<compile_context>
chip_gen: v7x
topology: tpu7x:2x2x1
jax: 0.10.0
libtpu: 0.0.40
codegen_flags: <defaults>
</compile_context>

<pallas_src>
import functools

import numpy as np
import jax
import jax.numpy as jnp
from jax.experimental import pallas as pl
from jax.experimental.pallas import tpu as pltpu


# ----------------------------------------------------------------------------
# Fused GEMM kernel:  out = out_act( BN( W @ in_act(cols) + bias ) )
#   a_ref     : (Cout, K)   weight matrix (bf16)
#   b_ref     : (K,    N)   im2col columns, N = B*Ho*Wo (bf16)
#   bias_ref  : (Cout, 1)   conv bias (f32)   [applied iff use_bias]
#   gamma_ref : (Cout, 1)   BN weight (f32)   [applied iff use_norm]
#   beta_ref  : (Cout, 1)   BN bias   (f32)   [applied iff use_norm]
#   o_ref     : (Cout, N)
# The whole GEMM is one full-extent block, so the per-row (= per-channel)
# batch-norm statistics over B*Ho*Wo live entirely in the epilogue.
# ----------------------------------------------------------------------------
def _gemm_kernel(a_ref, b_ref, bias_ref, gamma_ref, beta_ref, o_ref, *,
                 in_act, use_bias, use_norm, out_act, eps):
    b = b_ref[...]
    if in_act == "lrelu":            # nn.LeakyReLU(0.2) fused onto the cols
        b = jnp.where(b > 0, b, 0.2 * b)
    elif in_act == "relu":           # nn.ReLU fused onto the cols
        b = jnp.maximum(b, 0)
    r = jnp.dot(a_ref[...], b, preferred_element_type=jnp.float32)
    if use_bias:
        r = r + bias_ref[...]
    if use_norm:
        # nn.BatchNorm2d forward in training mode (fresh module default):
        # per-channel batch statistics with biased variance, then affine.
        # TODO(synk): running-stat buffer updates (a training side effect)
        #             are not modeled; they do not affect the forward output.
        mean = jnp.mean(r, axis=1, keepdims=True)
        xc = r - mean
        var = jnp.mean(xc * xc, axis=1, keepdims=True)
        r = xc * jax.lax.rsqrt(var + eps) * gamma_ref[...] + beta_ref[...]
    if out_act == "tanh":
        r = jnp.tanh(r)
    o_ref[...] = r.astype(o_ref.dtype)


def fused_gemm(a, b, bias=None, gamma=None, beta=None, *, in_act=None,
               out_act=None, out_dtype=jnp.bfloat16, eps=1e-5):
    """out = out_act(batchnorm(a @ in_act(b) + bias)).  a:(M,K) b:(K,N)."""
    M, K = a.shape
    K2, N = b.shape
    assert K == K2
    use_bias = bias is not None
    use_norm = gamma is not None

    bias2 = (bias if use_bias else jnp.zeros((M,), jnp.float32))
    gamma2 = (gamma if use_norm else jnp.ones((M,), jnp.float32))
    beta2 = (beta if use_norm else jnp.zeros((M,), jnp.float32))
    bias2 = bias2.astype(jnp.float32).reshape(M, 1)
    gamma2 = gamma2.astype(jnp.float32).reshape(M, 1)
    beta2 = beta2.astype(jnp.float32).reshape(M, 1)

    kernel = functools.partial(_gemm_kernel, in_act=in_act, use_bias=use_bias,
                               use_norm=use_norm, out_act=out_act, eps=eps)
    return pl.pallas_call(
        kernel,
        out_shape=jax.ShapeDtypeStruct((M, N), out_dtype),
        grid=(1,),
        in_specs=[
            pl.BlockSpec((M, K), lambda i: (0, 0)),
            pl.BlockSpec((K, N), lambda i: (0, 0)),
            pl.BlockSpec((M, 1), lambda i: (0, 0)),
            pl.BlockSpec((M, 1), lambda i: (0, 0)),
            pl.BlockSpec((M, 1), lambda i: (0, 0)),
        ],
        out_specs=pl.BlockSpec((M, N), lambda i: (0, 0)),
        compiler_params=pltpu.CompilerParams(
            dimension_semantics=("arbitrary",)),
    )(a.astype(jnp.bfloat16), b.astype(jnp.bfloat16), bias2, gamma2, beta2)


# ----------------------------------------------------------------------------
# Conv lowering glue (plain JAX data movement; hot math stays in fused_gemm)
# ----------------------------------------------------------------------------
def _im2col_cbhw(x, k, s, p):
    """x: (C, B, H, W) -> cols (C*k*k, B*Ho*Wo), K ordered (cin, kh, kw)."""
    C, B, H, W = x.shape
    if p > 0:
        x = jnp.pad(x, ((0, 0), (0, 0), (p, p), (p, p)))
    Ho = (H + 2 * p - k) // s + 1
    Wo = (W + 2 * p - k) // s + 1
    patches = []
    for kh in range(k):
        for kw in range(k):
            patches.append(x[:, :, kh:kh + (Ho - 1) * s + 1:s,
                               kw:kw + (Wo - 1) * s + 1:s])   # (C,B,Ho,Wo)
    cols = jnp.stack(patches, axis=1)                          # (C,k*k,B,Ho,Wo)
    return cols.reshape(C * k * k, B * Ho * Wo), Ho, Wo


def conv_down(x, w, *, in_act=None, gamma=None, beta=None,
              out_dtype=jnp.bfloat16):
    """Conv2d(k=4, s=2, p=1, bias=False) on CBHW x; w: (Cout, Cin, 4, 4).
    Optional fused pre-activation (applied to the conv input, since act(0)=0
    commutes with zero padding) and fused training-mode BatchNorm."""
    Cout, Cin, k, _ = w.shape
    _, B, _, _ = x.shape
    cols, Ho, Wo = _im2col_cbhw(x, k, 2, 1)
    wmat = w.reshape(Cout, Cin * k * k)
    y = fused_gemm(wmat, cols, gamma=gamma, beta=beta,
                   in_act=in_act, out_dtype=out_dtype)
    return y.reshape(Cout, B, Ho, Wo)


def conv_up(x, w_t, bias=None, *, in_act="relu", gamma=None, beta=None,
            out_act=None, out_dtype=jnp.bfloat16):
    """ConvTranspose2d(k=4, s=2, p=1) on CBHW x; w_t: (Cin, Cout, 4, 4)
    (PyTorch ConvTranspose layout).  Lowered as a stride-1 conv over the
    zero-dilated, edge-padded input with the flipped / channel-swapped kernel."""
    Cin, Cout, k, _ = w_t.shape
    _, B, _, _ = x.shape
    # interior (dilation) padding of 1, edge padding of k - 1 - p = 2
    xd = jax.lax.pad(x, jnp.array(0, x.dtype),
                     ((0, 0, 0), (0, 0, 0), (2, 2, 1), (2, 2, 1)))
    cols, Ho, Wo = _im2col_cbhw(xd, k, 1, 0)
    wconv = jnp.transpose(w_t, (1, 0, 2, 3))[:, :, ::-1, ::-1]
    wmat = wconv.reshape(Cout, Cin * k * k)
    y = fused_gemm(wmat, cols, bias=bias, gamma=gamma, beta=beta,
                   in_act=in_act, out_act=out_act, out_dtype=out_dtype)
    return y.reshape(Cout, B, Ho, Wo)


# ----------------------------------------------------------------------------
# UnetSkipConnectionBlock / UnetGenerator forward (CBHW internal layout)
# ----------------------------------------------------------------------------
def _run_block(blocks, idx, x):
    blk = blocks[idx]
    if "up_b" in blk:  # outermost: [downconv] + sub + [relu, upconv, tanh]
        h = conv_down(x, blk["down_w"])
        h = _run_block(blocks, idx + 1, h)
        return conv_up(h, blk["up_w"], bias=blk["up_b"], in_act="relu",
                       out_act="tanh", out_dtype=jnp.float32)
    if "dn_gamma" in blk:  # middle: [lrelu, conv, bn] + sub + [relu, convT, bn]
        h = conv_down(x, blk["down_w"], in_act="lrelu",
                      gamma=blk["dn_gamma"], beta=blk["dn_beta"])
        h = _run_block(blocks, idx + 1, h)
        h = conv_up(h, blk["up_w"], in_act="relu",
                    gamma=blk["up_gamma"], beta=blk["up_beta"])
        return jnp.concatenate([x, h], axis=0)  # cat([x, model(x)], dim=1)
    # innermost: [lrelu, conv] + [relu, convT, bn]
    h = conv_down(x, blk["down_w"], in_act="lrelu")
    h = conv_up(h, blk["up_w"], in_act="relu",
                gamma=blk["up_gamma"], beta=blk["up_beta"])
    return jnp.concatenate([x, h], axis=0)
    # TODO(synk): nn.Dropout(0.5) of the use_dropout=True middle path is not
    #             implemented (default use_dropout=False => no dropout).


def unet_generator_forward(blocks, x):
    """x: (B, input_nc, H, W) float32 -> (B, output_nc, H, W) float32."""
    xc = jnp.transpose(x, (1, 0, 2, 3)).astype(jnp.bfloat16)   # CBHW internal
    out = _run_block(blocks, 0, xc)                            # (Cout,B,H,W) f32
    return jnp.transpose(out, (1, 0, 2, 3))


# ----------------------------------------------------------------------------
# Deterministic parameter construction (mirrors UnetGenerator.__init__ with
# norm_layer=nn.BatchNorm2d => conv/convT bias=False except outermost upconv)
# ----------------------------------------------------------------------------
def init_unet_params(key, input_nc, output_nc, num_downs, ngf):
    k = 4

    def conv_w(key, cout, cin):
        bound = 1.0 / np.sqrt(cin * k * k)
        return jax.random.uniform(key, (cout, cin, k, k), jnp.float32,
                                  -bound, bound)

    def convT_w(key, cin, cout):
        bound = 1.0 / np.sqrt(cin * k * k)
        return jax.random.uniform(key, (cin, cout, k, k), jnp.float32,
                                  -bound, bound)

    def bn(c):  # default nn.BatchNorm2d init: weight=1, bias=0
        return jnp.ones((c,), jnp.float32), jnp.zeros((c,), jnp.float32)

    blocks = []
    # outermost block
    key, k1, k2, k3 = jax.random.split(key, 4)
    up_bound = 1.0 / np.sqrt(ngf * 2 * k * k)
    blocks.append({
        "down_w": conv_w(k1, ngf, input_nc),
        "up_w": convT_w(k2, ngf * 2, output_nc),
        "up_b": jax.random.uniform(k3, (output_nc,), jnp.float32,
                                   -up_bound, up_bound),
    })
    # the three fixed intermediate blocks (ngf -> 2ngf -> 4ngf -> 8ngf)
    mids = [(ngf, ngf * 2), (ngf * 2, ngf * 4), (ngf * 4, ngf * 8)]
    # plus (num_downs - 5) ngf*8 -> ngf*8 middle blocks
    mids += [(ngf * 8, ngf * 8)] * (num_downs - 5)
    for outer_nc, inner_nc in mids:
        key, k1, k2 = jax.random.split(key, 3)
        dg, db = bn(inner_nc)
        ug, ub = bn(outer_nc)
        blocks.append({
            "down_w": conv_w(k1, inner_nc, outer_nc),
            "dn_gamma": dg, "dn_beta": db,
            "up_w": convT_w(k2, inner_nc * 2, outer_nc),
            "up_gamma": ug, "up_beta": ub,
        })
    # innermost block (ngf*8 -> ngf*8, no down-norm, upconv without bias)
    key, k1, k2 = jax.random.split(key, 3)
    ug, ub = bn(ngf * 8)
    blocks.append({
        "down_w": conv_w(k1, ngf * 8, ngf * 8),
        "up_w": convT_w(k2, ngf * 8, ngf * 8),
        "up_gamma": ug, "up_beta": ub,
    })
    return blocks


# ----------------------------------------------------------------------------
if __name__ == "__main__":
    key = jax.random.PRNGKey(0)
    key, kp, kx = jax.random.split(key, 3)

    # Small but structurally complete config: num_downs=5 (spatial 32 -> 1 at
    # the bottleneck), ngf=8, 3 -> 3 channels, batch 2.
    input_nc, output_nc, num_downs, ngf = 3, 3, 5, 8
    B, H, W = 2, 32, 32

    blocks = init_unet_params(kp, input_nc, output_nc, num_downs, ngf)
    x = jax.random.normal(kx, (B, input_nc, H, W), jnp.float32)

    fwd = jax.jit(unet_generator_forward)
    y = fwd(blocks, x)
    jax.block_until_ready(y)
    assert y.shape == (B, output_nc, H, W), y.shape
    assert bool(jnp.all(jnp.isfinite(y)))
    print("KERNEL_OK")
</pallas_src>

<mosaic_0001>
module attributes {stable_mosaic.version = 11 : i64} {
  func.func @_gemm_kernel(%arg0: i32, %arg1: memref<8x48xbf16, #tpu.memory_space<vmem>>, %arg2: memref<48x512xbf16, #tpu.memory_space<vmem>>, %arg3: memref<8x1xf32, #tpu.memory_space<vmem>>, %arg4: memref<8x1xf32, #tpu.memory_space<vmem>>, %arg5: memref<8x1xf32, #tpu.memory_space<vmem>>, %arg6: memref<8x512xbf16, #tpu.memory_space<vmem>>) attributes {dimension_semantics = [#tpu.dimension_semantics<arbitrary>], iteration_bounds = array<i64: 1>, scalar_prefetch = 0 : i64, scratch_operands = 0 : i64, tpu.core_type = #tpu.core_type<tc>, window_params = [{pipeline_mode = #tpu.pipeline_mode<synchronous>, transform_indices = @transform_0, window_bounds = array<i64: 8, 48>}, {pipeline_mode = #tpu.pipeline_mode<synchronous>, transform_indices = @transform_1, window_bounds = array<i64: 48, 512>}, {pipeline_mode = #tpu.pipeline_mode<synchronous>, transform_indices = @transform_2, window_bounds = array<i64: 8, 1>}, {pipeline_mode = #tpu.pipeline_mode<synchronous>, transform_indices = @transform_3, window_bounds = array<i64: 8, 1>}, {pipeline_mode = #tpu.pipeline_mode<synchronous>, transform_indices = @transform_4, window_bounds = array<i64: 8, 1>}, {pipeline_mode = #tpu.pipeline_mode<synchronous>, transform_indices = @transform_5, window_bounds = array<i64: 8, 512>}]} {
    %c0 = arith.constant 0 : index
    %c0_0 = arith.constant 0 : index
    %0 = vector.load %arg2[%c0, %c0_0] : memref<48x512xbf16, #tpu.memory_space<vmem>>, vector<48x512xbf16>
    %c0_1 = arith.constant 0 : index
    %c0_2 = arith.constant 0 : index
    %1 = vector.load %arg1[%c0_1, %c0_2] : memref<8x48xbf16, #tpu.memory_space<vmem>>, vector<8x48xbf16>
    %cst = arith.constant dense<0.000000e+00> : vector<8x512xf32>
    %2 = tpu.matmul %1, %0, %cst {dimension_numbers = #tpu.dot_dimension_numbers<[1], [0], [0], [1], [0, 0, 1, 1], [], []>} : vector<8x48xbf16>, vector<48x512xbf16>, vector<8x512xf32> -> vector<8x512xf32>
    %3 = arith.truncf %2 : vector<8x512xf32> to vector<8x512xbf16>
    %c0_3 = arith.constant 0 : index
    %c0_4 = arith.constant 0 : index
    %4 = vector.load %arg6[%c0_3, %c0_4] : memref<8x512xbf16, #tpu.memory_space<vmem>>, vector<8x512xbf16>
    tpu.vector_store %arg6[%c0_3, %c0_4], %3 {strides = array<i32>} : memref<8x512xbf16, #tpu.memory_space<vmem>>, vector<8x512xbf16>,
    return
  }
  func.func @transform_0(%arg0: i32) -> (i32, i32) {
    %c0_i32 = arith.constant 0 : i32
    %c0_i32_0 = arith.constant 0 : i32
    %c0_i32_1 = arith.constant 0 : i32
    return %c0_i32, %c0_i32_0 : i32, i32
  }
  func.func @transform_1(%arg0: i32) -> (i32, i32) {
    %c0_i32 = arith.constant 0 : i32
    %c0_i32_0 = arith.constant 0 : i32
    %c0_i32_1 = arith.constant 0 : i32
    return %c0_i32, %c0_i32_0 : i32, i32
  }
  func.func @transform_2(%arg0: i32) -> (i32, i32) {
    %c0_i32 = arith.constant 0 : i32
    %c0_i32_0 = arith.constant 0 : i32
    %c0_i32_1 = arith.constant 0 : i32
    return %c0_i32, %c0_i32_0 : i32, i32
  }
  func.func @transform_3(%arg0: i32) -> (i32, i32) {
    %c0_i32 = arith.constant 0 : i32
    %c0_i32_0 = arith.constant 0 : i32
    %c0_i32_1 = arith.constant 0 : i32
    return %c0_i32, %c0_i32_0 : i32, i32
  }
  func.func @transform_4(%arg0: i32) -> (i32, i32) {
    %c0_i32 = arith.constant 0 : i32
    %c0_i32_0 = arith.constant 0 : i32
    %c0_i32_1 = arith.constant 0 : i32
    return %c0_i32, %c0_i32_0 : i32, i32
  }
  func.func @transform_5(%arg0: i32) -> (i32, i32) {
    %c0_i32 = arith.constant 0 : i32
    %c0_i32_0 = arith.constant 0 : i32
    %c0_i32_1 = arith.constant 0 : i32
    return %c0_i32, %c0_i32_0 : i32, i32
  }
}

module attributes {stable_mosaic.version = 11 : i64} {
  func.func @_gemm_kernel(%arg0: i32, %arg1: memref<16x128xbf16, #tpu.memory_space<vmem>>, %arg2: memref<128x128xbf16, #tpu.memory_space<vmem>>, %arg3: memref<16x1xf32, #tpu.memory_space<vmem>>, %arg4: memref<16x1xf32, #tpu.memory_space<vmem>>, %arg5: memref<16x1xf32, #tpu.memory_space<vmem>>, %arg6: memref<16x128xbf16, #tpu.memory_space<vmem>>) attributes {dimension_semantics = [#tpu.dimension_semantics<arbitrary>], iteration_bounds = array<i64: 1>, scalar_prefetch = 0 : i64, scratch_operands = 0 : i64, tpu.core_type = #tpu.core_type<tc>, window_params = [{pipeline_mode = #tpu.pipeline_mode<synchronous>, transform_indices = @transform_0, window_bounds = array<i64: 16, 128>}, {pipeline_mode = #tpu.pipeline_mode<synchronous>, transform_indices = @transform_1, window_bounds = array<i64: 128, 128>}, {pipeline_mode = #tpu.pipeline_mode<synchronous>, transform_indices = @transform_2, window_bounds = array<i64: 16, 1>}, {pipeline_mode = #tpu.pipeline_mode<synchronous>, transform_indices = @transform_3, window_bounds = array<i64: 16, 1>}, {pipeline_mode = #tpu.pipeline_mode<synchronous>, transform_indices = @transform_4, window_bounds = array<i64: 16, 1>}, {pipeline_mode = #tpu.pipeline_mode<synchronous>, transform_indices = @transform_5, window_bounds = array<i64: 16, 128>}]} {
    %c0 = arith.constant 0 : index
    %c0_0 = arith.constant 0 : index
    %0 = vector.load %arg2[%c0, %c0_0] : memref<128x128xbf16, #tpu.memory_space<vmem>>, vector<128x128xbf16>
    %cst = arith.constant 0.000000e+00 : bf16
    %1 = vector.broadcast %cst : bf16 to vector<128x128xbf16>
    %2 = arith.cmpf ogt, %0, %1 : vector<128x128xbf16>
    %cst_1 = arith.constant 2.001950e-01 : bf16
    %3 = vector.broadcast %cst_1 : bf16 to vector<128x128xbf16>
    %4 = arith.mulf %3, %0 : vector<128x128xbf16>
    %5 = arith.select %2, %0, %4 : vector<128x128xi1>, vector<128x128xbf16>
    %c0_2 = arith.constant 0 : index
    %c0_3 = arith.constant 0 : index
    %6 = vector.load %arg1[%c0_2, %c0_3] : memref<16x128xbf16, #tpu.memory_space<vmem>>, vector<16x128xbf16>
    %cst_4 = arith.constant dense<0.000000e+00> : vector<16x128xf32>
    %7 = tpu.matmul %6, %5, %cst_4 {dimension_numbers = #tpu.dot_dimension_numbers<[1], [0], [0], [1], [0, 0, 1, 1], [], []>} : vector<16x128xbf16>, vector<128x128xbf16>, vector<16x128xf32> -> vector<16x128xf32>
    %cst_5 = arith.constant dense<0.000000e+00> : vector<16xf32>
    %8 = vector.multi_reduction <add>, %7, %cst_5 [1] : vector<16x128xf32> to vector<16xf32>
    %9 = vector.shape_cast %8 : vector<16xf32> to vector<16x1xf32>
    %cst_6 = arith.constant 1.280000e+02 : f32
    %10 = vector.broadcast %cst_6 : f32 to vector<16x1xf32>
    %11 = arith.divf %9, %10 : vector<16x1xf32>
    %12 = vector.broadcast %11 : vector<16x1xf32> to vector<16x128xf32>
    %13 = arith.subf %7, %12 : vector<16x128xf32>
    %14 = arith.mulf %13, %13 : vector<16x128xf32>
    %cst_7 = arith.constant dense<0.000000e+00> : vector<16xf32>
    %15 = vector.multi_reduction <add>, %14, %cst_7 [1] : vector<16x128xf32> to vector<16xf32>
    %16 = vector.shape_cast %15 : vector<16xf32> to vector<16x1xf32>
    %cst_8 = arith.constant 1.280000e+02 : f32
    %17 = vector.broadcast %cst_8 : f32 to vector<16x1xf32>
    %18 = arith.divf %16, %17 : vector<16x1xf32>
    %cst_9 = arith.constant 9.99999974E-6 : f32
    %19 = vector.broadcast %cst_9 : f32 to vector<16x1xf32>
    %20 = arith.addf %18, %19 : vector<16x1xf32>
    %21 = math.rsqrt %20 : vector<16x1xf32>
    %22 = vector.broadcast %21 : vector<16x1xf32> to vector<16x128xf32>
    %23 = arith.mulf %13, %22 : vector<16x128xf32>
    %c0_10 = arith.constant 0 : index
    %c0_11 = arith.constant 0 : index
    %24 = vector.load %arg4[%c0_10, %c0_11] : memref<16x1xf32, #tpu.memory_space<vmem>>, vector<16x1xf32>
    %25 = vector.broadcast %24 : vector<16x1xf32> to vector<16x128xf32>
    %26 = arith.mulf %23, %25 : vector<16x128xf32>
    %c0_12 = arith.constant 0 : index
    %c0_13 = arith.constant 0 : index
    %27 = vector.load %arg5[%c0_12, %c0_13] : memref<16x1xf32, #tpu.memory_space<vmem>>, vector<16x1xf32>
    %28 = vector.broadcast %27 : vector<16x1xf32> to vector<16x128xf32>
    %29 = arith.addf %26, %28 : vector<16x128xf32>
    %30 = arith.truncf %29 : vector<16x128xf32> to vector<16x128xbf16>
    %c0_14 = arith.constant 0 : index
    %c0_15 = arith.constant 0 : index
    %31 = vector.load %arg6[%c0_14, %c0_15] : memref<16x128xbf16, #tpu.memory_space<vmem>>, vector<16x128xbf16>
    tpu.vector_store %arg6[%c0_14, %c0_15], %30 {strides = array<i32>} : memref<16x128xbf16, #tpu.memory_space<vmem>>, vector<16x128xbf16>,
    return
  }
  func.func @transform_0(%arg0: i32) -> (i32, i32) {
    %c0_i32 = arith.constant 0 : i32
    %c0_i32_0 = arith.constant 0 : i32
    %c0_i32_1 = arith.constant 0 : i32
    return %c0_i32, %c0_i32_0 : i32, i32
  }
  func.func @transform_1(%arg0: i32) -> (i32, i32) {
    %c0_i32 = arith.constant 0 : i32
    %c0_i32_0 = arith.constant 0 : i32
    %c0_i32_1 = arith.constant 0 : i32
    return %c0_i32, %c0_i32_0 : i32, i32
  }
  func.func @transform_2(%arg0: i32) -> (i32, i32) {
    %c0_i32 = arith.constant 0 : i32
    %c0_i32_0 = arith.constant 0 : i32
    %c0_i32_1 = arith.constant 0 : i32
    return %c0_i32, %c0_i32_0 : i32, i32
  }
  func.func @transform_3(%arg0: i32) -> (i32, i32) {
    %c0_i32 = arith.constant 0 : i32
    %c0_i32_0 = arith.constant 0 : i32
    %c0_i32_1 = arith.constant 0 : i32
    return %c0_i32, %c0_i32_0 : i32, i32
  }
  func.func @transform_4(%arg0: i32) -> (i32, i32) {
    %c0_i32 = arith.constant 0 : i32
    %c0_i32_0 = arith.constant 0 : i32
    %c0_i32_1 = arith.constant 0 : i32
    return %c0_i32, %c0_i32_0 : i32, i32
  }
  func.func @transform_5(%arg0: i32) -> (i32, i32) {
    %c0_i32 = arith.constant 0 : i32
    %c0_i32_0 = arith.constant 0 : i32
    %c0_i32_1 = arith.constant 0 : i32
    return %c0_i32, %c0_i32_0 : i32, i32
  }
}

module attributes {stable_mosaic.version = 11 : i64} {
  func.func @_gemm_kernel(%arg0: i32, %arg1: memref<32x256xbf16, #tpu.memory_space<vmem>>, %arg2: memref<256x32xbf16, #tpu.memory_space<vmem>>, %arg3: memref<32x1xf32, #tpu.memory_space<vmem>>, %arg4: memref<32x1xf32, #tpu.memory_space<vmem>>, %arg5: memref<32x1xf32, #tpu.memory_space<vmem>>, %arg6: memref<32x32xbf16, #tpu.memory_space<vmem>>) attributes {dimension_semantics = [#tpu.dimension_semantics<arbitrary>], iteration_bounds = array<i64: 1>, scalar_prefetch = 0 : i64, scratch_operands = 0 : i64, tpu.core_type = #tpu.core_type<tc>, window_params = [{pipeline_mode = #tpu.pipeline_mode<synchronous>, transform_indices = @transform_0, window_bounds = array<i64: 32, 256>}, {pipeline_mode = #tpu.pipeline_mode<synchronous>, transform_indices = @transform_1, window_bounds = array<i64: 256, 32>}, {pipeline_mode = #tpu.pipeline_mode<synchronous>, transform_indices = @transform_2, window_bounds = array<i64: 32, 1>}, {pipeline_mode = #tpu.pipeline_mode<synchronous>, transform_indices = @transform_3, window_bounds = array<i64: 32, 1>}, {pipeline_mode = #tpu.pipeline_mode<synchronous>, transform_indices = @transform_4, window_bounds = array<i64: 32, 1>}, {pipeline_mode = #tpu.pipeline_mode<synchronous>, transform_indices = @transform_5, window_bounds = array<i64: 32, 32>}]} {
    %c0 = arith.constant 0 : index
    %c0_0 = arith.constant 0 : index
    %0 = vector.load %arg2[%c0, %c0_0] : memref<256x32xbf16, #tpu.memory_space<vmem>>, vector<256x32xbf16>
    %cst = arith.constant 0.000000e+00 : bf16
    %1 = vector.broadcast %cst : bf16 to vector<256x32xbf16>
    %2 = arith.cmpf ogt, %0, %1 : vector<256x32xbf16>
    %cst_1 = arith.constant 2.001950e-01 : bf16
    %3 = vector.broadcast %cst_1 : bf16 to vector<256x32xbf16>
    %4 = arith.mulf %3, %0 : vector<256x32xbf16>
    %5 = arith.select %2, %0, %4 : vector<256x32xi1>, vector<256x32xbf16>
    %c0_2 = arith.constant 0 : index
    %c0_3 = arith.constant 0 : index
    %6 = vector.load %arg1[%c0_2, %c0_3] : memref<32x256xbf16, #tpu.memory_space<vmem>>, vector<32x256xbf16>
    %cst_4 = arith.constant dense<0.000000e+00> : vector<32x32xf32>
    %7 = tpu.matmul %6, %5, %cst_4 {dimension_numbers = #tpu.dot_dimension_numbers<[1], [0], [0], [1], [0, 0, 1, 1], [], []>} : vector<32x256xbf16>, vector<256x32xbf16>, vector<32x32xf32> -> vector<32x32xf32>
    %cst_5 = arith.constant dense<0.000000e+00> : vector<32xf32>
    %8 = vector.multi_reduction <add>, %7, %cst_5 [1] : vector<32x32xf32> to vector<32xf32>
    %9 = vector.shape_cast %8 : vector<32xf32> to vector<32x1xf32>
    %cst_6 = arith.constant 3.200000e+01 : f32
    %10 = vector.broadcast %cst_6 : f32 to vector<32x1xf32>
    %11 = arith.divf %9, %10 : vector<32x1xf32>
    %12 = vector.broadcast %11 : vector<32x1xf32> to vector<32x32xf32>
    %13 = arith.subf %7, %12 : vector<32x32xf32>
    %14 = arith.mulf %13, %13 : vector<32x32xf32>
    %cst_7 = arith.constant dense<0.000000e+00> : vector<32xf32>
    %15 = vector.multi_reduction <add>, %14, %cst_7 [1] : vector<32x32xf32> to vector<32xf32>
    %16 = vector.shape_cast %15 : vector<32xf32> to vector<32x1xf32>
    %cst_8 = arith.constant 3.200000e+01 : f32
    %17 = vector.broadcast %cst_8 : f32 to vector<32x1xf32>
    %18 = arith.divf %16, %17 : vector<32x1xf32>
    %cst_9 = arith.constant 9.99999974E-6 : f32
    %19 = vector.broadcast %cst_9 : f32 to vector<32x1xf32>
    %20 = arith.addf %18, %19 : vector<32x1xf32>
    %21 = math.rsqrt %20 : vector<32x1xf32>
    %22 = vector.broadcast %21 : vector<32x1xf32> to vector<32x32xf32>
    %23 = arith.mulf %13, %22 : vector<32x32xf32>
    %c0_10 = arith.constant 0 : index
    %c0_11 = arith.constant 0 : index
    %24 = vector.load %arg4[%c0_10, %c0_11] : memref<32x1xf32, #tpu.memory_space<vmem>>, vector<32x1xf32>
    %25 = vector.broadcast %24 : vector<32x1xf32> to vector<32x32xf32>
    %26 = arith.mulf %23, %25 : vector<32x32xf32>
    %c0_12 = arith.constant 0 : index
    %c0_13 = arith.constant 0 : index
    %27 = vector.load %arg5[%c0_12, %c0_13] : memref<32x1xf32, #tpu.memory_space<vmem>>, vector<32x1xf32>
    %28 = vector.broadcast %27 : vector<32x1xf32> to vector<32x32xf32>
    %29 = arith.addf %26, %28 : vector<32x32xf32>
    %30 = arith.truncf %29 : vector<32x32xf32> to vector<32x32xbf16>
    %c0_14 = arith.constant 0 : index
    %c0_15 = arith.constant 0 : index
    %31 = vector.load %arg6[%c0_14, %c0_15] : memref<32x32xbf16, #tpu.memory_space<vmem>>, vector<32x32xbf16>
    tpu.vector_store %arg6[%c0_14, %c0_15], %30 {strides = array<i32>} : memref<32x32xbf16, #tpu.memory_space<vmem>>, vector<32x32xbf16>,
    return
  }
  func.func @transform_0(%arg0: i32) -> (i32, i32) {
    %c0_i32 = arith.constant 0 : i32
    %c0_i32_0 = arith.constant 0 : i32
    %c0_i32_1 = arith.constant 0 : i32
    return %c0_i32, %c0_i32_0 : i32, i32
  }
  func.func @transform_1(%arg0: i32) -> (i32, i32) {
    %c0_i32 = arith.constant 0 : i32
    %c0_i32_0 = arith.constant 0 : i32
    %c0_i32_1 = arith.constant 0 : i32
    return %c0_i32, %c0_i32_0 : i32, i32
  }
  func.func @transform_2(%arg0: i32) -> (i32, i32) {
    %c0_i32 = arith.constant 0 : i32
    %c0_i32_0 = arith.constant 0 : i32
    %c0_i32_1 = arith.constant 0 : i32
    return %c0_i32, %c0_i32_0 : i32, i32
  }
  func.func @transform_3(%arg0: i32) -> (i32, i32) {
    %c0_i32 = arith.constant 0 : i32
    %c0_i32_0 = arith.constant 0 : i32
    %c0_i32_1 = arith.constant 0 : i32
    return %c0_i32, %c0_i32_0 : i32, i32
  }
  func.func @transform_4(%arg0: i32) -> (i32, i32) {
    %c0_i32 = arith.constant 0 : i32
    %c0_i32_0 = arith.constant 0 : i32
    %c0_i32_1 = arith.constant 0 : i32
    return %c0_i32, %c0_i32_0 : i32, i32
  }
  func.func @transform_5(%arg0: i32) -> (i32, i32) {
    %c0_i32 = arith.constant 0 : i32
    %c0_i32_0 = arith.constant 0 : i32
    %c0_i32_1 = arith.constant 0 : i32
    return %c0_i32, %c0_i32_0 : i32, i32
  }
}

module attributes {stable_mosaic.version = 11 : i64} {
  func.func @_gemm_kernel(%arg0: i32, %arg1: memref<64x512xbf16, #tpu.memory_space<vmem>>, %arg2: memref<512x8xbf16, #tpu.memory_space<vmem>>, %arg3: memref<64x1xf32, #tpu.memory_space<vmem>>, %arg4: memref<64x1xf32, #tpu.memory_space<vmem>>, %arg5: memref<64x1xf32, #tpu.memory_space<vmem>>, %arg6: memref<64x8xbf16, #tpu.memory_space<vmem>>) attributes {dimension_semantics = [#tpu.dimension_semantics<arbitrary>], iteration_bounds = array<i64: 1>, scalar_prefetch = 0 : i64, scratch_operands = 0 : i64, tpu.core_type = #tpu.core_type<tc>, window_params = [{pipeline_mode = #tpu.pipeline_mode<synchronous>, transform_indices = @transform_0, window_bounds = array<i64: 64, 512>}, {pipeline_mode = #tpu.pipeline_mode<synchronous>, transform_indices = @transform_1, window_bounds = array<i64: 512, 8>}, {pipeline_mode = #tpu.pipeline_mode<synchronous>, transform_indices = @transform_2, window_bounds = array<i64: 64, 1>}, {pipeline_mode = #tpu.pipeline_mode<synchronous>, transform_indices = @transform_3, window_bounds = array<i64: 64, 1>}, {pipeline_mode = #tpu.pipeline_mode<synchronous>, transform_indices = @transform_4, window_bounds = array<i64: 64, 1>}, {pipeline_mode = #tpu.pipeline_mode<synchronous>, transform_indices = @transform_5, window_bounds = array<i64: 64, 8>}]} {
    %c0 = arith.constant 0 : index
    %c0_0 = arith.constant 0 : index
    %0 = vector.load %arg2[%c0, %c0_0] : memref<512x8xbf16, #tpu.memory_space<vmem>>, vector<512x8xbf16>
    %cst = arith.constant 0.000000e+00 : bf16
    %1 = vector.broadcast %cst : bf16 to vector<512x8xbf16>
    %2 = arith.cmpf ogt, %0, %1 : vector<512x8xbf16>
    %cst_1 = arith.constant 2.001950e-01 : bf16
    %3 = vector.broadcast %cst_1 : bf16 to vector<512x8xbf16>
    %4 = arith.mulf %3, %0 : vector<512x8xbf16>
    %5 = arith.select %2, %0, %4 : vector<512x8xi1>, vector<512x8xbf16>
    %c0_2 = arith.constant 0 : index
    %c0_3 = arith.constant 0 : index
    %6 = vector.load %arg1[%c0_2, %c0_3] : memref<64x512xbf16, #tpu.memory_space<vmem>>, vector<64x512xbf16>
    %cst_4 = arith.constant dense<0.000000e+00> : vector<64x8xf32>
    %7 = tpu.matmul %6, %5, %cst_4 {dimension_numbers = #tpu.dot_dimension_numbers<[1], [0], [0], [1], [0, 0, 1, 1], [], []>} : vector<64x512xbf16>, vector<512x8xbf16>, vector<64x8xf32> -> vector<64x8xf32>
    %cst_5 = arith.constant dense<0.000000e+00> : vector<64xf32>
    %8 = vector.multi_reduction <add>, %7, %cst_5 [1] : vector<64x8xf32> to vector<64xf32>
    %9 = vector.shape_cast %8 : vector<64xf32> to vector<64x1xf32>
    %cst_6 = arith.constant 8.000000e+00 : f32
    %10 = vector.broadcast %cst_6 : f32 to vector<64x1xf32>
    %11 = arith.divf %9, %10 : vector<64x1xf32>
    %12 = vector.broadcast %11 : vector<64x1xf32> to vector<64x8xf32>
    %13 = arith.subf %7, %12 : vector<64x8xf32>
    %14 = arith.mulf %13, %13 : vector<64x8xf32>
    %cst_7 = arith.constant dense<0.000000e+00> : vector<64xf32>
    %15 = vector.multi_reduction <add>, %14, %cst_7 [1] : vector<64x8xf32> to vector<64xf32>
    %16 = vector.shape_cast %15 : vector<64xf32> to vector<64x1xf32>
    %cst_8 = arith.constant 8.000000e+00 : f32
    %17 = vector.broadcast %cst_8 : f32 to vector<64x1xf32>
    %18 = arith.divf %16, %17 : vector<64x1xf32>
    %cst_9 = arith.constant 9.99999974E-6 : f32
    %19 = vector.broadcast %cst_9 : f32 to vector<64x1xf32>
    %20 = arith.addf %18, %19 : vector<64x1xf32>
    %21 = math.rsqrt %20 : vector<64x1xf32>
    %22 = vector.broadcast %21 : vector<64x1xf32> to vector<64x8xf32>
    %23 = arith.mulf %13, %22 : vector<64x8xf32>
    %c0_10 = arith.constant 0 : index
    %c0_11 = arith.constant 0 : index
    %24 = vector.load %arg4[%c0_10, %c0_11] : memref<64x1xf32, #tpu.memory_space<vmem>>, vector<64x1xf32>
    %25 = vector.broadcast %24 : vector<64x1xf32> to vector<64x8xf32>
    %26 = arith.mulf %23, %25 : vector<64x8xf32>
    %c0_12 = arith.constant 0 : index
    %c0_13 = arith.constant 0 : index
    %27 = vector.load %arg5[%c0_12, %c0_13] : memref<64x1xf32, #tpu.memory_space<vmem>>, vector<64x1xf32>
    %28 = vector.broadcast %27 : vector<64x1xf32> to vector<64x8xf32>
    %29 = arith.addf %26, %28 : vector<64x8xf32>
    %30 = arith.truncf %29 : vector<64x8xf32> to vector<64x8xbf16>
    %c0_14 = arith.constant 0 : index
    %c0_15 = arith.constant 0 : index
    %31 = vector.load %arg6[%c0_14, %c0_15] : memref<64x8xbf16, #tpu.memory_space<vmem>>, vector<64x8xbf16>
    tpu.vector_store %arg6[%c0_14, %c0_15], %30 {strides = array<i32>} : memref<64x8xbf16, #tpu.memory_space<vmem>>, vector<64x8xbf16>,
    return
  }
  func.func @transform_0(%arg0: i32) -> (i32, i32) {
    %c0_i32 = arith.constant 0 : i32
    %c0_i32_0 = arith.constant 0 : i32
    %c0_i32_1 = arith.constant 0 : i32
    return %c0_i32, %c0_i32_0 : i32, i32
  }
  func.func @transform_1(%arg0: i32) -> (i32, i32) {
    %c0_i32 = arith.constant 0 : i32
    %c0_i32_0 = arith.constant 0 : i32
    %c0_i32_1 = arith.constant 0 : i32
    return %c0_i32, %c0_i32_0 : i32, i32
  }
  func.func @transform_2(%arg0: i32) -> (i32, i32) {
    %c0_i32 = arith.constant 0 : i32
    %c0_i32_0 = arith.constant 0 : i32
    %c0_i32_1 = arith.constant 0 : i32
    return %c0_i32, %c0_i32_0 : i32, i32
  }
  func.func @transform_3(%arg0: i32) -> (i32, i32) {
    %c0_i32 = arith.constant 0 : i32
    %c0_i32_0 = arith.constant 0 : i32
    %c0_i32_1 = arith.constant 0 : i32
    return %c0_i32, %c0_i32_0 : i32, i32
  }
  func.func @transform_4(%arg0: i32) -> (i32, i32) {
    %c0_i32 = arith.constant 0 : i32
    %c0_i32_0 = arith.constant 0 : i32
    %c0_i32_1 = arith.constant 0 : i32
    return %c0_i32, %c0_i32_0 : i32, i32
  }
  func.func @transform_5(%arg0: i32) -> (i32, i32) {
    %c0_i32 = arith.constant 0 : i32
    %c0_i32_0 = arith.constant 0 : i32
    %c0_i32_1 = arith.constant 0 : i32
    return %c0_i32, %c0_i32_0 : i32, i32
  }
}

module attributes {stable_mosaic.version = 11 : i64} {
  func.func @_gemm_kernel(%arg0: i32, %arg1: memref<64x1024xbf16, #tpu.memory_space<vmem>>, %arg2: memref<1024x2xbf16, #tpu.memory_space<vmem>>, %arg3: memref<64x1xf32, #tpu.memory_space<vmem>>, %arg4: memref<64x1xf32, #tpu.memory_space<vmem>>, %arg5: memref<64x1xf32, #tpu.memory_space<vmem>>, %arg6: memref<64x2xbf16, #tpu.memory_space<vmem>>) attributes {dimension_semantics = [#tpu.dimension_semantics<arbitrary>], iteration_bounds = array<i64: 1>, scalar_prefetch = 0 : i64, scratch_operands = 0 : i64, tpu.core_type = #tpu.core_type<tc>, window_params = [{pipeline_mode = #tpu.pipeline_mode<synchronous>, transform_indices = @transform_0, window_bounds = array<i64: 64, 1024>}, {pipeline_mode = #tpu.pipeline_mode<synchronous>, transform_indices = @transform_1, window_bounds = array<i64: 1024, 2>}, {pipeline_mode = #tpu.pipeline_mode<synchronous>, transform_indices = @transform_2, window_bounds = array<i64: 64, 1>}, {pipeline_mode = #tpu.pipeline_mode<synchronous>, transform_indices = @transform_3, window_bounds = array<i64: 64, 1>}, {pipeline_mode = #tpu.pipeline_mode<synchronous>, transform_indices = @transform_4, window_bounds = array<i64: 64, 1>}, {pipeline_mode = #tpu.pipeline_mode<synchronous>, transform_indices = @transform_5, window_bounds = array<i64: 64, 2>}]} {
    %c0 = arith.constant 0 : index
    %c0_0 = arith.constant 0 : index
    %0 = vector.load %arg2[%c0, %c0_0] : memref<1024x2xbf16, #tpu.memory_space<vmem>>, vector<1024x2xbf16>
    %cst = arith.constant 0.000000e+00 : bf16
    %1 = vector.broadcast %cst : bf16 to vector<1024x2xbf16>
    %2 = arith.cmpf ogt, %0, %1 : vector<1024x2xbf16>
    %cst_1 = arith.constant 2.001950e-01 : bf16
    %3 = vector.broadcast %cst_1 : bf16 to vector<1024x2xbf16>
    %4 = arith.mulf %3, %0 : vector<1024x2xbf16>
    %5 = arith.select %2, %0, %4 : vector<1024x2xi1>, vector<1024x2xbf16>
    %c0_2 = arith.constant 0 : index
    %c0_3 = arith.constant 0 : index
    %6 = vector.load %arg1[%c0_2, %c0_3] : memref<64x1024xbf16, #tpu.memory_space<vmem>>, vector<64x1024xbf16>
    %cst_4 = arith.constant dense<0.000000e+00> : vector<64x2xf32>
    %7 = tpu.matmul %6, %5, %cst_4 {dimension_numbers = #tpu.dot_dimension_numbers<[1], [0], [0], [1], [0, 0, 1, 1], [], []>} : vector<64x1024xbf16>, vector<1024x2xbf16>, vector<64x2xf32> -> vector<64x2xf32>
    %8 = arith.truncf %7 : vector<64x2xf32> to vector<64x2xbf16>
    %c0_5 = arith.constant 0 : index
    %c0_6 = arith.constant 0 : index
    %9 = vector.load %arg6[%c0_5, %c0_6] : memref<64x2xbf16, #tpu.memory_space<vmem>>, vector<64x2xbf16>
    tpu.vector_store %arg6[%c0_5, %c0_6], %8 {strides = array<i32>} : memref<64x2xbf16, #tpu.memory_space<vmem>>, vector<64x2xbf16>,
    return
  }
  func.func @transform_0(%arg0: i32) -> (i32, i32) {
    %c0_i32 = arith.constant 0 : i32
    %c0_i32_0 = arith.constant 0 : i32
    %c0_i32_1 = arith.constant 0 : i32
    return %c0_i32, %c0_i32_0 : i32, i32
  }
  func.func @transform_1(%arg0: i32) -> (i32, i32) {
    %c0_i32 = arith.constant 0 : i32
    %c0_i32_0 = arith.constant 0 : i32
    %c0_i32_1 = arith.constant 0 : i32
    return %c0_i32, %c0_i32_0 : i32, i32
  }
  func.func @transform_2(%arg0: i32) -> (i32, i32) {
    %c0_i32 = arith.constant 0 : i32
    %c0_i32_0 = arith.constant 0 : i32
    %c0_i32_1 = arith.constant 0 : i32
    return %c0_i32, %c0_i32_0 : i32, i32
  }
  func.func @transform_3(%arg0: i32) -> (i32, i32) {
    %c0_i32 = arith.constant 0 : i32
    %c0_i32_0 = arith.constant 0 : i32
    %c0_i32_1 = arith.constant 0 : i32
    return %c0_i32, %c0_i32_0 : i32, i32
  }
  func.func @transform_4(%arg0: i32) -> (i32, i32) {
    %c0_i32 = arith.constant 0 : i32
    %c0_i32_0 = arith.constant 0 : i32
    %c0_i32_1 = arith.constant 0 : i32
    return %c0_i32, %c0_i32_0 : i32, i32
  }
  func.func @transform_5(%arg0: i32) -> (i32, i32) {
    %c0_i32 = arith.constant 0 : i32
    %c0_i32_0 = arith.constant 0 : i32
    %c0_i32_1 = arith.constant 0 : i32
    return %c0_i32, %c0_i32_0 : i32, i32
  }
}

module attributes {stable_mosaic.version = 11 : i64} {
  func.func @_gemm_kernel(%arg0: i32, %arg1: memref<64x1024xbf16, #tpu.memory_space<vmem>>, %arg2: memref<1024x8xbf16, #tpu.memory_space<vmem>>, %arg3: memref<64x1xf32, #tpu.memory_space<vmem>>, %arg4: memref<64x1xf32, #tpu.memory_space<vmem>>, %arg5: memref<64x1xf32, #tpu.memory_space<vmem>>, %arg6: memref<64x8xbf16, #tpu.memory_space<vmem>>) attributes {dimension_semantics = [#tpu.dimension_semantics<arbitrary>], iteration_bounds = array<i64: 1>, scalar_prefetch = 0 : i64, scratch_operands = 0 : i64, tpu.core_type = #tpu.core_type<tc>, window_params = [{pipeline_mode = #tpu.pipeline_mode<synchronous>, transform_indices = @transform_0, window_bounds = array<i64: 64, 1024>}, {pipeline_mode = #tpu.pipeline_mode<synchronous>, transform_indices = @transform_1, window_bounds = array<i64: 1024, 8>}, {pipeline_mode = #tpu.pipeline_mode<synchronous>, transform_indices = @transform_2, window_bounds = array<i64: 64, 1>}, {pipeline_mode = #tpu.pipeline_mode<synchronous>, transform_indices = @transform_3, window_bounds = array<i64: 64, 1>}, {pipeline_mode = #tpu.pipeline_mode<synchronous>, transform_indices = @transform_4, window_bounds = array<i64: 64, 1>}, {pipeline_mode = #tpu.pipeline_mode<synchronous>, transform_indices = @transform_5, window_bounds = array<i64: 64, 8>}]} {
    %c0 = arith.constant 0 : index
    %c0_0 = arith.constant 0 : index
    %0 = vector.load %arg2[%c0, %c0_0] : memref<1024x8xbf16, #tpu.memory_space<vmem>>, vector<1024x8xbf16>
    %cst = arith.constant 0.000000e+00 : bf16
    %1 = vector.broadcast %cst : bf16 to vector<1024x8xbf16>
    %2 = arith.maximumf %0, %1 : vector<1024x8xbf16>
    %c0_1 = arith.constant 0 : index
    %c0_2 = arith.constant 0 : index
    %3 = vector.load %arg1[%c0_1, %c0_2] : memref<64x1024xbf16, #tpu.memory_space<vmem>>, vector<64x1024xbf16>
    %cst_3 = arith.constant dense<0.000000e+00> : vector<64x8xf32>
    %4 = tpu.matmul %3, %2, %cst_3 {dimension_numbers = #tpu.dot_dimension_numbers<[1], [0], [0], [1], [0, 0, 1, 1], [], []>} : vector<64x1024xbf16>, vector<1024x8xbf16>, vector<64x8xf32> -> vector<64x8xf32>
    %cst_4 = arith.constant dense<0.000000e+00> : vector<64xf32>
    %5 = vector.multi_reduction <add>, %4, %cst_4 [1] : vector<64x8xf32> to vector<64xf32>
    %6 = vector.shape_cast %5 : vector<64xf32> to vector<64x1xf32>
    %cst_5 = arith.constant 8.000000e+00 : f32
    %7 = vector.broadcast %cst_5 : f32 to vector<64x1xf32>
    %8 = arith.divf %6, %7 : vector<64x1xf32>
    %9 = vector.broadcast %8 : vector<64x1xf32> to vector<64x8xf32>
    %10 = arith.subf %4, %9 : vector<64x8xf32>
    %11 = arith.mulf %10, %10 : vector<64x8xf32>
    %cst_6 = arith.constant dense<0.000000e+00> : vector<64xf32>
    %12 = vector.multi_reduction <add>, %11, %cst_6 [1] : vector<64x8xf32> to vector<64xf32>
    %13 = vector.shape_cast %12 : vector<64xf32> to vector<64x1xf32>
    %cst_7 = arith.constant 8.000000e+00 : f32
    %14 = vector.broadcast %cst_7 : f32 to vector<64x1xf32>
    %15 = arith.divf %13, %14 : vector<64x1xf32>
    %cst_8 = arith.constant 9.99999974E-6 : f32
    %16 = vector.broadcast %cst_8 : f32 to vector<64x1xf32>
    %17 = arith.addf %15, %16 : vector<64x1xf32>
    %18 = math.rsqrt %17 : vector<64x1xf32>
    %19 = vector.broadcast %18 : vector<64x1xf32> to vector<64x8xf32>
    %20 = arith.mulf %10, %19 : vector<64x8xf32>
    %c0_9 = arith.constant 0 : index
    %c0_10 = arith.constant 0 : index
    %21 = vector.load %arg4[%c0_9, %c0_10] : memref<64x1xf32, #tpu.memory_space<vmem>>, vector<64x1xf32>
    %22 = vector.broadcast %21 : vector<64x1xf32> to vector<64x8xf32>
    %23 = arith.mulf %20, %22 : vector<64x8xf32>
    %c0_11 = arith.constant 0 : index
    %c0_12 = arith.constant 0 : index
    %24 = vector.load %arg5[%c0_11, %c0_12] : memref<64x1xf32, #tpu.memory_space<vmem>>, vector<64x1xf32>
    %25 = vector.broadcast %24 : vector<64x1xf32> to vector<64x8xf32>
    %26 = arith.addf %23, %25 : vector<64x8xf32>
    %27 = arith.truncf %26 : vector<64x8xf32> to vector<64x8xbf16>
    %c0_13 = arith.constant 0 : index
    %c0_14 = arith.constant 0 : index
    %28 = vector.load %arg6[%c0_13, %c0_14] : memref<64x8xbf16, #tpu.memory_space<vmem>>, vector<64x8xbf16>
    tpu.vector_store %arg6[%c0_13, %c0_14], %27 {strides = array<i32>} : memref<64x8xbf16, #tpu.memory_space<vmem>>, vector<64x8xbf16>,
    return
  }
  func.func @transform_0(%arg0: i32) -> (i32, i32) {
    %c0_i32 = arith.constant 0 : i32
    %c0_i32_0 = arith.constant 0 : i32
    %c0_i32_1 = arith.constant 0 : i32
    return %c0_i32, %c0_i32_0 : i32, i32
  }
  func.func @transform_1(%arg0: i32) -> (i32, i32) {
    %c0_i32 = arith.constant 0 : i32
    %c0_i32_0 = arith.constant 0 : i32
    %c0_i32_1 = arith.constant 0 : i32
    return %c0_i32, %c0_i32_0 : i32, i32
  }
  func.func @transform_2(%arg0: i32) -> (i32, i32) {
    %c0_i32 = arith.constant 0 : i32
    %c0_i32_0 = arith.constant 0 : i32
    %c0_i32_1 = arith.constant 0 : i32
    return %c0_i32, %c0_i32_0 : i32, i32
  }
  func.func @transform_3(%arg0: i32) -> (i32, i32) {
    %c0_i32 = arith.constant 0 : i32
    %c0_i32_0 = arith.constant 0 : i32
    %c0_i32_1 = arith.constant 0 : i32
    return %c0_i32, %c0_i32_0 : i32, i32
  }
  func.func @transform_4(%arg0: i32) -> (i32, i32) {
    %c0_i32 = arith.constant 0 : i32
    %c0_i32_0 = arith.constant 0 : i32
    %c0_i32_1 = arith.constant 0 : i32
    return %c0_i32, %c0_i32_0 : i32, i32
  }
  func.func @transform_5(%arg0: i32) -> (i32, i32) {
    %c0_i32 = arith.constant 0 : i32
    %c0_i32_0 = arith.constant 0 : i32
    %c0_i32_1 = arith.constant 0 : i32
    return %c0_i32, %c0_i32_0 : i32, i32
  }
}

module attributes {stable_mosaic.version = 11 : i64} {
  func.func @_gemm_kernel(%arg0: i32, %arg1: memref<32x2048xbf16, #tpu.memory_space<vmem>>, %arg2: memref<2048x32xbf16, #tpu.memory_space<vmem>>, %arg3: memref<32x1xf32, #tpu.memory_space<vmem>>, %arg4: memref<32x1xf32, #tpu.memory_space<vmem>>, %arg5: memref<32x1xf32, #tpu.memory_space<vmem>>, %arg6: memref<32x32xbf16, #tpu.memory_space<vmem>>) attributes {dimension_semantics = [#tpu.dimension_semantics<arbitrary>], iteration_bounds = array<i64: 1>, scalar_prefetch = 0 : i64, scratch_operands = 0 : i64, tpu.core_type = #tpu.core_type<tc>, window_params = [{pipeline_mode = #tpu.pipeline_mode<synchronous>, transform_indices = @transform_0, window_bounds = array<i64: 32, 2048>}, {pipeline_mode = #tpu.pipeline_mode<synchronous>, transform_indices = @transform_1, window_bounds = array<i64: 2048, 32>}, {pipeline_mode = #tpu.pipeline_mode<synchronous>, transform_indices = @transform_2, window_bounds = array<i64: 32, 1>}, {pipeline_mode = #tpu.pipeline_mode<synchronous>, transform_indices = @transform_3, window_bounds = array<i64: 32, 1>}, {pipeline_mode = #tpu.pipeline_mode<synchronous>, transform_indices = @transform_4, window_bounds = array<i64: 32, 1>}, {pipeline_mode = #tpu.pipeline_mode<synchronous>, transform_indices = @transform_5, window_bounds = array<i64: 32, 32>}]} {
    %c0 = arith.constant 0 : index
    %c0_0 = arith.constant 0 : index
    %0 = vector.load %arg2[%c0, %c0_0] : memref<2048x32xbf16, #tpu.memory_space<vmem>>, vector<2048x32xbf16>
    %cst = arith.constant 0.000000e+00 : bf16
    %1 = vector.broadcast %cst : bf16 to vector<2048x32xbf16>
    %2 = arith.maximumf %0, %1 : vector<2048x32xbf16>
    %c0_1 = arith.constant 0 : index
    %c0_2 = arith.constant 0 : index
    %3 = vector.load %arg1[%c0_1, %c0_2] : memref<32x2048xbf16, #tpu.memory_space<vmem>>, vector<32x2048xbf16>
    %cst_3 = arith.constant dense<0.000000e+00> : vector<32x32xf32>
    %4 = tpu.matmul %3, %2, %cst_3 {dimension_numbers = #tpu.dot_dimension_numbers<[1], [0], [0], [1], [0, 0, 1, 1], [], []>} : vector<32x2048xbf16>, vector<2048x32xbf16>, vector<32x32xf32> -> vector<32x32xf32>
    %cst_4 = arith.constant dense<0.000000e+00> : vector<32xf32>
    %5 = vector.multi_reduction <add>, %4, %cst_4 [1] : vector<32x32xf32> to vector<32xf32>
    %6 = vector.shape_cast %5 : vector<32xf32> to vector<32x1xf32>
    %cst_5 = arith.constant 3.200000e+01 : f32
    %7 = vector.broadcast %cst_5 : f32 to vector<32x1xf32>
    %8 = arith.divf %6, %7 : vector<32x1xf32>
    %9 = vector.broadcast %8 : vector<32x1xf32> to vector<32x32xf32>
    %10 = arith.subf %4, %9 : vector<32x32xf32>
    %11 = arith.mulf %10, %10 : vector<32x32xf32>
    %cst_6 = arith.constant dense<0.000000e+00> : vector<32xf32>
    %12 = vector.multi_reduction <add>, %11, %cst_6 [1] : vector<32x32xf32> to vector<32xf32>
    %13 = vector.shape_cast %12 : vector<32xf32> to vector<32x1xf32>
    %cst_7 = arith.constant 3.200000e+01 : f32
    %14 = vector.broadcast %cst_7 : f32 to vector<32x1xf32>
    %15 = arith.divf %13, %14 : vector<32x1xf32>
    %cst_8 = arith.constant 9.99999974E-6 : f32
    %16 = vector.broadcast %cst_8 : f32 to vector<32x1xf32>
    %17 = arith.addf %15, %16 : vector<32x1xf32>
    %18 = math.rsqrt %17 : vector<32x1xf32>
    %19 = vector.broadcast %18 : vector<32x1xf32> to vector<32x32xf32>
    %20 = arith.mulf %10, %19 : vector<32x32xf32>
    %c0_9 = arith.constant 0 : index
    %c0_10 = arith.constant 0 : index
    %21 = vector.load %arg4[%c0_9, %c0_10] : memref<32x1xf32, #tpu.memory_space<vmem>>, vector<32x1xf32>
    %22 = vector.broadcast %21 : vector<32x1xf32> to vector<32x32xf32>
    %23 = arith.mulf %20, %22 : vector<32x32xf32>
    %c0_11 = arith.constant 0 : index
    %c0_12 = arith.constant 0 : index
    %24 = vector.load %arg5[%c0_11, %c0_12] : memref<32x1xf32, #tpu.memory_space<vmem>>, vector<32x1xf32>
    %25 = vector.broadcast %24 : vector<32x1xf32> to vector<32x32xf32>
    %26 = arith.addf %23, %25 : vector<32x32xf32>
    %27 = arith.truncf %26 : vector<32x32xf32> to vector<32x32xbf16>
    %c0_13 = arith.constant 0 : index
    %c0_14 = arith.constant 0 : index
    %28 = vector.load %arg6[%c0_13, %c0_14] : memref<32x32xbf16, #tpu.memory_space<vmem>>, vector<32x32xbf16>
    tpu.vector_store %arg6[%c0_13, %c0_14], %27 {strides = array<i32>} : memref<32x32xbf16, #tpu.memory_space<vmem>>, vector<32x32xbf16>,
    return
  }
  func.func @transform_0(%arg0: i32) -> (i32, i32) {
    %c0_i32 = arith.constant 0 : i32
    %c0_i32_0 = arith.constant 0 : i32
    %c0_i32_1 = arith.constant 0 : i32
    return %c0_i32, %c0_i32_0 : i32, i32
  }
  func.func @transform_1(%arg0: i32) -> (i32, i32) {
    %c0_i32 = arith.constant 0 : i32
    %c0_i32_0 = arith.constant 0 : i32
    %c0_i32_1 = arith.constant 0 : i32
    return %c0_i32, %c0_i32_0 : i32, i32
  }
  func.func @transform_2(%arg0: i32) -> (i32, i32) {
    %c0_i32 = arith.constant 0 : i32
    %c0_i32_0 = arith.constant 0 : i32
    %c0_i32_1 = arith.constant 0 : i32
    return %c0_i32, %c0_i32_0 : i32, i32
  }
  func.func @transform_3(%arg0: i32) -> (i32, i32) {
    %c0_i32 = arith.constant 0 : i32
    %c0_i32_0 = arith.constant 0 : i32
    %c0_i32_1 = arith.constant 0 : i32
    return %c0_i32, %c0_i32_0 : i32, i32
  }
  func.func @transform_4(%arg0: i32) -> (i32, i32) {
    %c0_i32 = arith.constant 0 : i32
    %c0_i32_0 = arith.constant 0 : i32
    %c0_i32_1 = arith.constant 0 : i32
    return %c0_i32, %c0_i32_0 : i32, i32
  }
  func.func @transform_5(%arg0: i32) -> (i32, i32) {
    %c0_i32 = arith.constant 0 : i32
    %c0_i32_0 = arith.constant 0 : i32
    %c0_i32_1 = arith.constant 0 : i32
    return %c0_i32, %c0_i32_0 : i32, i32
  }
}

module attributes {stable_mosaic.version = 11 : i64} {
  func.func @_gemm_kernel(%arg0: i32, %arg1: memref<16x1024xbf16, #tpu.memory_space<vmem>>, %arg2: memref<1024x128xbf16, #tpu.memory_space<vmem>>, %arg3: memref<16x1xf32, #tpu.memory_space<vmem>>, %arg4: memref<16x1xf32, #tpu.memory_space<vmem>>, %arg5: memref<16x1xf32, #tpu.memory_space<vmem>>, %arg6: memref<16x128xbf16, #tpu.memory_space<vmem>>) attributes {dimension_semantics = [#tpu.dimension_semantics<arbitrary>], iteration_bounds = array<i64: 1>, scalar_prefetch = 0 : i64, scratch_operands = 0 : i64, tpu.core_type = #tpu.core_type<tc>, window_params = [{pipeline_mode = #tpu.pipeline_mode<synchronous>, transform_indices = @transform_0, window_bounds = array<i64: 16, 1024>}, {pipeline_mode = #tpu.pipeline_mode<synchronous>, transform_indices = @transform_1, window_bounds = array<i64: 1024, 128>}, {pipeline_mode = #tpu.pipeline_mode<synchronous>, transform_indices = @transform_2, window_bounds = array<i64: 16, 1>}, {pipeline_mode = #tpu.pipeline_mode<synchronous>, transform_indices = @transform_3, window_bounds = array<i64: 16, 1>}, {pipeline_mode = #tpu.pipeline_mode<synchronous>, transform_indices = @transform_4, window_bounds = array<i64: 16, 1>}, {pipeline_mode = #tpu.pipeline_mode<synchronous>, transform_indices = @transform_5, window_bounds = array<i64: 16, 128>}]} {
    %c0 = arith.constant 0 : index
    %c0_0 = arith.constant 0 : index
    %0 = vector.load %arg2[%c0, %c0_0] : memref<1024x128xbf16, #tpu.memory_space<vmem>>, vector<1024x128xbf16>
    %cst = arith.constant 0.000000e+00 : bf16
    %1 = vector.broadcast %cst : bf16 to vector<1024x128xbf16>
    %2 = arith.maximumf %0, %1 : vector<1024x128xbf16>
    %c0_1 = arith.constant 0 : index
    %c0_2 = arith.constant 0 : index
    %3 = vector.load %arg1[%c0_1, %c0_2] : memref<16x1024xbf16, #tpu.memory_space<vmem>>, vector<16x1024xbf16>
    %cst_3 = arith.constant dense<0.000000e+00> : vector<16x128xf32>
    %4 = tpu.matmul %3, %2, %cst_3 {dimension_numbers = #tpu.dot_dimension_numbers<[1], [0], [0], [1], [0, 0, 1, 1], [], []>} : vector<16x1024xbf16>, vector<1024x128xbf16>, vector<16x128xf32> -> vector<16x128xf32>
    %cst_4 = arith.constant dense<0.000000e+00> : vector<16xf32>
    %5 = vector.multi_reduction <add>, %4, %cst_4 [1] : vector<16x128xf32> to vector<16xf32>
    %6 = vector.shape_cast %5 : vector<16xf32> to vector<16x1xf32>
    %cst_5 = arith.constant 1.280000e+02 : f32
    %7 = vector.broadcast %cst_5 : f32 to vector<16x1xf32>
    %8 = arith.divf %6, %7 : vector<16x1xf32>
    %9 = vector.broadcast %8 : vector<16x1xf32> to vector<16x128xf32>
    %10 = arith.subf %4, %9 : vector<16x128xf32>
    %11 = arith.mulf %10, %10 : vector<16x128xf32>
    %cst_6 = arith.constant dense<0.000000e+00> : vector<16xf32>
    %12 = vector.multi_reduction <add>, %11, %cst_6 [1] : vector<16x128xf32> to vector<16xf32>
    %13 = vector.shape_cast %12 : vector<16xf32> to vector<16x1xf32>
    %cst_7 = arith.constant 1.280000e+02 : f32
    %14 = vector.broadcast %cst_7 : f32 to vector<16x1xf32>
    %15 = arith.divf %13, %14 : vector<16x1xf32>
    %cst_8 = arith.constant 9.99999974E-6 : f32
    %16 = vector.broadcast %cst_8 : f32 to vector<16x1xf32>
    %17 = arith.addf %15, %16 : vector<16x1xf32>
    %18 = math.rsqrt %17 : vector<16x1xf32>
    %19 = vector.broadcast %18 : vector<16x1xf32> to vector<16x128xf32>
    %20 = arith.mulf %10, %19 : vector<16x128xf32>
    %c0_9 = arith.constant 0 : index
    %c0_10 = arith.constant 0 : index
    %21 = vector.load %arg4[%c0_9, %c0_10] : memref<16x1xf32, #tpu.memory_space<vmem>>, vector<16x1xf32>
    %22 = vector.broadcast %21 : vector<16x1xf32> to vector<16x128xf32>
    %23 = arith.mulf %20, %22 : vector<16x128xf32>
    %c0_11 = arith.constant 0 : index
    %c0_12 = arith.constant 0 : index
    %24 = vector.load %arg5[%c0_11, %c0_12] : memref<16x1xf32, #tpu.memory_space<vmem>>, vector<16x1xf32>
    %25 = vector.broadcast %24 : vector<16x1xf32> to vector<16x128xf32>
    %26 = arith.addf %23, %25 : vector<16x128xf32>
    %27 = arith.truncf %26 : vector<16x128xf32> to vector<16x128xbf16>
    %c0_13 = arith.constant 0 : index
    %c0_14 = arith.constant 0 : index
    %28 = vector.load %arg6[%c0_13, %c0_14] : memref<16x128xbf16, #tpu.memory_space<vmem>>, vector<16x128xbf16>
    tpu.vector_store %arg6[%c0_13, %c0_14], %27 {strides = array<i32>} : memref<16x128xbf16, #tpu.memory_space<vmem>>, vector<16x128xbf16>,
    return
  }
  func.func @transform_0(%arg0: i32) -> (i32, i32) {
    %c0_i32 = arith.constant 0 : i32
    %c0_i32_0 = arith.constant 0 : i32
    %c0_i32_1 = arith.constant 0 : i32
    return %c0_i32, %c0_i32_0 : i32, i32
  }
  func.func @transform_1(%arg0: i32) -> (i32, i32) {
    %c0_i32 = arith.constant 0 : i32
    %c0_i32_0 = arith.constant 0 : i32
    %c0_i32_1 = arith.constant 0 : i32
    return %c0_i32, %c0_i32_0 : i32, i32
  }
  func.func @transform_2(%arg0: i32) -> (i32, i32) {
    %c0_i32 = arith.constant 0 : i32
    %c0_i32_0 = arith.constant 0 : i32
    %c0_i32_1 = arith.constant 0 : i32
    return %c0_i32, %c0_i32_0 : i32, i32
  }
  func.func @transform_3(%arg0: i32) -> (i32, i32) {
    %c0_i32 = arith.constant 0 : i32
    %c0_i32_0 = arith.constant 0 : i32
    %c0_i32_1 = arith.constant 0 : i32
    return %c0_i32, %c0_i32_0 : i32, i32
  }
  func.func @transform_4(%arg0: i32) -> (i32, i32) {
    %c0_i32 = arith.constant 0 : i32
    %c0_i32_0 = arith.constant 0 : i32
    %c0_i32_1 = arith.constant 0 : i32
    return %c0_i32, %c0_i32_0 : i32, i32
  }
  func.func @transform_5(%arg0: i32) -> (i32, i32) {
    %c0_i32 = arith.constant 0 : i32
    %c0_i32_0 = arith.constant 0 : i32
    %c0_i32_1 = arith.constant 0 : i32
    return %c0_i32, %c0_i32_0 : i32, i32
  }
}

module attributes {stable_mosaic.version = 11 : i64} {
  func.func @_gemm_kernel(%arg0: i32, %arg1: memref<8x512xbf16, #tpu.memory_space<vmem>>, %arg2: memref<512x512xbf16, #tpu.memory_space<vmem>>, %arg3: memref<8x1xf32, #tpu.memory_space<vmem>>, %arg4: memref<8x1xf32, #tpu.memory_space<vmem>>, %arg5: memref<8x1xf32, #tpu.memory_space<vmem>>, %arg6: memref<8x512xbf16, #tpu.memory_space<vmem>>) attributes {dimension_semantics = [#tpu.dimension_semantics<arbitrary>], iteration_bounds = array<i64: 1>, scalar_prefetch = 0 : i64, scratch_operands = 0 : i64, tpu.core_type = #tpu.core_type<tc>, window_params = [{pipeline_mode = #tpu.pipeline_mode<synchronous>, transform_indices = @transform_0, window_bounds = array<i64: 8, 512>}, {pipeline_mode = #tpu.pipeline_mode<synchronous>, transform_indices = @transform_1, window_bounds = array<i64: 512, 512>}, {pipeline_mode = #tpu.pipeline_mode<synchronous>, transform_indices = @transform_2, window_bounds = array<i64: 8, 1>}, {pipeline_mode = #tpu.pipeline_mode<synchronous>, transform_indices = @transform_3, window_bounds = array<i64: 8, 1>}, {pipeline_mode = #tpu.pipeline_mode<synchronous>, transform_indices = @transform_4, window_bounds = array<i64: 8, 1>}, {pipeline_mode = #tpu.pipeline_mode<synchronous>, transform_indices = @transform_5, window_bounds = array<i64: 8, 512>}]} {
    %c0 = arith.constant 0 : index
    %c0_0 = arith.constant 0 : index
    %0 = vector.load %arg2[%c0, %c0_0] : memref<512x512xbf16, #tpu.memory_space<vmem>>, vector<512x512xbf16>
    %cst = arith.constant 0.000000e+00 : bf16
    %1 = vector.broadcast %cst : bf16 to vector<512x512xbf16>
    %2 = arith.maximumf %0, %1 : vector<512x512xbf16>
    %c0_1 = arith.constant 0 : index
    %c0_2 = arith.constant 0 : index
    %3 = vector.load %arg1[%c0_1, %c0_2] : memref<8x512xbf16, #tpu.memory_space<vmem>>, vector<8x512xbf16>
    %cst_3 = arith.constant dense<0.000000e+00> : vector<8x512xf32>
    %4 = tpu.matmul %3, %2, %cst_3 {dimension_numbers = #tpu.dot_dimension_numbers<[1], [0], [0], [1], [0, 0, 1, 1], [], []>} : vector<8x512xbf16>, vector<512x512xbf16>, vector<8x512xf32> -> vector<8x512xf32>
    %cst_4 = arith.constant dense<0.000000e+00> : vector<8xf32>
    %5 = vector.multi_reduction <add>, %4, %cst_4 [1] : vector<8x512xf32> to vector<8xf32>
    %6 = vector.shape_cast %5 : vector<8xf32> to vector<8x1xf32>
    %cst_5 = arith.constant 5.120000e+02 : f32
    %7 = vector.broadcast %cst_5 : f32 to vector<8x1xf32>
    %8 = arith.divf %6, %7 : vector<8x1xf32>
    %9 = vector.broadcast %8 : vector<8x1xf32> to vector<8x512xf32>
    %10 = arith.subf %4, %9 : vector<8x512xf32>
    %11 = arith.mulf %10, %10 : vector<8x512xf32>
    %cst_6 = arith.constant dense<0.000000e+00> : vector<8xf32>
    %12 = vector.multi_reduction <add>, %11, %cst_6 [1] : vector<8x512xf32> to vector<8xf32>
    %13 = vector.shape_cast %12 : vector<8xf32> to vector<8x1xf32>
    %cst_7 = arith.constant 5.120000e+02 : f32
    %14 = vector.broadcast %cst_7 : f32 to vector<8x1xf32>
    %15 = arith.divf %13, %14 : vector<8x1xf32>
    %cst_8 = arith.constant 9.99999974E-6 : f32
    %16 = vector.broadcast %cst_8 : f32 to vector<8x1xf32>
    %17 = arith.addf %15, %16 : vector<8x1xf32>
    %18 = math.rsqrt %17 : vector<8x1xf32>
    %19 = vector.broadcast %18 : vector<8x1xf32> to vector<8x512xf32>
    %20 = arith.mulf %10, %19 : vector<8x512xf32>
    %c0_9 = arith.constant 0 : index
    %c0_10 = arith.constant 0 : index
    %21 = vector.load %arg4[%c0_9, %c0_10] : memref<8x1xf32, #tpu.memory_space<vmem>>, vector<8x1xf32>
    %22 = vector.broadcast %21 : vector<8x1xf32> to vector<8x512xf32>
    %23 = arith.mulf %20, %22 : vector<8x512xf32>
    %c0_11 = arith.constant 0 : index
    %c0_12 = arith.constant 0 : index
    %24 = vector.load %arg5[%c0_11, %c0_12] : memref<8x1xf32, #tpu.memory_space<vmem>>, vector<8x1xf32>
    %25 = vector.broadcast %24 : vector<8x1xf32> to vector<8x512xf32>
    %26 = arith.addf %23, %25 : vector<8x512xf32>
    %27 = arith.truncf %26 : vector<8x512xf32> to vector<8x512xbf16>
    %c0_13 = arith.constant 0 : index
    %c0_14 = arith.constant 0 : index
    %28 = vector.load %arg6[%c0_13, %c0_14] : memref<8x512xbf16, #tpu.memory_space<vmem>>, vector<8x512xbf16>
    tpu.vector_store %arg6[%c0_13, %c0_14], %27 {strides = array<i32>} : memref<8x512xbf16, #tpu.memory_space<vmem>>, vector<8x512xbf16>,
    return
  }
  func.func @transform_0(%arg0: i32) -> (i32, i32) {
    %c0_i32 = arith.constant 0 : i32
    %c0_i32_0 = arith.constant 0 : i32
    %c0_i32_1 = arith.constant 0 : i32
    return %c0_i32, %c0_i32_0 : i32, i32
  }
  func.func @transform_1(%arg0: i32) -> (i32, i32) {
    %c0_i32 = arith.constant 0 : i32
    %c0_i32_0 = arith.constant 0 : i32
    %c0_i32_1 = arith.constant 0 : i32
    return %c0_i32, %c0_i32_0 : i32, i32
  }
  func.func @transform_2(%arg0: i32) -> (i32, i32) {
    %c0_i32 = arith.constant 0 : i32
    %c0_i32_0 = arith.constant 0 : i32
    %c0_i32_1 = arith.constant 0 : i32
    return %c0_i32, %c0_i32_0 : i32, i32
  }
  func.func @transform_3(%arg0: i32) -> (i32, i32) {
    %c0_i32 = arith.constant 0 : i32
    %c0_i32_0 = arith.constant 0 : i32
    %c0_i32_1 = arith.constant 0 : i32
    return %c0_i32, %c0_i32_0 : i32, i32
  }
  func.func @transform_4(%arg0: i32) -> (i32, i32) {
    %c0_i32 = arith.constant 0 : i32
    %c0_i32_0 = arith.constant 0 : i32
    %c0_i32_1 = arith.constant 0 : i32
    return %c0_i32, %c0_i32_0 : i32, i32
  }
  func.func @transform_5(%arg0: i32) -> (i32, i32) {
    %c0_i32 = arith.constant 0 : i32
    %c0_i32_0 = arith.constant 0 : i32
    %c0_i32_1 = arith.constant 0 : i32
    return %c0_i32, %c0_i32_0 : i32, i32
  }
}

module attributes {stable_mosaic.version = 11 : i64} {
  func.func @_gemm_kernel(%arg0: i32, %arg1: memref<3x256xbf16, #tpu.memory_space<vmem>>, %arg2: memref<256x2048xbf16, #tpu.memory_space<vmem>>, %arg3: memref<3x1xf32, #tpu.memory_space<vmem>>, %arg4: memref<3x1xf32, #tpu.memory_space<vmem>>, %arg5: memref<3x1xf32, #tpu.memory_space<vmem>>, %arg6: memref<3x2048xf32, #tpu.memory_space<vmem>>) attributes {dimension_semantics = [#tpu.dimension_semantics<arbitrary>], iteration_bounds = array<i64: 1>, scalar_prefetch = 0 : i64, scratch_operands = 0 : i64, tpu.core_type = #tpu.core_type<tc>, window_params = [{pipeline_mode = #tpu.pipeline_mode<synchronous>, transform_indices = @transform_0, window_bounds = array<i64: 3, 256>}, {pipeline_mode = #tpu.pipeline_mode<synchronous>, transform_indices = @transform_1, window_bounds = array<i64: 256, 2048>}, {pipeline_mode = #tpu.pipeline_mode<synchronous>, transform_indices = @transform_2, window_bounds = array<i64: 3, 1>}, {pipeline_mode = #tpu.pipeline_mode<synchronous>, transform_indices = @transform_3, window_bounds = array<i64: 3, 1>}, {pipeline_mode = #tpu.pipeline_mode<synchronous>, transform_indices = @transform_4, window_bounds = array<i64: 3, 1>}, {pipeline_mode = #tpu.pipeline_mode<synchronous>, transform_indices = @transform_5, window_bounds = array<i64: 3, 2048>}]} {
    %c0 = arith.constant 0 : index
    %c0_0 = arith.constant 0 : index
    %0 = vector.load %arg2[%c0, %c0_0] : memref<256x2048xbf16, #tpu.memory_space<vmem>>, vector<256x2048xbf16>
    %cst = arith.constant 0.000000e+00 : bf16
    %1 = vector.broadcast %cst : bf16 to vector<256x2048xbf16>
    %2 = arith.maximumf %0, %1 : vector<256x2048xbf16>
    %c0_1 = arith.constant 0 : index
    %c0_2 = arith.constant 0 : index
    %3 = vector.load %arg1[%c0_1, %c0_2] : memref<3x256xbf16, #tpu.memory_space<vmem>>, vector<3x256xbf16>
    %cst_3 = arith.constant dense<0.000000e+00> : vector<3x2048xf32>
    %4 = tpu.matmul %3, %2, %cst_3 {dimension_numbers = #tpu.dot_dimension_numbers<[1], [0], [0], [1], [0, 0, 1, 1], [], []>} : vector<3x256xbf16>, vector<256x2048xbf16>, vector<3x2048xf32> -> vector<3x2048xf32>
    %c0_4 = arith.constant 0 : index
    %c0_5 = arith.constant 0 : index
    %5 = vector.load %arg3[%c0_4, %c0_5] : memref<3x1xf32, #tpu.memory_space<vmem>>, vector<3x1xf32>
    %6 = vector.broadcast %5 : vector<3x1xf32> to vector<3x2048xf32>
    %7 = arith.addf %4, %6 : vector<3x2048xf32>
    %8 = math.tanh %7 : vector<3x2048xf32>
    %c0_6 = arith.constant 0 : index
    %c0_7 = arith.constant 0 : index
    %9 = vector.load %arg6[%c0_6, %c0_7] : memref<3x2048xf32, #tpu.memory_space<vmem>>, vector<3x2048xf32>
    tpu.vector_store %arg6[%c0_6, %c0_7], %8 {strides = array<i32>} : memref<3x2048xf32, #tpu.memory_space<vmem>>, vector<3x2048xf32>,
    return
  }
  func.func @transform_0(%arg0: i32) -> (i32, i32) {
    %c0_i32 = arith.constant 0 : i32
    %c0_i32_0 = arith.constant 0 : i32
    %c0_i32_1 = arith.constant 0 : i32
    return %c0_i32, %c0_i32_0 : i32, i32
  }
  func.func @transform_1(%arg0: i32) -> (i32, i32) {
    %c0_i32 = arith.constant 0 : i32
    %c0_i32_0 = arith.constant 0 : i32
    %c0_i32_1 = arith.constant 0 : i32
    return %c0_i32, %c0_i32_0 : i32, i32
  }
  func.func @transform_2(%arg0: i32) -> (i32, i32) {
    %c0_i32 = arith.constant 0 : i32
    %c0_i32_0 = arith.constant 0 : i32
    %c0_i32_1 = arith.constant 0 : i32
    return %c0_i32, %c0_i32_0 : i32, i32
  }
  func.func @transform_3(%arg0: i32) -> (i32, i32) {
    %c0_i32 = arith.constant 0 : i32
    %c0_i32_0 = arith.constant 0 : i32
    %c0_i32_1 = arith.constant 0 : i32
    return %c0_i32, %c0_i32_0 : i32, i32
  }
  func.func @transform_4(%arg0: i32) -> (i32, i32) {
    %c0_i32 = arith.constant 0 : i32
    %c0_i32_0 = arith.constant 0 : i32
    %c0_i32_1 = arith.constant 0 : i32
    return %c0_i32, %c0_i32_0 : i32, i32
  }
  func.func @transform_5(%arg0: i32) -> (i32, i32) {
    %c0_i32 = arith.constant 0 : i32
    %c0_i32_0 = arith.constant 0 : i32
    %c0_i32_1 = arith.constant 0 : i32
    return %c0_i32, %c0_i32_0 : i32, i32
  }
}

</mosaic_0001>

<llo_original>
// kernel: unet_generator_forward.10
$region0: #{unet_generator_forward.10}
  #allocation0 [shape = 'u32[]', space=smem, size = 0x4, offset = 0x4, fixed_abs, tag = 'smem constant byte address 0x4 - core index']
  #allocation1 [shape = 'u32[144,128]{1,0:T(1,128)}', space=vmem, size = 0x12000, scoped, tag = 'internal scratch']
  %s0 = inlined_call_operand.vmem [shape: bf16[8,48], index: 0, kind: input, shape index: {}]
  %s1 = inlined_call_operand.vmem [shape: bf16[48,512], index: 1, kind: input, shape index: {}]
  %s2 = inlined_call_operand.vmem [shape: f32[8,1], index: 2, kind: input, shape index: {}, may-alias: {2,4}]
  %s3 = inlined_call_operand.vmem [shape: f32[8,1], index: 3, kind: input, shape index: {}]
  %s4 = inlined_call_operand.vmem [shape: f32[8,1], index: 4, kind: input, shape index: {}, may-alias: {2,4}]
  %s5 = inlined_call_operand.vmem [shape: bf16[8,512], index: 5, kind: output, shape index: {}]
  %s6 = sld [smem:[#allocation0]]
  $region30: #{unet_generator_forward.10} parent=0
    _
  %s8 = ssub.s32 1, %s6
  %s9 = scalar_select 0, %s8, %s6
  // Predicated region
  $region2: #{unet_generator_forward.10} parent=0 // pred_check
    _
  $region3: #{unet_generator_forward.10} parent=0 // pred_check_branch
    %11 = sbr.rel (0) target = $region5
  $region4: #{unet_generator_forward.10} parent=0 // pred_region
    _
  $region5: #{unet_generator_forward.10} parent=0 // pred_fallthru
    _
  // Predicated region
  $region6: #{unet_generator_forward.10} parent=0 // pred_check
    _
  $region7: #{unet_generator_forward.10} parent=0 // pred_check_branch
    %13 = sbr.rel (0) target = $region9
  $region8: #{unet_generator_forward.10} parent=0 // pred_region
    _
  $region9: #{unet_generator_forward.10} parent=0 // pred_fallthru
    _
  // Predicated region
  $region10: #{unet_generator_forward.10} parent=0 // pred_check
    _
  $region11: #{unet_generator_forward.10} parent=0 // pred_check_branch
    %15 = sbr.rel (0) target = $region13
  $region12: #{unet_generator_forward.10} parent=0 // pred_region
    _
  $region13: #{unet_generator_forward.10} parent=0 // pred_fallthru
    _
  // Predicated region
  $region14: #{unet_generator_forward.10} parent=0 // pred_check
    _
  $region15: #{unet_generator_forward.10} parent=0 // pred_check_branch
    %17 = sbr.rel (0) target = $region17
  $region16: #{unet_generator_forward.10} parent=0 // pred_region
    _
  $region17: #{unet_generator_forward.10} parent=0 // pred_fallthru
    _
  // Predicated region
  $region18: #{unet_generator_forward.10} parent=0 // pred_check
    _
  $region19: #{unet_generator_forward.10} parent=0 // pred_check_branch
    %19 = sbr.rel (0) target = $region21
  $region20: #{unet_generator_forward.10} parent=0 // pred_region
    _
  $region21: #{unet_generator_forward.10} parent=0 // pred_fallthru
    _
  %v21 = vld [vmem:[%s1] sm:$0xff]
  %v22 = vld [vmem:[%s1 + $0x8] sm:$0xff]
  %v23 = vld [vmem:[%s1 + $0x10] sm:$0xff]
  %v24 = vld [vmem:[%s1 + $0x18] sm:$0xff]
  %v25 = vld [vmem:[%s1 + $0x20] sm:$0xff]
  %v26 = vld [vmem:[%s1 + $0x28] sm:$0xff]
  %v27 = vld [vmem:[%s1 + $0x30] sm:$0xff]
  %v28 = vld [vmem:[%s1 + $0x38] sm:$0xff]
  %v29 = vld [vmem:[%s1 + $0x40] sm:$0xff]
  %v30 = vld [vmem:[%s1 + $0x48] sm:$0xff]
  %v31 = vld [vmem:[%s1 + $0x50] sm:$0xff]
  %v32 = vld [vmem:[%s1 + $0x58] sm:$0xff]
  %v33 = vld [vmem:[%s0] sm:$0xf]
  %v46 = vunpack.c.l.b16 %v21
  %v47 = vunpack.c.h.b16 %v21
  %v48 = vunpack.c.l.b16 %v22
  %v49 = vunpack.c.h.b16 %v22
  %v50 = vunpack.c.l.b16 %v23
  %v51 = vunpack.c.h.b16 %v23
  %v52 = vunpack.c.l.b16 %v24
  %v53 = vunpack.c.h.b16 %v24
  %v54 = vunpack.c.l.b16 %v25
  %v55 = vunpack.c.h.b16 %v25
  %v56 = vunpack.c.l.b16 %v26
  %v57 = vunpack.c.h.b16 %v26
  %v58 = vunpack.c.l.b16 %v27
  %v59 = vunpack.c.h.b16 %v27
  %v60 = vunpack.c.l.b16 %v28
  %v61 = vunpack.c.h.b16 %v28
  %v62 = vunpack.c.l.b16 %v29
  %v63 = vunpack.c.h.b16 %v29
  %v64 = vunpack.c.l.b16 %v30
  %v65 = vunpack.c.h.b16 %v30
  %v66 = vunpack.c.l.b16 %v31
  %v67 = vunpack.c.h.b16 %v31
  %v68 = vunpack.c.l.b16 %v32
  %v69 = vunpack.c.h.b16 %v32
  %v70 = vpack.c.b16 %v50, %v46
  %v71 = vpack.c.b16 %v51, %v47
  %v72 = vpack.c.b16 %v52, %v48
  %v73 = vpack.c.b16 %v53, %v49
  %v74 = vpack.c.b16 %v58, %v54
  %v75 = vpack.c.b16 %v59, %v55
  %v76 = vpack.c.b16 %v60, %v56
  %v77 = vpack.c.b16 %v61, %v57
  %v78 = vpack.c.b16 %v66, %v62
  %v79 = vpack.c.b16 %v67, %v63
  %v80 = vpack.c.b16 %v68, %v64
  %v81 = vpack.c.b16 %v69, %v65
  %vm94 = vcmask 392192
  %v96 = vsel %vm94, %v33, 0
  %98 = vmatprep.subr.bf16.mxu0 %v71
  %99 = vmatpush1.bf16.msra.mxu0 %v70
  %100 = vmatprep.subr.bf16.mxu0 %v75
  %101 = vmatpush1.bf16.msra.mxu0 %v74
  %102 = vmatprep.subr.bf16.mxu0 %v79
  %103 = vmatpush1.bf16.msra.mxu0 %v78
  %104 = vmatprep.subr.bf16.mxu0 0
  %105 = vmatpush1.bf16.msra.mxu0 0
  %106 = vmatprep.subr.bf16.mxu0 0
  %107 = vmatpush1.bf16.msra.mxu0 0
  %108 = vmatprep.subr.bf16.mxu0 0
  %109 = vmatpush1.bf16.msra.mxu0 0
  %110 = vmatprep.subr.bf16.mxu0 0
  %111 = vmatpush1.bf16.msra.mxu0 0
  %112 = vmatprep.subr.bf16.mxu0 0
  %113 = vmatpush1.bf16.msra.mxu0 0
  %114 = vmatprep.subr.bf16.mxu0 0
  %115 = vmatpush1.bf16.msra.mxu0 0
  %116 = vmatprep.subr.bf16.mxu0 0
  %117 = vmatpush1.bf16.msra.mxu0 0
  %118 = vmatprep.subr.bf16.mxu0 0
  %119 = vmatpush1.bf16.msra.mxu0 0
  %120 = vmatprep.subr.bf16.mxu0 0
  %121 = vmatpush1.bf16.msra.mxu0 0
  %122 = vmatprep.subr.bf16.mxu0 0
  %123 = vmatpush1.bf16.msra.mxu0 0
  %124 = vmatprep.subr.bf16.mxu0 0
  %125 = vmatpush1.bf16.msra.mxu0 0
  %126 = vmatprep.subr.bf16.mxu0 0
  %127 = vmatpush1.bf16.msra.mxu0 0
  %128 = vmatprep.subr.bf16.mxu0 0
  %129 = vmatpush1.bf16.msra.mxu0 0
  %130 = vmatprep.mubr.bf16.mxu0 0
  %131 = vmatmul.mubr.bf16.gmra.mrb[0].mxu0 %v96
  %v132 = vpop.f32.mrb[0].mxu0
  %v133 = vadd.f32 0.0, %v132
  %v134 = vpop.f32.mrb[0].mxu0
  %v135 = vadd.f32 0.0, %v134
  %v136 = vpop.f32.mrb[0].mxu0
  %v137 = vpop.f32.mrb[0].mxu0
  %138 = vdwg.mxu0
  %139 = vmatprep.subr.bf16.mxu0 %v73
  %140 = vmatpush1.bf16.msra.mxu0 %v72
  %141 = vmatprep.subr.bf16.mxu0 %v77
  %142 = vmatpush1.bf16.msra.mxu0 %v76
  %143 = vmatprep.subr.bf16.mxu0 %v81
  %144 = vmatpush1.bf16.msra.mxu0 %v80
  %145 = vmatprep.subr.bf16.mxu0 0
  %146 = vmatpush1.bf16.msra.mxu0 0
  %147 = vmatprep.subr.bf16.mxu0 0
  %148 = vmatpush1.bf16.msra.mxu0 0
  %149 = vmatprep.subr.bf16.mxu0 0
  %150 = vmatpush1.bf16.msra.mxu0 0
  %151 = vmatprep.subr.bf16.mxu0 0
  %152 = vmatpush1.bf16.msra.mxu0 0
  %153 = vmatprep.subr.bf16.mxu0 0
  %154 = vmatpush1.bf16.msra.mxu0 0
  %155 = vmatprep.subr.bf16.mxu0 0
  %156 = vmatpush1.bf16.msra.mxu0 0
  %157 = vmatprep.subr.bf16.mxu0 0
  %158 = vmatpush1.bf16.msra.mxu0 0
  %159 = vmatprep.subr.bf16.mxu0 0
  %160 = vmatpush1.bf16.msra.mxu0 0
  %161 = vmatprep.subr.bf16.mxu0 0
  %162 = vmatpush1.bf16.msra.mxu0 0
  %163 = vmatprep.subr.bf16.mxu0 0
  %164 = vmatpush1.bf16.msra.mxu0 0
  %165 = vmatprep.subr.bf16.mxu0 0
  %166 = vmatpush1.bf16.msra.mxu0 0
  %167 = vmatprep.subr.bf16.mxu0 0
  %168 = vmatpush1.bf16.msra.mxu0 0
  %169 = vmatprep.subr.bf16.mxu0 0
  %170 = vmatpush1.bf16.msra.mxu0 0
  %171 = vmatprep.mubr.bf16.mxu0 0
  %172 = vmatmul.mubr.bf16.gmra.mrb[0].mxu0 %v96
  %v173 = vpop.f32.mrb[0].mxu0
  %v174 = vadd.f32 0.0, %v173
  %v175 = vpop.f32.mrb[0].mxu0
  %v176 = vadd.f32 0.0, %v175
  %v177 = vpop.f32.mrb[0].mxu0
  %v178 = vpop.f32.mrb[0].mxu0
  %179 = vdwg.mxu0
  %v180 = vpack.c.bf16 %v133, %v133
  %v181 = vpack.c.bf16 %v135, %v135
  %v182 = vpack.c.bf16 %v174, %v174
  %v183 = vpack.c.bf16 %v176, %v176
  %v188 = vunpack.c.l.b16 %v180
  %v189 = vunpack.c.l.b16 %v181
  %v190 = vunpack.c.l.b16 %v182
  %v191 = vunpack.c.l.b16 %v183
  %v192 = vpack.c.b16 %v189, %v188
  %v193 = vpack.c.b16 %v191, %v190
  %196 = vst [vmem:[%s5] sm:$0xff] %v192
  %197 = vst [vmem:[%s5 + $0x8] sm:$0xff] %v193
  // Predicated region
  $region22: #{unet_generator_forward.10} parent=0 // pred_check
    _
  $region23: #{unet_generator_forward.10} parent=0 // pred_check_branch
    %199 = sbr.rel (0) target = $region25
  $region24: #{unet_generator_forward.10} parent=0 // pred_region
    _
  $region25: #{unet_generator_forward.10} parent=0 // pred_fallthru
    _
  // Predicated region
  $region26: #{unet_generator_forward.10} parent=0 // pred_check
    _
  $region27: #{unet_generator_forward.10} parent=0 // pred_check_branch
    %201 = sbr.rel (0) target = $region29
  $region28: #{unet_generator_forward.10} parent=0 // pred_region
    _
  $region29: #{unet_generator_forward.10} parent=0 // pred_fallthru
    _

// kernel: unet_generator_forward.11
$region0: #{unet_generator_forward.11}
  #allocation0 [shape = 'u32[]', space=smem, size = 0x4, offset = 0x4, fixed_abs, tag = 'smem constant byte address 0x4 - core index']
  #allocation1 [shape = 'u32[144,128]{1,0:T(1,128)}', space=vmem, size = 0x12000, scoped, tag = 'internal scratch']
  %s0 = inlined_call_operand.vmem [shape: bf16[16,128], index: 0, kind: input, shape index: {}]
  %s1 = inlined_call_operand.vmem [shape: bf16[128,128], index: 1, kind: input, shape index: {}]
  %s2 = inlined_call_operand.vmem [shape: f32[16,1], index: 2, kind: input, shape index: {}]
  %s3 = inlined_call_operand.vmem [shape: f32[16,1], index: 3, kind: input, shape index: {}]
  %s4 = inlined_call_operand.vmem [shape: f32[16,1], index: 4, kind: input, shape index: {}]
  %s5 = inlined_call_operand.vmem [shape: bf16[16,128], index: 5, kind: output, shape index: {}]
  %s6 = sld [smem:[#allocation0]]
  $region30: #{unet_generator_forward.11} parent=0
    _
  %s8 = ssub.s32 1, %s6
  %s9 = scalar_select 0, %s8, %s6
  // Predicated region
  $region2: #{unet_generator_forward.11} parent=0 // pred_check
    _
  $region3: #{unet_generator_forward.11} parent=0 // pred_check_branch
    %11 = sbr.rel (0) target = $region5
  $region4: #{unet_generator_forward.11} parent=0 // pred_region
    _
  $region5: #{unet_generator_forward.11} parent=0 // pred_fallthru
    _
  // Predicated region
  $region6: #{unet_generator_forward.11} parent=0 // pred_check
    _
  $region7: #{unet_generator_forward.11} parent=0 // pred_check_branch
    %13 = sbr.rel (0) target = $region9
  $region8: #{unet_generator_forward.11} parent=0 // pred_region
    _
  $region9: #{unet_generator_forward.11} parent=0 // pred_fallthru
    _
  // Predicated region
  $region10: #{unet_generator_forward.11} parent=0 // pred_check
    _
  $region11: #{unet_generator_forward.11} parent=0 // pred_check_branch
    %15 = sbr.rel (0) target = $region13
  $region12: #{unet_generator_forward.11} parent=0 // pred_region
    _
  $region13: #{unet_generator_forward.11} parent=0 // pred_fallthru
    _
  // Predicated region
  $region14: #{unet_generator_forward.11} parent=0 // pred_check
    _
  $region15: #{unet_generator_forward.11} parent=0 // pred_check_branch
    %17 = sbr.rel (0) target = $region17
  $region16: #{unet_generator_forward.11} parent=0 // pred_region
    _
  $region17: #{unet_generator_forward.11} parent=0 // pred_fallthru
    _
  // Predicated region
  $region18: #{unet_generator_forward.11} parent=0 // pred_check
    _
  $region19: #{unet_generator_forward.11} parent=0 // pred_check_branch
    %19 = sbr.rel (0) target = $region21
  $region20: #{unet_generator_forward.11} parent=0 // pred_region
    _
  $region21: #{unet_generator_forward.11} parent=0 // pred_fallthru
    _
  %v22 = vld [vmem:[%s1] sm:$0xf]
  %v23 = vld [vmem:[%s1 + $0x4] sm:$0xf]
  %v24 = vld [vmem:[%s1 + $0x8] sm:$0xf]
  %v25 = vld [vmem:[%s1 + $0xc] sm:$0xf]
  %v26 = vld [vmem:[%s1 + $0x10] sm:$0xf]
  %v27 = vld [vmem:[%s1 + $0x14] sm:$0xf]
  %v28 = vld [vmem:[%s1 + $0x18] sm:$0xf]
  %v29 = vld [vmem:[%s1 + $0x1c] sm:$0xf]
  %v30 = vld [vmem:[%s1 + $0x20] sm:$0xf]
  %v31 = vld [vmem:[%s1 + $0x24] sm:$0xf]
  %v32 = vld [vmem:[%s1 + $0x28] sm:$0xf]
  %v33 = vld [vmem:[%s1 + $0x2c] sm:$0xf]
  %v34 = vld [vmem:[%s1 + $0x30] sm:$0xf]
  %v35 = vld [vmem:[%s1 + $0x34] sm:$0xf]
  %v36 = vld [vmem:[%s1 + $0x38] sm:$0xf]
  %v37 = vld [vmem:[%s1 + $0x3c] sm:$0xf]
  %vm38 = vcmp.gt.bf16.partialorder %v22, 0
  %vm39 = vcmp.gt.bf16.partialorder %v23, 0
  %vm40 = vcmp.gt.bf16.partialorder %v24, 0
  %vm41 = vcmp.gt.bf16.partialorder %v25, 0
  %vm42 = vcmp.gt.bf16.partialorder %v26, 0
  %vm43 = vcmp.gt.bf16.partialorder %v27, 0
  %vm44 = vcmp.gt.bf16.partialorder %v28, 0
  %vm45 = vcmp.gt.bf16.partialorder %v29, 0
  %vm46 = vcmp.gt.bf16.partialorder %v30, 0
  %vm47 = vcmp.gt.bf16.partialorder %v31, 0
  %vm48 = vcmp.gt.bf16.partialorder %v32, 0
  %vm49 = vcmp.gt.bf16.partialorder %v33, 0
  %vm50 = vcmp.gt.bf16.partialorder %v34, 0
  %vm51 = vcmp.gt.bf16.partialorder %v35, 0
  %vm52 = vcmp.gt.bf16.partialorder %v36, 0
  %vm53 = vcmp.gt.bf16.partialorder %v37, 0
  %v54 = vmul.bf16 %v22, 1045249613
  %v55 = vmul.bf16 %v23, 1045249613
  %v56 = vmul.bf16 %v24, 1045249613
  %v57 = vmul.bf16 %v25, 1045249613
  %v58 = vmul.bf16 %v26, 1045249613
  %v59 = vmul.bf16 %v27, 1045249613
  %v60 = vmul.bf16 %v28, 1045249613
  %v61 = vmul.bf16 %v29, 1045249613
  %v62 = vmul.bf16 %v30, 1045249613
  %v63 = vmul.bf16 %v31, 1045249613
  %v64 = vmul.bf16 %v32, 1045249613
  %v65 = vmul.bf16 %v33, 1045249613
  %v66 = vmul.bf16 %v34, 1045249613
  %v67 = vmul.bf16 %v35, 1045249613
  %v68 = vmul.bf16 %v36, 1045249613
  %v69 = vmul.bf16 %v37, 1045249613
  %v70 = vsel %vm38, %v22, %v54
  %v71 = vsel %vm39, %v23, %v55
  %v72 = vsel %vm40, %v24, %v56
  %v73 = vsel %vm41, %v25, %v57
  %v74 = vsel %vm42, %v26, %v58
  %v75 = vsel %vm43, %v27, %v59
  %v76 = vsel %vm44, %v28, %v60
  %v77 = vsel %vm45, %v29, %v61
  %v78 = vsel %vm46, %v30, %v62
  %v79 = vsel %vm47, %v31, %v63
  %v80 = vsel %vm48, %v32, %v64
  %v81 = vsel %vm49, %v33, %v65
  %v82 = vsel %vm50, %v34, %v66
  %v83 = vsel %vm51, %v35, %v67
  %v84 = vsel %vm52, %v36, %v68
  %v85 = vsel %vm53, %v37, %v69
  %v86 = vld [vmem:[%s0] sm:$0xf]
  %v87 = vld [vmem:[%s0 + $0x4] sm:$0xf]
  %v90 = vunpack.c.l.b16 %v86
  %v91 = vunpack.c.l.b16 %v87
  %v92 = vpack.c.b16 %v91, %v90
  %v110 = vunpack.c.l.b16 %v70
  %v111 = vunpack.c.l.b16 %v71
  %v112 = vunpack.c.l.b16 %v72
  %v113 = vunpack.c.l.b16 %v73
  %v114 = vunpack.c.l.b16 %v74
  %v115 = vunpack.c.l.b16 %v75
  %v116 = vunpack.c.l.b16 %v76
  %v117 = vunpack.c.l.b16 %v77
  %v118 = vunpack.c.l.b16 %v78
  %v119 = vunpack.c.l.b16 %v79
  %v120 = vunpack.c.l.b16 %v80
  %v121 = vunpack.c.l.b16 %v81
  %v122 = vunpack.c.l.b16 %v82
  %v123 = vunpack.c.l.b16 %v83
  %v124 = vunpack.c.l.b16 %v84
  %v125 = vunpack.c.l.b16 %v85
  %v126 = vpack.c.b16 %v111, %v110
  %v127 = vpack.c.b16 %v113, %v112
  %v128 = vpack.c.b16 %v115, %v114
  %v129 = vpack.c.b16 %v117, %v116
  %v130 = vpack.c.b16 %v119, %v118
  %v131 = vpack.c.b16 %v121, %v120
  %v132 = vpack.c.b16 %v123, %v122
  %v133 = vpack.c.b16 %v125, %v124
  %142 = vmatprep.subr.bf16.mxu0 0
  %143 = vmatpush1.bf16.msra.mxu0 %v126
  %144 = vmatprep.subr.bf16.mxu0 0
  %145 = vmatpush1.bf16.msra.mxu0 %v127
  %146 = vmatprep.subr.bf16.mxu0 0
  %147 = vmatpush1.bf16.msra.mxu0 %v128
  %148 = vmatprep.subr.bf16.mxu0 0
  %149 = vmatpush1.bf16.msra.mxu0 %v129
  %150 = vmatprep.subr.bf16.mxu0 0
  %151 = vmatpush1.bf16.msra.mxu0 %v130
  %152 = vmatprep.subr.bf16.mxu0 0
  %153 = vmatpush1.bf16.msra.mxu0 %v131
  %154 = vmatprep.subr.bf16.mxu0 0
  %155 = vmatpush1.bf16.msra.mxu0 %v132
  %156 = vmatprep.subr.bf16.mxu0 0
  %157 = vmatpush1.bf16.msra.mxu0 %v133
  %158 = vmatprep.subr.bf16.mxu0 0
  %159 = vmatpush1.bf16.msra.mxu0 0
  %160 = vmatprep.subr.bf16.mxu0 0
  %161 = vmatpush1.bf16.msra.mxu0 0
  %162 = vmatprep.subr.bf16.mxu0 0
  %163 = vmatpush1.bf16.msra.mxu0 0
  %164 = vmatprep.subr.bf16.mxu0 0
  %165 = vmatpush1.bf16.msra.mxu0 0
  %166 = vmatprep.subr.bf16.mxu0 0
  %167 = vmatpush1.bf16.msra.mxu0 0
  %168 = vmatprep.subr.bf16.mxu0 0
  %169 = vmatpush1.bf16.msra.mxu0 0
  %170 = vmatprep.subr.bf16.mxu0 0
  %171 = vmatpush1.bf16.msra.mxu0 0
  %172 = vmatprep.subr.bf16.mxu0 0
  %173 = vmatpush1.bf16.msra.mxu0 0
  %174 = vmatprep.mubr.bf16.mxu0 0
  %175 = vmatmul.mubr.bf16.gmra.mrb[0].mxu0 %v92
  %v176 = vpop.f32.mrb[0].mxu0
  %v177 = vadd.f32 0.0, %v176
  %v178 = vpop.f32.mrb[0].mxu0
  %v179 = vpop.f32.mrb[0].mxu0
  %v180 = vadd.f32 0.0, %v179
  %v181 = vpop.f32.mrb[0].mxu0
  %182 = vdwg.mxu0
  %183 = vadd.xlane.f32.xlu0 %v177
  %v184 = vpop.xlane.xlu0 %183
  %185 = vadd.xlane.f32.xlu0 %v180
  %v186 = vpop.xlane.xlu0 %185
  %v187 = vrcp.pop 128.0
  %v188 = vmul.f32 %v184, %v187
  %v189 = vmul.f32 %v186, %v187
  %v190 = vsub.f32 %v177, %v188
  %v191 = vsub.f32 %v180, %v189
  %v192 = vmul.f32 %v190, %v190
  %v193 = vmul.f32 %v191, %v191
  %194 = vadd.xlane.f32.xlu0 %v192
  %v195 = vpop.xlane.xlu0 %194
  %196 = vadd.xlane.f32.xlu0 %v193
  %v197 = vpop.xlane.xlu0 %196
  %v198 = vmul.f32 %v195, %v187
  %v199 = vmul.f32 %v197, %v187
  %v200 = vadd.f32 %v198, 1e-05
  %v201 = vadd.f32 %v199, 1e-05
  %v202 = vrsqrt.pop %v200
  %v203 = vrsqrt.pop %v201
  %v204 = vmul.f32 %v190, %v202
  %v205 = vmul.f32 %v191, %v203
  %v206 = vld [vmem:[%s3] sm:$0xff]
  %v207 = vld [vmem:[%s3 + $0x8] sm:$0xff]
  %209 = vset.pattern.permute.xlu0 0
  %210 = vperm.xlu0 %209, %v206
  %v211 = vpop.permute.xlu0 %210
  %214 = vset.pattern.permute.xlu0 0
  %215 = vperm.xlu0 %214, %v207
  %v216 = vpop.permute.xlu0 %215
  %v218 = vmul.f32 %v204, %v211
  %v219 = vmul.f32 %v205, %v216
  %v220 = vld [vmem:[%s4] sm:$0xff]
  %v221 = vld [vmem:[%s4 + $0x8] sm:$0xff]
  %223 = vset.pattern.permute.xlu0 0
  %224 = vperm.xlu0 %223, %v220
  %v225 = vpop.permute.xlu0 %224
  %228 = vset.pattern.permute.xlu0 0
  %229 = vperm.xlu0 %228, %v221
  %v230 = vpop.permute.xlu0 %229
  %v232 = vadd.f32 %v218, %v225
  %v233 = vadd.f32 %v219, %v230
  %v234 = vpack.c.bf16 %v233, %v232
  %v236 = vunpack.c.l.b16 %v234
  %v237 = vunpack.c.h.b16 %v234
  %v238 = vpack.c.b16 %v236, %v236
  %v239 = vpack.c.b16 %v237, %v237
  %242 = vst [vmem:[%s5] sm:$0xf] %v238
  %243 = vst [vmem:[%s5 + $0x4] sm:$0xf] %v239
  // Predicated region
  $region22: #{unet_generator_forward.11} parent=0 // pred_check
    _
  $region23: #{unet_generator_forward.11} parent=0 // pred_check_branch
    %245 = sbr.rel (0) target = $region25
  $region24: #{unet_generator_forward.11} parent=0 // pred_region
    _
  $region25: #{unet_generator_forward.11} parent=0 // pred_fallthru
    _
  // Predicated region
  $region26: #{unet_generator_forward.11} parent=0 // pred_check
    _
  $region27: #{unet_generator_forward.11} parent=0 // pred_check_branch
    %247 = sbr.rel (0) target = $region29
  $region28: #{unet_generator_forward.11} parent=0 // pred_region
    _
  $region29: #{unet_generator_forward.11} parent=0 // pred_fallthru
    _

// kernel: unet_generator_forward.12
$region0: #{unet_generator_forward.12}
  #allocation0 [shape = 'u32[]', space=smem, size = 0x4, offset = 0x4, fixed_abs, tag = 'smem constant byte address 0x4 - core index']
  #allocation1 [shape = 'u32[144,128]{1,0:T(1,128)}', space=vmem, size = 0x12000, scoped, tag = 'internal scratch']
  %s0 = inlined_call_operand.vmem [shape: bf16[32,256], index: 0, kind: input, shape index: {}]
  %s1 = inlined_call_operand.vmem [shape: bf16[256,32], index: 1, kind: input, shape index: {}]
  %s2 = inlined_call_operand.vmem [shape: f32[32,1], index: 2, kind: input, shape index: {}]
  %s3 = inlined_call_operand.vmem [shape: f32[32,1], index: 3, kind: input, shape index: {}]
  %s4 = inlined_call_operand.vmem [shape: f32[32,1], index: 4, kind: input, shape index: {}]
  %s5 = inlined_call_operand.vmem [shape: bf16[32,32], index: 5, kind: output, shape index: {}]
  %s6 = sld [smem:[#allocation0]]
  $region30: #{unet_generator_forward.12} parent=0
    _
  %s8 = ssub.s32 1, %s6
  %s9 = scalar_select 0, %s8, %s6
  // Predicated region
  $region2: #{unet_generator_forward.12} parent=0 // pred_check
    _
  $region3: #{unet_generator_forward.12} parent=0 // pred_check_branch
    %11 = sbr.rel (0) target = $region5
  $region4: #{unet_generator_forward.12} parent=0 // pred_region
    _
  $region5: #{unet_generator_forward.12} parent=0 // pred_fallthru
    _
  // Predicated region
  $region6: #{unet_generator_forward.12} parent=0 // pred_check
    _
  $region7: #{unet_generator_forward.12} parent=0 // pred_check_branch
    %13 = sbr.rel (0) target = $region9
  $region8: #{unet_generator_forward.12} parent=0 // pred_region
    _
  $region9: #{unet_generator_forward.12} parent=0 // pred_fallthru
    _
  // Predicated region
  $region10: #{unet_generator_forward.12} parent=0 // pred_check
    _
  $region11: #{unet_generator_forward.12} parent=0 // pred_check_branch
    %15 = sbr.rel (0) target = $region13
  $region12: #{unet_generator_forward.12} parent=0 // pred_region
    _
  $region13: #{unet_generator_forward.12} parent=0 // pred_fallthru
    _
  // Predicated region
  $region14: #{unet_generator_forward.12} parent=0 // pred_check
    _
  $region15: #{unet_generator_forward.12} parent=0 // pred_check_branch
    %17 = sbr.rel (0) target = $region17
  $region16: #{unet_generator_forward.12} parent=0 // pred_region
    _
  $region17: #{unet_generator_forward.12} parent=0 // pred_fallthru
    _
  // Predicated region
  $region18: #{unet_generator_forward.12} parent=0 // pred_check
    _
  $region19: #{unet_generator_forward.12} parent=0 // pred_check_branch
    %19 = sbr.rel (0) target = $region21
  $region20: #{unet_generator_forward.12} parent=0 // pred_region
    _
  $region21: #{unet_generator_forward.12} parent=0 // pred_fallthru
    _
  %v22 = vld [vmem:[%s1] sm:$0xf]
  %v23 = vld [vmem:[%s1 + $0x4] sm:$0xf]
  %v24 = vld [vmem:[%s1 + $0x8] sm:$0xf]
  %v25 = vld [vmem:[%s1 + $0xc] sm:$0xf]
  %v26 = vld [vmem:[%s1 + $0x10] sm:$0xf]
  %v27 = vld [vmem:[%s1 + $0x14] sm:$0xf]
  %v28 = vld [vmem:[%s1 + $0x18] sm:$0xf]
  %v29 = vld [vmem:[%s1 + $0x1c] sm:$0xf]
  %v30 = vld [vmem:[%s1 + $0x20] sm:$0xf]
  %v31 = vld [vmem:[%s1 + $0x24] sm:$0xf]
  %v32 = vld [vmem:[%s1 + $0x28] sm:$0xf]
  %v33 = vld [vmem:[%s1 + $0x2c] sm:$0xf]
  %v34 = vld [vmem:[%s1 + $0x30] sm:$0xf]
  %v35 = vld [vmem:[%s1 + $0x34] sm:$0xf]
  %v36 = vld [vmem:[%s1 + $0x38] sm:$0xf]
  %v37 = vld [vmem:[%s1 + $0x3c] sm:$0xf]
  %v38 = vld [vmem:[%s1 + $0x40] sm:$0xf]
  %v39 = vld [vmem:[%s1 + $0x44] sm:$0xf]
  %v40 = vld [vmem:[%s1 + $0x48] sm:$0xf]
  %v41 = vld [vmem:[%s1 + $0x4c] sm:$0xf]
  %v42 = vld [vmem:[%s1 + $0x50] sm:$0xf]
  %v43 = vld [vmem:[%s1 + $0x54] sm:$0xf]
  %v44 = vld [vmem:[%s1 + $0x58] sm:$0xf]
  %v45 = vld [vmem:[%s1 + $0x5c] sm:$0xf]
  %v46 = vld [vmem:[%s1 + $0x60] sm:$0xf]
  %v47 = vld [vmem:[%s1 + $0x64] sm:$0xf]
  %v48 = vld [vmem:[%s1 + $0x68] sm:$0xf]
  %v49 = vld [vmem:[%s1 + $0x6c] sm:$0xf]
  %v50 = vld [vmem:[%s1 + $0x70] sm:$0xf]
  %v51 = vld [vmem:[%s1 + $0x74] sm:$0xf]
  %v52 = vld [vmem:[%s1 + $0x78] sm:$0xf]
  %v53 = vld [vmem:[%s1 + $0x7c] sm:$0xf]
  %vm54 = vcmp.gt.bf16.partialorder %v22, 0
  %vm55 = vcmp.gt.bf16.partialorder %v23, 0
  %vm56 = vcmp.gt.bf16.partialorder %v24, 0
  %vm57 = vcmp.gt.bf16.partialorder %v25, 0
  %vm58 = vcmp.gt.bf16.partialorder %v26, 0
  %vm59 = vcmp.gt.bf16.partialorder %v27, 0
  %vm60 = vcmp.gt.bf16.partialorder %v28, 0
  %vm61 = vcmp.gt.bf16.partialorder %v29, 0
  %vm62 = vcmp.gt.bf16.partialorder %v30, 0
  %vm63 = vcmp.gt.bf16.partialorder %v31, 0
  %vm64 = vcmp.gt.bf16.partialorder %v32, 0
  %vm65 = vcmp.gt.bf16.partialorder %v33, 0
  %vm66 = vcmp.gt.bf16.partialorder %v34, 0
  %vm67 = vcmp.gt.bf16.partialorder %v35, 0
  %vm68 = vcmp.gt.bf16.partialorder %v36, 0
  %vm69 = vcmp.gt.bf16.partialorder %v37, 0
  %vm70 = vcmp.gt.bf16.partialorder %v38, 0
  %vm71 = vcmp.gt.bf16.partialorder %v39, 0
  %vm72 = vcmp.gt.bf16.partialorder %v40, 0
  %vm73 = vcmp.gt.bf16.partialorder %v41, 0
  %vm74 = vcmp.gt.bf16.partialorder %v42, 0
  %vm75 = vcmp.gt.bf16.partialorder %v43, 0
  %vm76 = vcmp.gt.bf16.partialorder %v44, 0
  %vm77 = vcmp.gt.bf16.partialorder %v45, 0
  %vm78 = vcmp.gt.bf16.partialorder %v46, 0
  %vm79 = vcmp.gt.bf16.partialorder %v47, 0
  %vm80 = vcmp.gt.bf16.partialorder %v48, 0
  %vm81 = vcmp.gt.bf16.partialorder %v49, 0
  %vm82 = vcmp.gt.bf16.partialorder %v50, 0
  %vm83 = vcmp.gt.bf16.partialorder %v51, 0
  %vm84 = vcmp.gt.bf16.partialorder %v52, 0
  %vm85 = vcmp.gt.bf16.partialorder %v53, 0
  %v86 = vmul.bf16 %v22, 1045249613
  %v87 = vmul.bf16 %v23, 1045249613
  %v88 = vmul.bf16 %v24, 1045249613
  %v89 = vmul.bf16 %v25, 1045249613
  %v90 = vmul.bf16 %v26, 1045249613
  %v91 = vmul.bf16 %v27, 1045249613
  %v92 = vmul.bf16 %v28, 1045249613
  %v93 = vmul.bf16 %v29, 1045249613
  %v94 = vmul.bf16 %v30, 1045249613
  %v95 = vmul.bf16 %v31, 1045249613
  %v96 = vmul.bf16 %v32, 1045249613
  %v97 = vmul.bf16 %v33, 1045249613
  %v98 = vmul.bf16 %v34, 1045249613
  %v99 = vmul.bf16 %v35, 1045249613
  %v100 = vmul.bf16 %v36, 1045249613
  %v101 = vmul.bf16 %v37, 1045249613
  %v102 = vmul.bf16 %v38, 1045249613
  %v103 = vmul.bf16 %v39, 1045249613
  %v104 = vmul.bf16 %v40, 1045249613
  %v105 = vmul.bf16 %v41, 1045249613
  %v106 = vmul.bf16 %v42, 1045249613
  %v107 = vmul.bf16 %v43, 1045249613
  %v108 = vmul.bf16 %v44, 1045249613
  %v109 = vmul.bf16 %v45, 1045249613
  %v110 = vmul.bf16 %v46, 1045249613
  %v111 = vmul.bf16 %v47, 1045249613
  %v112 = vmul.bf16 %v48, 1045249613
  %v113 = vmul.bf16 %v49, 1045249613
  %v114 = vmul.bf16 %v50, 1045249613
  %v115 = vmul.bf16 %v51, 1045249613
  %v116 = vmul.bf16 %v52, 1045249613
  %v117 = vmul.bf16 %v53, 1045249613
  %v118 = vsel %vm54, %v22, %v86
  %v119 = vsel %vm55, %v23, %v87
  %v120 = vsel %vm56, %v24, %v88
  %v121 = vsel %vm57, %v25, %v89
  %v122 = vsel %vm58, %v26, %v90
  %v123 = vsel %vm59, %v27, %v91
  %v124 = vsel %vm60, %v28, %v92
  %v125 = vsel %vm61, %v29, %v93
  %v126 = vsel %vm62, %v30, %v94
  %v127 = vsel %vm63, %v31, %v95
  %v128 = vsel %vm64, %v32, %v96
  %v129 = vsel %vm65, %v33, %v97
  %v130 = vsel %vm66, %v34, %v98
  %v131 = vsel %vm67, %v35, %v99
  %v132 = vsel %vm68, %v36, %v100
  %v133 = vsel %vm69, %v37, %v101
  %v134 = vsel %vm70, %v38, %v102
  %v135 = vsel %vm71, %v39, %v103
  %v136 = vsel %vm72, %v40, %v104
  %v137 = vsel %vm73, %v41, %v105
  %v138 = vsel %vm74, %v42, %v106
  %v139 = vsel %vm75, %v43, %v107
  %v140 = vsel %vm76, %v44, %v108
  %v141 = vsel %vm77, %v45, %v109
  %v142 = vsel %vm78, %v46, %v110
  %v143 = vsel %vm79, %v47, %v111
  %v144 = vsel %vm80, %v48, %v112
  %v145 = vsel %vm81, %v49, %v113
  %v146 = vsel %vm82, %v50, %v114
  %v147 = vsel %vm83, %v51, %v115
  %v148 = vsel %vm84, %v52, %v116
  %v149 = vsel %vm85, %v53, %v117
  %v150 = vld [vmem:[%s0] sm:$0xff]
  %v151 = vld [vmem:[%s0 + $0x8] sm:$0xff]
  %v152 = vld [vmem:[%s0 + $0x10] sm:$0xff]
  %v153 = vld [vmem:[%s0 + $0x18] sm:$0xff]
  %v158 = vunpack.c.l.b16 %v150
  %v159 = vunpack.c.h.b16 %v150
  %v160 = vunpack.c.l.b16 %v151
  %v161 = vunpack.c.h.b16 %v151
  %v162 = vunpack.c.l.b16 %v152
  %v163 = vunpack.c.h.b16 %v152
  %v164 = vunpack.c.l.b16 %v153
  %v165 = vunpack.c.h.b16 %v153
  %v166 = vpack.c.b16 %v160, %v158
  %v167 = vpack.c.b16 %v161, %v159
  %v168 = vpack.c.b16 %v164, %v162
  %v169 = vpack.c.b16 %v165, %v163
  %v206 = vunpack.c.l.b16 %v118
  %v207 = vunpack.c.l.b16 %v119
  %v208 = vunpack.c.l.b16 %v120
  %v209 = vunpack.c.l.b16 %v121
  %v210 = vunpack.c.l.b16 %v122
  %v211 = vunpack.c.l.b16 %v123
  %v212 = vunpack.c.l.b16 %v124
  %v213 = vunpack.c.l.b16 %v125
  %v214 = vunpack.c.l.b16 %v126
  %v215 = vunpack.c.l.b16 %v127
  %v216 = vunpack.c.l.b16 %v128
  %v217 = vunpack.c.l.b16 %v129
  %v218 = vunpack.c.l.b16 %v130
  %v219 = vunpack.c.l.b16 %v131
  %v220 = vunpack.c.l.b16 %v132
  %v221 = vunpack.c.l.b16 %v133
  %v222 = vunpack.c.l.b16 %v134
  %v223 = vunpack.c.l.b16 %v135
  %v224 = vunpack.c.l.b16 %v136
  %v225 = vunpack.c.l.b16 %v137
  %v226 = vunpack.c.l.b16 %v138
  %v227 = vunpack.c.l.b16 %v139
  %v228 = vunpack.c.l.b16 %v140
  %v229 = vunpack.c.l.b16 %v141
  %v230 = vunpack.c.l.b16 %v142
  %v231 = vunpack.c.l.b16 %v143
  %v232 = vunpack.c.l.b16 %v144
  %v233 = vunpack.c.l.b16 %v145
  %v234 = vunpack.c.l.b16 %v146
  %v235 = vunpack.c.l.b16 %v147
  %v236 = vunpack.c.l.b16 %v148
  %v237 = vunpack.c.l.b16 %v149
  %v238 = vpack.c.b16 %v207, %v206
  %v239 = vpack.c.b16 %v209, %v208
  %v240 = vpack.c.b16 %v211, %v210
  %v241 = vpack.c.b16 %v213, %v212
  %v242 = vpack.c.b16 %v215, %v214
  %v243 = vpack.c.b16 %v217, %v216
  %v244 = vpack.c.b16 %v219, %v218
  %v245 = vpack.c.b16 %v221, %v220
  %v246 = vpack.c.b16 %v223, %v222
  %v247 = vpack.c.b16 %v225, %v224
  %v248 = vpack.c.b16 %v227, %v226
  %v249 = vpack.c.b16 %v229, %v228
  %v250 = vpack.c.b16 %v231, %v230
  %v251 = vpack.c.b16 %v233, %v232
  %v252 = vpack.c.b16 %v235, %v234
  %v253 = vpack.c.b16 %v237, %v236
  %270 = vmatprep.subr.bf16.mxu0 0
  %271 = vmatpush1.bf16.msra.mxu0 %v238
  %272 = vmatprep.subr.bf16.mxu0 0
  %273 = vmatpush1.bf16.msra.mxu0 %v239
  %274 = vmatprep.subr.bf16.mxu0 0
  %275 = vmatpush1.bf16.msra.mxu0 %v240
  %276 = vmatprep.subr.bf16.mxu0 0
  %277 = vmatpush1.bf16.msra.mxu0 %v241
  %278 = vmatprep.subr.bf16.mxu0 0
  %279 = vmatpush1.bf16.msra.mxu0 %v242
  %280 = vmatprep.subr.bf16.mxu0 0
  %281 = vmatpush1.bf16.msra.mxu0 %v243
  %282 = vmatprep.subr.bf16.mxu0 0
  %283 = vmatpush1.bf16.msra.mxu0 %v244
  %284 = vmatprep.subr.bf16.mxu0 0
  %285 = vmatpush1.bf16.msra.mxu0 %v245
  %286 = vmatprep.subr.bf16.mxu0 0
  %287 = vmatpush1.bf16.msra.mxu0 %v246
  %288 = vmatprep.subr.bf16.mxu0 0
  %289 = vmatpush1.bf16.msra.mxu0 %v247
  %290 = vmatprep.subr.bf16.mxu0 0
  %291 = vmatpush1.bf16.msra.mxu0 %v248
  %292 = vmatprep.subr.bf16.mxu0 0
  %293 = vmatpush1.bf16.msra.mxu0 %v249
  %294 = vmatprep.subr.bf16.mxu0 0
  %295 = vmatpush1.bf16.msra.mxu0 %v250
  %296 = vmatprep.subr.bf16.mxu0 0
  %297 = vmatpush1.bf16.msra.mxu0 %v251
  %298 = vmatprep.subr.bf16.mxu0 0
  %299 = vmatpush1.bf16.msra.mxu0 %v252
  %300 = vmatprep.subr.bf16.mxu0 0
  %301 = vmatpush1.bf16.msra.mxu0 %v253
  %302 = vmatprep.mubr.bf16.mxu0 %v167
  %303 = vmatmul.mubr.bf16.gmra.mrb[0].mxu0 %v166
  %v304 = vpop.f32.mrb[0].mxu0
  %v305 = vadd.f32 0.0, %v304
  %v306 = vpop.f32.mrb[0].mxu0
  %v307 = vpop.f32.mrb[0].mxu0
  %v308 = vadd.f32 0.0, %v307
  %v309 = vpop.f32.mrb[0].mxu0
  %310 = vmatprep.mubr.bf16.mxu0 %v169
  %311 = vmatmul.mubr.bf16.gmra.mrb[0].mxu0 %v168
  %v312 = vpop.f32.mrb[0].mxu0
  %v313 = vadd.f32 0.0, %v312
  %v314 = vpop.f32.mrb[0].mxu0
  %v315 = vpop.f32.mrb[0].mxu0
  %v316 = vadd.f32 0.0, %v315
  %v317 = vpop.f32.mrb[0].mxu0
  %318 = vdwg.mxu0
  %vm319 = vcmask 261120
  %v320 = vsel %vm319, %v305, 0.0
  %321 = vadd.xlane.f32.xlu0 %v320
  %v322 = vpop.xlane.xlu0 %321
  %v323 = vsel %vm319, %v308, 0.0
  %324 = vadd.xlane.f32.xlu0 %v323
  %v325 = vpop.xlane.xlu0 %324
  %v326 = vsel %vm319, %v313, 0.0
  %327 = vadd.xlane.f32.xlu0 %v326
  %v328 = vpop.xlane.xlu0 %327
  %v329 = vsel %vm319, %v316, 0.0
  %330 = vadd.xlane.f32.xlu0 %v329
  %v331 = vpop.xlane.xlu0 %330
  %v332 = vrcp.pop 32.0
  %v333 = vmul.f32 %v322, %v332
  %v334 = vmul.f32 %v325, %v332
  %v335 = vmul.f32 %v328, %v332
  %v336 = vmul.f32 %v331, %v332
  %v337 = vsub.f32 %v305, %v333
  %v338 = vsub.f32 %v308, %v334
  %v339 = vsub.f32 %v313, %v335
  %v340 = vsub.f32 %v316, %v336
  %v341 = vmul.f32 %v337, %v337
  %v342 = vmul.f32 %v338, %v338
  %v343 = vmul.f32 %v339, %v339
  %v344 = vmul.f32 %v340, %v340
  %v345 = vsel %vm319, %v341, 0.0
  %346 = vadd.xlane.f32.xlu0 %v345
  %v347 = vpop.xlane.xlu0 %346
  %v348 = vsel %vm319, %v342, 0.0
  %349 = vadd.xlane.f32.xlu0 %v348
  %v350 = vpop.xlane.xlu0 %349
  %v351 = vsel %vm319, %v343, 0.0
  %352 = vadd.xlane.f32.xlu0 %v351
  %v353 = vpop.xlane.xlu0 %352
  %v354 = vsel %vm319, %v344, 0.0
  %355 = vadd.xlane.f32.xlu0 %v354
  %v356 = vpop.xlane.xlu0 %355
  %v357 = vmul.f32 %v347, %v332
  %v358 = vmul.f32 %v350, %v332
  %v359 = vmul.f32 %v353, %v332
  %v360 = vmul.f32 %v356, %v332
  %v361 = vadd.f32 %v357, 1e-05
  %v362 = vadd.f32 %v358, 1e-05
  %v363 = vadd.f32 %v359, 1e-05
  %v364 = vadd.f32 %v360, 1e-05
  %v365 = vrsqrt.pop %v361
  %v366 = vrsqrt.pop %v362
  %v367 = vrsqrt.pop %v363
  %v368 = vrsqrt.pop %v364
  %v369 = vmul.f32 %v337, %v365
  %v370 = vmul.f32 %v338, %v366
  %v371 = vmul.f32 %v339, %v367
  %v372 = vmul.f32 %v340, %v368
  %v373 = vld [vmem:[%s3] sm:$0xff]
  %v374 = vld [vmem:[%s3 + $0x8] sm:$0xff]
  %v375 = vld [vmem:[%s3 + $0x10] sm:$0xff]
  %v376 = vld [vmem:[%s3 + $0x18] sm:$0xff]
  %378 = vset.pattern.permute.xlu0 0
  %379 = vperm.xlu0 %378, %v373
  %v380 = vpop.permute.xlu0 %379
  %383 = vset.pattern.permute.xlu0 0
  %384 = vperm.xlu0 %383, %v374
  %v385 = vpop.permute.xlu0 %384
  %388 = vset.pattern.permute.xlu0 0
  %389 = vperm.xlu0 %388, %v375
  %v390 = vpop.permute.xlu0 %389
  %393 = vset.pattern.permute.xlu0 0
  %394 = vperm.xlu0 %393, %v376
  %v395 = vpop.permute.xlu0 %394
  %v397 = vmul.f32 %v369, %v380
  %v398 = vmul.f32 %v370, %v385
  %v399 = vmul.f32 %v371, %v390
  %v400 = vmul.f32 %v372, %v395
  %v401 = vld [vmem:[%s4] sm:$0xff]
  %v402 = vld [vmem:[%s4 + $0x8] sm:$0xff]
  %v403 = vld [vmem:[%s4 + $0x10] sm:$0xff]
  %v404 = vld [vmem:[%s4 + $0x18] sm:$0xff]
  %406 = vset.pattern.permute.xlu0 0
  %407 = vperm.xlu0 %406, %v401
  %v408 = vpop.permute.xlu0 %407
  %411 = vset.pattern.permute.xlu0 0
  %412 = vperm.xlu0 %411, %v402
  %v413 = vpop.permute.xlu0 %412
  %416 = vset.pattern.permute.xlu0 0
  %417 = vperm.xlu0 %416, %v403
  %v418 = vpop.permute.xlu0 %417
  %421 = vset.pattern.permute.xlu0 0
  %422 = vperm.xlu0 %421, %v404
  %v423 = vpop.permute.xlu0 %422
  %v425 = vadd.f32 %v397, %v408
  %v426 = vadd.f32 %v398, %v413
  %v427 = vadd.f32 %v399, %v418
  %v428 = vadd.f32 %v400, %v423
  %v429 = vpack.c.bf16 %v426, %v425
  %v430 = vpack.c.bf16 %v428, %v427
  %v433 = vunpack.c.l.b16 %v429
  %v434 = vunpack.c.h.b16 %v429
  %v435 = vunpack.c.l.b16 %v430
  %v436 = vunpack.c.h.b16 %v430
  %v437 = vpack.c.b16 %v433, %v433
  %v438 = vpack.c.b16 %v434, %v434
  %v439 = vpack.c.b16 %v435, %v435
  %v440 = vpack.c.b16 %v436, %v436
  %vm445 = vcmask 257024
  %446 = vst.msk [vmem:[%s5] sm:$0xf] %vm445, %v437
  %447 = vst.msk [vmem:[%s5 + $0x4] sm:$0xf] %vm445, %v438
  %448 = vst.msk [vmem:[%s5 + $0x8] sm:$0xf] %vm445, %v439
  %449 = vst.msk [vmem:[%s5 + $0xc] sm:$0xf] %vm445, %v440
  // Predicated region
  $region22: #{unet_generator_forward.12} parent=0 // pred_check
    _
  $region23: #{unet_generator_forward.12} parent=0 // pred_check_branch
    %451 = sbr.rel (0) target = $region25
  $region24: #{unet_generator_forward.12} parent=0 // pred_region
    _
  $region25: #{unet_generator_forward.12} parent=0 // pred_fallthru
    _
  // Predicated region
  $region26: #{unet_generator_forward.12} parent=0 // pred_check
    _
  $region27: #{unet_generator_forward.12} parent=0 // pred_check_branch
    %453 = sbr.rel (0) target = $region29
  $region28: #{unet_generator_forward.12} parent=0 // pred_region
    _
  $region29: #{unet_generator_forward.12} parent=0 // pred_fallthru
    _

// kernel: unet_generator_forward.13
$region0: #{unet_generator_forward.13}
  #allocation0 [shape = 'u32[]', space=smem, size = 0x4, offset = 0x4, fixed_abs, tag = 'smem constant byte address 0x4 - core index']
  #allocation1 [shape = 'u32[144,128]{1,0:T(1,128)}', space=vmem, size = 0x12000, scoped, tag = 'internal scratch']
  %s0 = inlined_call_operand.vmem [shape: bf16[64,512], index: 0, kind: input, shape index: {}]
  %s1 = inlined_call_operand.vmem [shape: bf16[512,8], index: 1, kind: input, shape index: {}]
  %s2 = inlined_call_operand.vmem [shape: f32[64,1], index: 2, kind: input, shape index: {}]
  %s3 = inlined_call_operand.vmem [shape: f32[64,1], index: 3, kind: input, shape index: {}]
  %s4 = inlined_call_operand.vmem [shape: f32[64,1], index: 4, kind: input, shape index: {}]
  %s5 = inlined_call_operand.vmem [shape: bf16[64,8], index: 5, kind: output, shape index: {}]
  %s6 = sld [smem:[#allocation0]]
  $region30: #{unet_generator_forward.13} parent=0
    _
  %s8 = ssub.s32 1, %s6
  %s9 = scalar_select 0, %s8, %s6
  // Predicated region
  $region2: #{unet_generator_forward.13} parent=0 // pred_check
    _
  $region3: #{unet_generator_forward.13} parent=0 // pred_check_branch
    %11 = sbr.rel (0) target = $region5
  $region4: #{unet_generator_forward.13} parent=0 // pred_region
    _
  $region5: #{unet_generator_forward.13} parent=0 // pred_fallthru
    _
  // Predicated region
  $region6: #{unet_generator_forward.13} parent=0 // pred_check
    _
  $region7: #{unet_generator_forward.13} parent=0 // pred_check_branch
    %13 = sbr.rel (0) target = $region9
  $region8: #{unet_generator_forward.13} parent=0 // pred_region
    _
  $region9: #{unet_generator_forward.13} parent=0 // pred_fallthru
    _
  // Predicated region
  $region10: #{unet_generator_forward.13} parent=0 // pred_check
    _
  $region11: #{unet_generator_forward.13} parent=0 // pred_check_branch
    %15 = sbr.rel (0) target = $region13
  $region12: #{unet_generator_forward.13} parent=0 // pred_region
    _
  $region13: #{unet_generator_forward.13} parent=0 // pred_fallthru
    _
  // Predicated region
  $region14: #{unet_generator_forward.13} parent=0 // pred_check
    _
  $region15: #{unet_generator_forward.13} parent=0 // pred_check_branch
    %17 = sbr.rel (0) target = $region17
  $region16: #{unet_generator_forward.13} parent=0 // pred_region
    _
  $region17: #{unet_generator_forward.13} parent=0 // pred_fallthru
    _
  // Predicated region
  $region18: #{unet_generator_forward.13} parent=0 // pred_check
    _
  $region19: #{unet_generator_forward.13} parent=0 // pred_check_branch
    %19 = sbr.rel (0) target = $region21
  $region20: #{unet_generator_forward.13} parent=0 // pred_region
    _
  $region21: #{unet_generator_forward.13} parent=0 // pred_fallthru
    _
  %v22 = vld [vmem:[%s1] sm:$0xf]
  %v23 = vld [vmem:[%s1 + $0x4] sm:$0xf]
  %v24 = vld [vmem:[%s1 + $0x8] sm:$0xf]
  %v25 = vld [vmem:[%s1 + $0xc] sm:$0xf]
  %v26 = vld [vmem:[%s1 + $0x10] sm:$0xf]
  %v27 = vld [vmem:[%s1 + $0x14] sm:$0xf]
  %v28 = vld [vmem:[%s1 + $0x18] sm:$0xf]
  %v29 = vld [vmem:[%s1 + $0x1c] sm:$0xf]
  %v30 = vld [vmem:[%s1 + $0x20] sm:$0xf]
  %v31 = vld [vmem:[%s1 + $0x24] sm:$0xf]
  %v32 = vld [vmem:[%s1 + $0x28] sm:$0xf]
  %v33 = vld [vmem:[%s1 + $0x2c] sm:$0xf]
  %v34 = vld [vmem:[%s1 + $0x30] sm:$0xf]
  %v35 = vld [vmem:[%s1 + $0x34] sm:$0xf]
  %v36 = vld [vmem:[%s1 + $0x38] sm:$0xf]
  %v37 = vld [vmem:[%s1 + $0x3c] sm:$0xf]
  %v38 = vld [vmem:[%s1 + $0x40] sm:$0xf]
  %v39 = vld [vmem:[%s1 + $0x44] sm:$0xf]
  %v40 = vld [vmem:[%s1 + $0x48] sm:$0xf]
  %v41 = vld [vmem:[%s1 + $0x4c] sm:$0xf]
  %v42 = vld [vmem:[%s1 + $0x50] sm:$0xf]
  %v43 = vld [vmem:[%s1 + $0x54] sm:$0xf]
  %v44 = vld [vmem:[%s1 + $0x58] sm:$0xf]
  %v45 = vld [vmem:[%s1 + $0x5c] sm:$0xf]
  %v46 = vld [vmem:[%s1 + $0x60] sm:$0xf]
  %v47 = vld [vmem:[%s1 + $0x64] sm:$0xf]
  %v48 = vld [vmem:[%s1 + $0x68] sm:$0xf]
  %v49 = vld [vmem:[%s1 + $0x6c] sm:$0xf]
  %v50 = vld [vmem:[%s1 + $0x70] sm:$0xf]
  %v51 = vld [vmem:[%s1 + $0x74] sm:$0xf]
  %v52 = vld [vmem:[%s1 + $0x78] sm:$0xf]
  %v53 = vld [vmem:[%s1 + $0x7c] sm:$0xf]
  %v54 = vld [vmem:[%s1 + $0x80] sm:$0xf]
  %v55 = vld [vmem:[%s1 + $0x84] sm:$0xf]
  %v56 = vld [vmem:[%s1 + $0x88] sm:$0xf]
  %v57 = vld [vmem:[%s1 + $0x8c] sm:$0xf]
  %v58 = vld [vmem:[%s1 + $0x90] sm:$0xf]
  %v59 = vld [vmem:[%s1 + $0x94] sm:$0xf]
  %v60 = vld [vmem:[%s1 + $0x98] sm:$0xf]
  %v61 = vld [vmem:[%s1 + $0x9c] sm:$0xf]
  %v62 = vld [vmem:[%s1 + $0xa0] sm:$0xf]
  %v63 = vld [vmem:[%s1 + $0xa4] sm:$0xf]
  %v64 = vld [vmem:[%s1 + $0xa8] sm:$0xf]
  %v65 = vld [vmem:[%s1 + $0xac] sm:$0xf]
  %v66 = vld [vmem:[%s1 + $0xb0] sm:$0xf]
  %v67 = vld [vmem:[%s1 + $0xb4] sm:$0xf]
  %v68 = vld [vmem:[%s1 + $0xb8] sm:$0xf]
  %v69 = vld [vmem:[%s1 + $0xbc] sm:$0xf]
  %v70 = vld [vmem:[%s1 + $0xc0] sm:$0xf]
  %v71 = vld [vmem:[%s1 + $0xc4] sm:$0xf]
  %v72 = vld [vmem:[%s1 + $0xc8] sm:$0xf]
  %v73 = vld [vmem:[%s1 + $0xcc] sm:$0xf]
  %v74 = vld [vmem:[%s1 + $0xd0] sm:$0xf]
  %v75 = vld [vmem:[%s1 + $0xd4] sm:$0xf]
  %v76 = vld [vmem:[%s1 + $0xd8] sm:$0xf]
  %v77 = vld [vmem:[%s1 + $0xdc] sm:$0xf]
  %v78 = vld [vmem:[%s1 + $0xe0] sm:$0xf]
  %v79 = vld [vmem:[%s1 + $0xe4] sm:$0xf]
  %v80 = vld [vmem:[%s1 + $0xe8] sm:$0xf]
  %v81 = vld [vmem:[%s1 + $0xec] sm:$0xf]
  %v82 = vld [vmem:[%s1 + $0xf0] sm:$0xf]
  %v83 = vld [vmem:[%s1 + $0xf4] sm:$0xf]
  %v84 = vld [vmem:[%s1 + $0xf8] sm:$0xf]
  %v85 = vld [vmem:[%s1 + $0xfc] sm:$0xf]
  %vm86 = vcmp.gt.bf16.partialorder %v22, 0
  %vm87 = vcmp.gt.bf16.partialorder %v23, 0
  %vm88 = vcmp.gt.bf16.partialorder %v24, 0
  %vm89 = vcmp.gt.bf16.partialorder %v25, 0
  %vm90 = vcmp.gt.bf16.partialorder %v26, 0
  %vm91 = vcmp.gt.bf16.partialorder %v27, 0
  %vm92 = vcmp.gt.bf16.partialorder %v28, 0
  %vm93 = vcmp.gt.bf16.partialorder %v29, 0
  %vm94 = vcmp.gt.bf16.partialorder %v30, 0
  %vm95 = vcmp.gt.bf16.partialorder %v31, 0
  %vm96 = vcmp.gt.bf16.partialorder %v32, 0
  %vm97 = vcmp.gt.bf16.partialorder %v33, 0
  %vm98 = vcmp.gt.bf16.partialorder %v34, 0
  %vm99 = vcmp.gt.bf16.partialorder %v35, 0
  %vm100 = vcmp.gt.bf16.partialorder %v36, 0
  %vm101 = vcmp.gt.bf16.partialorder %v37, 0
  %vm102 = vcmp.gt.bf16.partialorder %v38, 0
  %vm103 = vcmp.gt.bf16.partialorder %v39, 0
  %vm104 = vcmp.gt.bf16.partialorder %v40, 0
  %vm105 = vcmp.gt.bf16.partialorder %v41, 0
  %vm106 = vcmp.gt.bf16.partialorder %v42, 0
  %vm107 = vcmp.gt.bf16.partialorder %v43, 0
  %vm108 = vcmp.gt.bf16.partialorder %v44, 0
  %vm109 = vcmp.gt.bf16.partialorder %v45, 0
  %vm110 = vcmp.gt.bf16.partialorder %v46, 0
  %vm111 = vcmp.gt.bf16.partialorder %v47, 0
  %vm112 = vcmp.gt.bf16.partialorder %v48, 0
  %vm113 = vcmp.gt.bf16.partialorder %v49, 0
  %vm114 = vcmp.gt.bf16.partialorder %v50, 0
  %vm115 = vcmp.gt.bf16.partialorder %v51, 0
  %vm116 = vcmp.gt.bf16.partialorder %v52, 0
  %vm117 = vcmp.gt.bf16.partialorder %v53, 0
  %vm118 = vcmp.gt.bf16.partialorder %v54, 0
  %vm119 = vcmp.gt.bf16.partialorder %v55, 0
  %vm120 = vcmp.gt.bf16.partialorder %v56, 0
  %vm121 = vcmp.gt.bf16.partialorder %v57, 0
  %vm122 = vcmp.gt.bf16.partialorder %v58, 0
  %vm123 = vcmp.gt.bf16.partialorder %v59, 0
  %vm124 = vcmp.gt.bf16.partialorder %v60, 0
  %vm125 = vcmp.gt.bf16.partialorder %v61, 0
  %vm126 = vcmp.gt.bf16.partialorder %v62, 0
  %vm127 = vcmp.gt.bf16.partialorder %v63, 0
  %vm128 = vcmp.gt.bf16.partialorder %v64, 0
  %vm129 = vcmp.gt.bf16.partialorder %v65, 0
  %vm130 = vcmp.gt.bf16.partialorder %v66, 0
  %vm131 = vcmp.gt.bf16.partialorder %v67, 0
  %vm132 = vcmp.gt.bf16.partialorder %v68, 0
  %vm133 = vcmp.gt.bf16.partialorder %v69, 0
  %vm134 = vcmp.gt.bf16.partialorder %v70, 0
  %vm135 = vcmp.gt.bf16.partialorder %v71, 0
  %vm136 = vcmp.gt.bf16.partialorder %v72, 0
  %vm137 = vcmp.gt.bf16.partialorder %v73, 0
  %vm138 = vcmp.gt.bf16.partialorder %v74, 0
  %vm139 = vcmp.gt.bf16.partialorder %v75, 0
  %vm140 = vcmp.gt.bf16.partialorder %v76, 0
  %vm141 = vcmp.gt.bf16.partialorder %v77, 0
  %vm142 = vcmp.gt.bf16.partialorder %v78, 0
  %vm143 = vcmp.gt.bf16.partialorder %v79, 0
  %vm144 = vcmp.gt.bf16.partialorder %v80, 0
  %vm145 = vcmp.gt.bf16.partialorder %v81, 0
  %vm146 = vcmp.gt.bf16.partialorder %v82, 0
  %vm147 = vcmp.gt.bf16.partialorder %v83, 0
  %vm148 = vcmp.gt.bf16.partialorder %v84, 0
  %vm149 = vcmp.gt.bf16.partialorder %v85, 0
  %v150 = vmul.bf16 %v22, 1045249613
  %v151 = vmul.bf16 %v23, 1045249613
  %v152 = vmul.bf16 %v24, 1045249613
  %v153 = vmul.bf16 %v25, 1045249613
  %v154 = vmul.bf16 %v26, 1045249613
  %v155 = vmul.bf16 %v27, 1045249613
  %v156 = vmul.bf16 %v28, 1045249613
  %v157 = vmul.bf16 %v29, 1045249613
  %v158 = vmul.bf16 %v30, 1045249613
  %v159 = vmul.bf16 %v31, 1045249613
  %v160 = vmul.bf16 %v32, 1045249613
  %v161 = vmul.bf16 %v33, 1045249613
  %v162 = vmul.bf16 %v34, 1045249613
  %v163 = vmul.bf16 %v35, 1045249613
  %v164 = vmul.bf16 %v36, 1045249613
  %v165 = vmul.bf16 %v37, 1045249613
  %v166 = vmul.bf16 %v38, 1045249613
  %v167 = vmul.bf16 %v39, 1045249613
  %v168 = vmul.bf16 %v40, 1045249613
  %v169 = vmul.bf16 %v41, 1045249613
  %v170 = vmul.bf16 %v42, 1045249613
  %v171 = vmul.bf16 %v43, 1045249613
  %v172 = vmul.bf16 %v44, 1045249613
  %v173 = vmul.bf16 %v45, 1045249613
  %v174 = vmul.bf16 %v46, 1045249613
  %v175 = vmul.bf16 %v47, 1045249613
  %v176 = vmul.bf16 %v48, 1045249613
  %v177 = vmul.bf16 %v49, 1045249613
  %v178 = vmul.bf16 %v50, 1045249613
  %v179 = vmul.bf16 %v51, 1045249613
  %v180 = vmul.bf16 %v52, 1045249613
  %v181 = vmul.bf16 %v53, 1045249613
  %v182 = vmul.bf16 %v54, 1045249613
  %v183 = vmul.bf16 %v55, 1045249613
  %v184 = vmul.bf16 %v56, 1045249613
  %v185 = vmul.bf16 %v57, 1045249613
  %v186 = vmul.bf16 %v58, 1045249613
  %v187 = vmul.bf16 %v59, 1045249613
  %v188 = vmul.bf16 %v60, 1045249613
  %v189 = vmul.bf16 %v61, 1045249613
  %v190 = vmul.bf16 %v62, 1045249613
  %v191 = vmul.bf16 %v63, 1045249613
  %v192 = vmul.bf16 %v64, 1045249613
  %v193 = vmul.bf16 %v65, 1045249613
  %v194 = vmul.bf16 %v66, 1045249613
  %v195 = vmul.bf16 %v67, 1045249613
  %v196 = vmul.bf16 %v68, 1045249613
  %v197 = vmul.bf16 %v69, 1045249613
  %v198 = vmul.bf16 %v70, 1045249613
  %v199 = vmul.bf16 %v71, 1045249613
  %v200 = vmul.bf16 %v72, 1045249613
  %v201 = vmul.bf16 %v73, 1045249613
  %v202 = vmul.bf16 %v74, 1045249613
  %v203 = vmul.bf16 %v75, 1045249613
  %v204 = vmul.bf16 %v76, 1045249613
  %v205 = vmul.bf16 %v77, 1045249613
  %v206 = vmul.bf16 %v78, 1045249613
  %v207 = vmul.bf16 %v79, 1045249613
  %v208 = vmul.bf16 %v80, 1045249613
  %v209 = vmul.bf16 %v81, 1045249613
  %v210 = vmul.bf16 %v82, 1045249613
  %v211 = vmul.bf16 %v83, 1045249613
  %v212 = vmul.bf16 %v84, 1045249613
  %v213 = vmul.bf16 %v85, 1045249613
  %v214 = vsel %vm86, %v22, %v150
  %v215 = vsel %vm87, %v23, %v151
  %v216 = vsel %vm88, %v24, %v152
  %v217 = vsel %vm89, %v25, %v153
  %v218 = vsel %vm90, %v26, %v154
  %v219 = vsel %vm91, %v27, %v155
  %v220 = vsel %vm92, %v28, %v156
  %v221 = vsel %vm93, %v29, %v157
  %v222 = vsel %vm94, %v30, %v158
  %v223 = vsel %vm95, %v31, %v159
  %v224 = vsel %vm96, %v32, %v160
  %v225 = vsel %vm97, %v33, %v161
  %v226 = vsel %vm98, %v34, %v162
  %v227 = vsel %vm99, %v35, %v163
  %v228 = vsel %vm100, %v36, %v164
  %v229 = vsel %vm101, %v37, %v165
  %v230 = vsel %vm102, %v38, %v166
  %v231 = vsel %vm103, %v39, %v167
  %v232 = vsel %vm104, %v40, %v168
  %v233 = vsel %vm105, %v41, %v169
  %v234 = vsel %vm106, %v42, %v170
  %v235 = vsel %vm107, %v43, %v171
  %v236 = vsel %vm108, %v44, %v172
  %v237 = vsel %vm109, %v45, %v173
  %v238 = vsel %vm110, %v46, %v174
  %v239 = vsel %vm111, %v47, %v175
  %v240 = vsel %vm112, %v48, %v176
  %v241 = vsel %vm113, %v49, %v177
  %v242 = vsel %vm114, %v50, %v178
  %v243 = vsel %vm115, %v51, %v179
  %v244 = vsel %vm116, %v52, %v180
  %v245 = vsel %vm117, %v53, %v181
  %v246 = vsel %vm118, %v54, %v182
  %v247 = vsel %vm119, %v55, %v183
  %v248 = vsel %vm120, %v56, %v184
  %v249 = vsel %vm121, %v57, %v185
  %v250 = vsel %vm122, %v58, %v186
  %v251 = vsel %vm123, %v59, %v187
  %v252 = vsel %vm124, %v60, %v188
  %v253 = vsel %vm125, %v61, %v189
  %v254 = vsel %vm126, %v62, %v190
  %v255 = vsel %vm127, %v63, %v191
  %v256 = vsel %vm128, %v64, %v192
  %v257 = vsel %vm129, %v65, %v193
  %v258 = vsel %vm130, %v66, %v194
  %v259 = vsel %vm131, %v67, %v195
  %v260 = vsel %vm132, %v68, %v196
  %v261 = vsel %vm133, %v69, %v197
  %v262 = vsel %vm134, %v70, %v198
  %v263 = vsel %vm135, %v71, %v199
  %v264 = vsel %vm136, %v72, %v200
  %v265 = vsel %vm137, %v73, %v201
  %v266 = vsel %vm138, %v74, %v202
  %v267 = vsel %vm139, %v75, %v203
  %v268 = vsel %vm140, %v76, %v204
  %v269 = vsel %vm141, %v77, %v205
  %v270 = vsel %vm142, %v78, %v206
  %v271 = vsel %vm143, %v79, %v207
  %v272 = vsel %vm144, %v80, %v208
  %v273 = vsel %vm145, %v81, %v209
  %v274 = vsel %vm146, %v82, %v210
  %v275 = vsel %vm147, %v83, %v211
  %v276 = vsel %vm148, %v84, %v212
  %v277 = vsel %vm149, %v85, %v213
  %v278 = vld [vmem:[%s0] sm:$0xff]
  %v279 = vld [vmem:[%s0 + $0x8] sm:$0xff]
  %v280 = vld [vmem:[%s0 + $0x10] sm:$0xff]
  %v281 = vld [vmem:[%s0 + $0x18] sm:$0xff]
  %v282 = vld [vmem:[%s0 + $0x20] sm:$0xff]
  %v283 = vld [vmem:[%s0 + $0x28] sm:$0xff]
  %v284 = vld [vmem:[%s0 + $0x30] sm:$0xff]
  %v285 = vld [vmem:[%s0 + $0x38] sm:$0xff]
  %v286 = vld [vmem:[%s0 + $0x40] sm:$0xff]
  %v287 = vld [vmem:[%s0 + $0x48] sm:$0xff]
  %v288 = vld [vmem:[%s0 + $0x50] sm:$0xff]
  %v289 = vld [vmem:[%s0 + $0x58] sm:$0xff]
  %v290 = vld [vmem:[%s0 + $0x60] sm:$0xff]
  %v291 = vld [vmem:[%s0 + $0x68] sm:$0xff]
  %v292 = vld [vmem:[%s0 + $0x70] sm:$0xff]
  %v293 = vld [vmem:[%s0 + $0x78] sm:$0xff]
  %v310 = vunpack.c.l.b16 %v278
  %v311 = vunpack.c.h.b16 %v278
  %v312 = vunpack.c.l.b16 %v279
  %v313 = vunpack.c.h.b16 %v279
  %v314 = vunpack.c.l.b16 %v280
  %v315 = vunpack.c.h.b16 %v280
  %v316 = vunpack.c.l.b16 %v281
  %v317 = vunpack.c.h.b16 %v281
  %v318 = vunpack.c.l.b16 %v282
  %v319 = vunpack.c.h.b16 %v282
  %v320 = vunpack.c.l.b16 %v283
  %v321 = vunpack.c.h.b16 %v283
  %v322 = vunpack.c.l.b16 %v284
  %v323 = vunpack.c.h.b16 %v284
  %v324 = vunpack.c.l.b16 %v285
  %v325 = vunpack.c.h.b16 %v285
  %v326 = vunpack.c.l.b16 %v286
  %v327 = vunpack.c.h.b16 %v286
  %v328 = vunpack.c.l.b16 %v287
  %v329 = vunpack.c.h.b16 %v287
  %v330 = vunpack.c.l.b16 %v288
  %v331 = vunpack.c.h.b16 %v288
  %v332 = vunpack.c.l.b16 %v289
  %v333 = vunpack.c.h.b16 %v289
  %v334 = vunpack.c.l.b16 %v290
  %v335 = vunpack.c.h.b16 %v290
  %v336 = vunpack.c.l.b16 %v291
  %v337 = vunpack.c.h.b16 %v291
  %v338 = vunpack.c.l.b16 %v292
  %v339 = vunpack.c.h.b16 %v292
  %v340 = vunpack.c.l.b16 %v293
  %v341 = vunpack.c.h.b16 %v293
  %v342 = vpack.c.b16 %v314, %v310
  %v343 = vpack.c.b16 %v315, %v311
  %v344 = vpack.c.b16 %v316, %v312
  %v345 = vpack.c.b16 %v317, %v313
  %v346 = vpack.c.b16 %v322, %v318
  %v347 = vpack.c.b16 %v323, %v319
  %v348 = vpack.c.b16 %v324, %v320
  %v349 = vpack.c.b16 %v325, %v321
  %v350 = vpack.c.b16 %v330, %v326
  %v351 = vpack.c.b16 %v331, %v327
  %v352 = vpack.c.b16 %v332, %v328
  %v353 = vpack.c.b16 %v333, %v329
  %v354 = vpack.c.b16 %v338, %v334
  %v355 = vpack.c.b16 %v339, %v335
  %v356 = vpack.c.b16 %v340, %v336
  %v357 = vpack.c.b16 %v341, %v337
  %v438 = vunpack.c.l.b16 %v214
  %v439 = vunpack.c.l.b16 %v215
  %v440 = vunpack.c.l.b16 %v216
  %v441 = vunpack.c.l.b16 %v217
  %v442 = vunpack.c.l.b16 %v218
  %v443 = vunpack.c.l.b16 %v219
  %v444 = vunpack.c.l.b16 %v220
  %v445 = vunpack.c.l.b16 %v221
  %v446 = vunpack.c.l.b16 %v222
  %v447 = vunpack.c.l.b16 %v223
  %v448 = vunpack.c.l.b16 %v224
  %v449 = vunpack.c.l.b16 %v225
  %v450 = vunpack.c.l.b16 %v226
  %v451 = vunpack.c.l.b16 %v227
  %v452 = vunpack.c.l.b16 %v228
  %v453 = vunpack.c.l.b16 %v229
  %v454 = vunpack.c.l.b16 %v230
  %v455 = vunpack.c.l.b16 %v231
  %v456 = vunpack.c.l.b16 %v232
  %v457 = vunpack.c.l.b16 %v233
  %v458 = vunpack.c.l.b16 %v234
  %v459 = vunpack.c.l.b16 %v235
  %v460 = vunpack.c.l.b16 %v236
  %v461 = vunpack.c.l.b16 %v237
  %v462 = vunpack.c.l.b16 %v238
  %v463 = vunpack.c.l.b16 %v239
  %v464 = vunpack.c.l.b16 %v240
  %v465 = vunpack.c.l.b16 %v241
  %v466 = vunpack.c.l.b16 %v242
  %v467 = vunpack.c.l.b16 %v243
  %v468 = vunpack.c.l.b16 %v244
  %v469 = vunpack.c.l.b16 %v245
  %v470 = vunpack.c.l.b16 %v246
  %v471 = vunpack.c.l.b16 %v247
  %v472 = vunpack.c.l.b16 %v248
  %v473 = vunpack.c.l.b16 %v249
  %v474 = vunpack.c.l.b16 %v250
  %v475 = vunpack.c.l.b16 %v251
  %v476 = vunpack.c.l.b16 %v252
  %v477 = vunpack.c.l.b16 %v253
  %v478 = vunpack.c.l.b16 %v254
  %v479 = vunpack.c.l.b16 %v255
  %v480 = vunpack.c.l.b16 %v256
  %v481 = vunpack.c.l.b16 %v257
  %v482 = vunpack.c.l.b16 %v258
  %v483 = vunpack.c.l.b16 %v259
  %v484 = vunpack.c.l.b16 %v260
  %v485 = vunpack.c.l.b16 %v261
  %v486 = vunpack.c.l.b16 %v262
  %v487 = vunpack.c.l.b16 %v263
  %v488 = vunpack.c.l.b16 %v264
  %v489 = vunpack.c.l.b16 %v265
  %v490 = vunpack.c.l.b16 %v266
  %v491 = vunpack.c.l.b16 %v267
  %v492 = vunpack.c.l.b16 %v268
  %v493 = vunpack.c.l.b16 %v269
  %v494 = vunpack.c.l.b16 %v270
  %v495 = vunpack.c.l.b16 %v271
  %v496 = vunpack.c.l.b16 %v272
  %v497 = vunpack.c.l.b16 %v273
  %v498 = vunpack.c.l.b16 %v274
  %v499 = vunpack.c.l.b16 %v275
  %v500 = vunpack.c.l.b16 %v276
  %v501 = vunpack.c.l.b16 %v277
  %v502 = vpack.c.b16 %v439, %v438
  %v503 = vpack.c.b16 %v441, %v440
  %v504 = vpack.c.b16 %v443, %v442
  %v505 = vpack.c.b16 %v445, %v444
  %v506 = vpack.c.b16 %v447, %v446
  %v507 = vpack.c.b16 %v449, %v448
  %v508 = vpack.c.b16 %v451, %v450
  %v509 = vpack.c.b16 %v453, %v452
  %v510 = vpack.c.b16 %v455, %v454
  %v511 = vpack.c.b16 %v457, %v456
  %v512 = vpack.c.b16 %v459, %v458
  %v513 = vpack.c.b16 %v461, %v460
  %v514 = vpack.c.b16 %v463, %v462
  %v515 = vpack.c.b16 %v465, %v464
  %v516 = vpack.c.b16 %v467, %v466
  %v517 = vpack.c.b16 %v469, %v468
  %v518 = vpack.c.b16 %v471, %v470
  %v519 = vpack.c.b16 %v473, %v472
  %v520 = vpack.c.b16 %v475, %v474
  %v521 = vpack.c.b16 %v477, %v476
  %v522 = vpack.c.b16 %v479, %v478
  %v523 = vpack.c.b16 %v481, %v480
  %v524 = vpack.c.b16 %v483, %v482
  %v525 = vpack.c.b16 %v485, %v484
  %v526 = vpack.c.b16 %v487, %v486
  %v527 = vpack.c.b16 %v489, %v488
  %v528 = vpack.c.b16 %v491, %v490
  %v529 = vpack.c.b16 %v493, %v492
  %v530 = vpack.c.b16 %v495, %v494
  %v531 = vpack.c.b16 %v497, %v496
  %v532 = vpack.c.b16 %v499, %v498
  %v533 = vpack.c.b16 %v501, %v500
  %566 = vmatprep.subr.bf16.mxu0 0
  %567 = vmatpush1.bf16.msra.mxu0 %v502
  %568 = vmatprep.subr.bf16.mxu0 0
  %569 = vmatpush1.bf16.msra.mxu0 %v503
  %570 = vmatprep.subr.bf16.mxu0 0
  %571 = vmatpush1.bf16.msra.mxu0 %v504
  %572 = vmatprep.subr.bf16.mxu0 0
  %573 = vmatpush1.bf16.msra.mxu0 %v505
  %574 = vmatprep.subr.bf16.mxu0 0
  %575 = vmatpush1.bf16.msra.mxu0 %v506
  %576 = vmatprep.subr.bf16.mxu0 0
  %577 = vmatpush1.bf16.msra.mxu0 %v507
  %578 = vmatprep.subr.bf16.mxu0 0
  %579 = vmatpush1.bf16.msra.mxu0 %v508
  %580 = vmatprep.subr.bf16.mxu0 0
  %581 = vmatpush1.bf16.msra.mxu0 %v509
  %582 = vmatprep.subr.bf16.mxu0 0
  %583 = vmatpush1.bf16.msra.mxu0 %v510
  %584 = vmatprep.subr.bf16.mxu0 0
  %585 = vmatpush1.bf16.msra.mxu0 %v511
  %586 = vmatprep.subr.bf16.mxu0 0
  %587 = vmatpush1.bf16.msra.mxu0 %v512
  %588 = vmatprep.subr.bf16.mxu0 0
  %589 = vmatpush1.bf16.msra.mxu0 %v513
  %590 = vmatprep.subr.bf16.mxu0 0
  %591 = vmatpush1.bf16.msra.mxu0 %v514
  %592 = vmatprep.subr.bf16.mxu0 0
  %593 = vmatpush1.bf16.msra.mxu0 %v515
  %594 = vmatprep.subr.bf16.mxu0 0
  %595 = vmatpush1.bf16.msra.mxu0 %v516
  %596 = vmatprep.subr.bf16.mxu0 0
  %597 = vmatpush1.bf16.msra.mxu0 %v517
  %598 = vmatprep.mubr.bf16.mxu0 %v343
  %599 = vmatmul.mubr.bf16.gmra.mrb[0].mxu0 %v342
  %v600 = vpop.f32.mrb[0].mxu0
  %v601 = vadd.f32 0.0, %v600
  %v602 = vpop.f32.mrb[0].mxu0
  %v603 = vpop.f32.mrb[0].mxu0
  %v604 = vadd.f32 0.0, %v603
  %v605 = vpop.f32.mrb[0].mxu0
  %606 = vmatprep.mubr.bf16.mxu0 %v347
  %607 = vmatmul.mubr.bf16.gmra.mrb[0].mxu0 %v346
  %v608 = vpop.f32.mrb[0].mxu0
  %v609 = vadd.f32 0.0, %v608
  %v610 = vpop.f32.mrb[0].mxu0
  %v611 = vpop.f32.mrb[0].mxu0
  %v612 = vadd.f32 0.0, %v611
  %v613 = vpop.f32.mrb[0].mxu0
  %614 = vmatprep.mubr.bf16.mxu0 %v351
  %615 = vmatmul.mubr.bf16.gmra.mrb[0].mxu0 %v350
  %v616 = vpop.f32.mrb[0].mxu0
  %v617 = vadd.f32 0.0, %v616
  %v618 = vpop.f32.mrb[0].mxu0
  %v619 = vpop.f32.mrb[0].mxu0
  %v620 = vadd.f32 0.0, %v619
  %v621 = vpop.f32.mrb[0].mxu0
  %622 = vmatprep.mubr.bf16.mxu0 %v355
  %623 = vmatmul.mubr.bf16.gmra.mrb[0].mxu0 %v354
  %v624 = vpop.f32.mrb[0].mxu0
  %v625 = vadd.f32 0.0, %v624
  %v626 = vpop.f32.mrb[0].mxu0
  %v627 = vpop.f32.mrb[0].mxu0
  %v628 = vadd.f32 0.0, %v627
  %v629 = vpop.f32.mrb[0].mxu0
  %630 = vdwg.mxu0
  %631 = vmatprep.subr.bf16.mxu0 0
  %632 = vmatpush1.bf16.msra.mxu0 %v518
  %633 = vmatprep.subr.bf16.mxu0 0
  %634 = vmatpush1.bf16.msra.mxu0 %v519
  %635 = vmatprep.subr.bf16.mxu0 0
  %636 = vmatpush1.bf16.msra.mxu0 %v520
  %637 = vmatprep.subr.bf16.mxu0 0
  %638 = vmatpush1.bf16.msra.mxu0 %v521
  %639 = vmatprep.subr.bf16.mxu0 0
  %640 = vmatpush1.bf16.msra.mxu0 %v522
  %641 = vmatprep.subr.bf16.mxu0 0
  %642 = vmatpush1.bf16.msra.mxu0 %v523
  %643 = vmatprep.subr.bf16.mxu0 0
  %644 = vmatpush1.bf16.msra.mxu0 %v524
  %645 = vmatprep.subr.bf16.mxu0 0
  %646 = vmatpush1.bf16.msra.mxu0 %v525
  %647 = vmatprep.subr.bf16.mxu0 0
  %648 = vmatpush1.bf16.msra.mxu0 %v526
  %649 = vmatprep.subr.bf16.mxu0 0
  %650 = vmatpush1.bf16.msra.mxu0 %v527
  %651 = vmatprep.subr.bf16.mxu0 0
  %652 = vmatpush1.bf16.msra.mxu0 %v528
  %653 = vmatprep.subr.bf16.mxu0 0
  %654 = vmatpush1.bf16.msra.mxu0 %v529
  %655 = vmatprep.subr.bf16.mxu0 0
  %656 = vmatpush1.bf16.msra.mxu0 %v530
  %657 = vmatprep.subr.bf16.mxu0 0
  %658 = vmatpush1.bf16.msra.mxu0 %v531
  %659 = vmatprep.subr.bf16.mxu0 0
  %660 = vmatpush1.bf16.msra.mxu0 %v532
  %661 = vmatprep.subr.bf16.mxu0 0
  %662 = vmatpush1.bf16.msra.mxu0 %v533
  %663 = vmatprep.mubr.bf16.mxu0 %v345
  %664 = vmatmul.mubr.bf16.gmra.mrb[0].mxu0 %v344
  %v665 = vpop.f32.mrb[0].mxu0
  %v666 = vadd.f32 %v601, %v665
  %v667 = vpop.f32.mrb[0].mxu0
  %v668 = vpop.f32.mrb[0].mxu0
  %v669 = vadd.f32 %v604, %v668
  %v670 = vpop.f32.mrb[0].mxu0
  %671 = vmatprep.mubr.bf16.mxu0 %v349
  %672 = vmatmul.mubr.bf16.gmra.mrb[0].mxu0 %v348
  %v673 = vpop.f32.mrb[0].mxu0
  %v674 = vadd.f32 %v609, %v673
  %v675 = vpop.f32.mrb[0].mxu0
  %v676 = vpop.f32.mrb[0].mxu0
  %v677 = vadd.f32 %v612, %v676
  %v678 = vpop.f32.mrb[0].mxu0
  %679 = vmatprep.mubr.bf16.mxu0 %v353
  %680 = vmatmul.mubr.bf16.gmra.mrb[0].mxu0 %v352
  %v681 = vpop.f32.mrb[0].mxu0
  %v682 = vadd.f32 %v617, %v681
  %v683 = vpop.f32.mrb[0].mxu0
  %v684 = vpop.f32.mrb[0].mxu0
  %v685 = vadd.f32 %v620, %v684
  %v686 = vpop.f32.mrb[0].mxu0
  %687 = vmatprep.mubr.bf16.mxu0 %v357
  %688 = vmatmul.mubr.bf16.gmra.mrb[0].mxu0 %v356
  %v689 = vpop.f32.mrb[0].mxu0
  %v690 = vadd.f32 %v625, %v689
  %v691 = vpop.f32.mrb[0].mxu0
  %v692 = vpop.f32.mrb[0].mxu0
  %v693 = vadd.f32 %v628, %v692
  %v694 = vpop.f32.mrb[0].mxu0
  %695 = vdwg.mxu0
  %vm696 = vcmask 64512
  %v697 = vsel %vm696, %v666, 0.0
  %698 = vadd.xlane.f32.xlu0 %v697
  %v699 = vpop.xlane.xlu0 %698
  %v700 = vsel %vm696, %v669, 0.0
  %701 = vadd.xlane.f32.xlu0 %v700
  %v702 = vpop.xlane.xlu0 %701
  %v703 = vsel %vm696, %v674, 0.0
  %704 = vadd.xlane.f32.xlu0 %v703
  %v705 = vpop.xlane.xlu0 %704
  %v706 = vsel %vm696, %v677, 0.0
  %707 = vadd.xlane.f32.xlu0 %v706
  %v708 = vpop.xlane.xlu0 %707
  %v709 = vsel %vm696, %v682, 0.0
  %710 = vadd.xlane.f32.xlu0 %v709
  %v711 = vpop.xlane.xlu0 %710
  %v712 = vsel %vm696, %v685, 0.0
  %713 = vadd.xlane.f32.xlu0 %v712
  %v714 = vpop.xlane.xlu0 %713
  %v715 = vsel %vm696, %v690, 0.0
  %716 = vadd.xlane.f32.xlu0 %v715
  %v717 = vpop.xlane.xlu0 %716
  %v718 = vsel %vm696, %v693, 0.0
  %719 = vadd.xlane.f32.xlu0 %v718
  %v720 = vpop.xlane.xlu0 %719
  %v721 = vrcp.pop 8.0
  %v722 = vmul.f32 %v699, %v721
  %v723 = vmul.f32 %v702, %v721
  %v724 = vmul.f32 %v705, %v721
  %v725 = vmul.f32 %v708, %v721
  %v726 = vmul.f32 %v711, %v721
  %v727 = vmul.f32 %v714, %v721
  %v728 = vmul.f32 %v717, %v721
  %v729 = vmul.f32 %v720, %v721
  %v730 = vsub.f32 %v666, %v722
  %v731 = vsub.f32 %v669, %v723
  %v732 = vsub.f32 %v674, %v724
  %v733 = vsub.f32 %v677, %v725
  %v734 = vsub.f32 %v682, %v726
  %v735 = vsub.f32 %v685, %v727
  %v736 = vsub.f32 %v690, %v728
  %v737 = vsub.f32 %v693, %v729
  %v738 = vmul.f32 %v730, %v730
  %v739 = vmul.f32 %v731, %v731
  %v740 = vmul.f32 %v732, %v732
  %v741 = vmul.f32 %v733, %v733
  %v742 = vmul.f32 %v734, %v734
  %v743 = vmul.f32 %v735, %v735
  %v744 = vmul.f32 %v736, %v736
  %v745 = vmul.f32 %v737, %v737
  %v746 = vsel %vm696, %v738, 0.0
  %747 = vadd.xlane.f32.xlu0 %v746
  %v748 = vpop.xlane.xlu0 %747
  %v749 = vsel %vm696, %v739, 0.0
  %750 = vadd.xlane.f32.xlu0 %v749
  %v751 = vpop.xlane.xlu0 %750
  %v752 = vsel %vm696, %v740, 0.0
  %753 = vadd.xlane.f32.xlu0 %v752
  %v754 = vpop.xlane.xlu0 %753
  %v755 = vsel %vm696, %v741, 0.0
  %756 = vadd.xlane.f32.xlu0 %v755
  %v757 = vpop.xlane.xlu0 %756
  %v758 = vsel %vm696, %v742, 0.0
  %759 = vadd.xlane.f32.xlu0 %v758
  %v760 = vpop.xlane.xlu0 %759
  %v761 = vsel %vm696, %v743, 0.0
  %762 = vadd.xlane.f32.xlu0 %v761
  %v763 = vpop.xlane.xlu0 %762
  %v764 = vsel %vm696, %v744, 0.0
  %765 = vadd.xlane.f32.xlu0 %v764
  %v766 = vpop.xlane.xlu0 %765
  %v767 = vsel %vm696, %v745, 0.0
  %768 = vadd.xlane.f32.xlu0 %v767
  %v769 = vpop.xlane.xlu0 %768
  %v770 = vmul.f32 %v748, %v721
  %v771 = vmul.f32 %v751, %v721
  %v772 = vmul.f32 %v754, %v721
  %v773 = vmul.f32 %v757, %v721
  %v774 = vmul.f32 %v760, %v721
  %v775 = vmul.f32 %v763, %v721
  %v776 = vmul.f32 %v766, %v721
  %v777 = vmul.f32 %v769, %v721
  %v778 = vadd.f32 %v770, 1e-05
  %v779 = vadd.f32 %v771, 1e-05
  %v780 = vadd.f32 %v772, 1e-05
  %v781 = vadd.f32 %v773, 1e-05
  %v782 = vadd.f32 %v774, 1e-05
  %v783 = vadd.f32 %v775, 1e-05
  %v784 = vadd.f32 %v776, 1e-05
  %v785 = vadd.f32 %v777, 1e-05
  %v786 = vrsqrt.pop %v778
  %v787 = vrsqrt.pop %v779
  %v788 = vrsqrt.pop %v780
  %v789 = vrsqrt.pop %v781
  %v790 = vrsqrt.pop %v782
  %v791 = vrsqrt.pop %v783
  %v792 = vrsqrt.pop %v784
  %v793 = vrsqrt.pop %v785
  %v794 = vmul.f32 %v730, %v786
  %v795 = vmul.f32 %v731, %v787
  %v796 = vmul.f32 %v732, %v788
  %v797 = vmul.f32 %v733, %v789
  %v798 = vmul.f32 %v734, %v790
  %v799 = vmul.f32 %v735, %v791
  %v800 = vmul.f32 %v736, %v792
  %v801 = vmul.f32 %v737, %v793
  %v802 = vld [vmem:[%s3] sm:$0xff]
  %v803 = vld [vmem:[%s3 + $0x8] sm:$0xff]
  %v804 = vld [vmem:[%s3 + $0x10] sm:$0xff]
  %v805 = vld [vmem:[%s3 + $0x18] sm:$0xff]
  %v806 = vld [vmem:[%s3 + $0x20] sm:$0xff]
  %v807 = vld [vmem:[%s3 + $0x28] sm:$0xff]
  %v808 = vld [vmem:[%s3 + $0x30] sm:$0xff]
  %v809 = vld [vmem:[%s3 + $0x38] sm:$0xff]
  %811 = vset.pattern.permute.xlu0 0
  %812 = vperm.xlu0 %811, %v802
  %v813 = vpop.permute.xlu0 %812
  %816 = vset.pattern.permute.xlu0 0
  %817 = vperm.xlu0 %816, %v803
  %v818 = vpop.permute.xlu0 %817
  %821 = vset.pattern.permute.xlu0 0
  %822 = vperm.xlu0 %821, %v804
  %v823 = vpop.permute.xlu0 %822
  %826 = vset.pattern.permute.xlu0 0
  %827 = vperm.xlu0 %826, %v805
  %v828 = vpop.permute.xlu0 %827
  %831 = vset.pattern.permute.xlu0 0
  %832 = vperm.xlu0 %831, %v806
  %v833 = vpop.permute.xlu0 %832
  %836 = vset.pattern.permute.xlu0 0
  %837 = vperm.xlu0 %836, %v807
  %v838 = vpop.permute.xlu0 %837
  %841 = vset.pattern.permute.xlu0 0
  %842 = vperm.xlu0 %841, %v808
  %v843 = vpop.permute.xlu0 %842
  %846 = vset.pattern.permute.xlu0 0
  %847 = vperm.xlu0 %846, %v809
  %v848 = vpop.permute.xlu0 %847
  %v850 = vmul.f32 %v794, %v813
  %v851 = vmul.f32 %v795, %v818
  %v852 = vmul.f32 %v796, %v823
  %v853 = vmul.f32 %v797, %v828
  %v854 = vmul.f32 %v798, %v833
  %v855 = vmul.f32 %v799, %v838
  %v856 = vmul.f32 %v800, %v843
  %v857 = vmul.f32 %v801, %v848
  %v858 = vld [vmem:[%s4] sm:$0xff]
  %v859 = vld [vmem:[%s4 + $0x8] sm:$0xff]
  %v860 = vld [vmem:[%s4 + $0x10] sm:$0xff]
  %v861 = vld [vmem:[%s4 + $0x18] sm:$0xff]
  %v862 = vld [vmem:[%s4 + $0x20] sm:$0xff]
  %v863 = vld [vmem:[%s4 + $0x28] sm:$0xff]
  %v864 = vld [vmem:[%s4 + $0x30] sm:$0xff]
  %v865 = vld [vmem:[%s4 + $0x38] sm:$0xff]
  %867 = vset.pattern.permute.xlu0 0
  %868 = vperm.xlu0 %867, %v858
  %v869 = vpop.permute.xlu0 %868
  %872 = vset.pattern.permute.xlu0 0
  %873 = vperm.xlu0 %872, %v859
  %v874 = vpop.permute.xlu0 %873
  %877 = vset.pattern.permute.xlu0 0
  %878 = vperm.xlu0 %877, %v860
  %v879 = vpop.permute.xlu0 %878
  %882 = vset.pattern.permute.xlu0 0
  %883 = vperm.xlu0 %882, %v861
  %v884 = vpop.permute.xlu0 %883
  %887 = vset.pattern.permute.xlu0 0
  %888 = vperm.xlu0 %887, %v862
  %v889 = vpop.permute.xlu0 %888
  %892 = vset.pattern.permute.xlu0 0
  %893 = vperm.xlu0 %892, %v863
  %v894 = vpop.permute.xlu0 %893
  %897 = vset.pattern.permute.xlu0 0
  %898 = vperm.xlu0 %897, %v864
  %v899 = vpop.permute.xlu0 %898
  %902 = vset.pattern.permute.xlu0 0
  %903 = vperm.xlu0 %902, %v865
  %v904 = vpop.permute.xlu0 %903
  %v906 = vadd.f32 %v850, %v869
  %v907 = vadd.f32 %v851, %v874
  %v908 = vadd.f32 %v852, %v879
  %v909 = vadd.f32 %v853, %v884
  %v910 = vadd.f32 %v854, %v889
  %v911 = vadd.f32 %v855, %v894
  %v912 = vadd.f32 %v856, %v899
  %v913 = vadd.f32 %v857, %v904
  %v914 = vpack.c.bf16 %v907, %v906
  %v915 = vpack.c.bf16 %v909, %v908
  %v916 = vpack.c.bf16 %v911, %v910
  %v917 = vpack.c.bf16 %v913, %v912
  %v922 = vunpack.c.l.b16 %v914
  %v923 = vunpack.c.h.b16 %v914
  %v924 = vunpack.c.l.b16 %v915
  %v925 = vunpack.c.h.b16 %v915
  %v926 = vunpack.c.l.b16 %v916
  %v927 = vunpack.c.h.b16 %v916
  %v928 = vunpack.c.l.b16 %v917
  %v929 = vunpack.c.h.b16 %v917
  %v930 = vpack.c.b16 %v922, %v922
  %v931 = vpack.c.b16 %v923, %v923
  %v932 = vpack.c.b16 %v924, %v924
  %v933 = vpack.c.b16 %v925, %v925
  %v934 = vpack.c.b16 %v926, %v926
  %v935 = vpack.c.b16 %v927, %v927
  %v936 = vpack.c.b16 %v928, %v928
  %v937 = vpack.c.b16 %v929, %v929
  %vm946 = vcmask 60416
  %947 = vst.msk [vmem:[%s5] sm:$0xf] %vm946, %v930
  %948 = vst.msk [vmem:[%s5 + $0x4] sm:$0xf] %vm946, %v931
  %949 = vst.msk [vmem:[%s5 + $0x8] sm:$0xf] %vm946, %v932
  %950 = vst.msk [vmem:[%s5 + $0xc] sm:$0xf] %vm946, %v933
  %951 = vst.msk [vmem:[%s5 + $0x10] sm:$0xf] %vm946, %v934
  %952 = vst.msk [vmem:[%s5 + $0x14] sm:$0xf] %vm946, %v935
  %953 = vst.msk [vmem:[%s5 + $0x18] sm:$0xf] %vm946, %v936
  %954 = vst.msk [vmem:[%s5 + $0x1c] sm:$0xf] %vm946, %v937
  // Predicated region
  $region22: #{unet_generator_forward.13} parent=0 // pred_check
    _
  $region23: #{unet_generator_forward.13} parent=0 // pred_check_branch
    %956 = sbr.rel (0) target = $region25
  $region24: #{unet_generator_forward.13} parent=0 // pred_region
    _
  $region25: #{unet_generator_forward.13} parent=0 // pred_fallthru
    _
  // Predicated region
  $region26: #{unet_generator_forward.13} parent=0 // pred_check
    _
  $region27: #{unet_generator_forward.13} parent=0 // pred_check_branch
    %958 = sbr.rel (0) target = $region29
  $region28: #{unet_generator_forward.13} parent=0 // pred_region
    _
  $region29: #{unet_generator_forward.13} parent=0 // pred_fallthru
    _

// kernel: unet_generator_forward.14
$region0: #{unet_generator_forward.14}
  #allocation0 [shape = 'u32[]', space=smem, size = 0x4, offset = 0x4, fixed_abs, tag = 'smem constant byte address 0x4 - core index']
  #allocation1 [shape = 'u32[144,128]{1,0:T(1,128)}', space=vmem, size = 0x12000, scoped, tag = 'internal scratch']
  %s0 = inlined_call_operand.vmem [shape: bf16[64,1024], index: 0, kind: input, shape index: {}]
  %s1 = inlined_call_operand.vmem [shape: bf16[1024,2], index: 1, kind: input, shape index: {}]
  %s2 = inlined_call_operand.vmem [shape: f32[64,1], index: 2, kind: input, shape index: {}, may-alias: {2,4}]
  %s3 = inlined_call_operand.vmem [shape: f32[64,1], index: 3, kind: input, shape index: {}]
  %s4 = inlined_call_operand.vmem [shape: f32[64,1], index: 4, kind: input, shape index: {}, may-alias: {2,4}]
  %s5 = inlined_call_operand.vmem [shape: bf16[64,2], index: 5, kind: output, shape index: {}]
  %s6 = sld [smem:[#allocation0]]
  $region30: #{unet_generator_forward.14} parent=0
    _
  %s8 = ssub.s32 1, %s6
  %s9 = scalar_select 0, %s8, %s6
  // Predicated region
  $region2: #{unet_generator_forward.14} parent=0 // pred_check
    _
  $region3: #{unet_generator_forward.14} parent=0 // pred_check_branch
    %11 = sbr.rel (0) target = $region5
  $region4: #{unet_generator_forward.14} parent=0 // pred_region
    _
  $region5: #{unet_generator_forward.14} parent=0 // pred_fallthru
    _
  // Predicated region
  $region6: #{unet_generator_forward.14} parent=0 // pred_check
    _
  $region7: #{unet_generator_forward.14} parent=0 // pred_check_branch
    %13 = sbr.rel (0) target = $region9
  $region8: #{unet_generator_forward.14} parent=0 // pred_region
    _
  $region9: #{unet_generator_forward.14} parent=0 // pred_fallthru
    _
  // Predicated region
  $region10: #{unet_generator_forward.14} parent=0 // pred_check
    _
  $region11: #{unet_generator_forward.14} parent=0 // pred_check_branch
    %15 = sbr.rel (0) target = $region13
  $region12: #{unet_generator_forward.14} parent=0 // pred_region
    _
  $region13: #{unet_generator_forward.14} parent=0 // pred_fallthru
    _
  // Predicated region
  $region14: #{unet_generator_forward.14} parent=0 // pred_check
    _
  $region15: #{unet_generator_forward.14} parent=0 // pred_check_branch
    %17 = sbr.rel (0) target = $region17
  $region16: #{unet_generator_forward.14} parent=0 // pred_region
    _
  $region17: #{unet_generator_forward.14} parent=0 // pred_fallthru
    _
  // Predicated region
  $region18: #{unet_generator_forward.14} parent=0 // pred_check
    _
  $region19: #{unet_generator_forward.14} parent=0 // pred_check_branch
    %19 = sbr.rel (0) target = $region21
  $region20: #{unet_generator_forward.14} parent=0 // pred_region
    _
  $region21: #{unet_generator_forward.14} parent=0 // pred_fallthru
    _
  %v22 = vld [vmem:[%s1] sm:$0xf]
  %v23 = vld [vmem:[%s1 + $0x4] sm:$0xf]
  %v24 = vld [vmem:[%s1 + $0x8] sm:$0xf]
  %v25 = vld [vmem:[%s1 + $0xc] sm:$0xf]
  %v26 = vld [vmem:[%s1 + $0x10] sm:$0xf]
  %v27 = vld [vmem:[%s1 + $0x14] sm:$0xf]
  %v28 = vld [vmem:[%s1 + $0x18] sm:$0xf]
  %v29 = vld [vmem:[%s1 + $0x1c] sm:$0xf]
  %v30 = vld [vmem:[%s1 + $0x20] sm:$0xf]
  %v31 = vld [vmem:[%s1 + $0x24] sm:$0xf]
  %v32 = vld [vmem:[%s1 + $0x28] sm:$0xf]
  %v33 = vld [vmem:[%s1 + $0x2c] sm:$0xf]
  %v34 = vld [vmem:[%s1 + $0x30] sm:$0xf]
  %v35 = vld [vmem:[%s1 + $0x34] sm:$0xf]
  %v36 = vld [vmem:[%s1 + $0x38] sm:$0xf]
  %v37 = vld [vmem:[%s1 + $0x3c] sm:$0xf]
  %v38 = vld [vmem:[%s1 + $0x40] sm:$0xf]
  %v39 = vld [vmem:[%s1 + $0x44] sm:$0xf]
  %v40 = vld [vmem:[%s1 + $0x48] sm:$0xf]
  %v41 = vld [vmem:[%s1 + $0x4c] sm:$0xf]
  %v42 = vld [vmem:[%s1 + $0x50] sm:$0xf]
  %v43 = vld [vmem:[%s1 + $0x54] sm:$0xf]
  %v44 = vld [vmem:[%s1 + $0x58] sm:$0xf]
  %v45 = vld [vmem:[%s1 + $0x5c] sm:$0xf]
  %v46 = vld [vmem:[%s1 + $0x60] sm:$0xf]
  %v47 = vld [vmem:[%s1 + $0x64] sm:$0xf]
  %v48 = vld [vmem:[%s1 + $0x68] sm:$0xf]
  %v49 = vld [vmem:[%s1 + $0x6c] sm:$0xf]
  %v50 = vld [vmem:[%s1 + $0x70] sm:$0xf]
  %v51 = vld [vmem:[%s1 + $0x74] sm:$0xf]
  %v52 = vld [vmem:[%s1 + $0x78] sm:$0xf]
  %v53 = vld [vmem:[%s1 + $0x7c] sm:$0xf]
  %v54 = vld [vmem:[%s1 + $0x80] sm:$0xf]
  %v55 = vld [vmem:[%s1 + $0x84] sm:$0xf]
  %v56 = vld [vmem:[%s1 + $0x88] sm:$0xf]
  %v57 = vld [vmem:[%s1 + $0x8c] sm:$0xf]
  %v58 = vld [vmem:[%s1 + $0x90] sm:$0xf]
  %v59 = vld [vmem:[%s1 + $0x94] sm:$0xf]
  %v60 = vld [vmem:[%s1 + $0x98] sm:$0xf]
  %v61 = vld [vmem:[%s1 + $0x9c] sm:$0xf]
  %v62 = vld [vmem:[%s1 + $0xa0] sm:$0xf]
  %v63 = vld [vmem:[%s1 + $0xa4] sm:$0xf]
  %v64 = vld [vmem:[%s1 + $0xa8] sm:$0xf]
  %v65 = vld [vmem:[%s1 + $0xac] sm:$0xf]
  %v66 = vld [vmem:[%s1 + $0xb0] sm:$0xf]
  %v67 = vld [vmem:[%s1 + $0xb4] sm:$0xf]
  %v68 = vld [vmem:[%s1 + $0xb8] sm:$0xf]
  %v69 = vld [vmem:[%s1 + $0xbc] sm:$0xf]
  %v70 = vld [vmem:[%s1 + $0xc0] sm:$0xf]
  %v71 = vld [vmem:[%s1 + $0xc4] sm:$0xf]
  %v72 = vld [vmem:[%s1 + $0xc8] sm:$0xf]
  %v73 = vld [vmem:[%s1 + $0xcc] sm:$0xf]
  %v74 = vld [vmem:[%s1 + $0xd0] sm:$0xf]
  %v75 = vld [vmem:[%s1 + $0xd4] sm:$0xf]
  %v76 = vld [vmem:[%s1 + $0xd8] sm:$0xf]
  %v77 = vld [vmem:[%s1 + $0xdc] sm:$0xf]
  %v78 = vld [vmem:[%s1 + $0xe0] sm:$0xf]
  %v79 = vld [vmem:[%s1 + $0xe4] sm:$0xf]
  %v80 = vld [vmem:[%s1 + $0xe8] sm:$0xf]
  %v81 = vld [vmem:[%s1 + $0xec] sm:$0xf]
  %v82 = vld [vmem:[%s1 + $0xf0] sm:$0xf]
  %v83 = vld [vmem:[%s1 + $0xf4] sm:$0xf]
  %v84 = vld [vmem:[%s1 + $0xf8] sm:$0xf]
  %v85 = vld [vmem:[%s1 + $0xfc] sm:$0xf]
  %v86 = vld [vmem:[%s1 + $0x100] sm:$0xf]
  %v87 = vld [vmem:[%s1 + $0x104] sm:$0xf]
  %v88 = vld [vmem:[%s1 + $0x108] sm:$0xf]
  %v89 = vld [vmem:[%s1 + $0x10c] sm:$0xf]
  %v90 = vld [vmem:[%s1 + $0x110] sm:$0xf]
  %v91 = vld [vmem:[%s1 + $0x114] sm:$0xf]
  %v92 = vld [vmem:[%s1 + $0x118] sm:$0xf]
  %v93 = vld [vmem:[%s1 + $0x11c] sm:$0xf]
  %v94 = vld [vmem:[%s1 + $0x120] sm:$0xf]
  %v95 = vld [vmem:[%s1 + $0x124] sm:$0xf]
  %v96 = vld [vmem:[%s1 + $0x128] sm:$0xf]
  %v97 = vld [vmem:[%s1 + $0x12c] sm:$0xf]
  %v98 = vld [vmem:[%s1 + $0x130] sm:$0xf]
  %v99 = vld [vmem:[%s1 + $0x134] sm:$0xf]
  %v100 = vld [vmem:[%s1 + $0x138] sm:$0xf]
  %v101 = vld [vmem:[%s1 + $0x13c] sm:$0xf]
  %v102 = vld [vmem:[%s1 + $0x140] sm:$0xf]
  %v103 = vld [vmem:[%s1 + $0x144] sm:$0xf]
  %v104 = vld [vmem:[%s1 + $0x148] sm:$0xf]
  %v105 = vld [vmem:[%s1 + $0x14c] sm:$0xf]
  %v106 = vld [vmem:[%s1 + $0x150] sm:$0xf]
  %v107 = vld [vmem:[%s1 + $0x154] sm:$0xf]
  %v108 = vld [vmem:[%s1 + $0x158] sm:$0xf]
  %v109 = vld [vmem:[%s1 + $0x15c] sm:$0xf]
  %v110 = vld [vmem:[%s1 + $0x160] sm:$0xf]
  %v111 = vld [vmem:[%s1 + $0x164] sm:$0xf]
  %v112 = vld [vmem:[%s1 + $0x168] sm:$0xf]
  %v113 = vld [vmem:[%s1 + $0x16c] sm:$0xf]
  %v114 = vld [vmem:[%s1 + $0x170] sm:$0xf]
  %v115 = vld [vmem:[%s1 + $0x174] sm:$0xf]
  %v116 = vld [vmem:[%s1 + $0x178] sm:$0xf]
  %v117 = vld [vmem:[%s1 + $0x17c] sm:$0xf]
  %v118 = vld [vmem:[%s1 + $0x180] sm:$0xf]
  %v119 = vld [vmem:[%s1 + $0x184] sm:$0xf]
  %v120 = vld [vmem:[%s1 + $0x188] sm:$0xf]
  %v121 = vld [vmem:[%s1 + $0x18c] sm:$0xf]
  %v122 = vld [vmem:[%s1 + $0x190] sm:$0xf]
  %v123 = vld [vmem:[%s1 + $0x194] sm:$0xf]
  %v124 = vld [vmem:[%s1 + $0x198] sm:$0xf]
  %v125 = vld [vmem:[%s1 + $0x19c] sm:$0xf]
  %v126 = vld [vmem:[%s1 + $0x1a0] sm:$0xf]
  %v127 = vld [vmem:[%s1 + $0x1a4] sm:$0xf]
  %v128 = vld [vmem:[%s1 + $0x1a8] sm:$0xf]
  %v129 = vld [vmem:[%s1 + $0x1ac] sm:$0xf]
  %v130 = vld [vmem:[%s1 + $0x1b0] sm:$0xf]
  %v131 = vld [vmem:[%s1 + $0x1b4] sm:$0xf]
  %v132 = vld [vmem:[%s1 + $0x1b8] sm:$0xf]
  %v133 = vld [vmem:[%s1 + $0x1bc] sm:$0xf]
  %v134 = vld [vmem:[%s1 + $0x1c0] sm:$0xf]
  %v135 = vld [vmem:[%s1 + $0x1c4] sm:$0xf]
  %v136 = vld [vmem:[%s1 + $0x1c8] sm:$0xf]
  %v137 = vld [vmem:[%s1 + $0x1cc] sm:$0xf]
  %v138 = vld [vmem:[%s1 + $0x1d0] sm:$0xf]
  %v139 = vld [vmem:[%s1 + $0x1d4] sm:$0xf]
  %v140 = vld [vmem:[%s1 + $0x1d8] sm:$0xf]
  %v141 = vld [vmem:[%s1 + $0x1dc] sm:$0xf]
  %v142 = vld [vmem:[%s1 + $0x1e0] sm:$0xf]
  %v143 = vld [vmem:[%s1 + $0x1e4] sm:$0xf]
  %v144 = vld [vmem:[%s1 + $0x1e8] sm:$0xf]
  %v145 = vld [vmem:[%s1 + $0x1ec] sm:$0xf]
  %v146 = vld [vmem:[%s1 + $0x1f0] sm:$0xf]
  %v147 = vld [vmem:[%s1 + $0x1f4] sm:$0xf]
  %v148 = vld [vmem:[%s1 + $0x1f8] sm:$0xf]
  %v149 = vld [vmem:[%s1 + $0x1fc] sm:$0xf]
  %vm150 = vcmp.gt.bf16.partialorder %v22, 0
  %vm151 = vcmp.gt.bf16.partialorder %v23, 0
  %vm152 = vcmp.gt.bf16.partialorder %v24, 0
  %vm153 = vcmp.gt.bf16.partialorder %v25, 0
  %vm154 = vcmp.gt.bf16.partialorder %v26, 0
  %vm155 = vcmp.gt.bf16.partialorder %v27, 0
  %vm156 = vcmp.gt.bf16.partialorder %v28, 0
  %vm157 = vcmp.gt.bf16.partialorder %v29, 0
  %vm158 = vcmp.gt.bf16.partialorder %v30, 0
  %vm159 = vcmp.gt.bf16.partialorder %v31, 0
  %vm160 = vcmp.gt.bf16.partialorder %v32, 0
  %vm161 = vcmp.gt.bf16.partialorder %v33, 0
  %vm162 = vcmp.gt.bf16.partialorder %v34, 0
  %vm163 = vcmp.gt.bf16.partialorder %v35, 0
  %vm164 = vcmp.gt.bf16.partialorder %v36, 0
  %vm165 = vcmp.gt.bf16.partialorder %v37, 0
  %vm166 = vcmp.gt.bf16.partialorder %v38, 0
  %vm167 = vcmp.gt.bf16.partialorder %v39, 0
  %vm168 = vcmp.gt.bf16.partialorder %v40, 0
  %vm169 = vcmp.gt.bf16.partialorder %v41, 0
  %vm170 = vcmp.gt.bf16.partialorder %v42, 0
  %vm171 = vcmp.gt.bf16.partialorder %v43, 0
  %vm172 = vcmp.gt.bf16.partialorder %v44, 0
  %vm173 = vcmp.gt.bf16.partialorder %v45, 0
  %vm174 = vcmp.gt.bf16.partialorder %v46, 0
  %vm175 = vcmp.gt.bf16.partialorder %v47, 0
  %vm176 = vcmp.gt.bf16.partialorder %v48, 0
  %vm177 = vcmp.gt.bf16.partialorder %v49, 0
  %vm178 = vcmp.gt.bf16.partialorder %v50, 0
  %vm179 = vcmp.gt.bf16.partialorder %v51, 0
  %vm180 = vcmp.gt.bf16.partialorder %v52, 0
  %vm181 = vcmp.gt.bf16.partialorder %v53, 0
  %vm182 = vcmp.gt.bf16.partialorder %v54, 0
  %vm183 = vcmp.gt.bf16.partialorder %v55, 0
  %vm184 = vcmp.gt.bf16.partialorder %v56, 0
  %vm185 = vcmp.gt.bf16.partialorder %v57, 0
  %vm186 = vcmp.gt.bf16.partialorder %v58, 0
  %vm187 = vcmp.gt.bf16.partialorder %v59, 0
  %vm188 = vcmp.gt.bf16.partialorder %v60, 0
  %vm189 = vcmp.gt.bf16.partialorder %v61, 0
  %vm190 = vcmp.gt.bf16.partialorder %v62, 0
  %vm191 = vcmp.gt.bf16.partialorder %v63, 0
  %vm192 = vcmp.gt.bf16.partialorder %v64, 0
  %vm193 = vcmp.gt.bf16.partialorder %v65, 0
  %vm194 = vcmp.gt.bf16.partialorder %v66, 0
  %vm195 = vcmp.gt.bf16.partialorder %v67, 0
  %vm196 = vcmp.gt.bf16.partialorder %v68, 0
  %vm197 = vcmp.gt.bf16.partialorder %v69, 0
  %vm198 = vcmp.gt.bf16.partialorder %v70, 0
  %vm199 = vcmp.gt.bf16.partialorder %v71, 0
  %vm200 = vcmp.gt.bf16.partialorder %v72, 0
  %vm201 = vcmp.gt.bf16.partialorder %v73, 0
  %vm202 = vcmp.gt.bf16.partialorder %v74, 0
  %vm203 = vcmp.gt.bf16.partialorder %v75, 0
  %vm204 = vcmp.gt.bf16.partialorder %v76, 0
  %vm205 = vcmp.gt.bf16.partialorder %v77, 0
  %vm206 = vcmp.gt.bf16.partialorder %v78, 0
  %vm207 = vcmp.gt.bf16.partialorder %v79, 0
  %vm208 = vcmp.gt.bf16.partialorder %v80, 0
  %vm209 = vcmp.gt.bf16.partialorder %v81, 0
  %vm210 = vcmp.gt.bf16.partialorder %v82, 0
  %vm211 = vcmp.gt.bf16.partialorder %v83, 0
  %vm212 = vcmp.gt.bf16.partialorder %v84, 0
  %vm213 = vcmp.gt.bf16.partialorder %v85, 0
  %vm214 = vcmp.gt.bf16.partialorder %v86, 0
  %vm215 = vcmp.gt.bf16.partialorder %v87, 0
  %vm216 = vcmp.gt.bf16.partialorder %v88, 0
  %vm217 = vcmp.gt.bf16.partialorder %v89, 0
  %vm218 = vcmp.gt.bf16.partialorder %v90, 0
  %vm219 = vcmp.gt.bf16.partialorder %v91, 0
  %vm220 = vcmp.gt.bf16.partialorder %v92, 0
  %vm221 = vcmp.gt.bf16.partialorder %v93, 0
  %vm222 = vcmp.gt.bf16.partialorder %v94, 0
  %vm223 = vcmp.gt.bf16.partialorder %v95, 0
  %vm224 = vcmp.gt.bf16.partialorder %v96, 0
  %vm225 = vcmp.gt.bf16.partialorder %v97, 0
  %vm226 = vcmp.gt.bf16.partialorder %v98, 0
  %vm227 = vcmp.gt.bf16.partialorder %v99, 0
  %vm228 = vcmp.gt.bf16.partialorder %v100, 0
  %vm229 = vcmp.gt.bf16.partialorder %v101, 0
  %vm230 = vcmp.gt.bf16.partialorder %v102, 0
  %vm231 = vcmp.gt.bf16.partialorder %v103, 0
  %vm232 = vcmp.gt.bf16.partialorder %v104, 0
  %vm233 = vcmp.gt.bf16.partialorder %v105, 0
  %vm234 = vcmp.gt.bf16.partialorder %v106, 0
  %vm235 = vcmp.gt.bf16.partialorder %v107, 0
  %vm236 = vcmp.gt.bf16.partialorder %v108, 0
  %vm237 = vcmp.gt.bf16.partialorder %v109, 0
  %vm238 = vcmp.gt.bf16.partialorder %v110, 0
  %vm239 = vcmp.gt.bf16.partialorder %v111, 0
  %vm240 = vcmp.gt.bf16.partialorder %v112, 0
  %vm241 = vcmp.gt.bf16.partialorder %v113, 0
  %vm242 = vcmp.gt.bf16.partialorder %v114, 0
  %vm243 = vcmp.gt.bf16.partialorder %v115, 0
  %vm244 = vcmp.gt.bf16.partialorder %v116, 0
  %vm245 = vcmp.gt.bf16.partialorder %v117, 0
  %vm246 = vcmp.gt.bf16.partialorder %v118, 0
  %vm247 = vcmp.gt.bf16.partialorder %v119, 0
  %vm248 = vcmp.gt.bf16.partialorder %v120, 0
  %vm249 = vcmp.gt.bf16.partialorder %v121, 0
  %vm250 = vcmp.gt.bf16.partialorder %v122, 0
  %vm251 = vcmp.gt.bf16.partialorder %v123, 0
  %vm252 = vcmp.gt.bf16.partialorder %v124, 0
  %vm253 = vcmp.gt.bf16.partialorder %v125, 0
  %vm254 = vcmp.gt.bf16.partialorder %v126, 0
  %vm255 = vcmp.gt.bf16.partialorder %v127, 0
  %vm256 = vcmp.gt.bf16.partialorder %v128, 0
  %vm257 = vcmp.gt.bf16.partialorder %v129, 0
  %vm258 = vcmp.gt.bf16.partialorder %v130, 0
  %vm259 = vcmp.gt.bf16.partialorder %v131, 0
  %vm260 = vcmp.gt.bf16.partialorder %v132, 0
  %vm261 = vcmp.gt.bf16.partialorder %v133, 0
  %vm262 = vcmp.gt.bf16.partialorder %v134, 0
  %vm263 = vcmp.gt.bf16.partialorder %v135, 0
  %vm264 = vcmp.gt.bf16.partialorder %v136, 0
  %vm265 = vcmp.gt.bf16.partialorder %v137, 0
  %vm266 = vcmp.gt.bf16.partialorder %v138, 0
  %vm267 = vcmp.gt.bf16.partialorder %v139, 0
  %vm268 = vcmp.gt.bf16.partialorder %v140, 0
  %vm269 = vcmp.gt.bf16.partialorder %v141, 0
  %vm270 = vcmp.gt.bf16.partialorder %v142, 0
  %vm271 = vcmp.gt.bf16.partialorder %v143, 0
  %vm272 = vcmp.gt.bf16.partialorder %v144, 0
  %vm273 = vcmp.gt.bf16.partialorder %v145, 0
  %vm274 = vcmp.gt.bf16.partialorder %v146, 0
  %vm275 = vcmp.gt.bf16.partialorder %v147, 0
  %vm276 = vcmp.gt.bf16.partialorder %v148, 0
  %vm277 = vcmp.gt.bf16.partialorder %v149, 0
  %v278 = vmul.bf16 %v22, 1045249613
  %v279 = vmul.bf16 %v23, 1045249613
  %v280 = vmul.bf16 %v24, 1045249613
  %v281 = vmul.bf16 %v25, 1045249613
  %v282 = vmul.bf16 %v26, 1045249613
  %v283 = vmul.bf16 %v27, 1045249613
  %v284 = vmul.bf16 %v28, 1045249613
  %v285 = vmul.bf16 %v29, 1045249613
  %v286 = vmul.bf16 %v30, 1045249613
  %v287 = vmul.bf16 %v31, 1045249613
  %v288 = vmul.bf16 %v32, 1045249613
  %v289 = vmul.bf16 %v33, 1045249613
  %v290 = vmul.bf16 %v34, 1045249613
  %v291 = vmul.bf16 %v35, 1045249613
  %v292 = vmul.bf16 %v36, 1045249613
  %v293 = vmul.bf16 %v37, 1045249613
  %v294 = vmul.bf16 %v38, 1045249613
  %v295 = vmul.bf16 %v39, 1045249613
  %v296 = vmul.bf16 %v40, 1045249613
  %v297 = vmul.bf16 %v41, 1045249613
  %v298 = vmul.bf16 %v42, 1045249613
  %v299 = vmul.bf16 %v43, 1045249613
  %v300 = vmul.bf16 %v44, 1045249613
  %v301 = vmul.bf16 %v45, 1045249613
  %v302 = vmul.bf16 %v46, 1045249613
  %v303 = vmul.bf16 %v47, 1045249613
  %v304 = vmul.bf16 %v48, 1045249613
  %v305 = vmul.bf16 %v49, 1045249613
  %v306 = vmul.bf16 %v50, 1045249613
  %v307 = vmul.bf16 %v51, 1045249613
  %v308 = vmul.bf16 %v52, 1045249613
  %v309 = vmul.bf16 %v53, 1045249613
  %v310 = vmul.bf16 %v54, 1045249613
  %v311 = vmul.bf16 %v55, 1045249613
  %v312 = vmul.bf16 %v56, 1045249613
  %v313 = vmul.bf16 %v57, 1045249613
  %v314 = vmul.bf16 %v58, 1045249613
  %v315 = vmul.bf16 %v59, 1045249613
  %v316 = vmul.bf16 %v60, 1045249613
  %v317 = vmul.bf16 %v61, 1045249613
  %v318 = vmul.bf16 %v62, 1045249613
  %v319 = vmul.bf16 %v63, 1045249613
  %v320 = vmul.bf16 %v64, 1045249613
  %v321 = vmul.bf16 %v65, 1045249613
  %v322 = vmul.bf16 %v66, 1045249613
  %v323 = vmul.bf16 %v67, 1045249613
  %v324 = vmul.bf16 %v68, 1045249613
  %v325 = vmul.bf16 %v69, 1045249613
  %v326 = vmul.bf16 %v70, 1045249613
  %v327 = vmul.bf16 %v71, 1045249613
  %v328 = vmul.bf16 %v72, 1045249613
  %v329 = vmul.bf16 %v73, 1045249613
  %v330 = vmul.bf16 %v74, 1045249613
  %v331 = vmul.bf16 %v75, 1045249613
  %v332 = vmul.bf16 %v76, 1045249613
  %v333 = vmul.bf16 %v77, 1045249613
  %v334 = vmul.bf16 %v78, 1045249613
  %v335 = vmul.bf16 %v79, 1045249613
  %v336 = vmul.bf16 %v80, 1045249613
  %v337 = vmul.bf16 %v81, 1045249613
  %v338 = vmul.bf16 %v82, 1045249613
  %v339 = vmul.bf16 %v83, 1045249613
  %v340 = vmul.bf16 %v84, 1045249613
  %v341 = vmul.bf16 %v85, 1045249613
  %v342 = vmul.bf16 %v86, 1045249613
  %v343 = vmul.bf16 %v87, 1045249613
  %v344 = vmul.bf16 %v88, 1045249613
  %v345 = vmul.bf16 %v89, 1045249613
  %v346 = vmul.bf16 %v90, 1045249613
  %v347 = vmul.bf16 %v91, 1045249613
  %v348 = vmul.bf16 %v92, 1045249613
  %v349 = vmul.bf16 %v93, 1045249613
  %v350 = vmul.bf16 %v94, 1045249613
  %v351 = vmul.bf16 %v95, 1045249613
  %v352 = vmul.bf16 %v96, 1045249613
  %v353 = vmul.bf16 %v97, 1045249613
  %v354 = vmul.bf16 %v98, 1045249613
  %v355 = vmul.bf16 %v99, 1045249613
  %v356 = vmul.bf16 %v100, 1045249613
  %v357 = vmul.bf16 %v101, 1045249613
  %v358 = vmul.bf16 %v102, 1045249613
  %v359 = vmul.bf16 %v103, 1045249613
  %v360 = vmul.bf16 %v104, 1045249613
  %v361 = vmul.bf16 %v105, 1045249613
  %v362 = vmul.bf16 %v106, 1045249613
  %v363 = vmul.bf16 %v107, 1045249613
  %v364 = vmul.bf16 %v108, 1045249613
  %v365 = vmul.bf16 %v109, 1045249613
  %v366 = vmul.bf16 %v110, 1045249613
  %v367 = vmul.bf16 %v111, 1045249613
  %v368 = vmul.bf16 %v112, 1045249613
  %v369 = vmul.bf16 %v113, 1045249613
  %v370 = vmul.bf16 %v114, 1045249613
  %v371 = vmul.bf16 %v115, 1045249613
  %v372 = vmul.bf16 %v116, 1045249613
  %v373 = vmul.bf16 %v117, 1045249613
  %v374 = vmul.bf16 %v118, 1045249613
  %v375 = vmul.bf16 %v119, 1045249613
  %v376 = vmul.bf16 %v120, 1045249613
  %v377 = vmul.bf16 %v121, 1045249613
  %v378 = vmul.bf16 %v122, 1045249613
  %v379 = vmul.bf16 %v123, 1045249613
  %v380 = vmul.bf16 %v124, 1045249613
  %v381 = vmul.bf16 %v125, 1045249613
  %v382 = vmul.bf16 %v126, 1045249613
  %v383 = vmul.bf16 %v127, 1045249613
  %v384 = vmul.bf16 %v128, 1045249613
  %v385 = vmul.bf16 %v129, 1045249613
  %v386 = vmul.bf16 %v130, 1045249613
  %v387 = vmul.bf16 %v131, 1045249613
  %v388 = vmul.bf16 %v132, 1045249613
  %v389 = vmul.bf16 %v133, 1045249613
  %v390 = vmul.bf16 %v134, 1045249613
  %v391 = vmul.bf16 %v135, 1045249613
  %v392 = vmul.bf16 %v136, 1045249613
  %v393 = vmul.bf16 %v137, 1045249613
  %v394 = vmul.bf16 %v138, 1045249613
  %v395 = vmul.bf16 %v139, 1045249613
  %v396 = vmul.bf16 %v140, 1045249613
  %v397 = vmul.bf16 %v141, 1045249613
  %v398 = vmul.bf16 %v142, 1045249613
  %v399 = vmul.bf16 %v143, 1045249613
  %v400 = vmul.bf16 %v144, 1045249613
  %v401 = vmul.bf16 %v145, 1045249613
  %v402 = vmul.bf16 %v146, 1045249613
  %v403 = vmul.bf16 %v147, 1045249613
  %v404 = vmul.bf16 %v148, 1045249613
  %v405 = vmul.bf16 %v149, 1045249613
  %v406 = vsel %vm150, %v22, %v278
  %v407 = vsel %vm151, %v23, %v279
  %v408 = vsel %vm152, %v24, %v280
  %v409 = vsel %vm153, %v25, %v281
  %v410 = vsel %vm154, %v26, %v282
  %v411 = vsel %vm155, %v27, %v283
  %v412 = vsel %vm156, %v28, %v284
  %v413 = vsel %vm157, %v29, %v285
  %v414 = vsel %vm158, %v30, %v286
  %v415 = vsel %vm159, %v31, %v287
  %v416 = vsel %vm160, %v32, %v288
  %v417 = vsel %vm161, %v33, %v289
  %v418 = vsel %vm162, %v34, %v290
  %v419 = vsel %vm163, %v35, %v291
  %v420 = vsel %vm164, %v36, %v292
  %v421 = vsel %vm165, %v37, %v293
  %v422 = vsel %vm166, %v38, %v294
  %v423 = vsel %vm167, %v39, %v295
  %v424 = vsel %vm168, %v40, %v296
  %v425 = vsel %vm169, %v41, %v297
  %v426 = vsel %vm170, %v42, %v298
  %v427 = vsel %vm171, %v43, %v299
  %v428 = vsel %vm172, %v44, %v300
  %v429 = vsel %vm173, %v45, %v301
  %v430 = vsel %vm174, %v46, %v302
  %v431 = vsel %vm175, %v47, %v303
  %v432 = vsel %vm176, %v48, %v304
  %v433 = vsel %vm177, %v49, %v305
  %v434 = vsel %vm178, %v50, %v306
  %v435 = vsel %vm179, %v51, %v307
  %v436 = vsel %vm180, %v52, %v308
  %v437 = vsel %vm181, %v53, %v309
  %v438 = vsel %vm182, %v54, %v310
  %v439 = vsel %vm183, %v55, %v311
  %v440 = vsel %vm184, %v56, %v312
  %v441 = vsel %vm185, %v57, %v313
  %v442 = vsel %vm186, %v58, %v314
  %v443 = vsel %vm187, %v59, %v315
  %v444 = vsel %vm188, %v60, %v316
  %v445 = vsel %vm189, %v61, %v317
  %v446 = vsel %vm190, %v62, %v318
  %v447 = vsel %vm191, %v63, %v319
  %v448 = vsel %vm192, %v64, %v320
  %v449 = vsel %vm193, %v65, %v321
  %v450 = vsel %vm194, %v66, %v322
  %v451 = vsel %vm195, %v67, %v323
  %v452 = vsel %vm196, %v68, %v324
  %v453 = vsel %vm197, %v69, %v325
  %v454 = vsel %vm198, %v70, %v326
  %v455 = vsel %vm199, %v71, %v327
  %v456 = vsel %vm200, %v72, %v328
  %v457 = vsel %vm201, %v73, %v329
  %v458 = vsel %vm202, %v74, %v330
  %v459 = vsel %vm203, %v75, %v331
  %v460 = vsel %vm204, %v76, %v332
  %v461 = vsel %vm205, %v77, %v333
  %v462 = vsel %vm206, %v78, %v334
  %v463 = vsel %vm207, %v79, %v335
  %v464 = vsel %vm208, %v80, %v336
  %v465 = vsel %vm209, %v81, %v337
  %v466 = vsel %vm210, %v82, %v338
  %v467 = vsel %vm211, %v83, %v339
  %v468 = vsel %vm212, %v84, %v340
  %v469 = vsel %vm213, %v85, %v341
  %v470 = vsel %vm214, %v86, %v342
  %v471 = vsel %vm215, %v87, %v343
  %v472 = vsel %vm216, %v88, %v344
  %v473 = vsel %vm217, %v89, %v345
  %v474 = vsel %vm218, %v90, %v346
  %v475 = vsel %vm219, %v91, %v347
  %v476 = vsel %vm220, %v92, %v348
  %v477 = vsel %vm221, %v93, %v349
  %v478 = vsel %vm222, %v94, %v350
  %v479 = vsel %vm223, %v95, %v351
  %v480 = vsel %vm224, %v96, %v352
  %v481 = vsel %vm225, %v97, %v353
  %v482 = vsel %vm226, %v98, %v354
  %v483 = vsel %vm227, %v99, %v355
  %v484 = vsel %vm228, %v100, %v356
  %v485 = vsel %vm229, %v101, %v357
  %v486 = vsel %vm230, %v102, %v358
  %v487 = vsel %vm231, %v103, %v359
  %v488 = vsel %vm232, %v104, %v360
  %v489 = vsel %vm233, %v105, %v361
  %v490 = vsel %vm234, %v106, %v362
  %v491 = vsel %vm235, %v107, %v363
  %v492 = vsel %vm236, %v108, %v364
  %v493 = vsel %vm237, %v109, %v365
  %v494 = vsel %vm238, %v110, %v366
  %v495 = vsel %vm239, %v111, %v367
  %v496 = vsel %vm240, %v112, %v368
  %v497 = vsel %vm241, %v113, %v369
  %v498 = vsel %vm242, %v114, %v370
  %v499 = vsel %vm243, %v115, %v371
  %v500 = vsel %vm244, %v116, %v372
  %v501 = vsel %vm245, %v117, %v373
  %v502 = vsel %vm246, %v118, %v374
  %v503 = vsel %vm247, %v119, %v375
  %v504 = vsel %vm248, %v120, %v376
  %v505 = vsel %vm249, %v121, %v377
  %v506 = vsel %vm250, %v122, %v378
  %v507 = vsel %vm251, %v123, %v379
  %v508 = vsel %vm252, %v124, %v380
  %v509 = vsel %vm253, %v125, %v381
  %v510 = vsel %vm254, %v126, %v382
  %v511 = vsel %vm255, %v127, %v383
  %v512 = vsel %vm256, %v128, %v384
  %v513 = vsel %vm257, %v129, %v385
  %v514 = vsel %vm258, %v130, %v386
  %v515 = vsel %vm259, %v131, %v387
  %v516 = vsel %vm260, %v132, %v388
  %v517 = vsel %vm261, %v133, %v389
  %v518 = vsel %vm262, %v134, %v390
  %v519 = vsel %vm263, %v135, %v391
  %v520 = vsel %vm264, %v136, %v392
  %v521 = vsel %vm265, %v137, %v393
  %v522 = vsel %vm266, %v138, %v394
  %v523 = vsel %vm267, %v139, %v395
  %v524 = vsel %vm268, %v140, %v396
  %v525 = vsel %vm269, %v141, %v397
  %v526 = vsel %vm270, %v142, %v398
  %v527 = vsel %vm271, %v143, %v399
  %v528 = vsel %vm272, %v144, %v400
  %v529 = vsel %vm273, %v145, %v401
  %v530 = vsel %vm274, %v146, %v402
  %v531 = vsel %vm275, %v147, %v403
  %v532 = vsel %vm276, %v148, %v404
  %v533 = vsel %vm277, %v149, %v405
  %v534 = vld [vmem:[%s0] sm:$0xff]
  %v535 = vld [vmem:[%s0 + $0x8] sm:$0xff]
  %v536 = vld [vmem:[%s0 + $0x10] sm:$0xff]
  %v537 = vld [vmem:[%s0 + $0x18] sm:$0xff]
  %v538 = vld [vmem:[%s0 + $0x20] sm:$0xff]
  %v539 = vld [vmem:[%s0 + $0x28] sm:$0xff]
  %v540 = vld [vmem:[%s0 + $0x30] sm:$0xff]
  %v541 = vld [vmem:[%s0 + $0x38] sm:$0xff]
  %v542 = vld [vmem:[%s0 + $0x40] sm:$0xff]
  %v543 = vld [vmem:[%s0 + $0x48] sm:$0xff]
  %v544 = vld [vmem:[%s0 + $0x50] sm:$0xff]
  %v545 = vld [vmem:[%s0 + $0x58] sm:$0xff]
  %v546 = vld [vmem:[%s0 + $0x60] sm:$0xff]
  %v547 = vld [vmem:[%s0 + $0x68] sm:$0xff]
  %v548 = vld [vmem:[%s0 + $0x70] sm:$0xff]
  %v549 = vld [vmem:[%s0 + $0x78] sm:$0xff]
  %v550 = vld [vmem:[%s0 + $0x80] sm:$0xff]
  %v551 = vld [vmem:[%s0 + $0x88] sm:$0xff]
  %v552 = vld [vmem:[%s0 + $0x90] sm:$0xff]
  %v553 = vld [vmem:[%s0 + $0x98] sm:$0xff]
  %v554 = vld [vmem:[%s0 + $0xa0] sm:$0xff]
  %v555 = vld [vmem:[%s0 + $0xa8] sm:$0xff]
  %v556 = vld [vmem:[%s0 + $0xb0] sm:$0xff]
  %v557 = vld [vmem:[%s0 + $0xb8] sm:$0xff]
  %v558 = vld [vmem:[%s0 + $0xc0] sm:$0xff]
  %v559 = vld [vmem:[%s0 + $0xc8] sm:$0xff]
  %v560 = vld [vmem:[%s0 + $0xd0] sm:$0xff]
  %v561 = vld [vmem:[%s0 + $0xd8] sm:$0xff]
  %v562 = vld [vmem:[%s0 + $0xe0] sm:$0xff]
  %v563 = vld [vmem:[%s0 + $0xe8] sm:$0xff]
  %v564 = vld [vmem:[%s0 + $0xf0] sm:$0xff]
  %v565 = vld [vmem:[%s0 + $0xf8] sm:$0xff]
  %v598 = vunpack.c.l.b16 %v534
  %v599 = vunpack.c.h.b16 %v534
  %v600 = vunpack.c.l.b16 %v535
  %v601 = vunpack.c.h.b16 %v535
  %v602 = vunpack.c.l.b16 %v536
  %v603 = vunpack.c.h.b16 %v536
  %v604 = vunpack.c.l.b16 %v537
  %v605 = vunpack.c.h.b16 %v537
  %v606 = vunpack.c.l.b16 %v538
  %v607 = vunpack.c.h.b16 %v538
  %v608 = vunpack.c.l.b16 %v539
  %v609 = vunpack.c.h.b16 %v539
  %v610 = vunpack.c.l.b16 %v540
  %v611 = vunpack.c.h.b16 %v540
  %v612 = vunpack.c.l.b16 %v541
  %v613 = vunpack.c.h.b16 %v541
  %v614 = vunpack.c.l.b16 %v542
  %v615 = vunpack.c.h.b16 %v542
  %v616 = vunpack.c.l.b16 %v543
  %v617 = vunpack.c.h.b16 %v543
  %v618 = vunpack.c.l.b16 %v544
  %v619 = vunpack.c.h.b16 %v544
  %v620 = vunpack.c.l.b16 %v545
  %v621 = vunpack.c.h.b16 %v545
  %v622 = vunpack.c.l.b16 %v546
  %v623 = vunpack.c.h.b16 %v546
  %v624 = vunpack.c.l.b16 %v547
  %v625 = vunpack.c.h.b16 %v547
  %v626 = vunpack.c.l.b16 %v548
  %v627 = vunpack.c.h.b16 %v548
  %v628 = vunpack.c.l.b16 %v549
  %v629 = vunpack.c.h.b16 %v549
  %v630 = vunpack.c.l.b16 %v550
  %v631 = vunpack.c.h.b16 %v550
  %v632 = vunpack.c.l.b16 %v551
  %v633 = vunpack.c.h.b16 %v551
  %v634 = vunpack.c.l.b16 %v552
  %v635 = vunpack.c.h.b16 %v552
  %v636 = vunpack.c.l.b16 %v553
  %v637 = vunpack.c.h.b16 %v553
  %v638 = vunpack.c.l.b16 %v554
  %v639 = vunpack.c.h.b16 %v554
  %v640 = vunpack.c.l.b16 %v555
  %v641 = vunpack.c.h.b16 %v555
  %v642 = vunpack.c.l.b16 %v556
  %v643 = vunpack.c.h.b16 %v556
  %v644 = vunpack.c.l.b16 %v557
  %v645 = vunpack.c.h.b16 %v557
  %v646 = vunpack.c.l.b16 %v558
  %v647 = vunpack.c.h.b16 %v558
  %v648 = vunpack.c.l.b16 %v559
  %v649 = vunpack.c.h.b16 %v559
  %v650 = vunpack.c.l.b16 %v560
  %v651 = vunpack.c.h.b16 %v560
  %v652 = vunpack.c.l.b16 %v561
  %v653 = vunpack.c.h.b16 %v561
  %v654 = vunpack.c.l.b16 %v562
  %v655 = vunpack.c.h.b16 %v562
  %v656 = vunpack.c.l.b16 %v563
  %v657 = vunpack.c.h.b16 %v563
  %v658 = vunpack.c.l.b16 %v564
  %v659 = vunpack.c.h.b16 %v564
  %v660 = vunpack.c.l.b16 %v565
  %v661 = vunpack.c.h.b16 %v565
  %v662 = vpack.c.b16 %v606, %v598
  %v663 = vpack.c.b16 %v607, %v599
  %v664 = vpack.c.b16 %v608, %v600
  %v665 = vpack.c.b16 %v609, %v601
  %v666 = vpack.c.b16 %v610, %v602
  %v667 = vpack.c.b16 %v611, %v603
  %v668 = vpack.c.b16 %v612, %v604
  %v669 = vpack.c.b16 %v613, %v605
  %v670 = vpack.c.b16 %v622, %v614
  %v671 = vpack.c.b16 %v623, %v615
  %v672 = vpack.c.b16 %v624, %v616
  %v673 = vpack.c.b16 %v625, %v617
  %v674 = vpack.c.b16 %v626, %v618
  %v675 = vpack.c.b16 %v627, %v619
  %v676 = vpack.c.b16 %v628, %v620
  %v677 = vpack.c.b16 %v629, %v621
  %v678 = vpack.c.b16 %v638, %v630
  %v679 = vpack.c.b16 %v639, %v631
  %v680 = vpack.c.b16 %v640, %v632
  %v681 = vpack.c.b16 %v641, %v633
  %v682 = vpack.c.b16 %v642, %v634
  %v683 = vpack.c.b16 %v643, %v635
  %v684 = vpack.c.b16 %v644, %v636
  %v685 = vpack.c.b16 %v645, %v637
  %v686 = vpack.c.b16 %v654, %v646
  %v687 = vpack.c.b16 %v655, %v647
  %v688 = vpack.c.b16 %v656, %v648
  %v689 = vpack.c.b16 %v657, %v649
  %v690 = vpack.c.b16 %v658, %v650
  %v691 = vpack.c.b16 %v659, %v651
  %v692 = vpack.c.b16 %v660, %v652
  %v693 = vpack.c.b16 %v661, %v653
  %v854 = vunpack.c.l.b16 %v406
  %v855 = vunpack.c.l.b16 %v407
  %v856 = vunpack.c.l.b16 %v408
  %v857 = vunpack.c.l.b16 %v409
  %v858 = vunpack.c.l.b16 %v410
  %v859 = vunpack.c.l.b16 %v411
  %v860 = vunpack.c.l.b16 %v412
  %v861 = vunpack.c.l.b16 %v413
  %v862 = vunpack.c.l.b16 %v414
  %v863 = vunpack.c.l.b16 %v415
  %v864 = vunpack.c.l.b16 %v416
  %v865 = vunpack.c.l.b16 %v417
  %v866 = vunpack.c.l.b16 %v418
  %v867 = vunpack.c.l.b16 %v419
  %v868 = vunpack.c.l.b16 %v420
  %v869 = vunpack.c.l.b16 %v421
  %v870 = vunpack.c.l.b16 %v422
  %v871 = vunpack.c.l.b16 %v423
  %v872 = vunpack.c.l.b16 %v424
  %v873 = vunpack.c.l.b16 %v425
  %v874 = vunpack.c.l.b16 %v426
  %v875 = vunpack.c.l.b16 %v427
  %v876 = vunpack.c.l.b16 %v428
  %v877 = vunpack.c.l.b16 %v429
  %v878 = vunpack.c.l.b16 %v430
  %v879 = vunpack.c.l.b16 %v431
  %v880 = vunpack.c.l.b16 %v432
  %v881 = vunpack.c.l.b16 %v433
  %v882 = vunpack.c.l.b16 %v434
  %v883 = vunpack.c.l.b16 %v435
  %v884 = vunpack.c.l.b16 %v436
  %v885 = vunpack.c.l.b16 %v437
  %v886 = vunpack.c.l.b16 %v438
  %v887 = vunpack.c.l.b16 %v439
  %v888 = vunpack.c.l.b16 %v440
  %v889 = vunpack.c.l.b16 %v441
  %v890 = vunpack.c.l.b16 %v442
  %v891 = vunpack.c.l.b16 %v443
  %v892 = vunpack.c.l.b16 %v444
  %v893 = vunpack.c.l.b16 %v445
  %v894 = vunpack.c.l.b16 %v446
  %v895 = vunpack.c.l.b16 %v447
  %v896 = vunpack.c.l.b16 %v448
  %v897 = vunpack.c.l.b16 %v449
  %v898 = vunpack.c.l.b16 %v450
  %v899 = vunpack.c.l.b16 %v451
  %v900 = vunpack.c.l.b16 %v452
  %v901 = vunpack.c.l.b16 %v453
  %v902 = vunpack.c.l.b16 %v454
  %v903 = vunpack.c.l.b16 %v455
  %v904 = vunpack.c.l.b16 %v456
  %v905 = vunpack.c.l.b16 %v457
  %v906 = vunpack.c.l.b16 %v458
  %v907 = vunpack.c.l.b16 %v459
  %v908 = vunpack.c.l.b16 %v460
  %v909 = vunpack.c.l.b16 %v461
  %v910 = vunpack.c.l.b16 %v462
  %v911 = vunpack.c.l.b16 %v463
  %v912 = vunpack.c.l.b16 %v464
  %v913 = vunpack.c.l.b16 %v465
  %v914 = vunpack.c.l.b16 %v466
  %v915 = vunpack.c.l.b16 %v467
  %v916 = vunpack.c.l.b16 %v468
  %v917 = vunpack.c.l.b16 %v469
  %v918 = vunpack.c.l.b16 %v470
  %v919 = vunpack.c.l.b16 %v471
  %v920 = vunpack.c.l.b16 %v472
  %v921 = vunpack.c.l.b16 %v473
  %v922 = vunpack.c.l.b16 %v474
  %v923 = vunpack.c.l.b16 %v475
  %v924 = vunpack.c.l.b16 %v476
  %v925 = vunpack.c.l.b16 %v477
  %v926 = vunpack.c.l.b16 %v478
  %v927 = vunpack.c.l.b16 %v479
  %v928 = vunpack.c.l.b16 %v480
  %v929 = vunpack.c.l.b16 %v481
  %v930 = vunpack.c.l.b16 %v482
  %v931 = vunpack.c.l.b16 %v483
  %v932 = vunpack.c.l.b16 %v484
  %v933 = vunpack.c.l.b16 %v485
  %v934 = vunpack.c.l.b16 %v486
  %v935 = vunpack.c.l.b16 %v487
  %v936 = vunpack.c.l.b16 %v488
  %v937 = vunpack.c.l.b16 %v489
  %v938 = vunpack.c.l.b16 %v490
  %v939 = vunpack.c.l.b16 %v491
  %v940 = vunpack.c.l.b16 %v492
  %v941 = vunpack.c.l.b16 %v493
  %v942 = vunpack.c.l.b16 %v494
  %v943 = vunpack.c.l.b16 %v495
  %v944 = vunpack.c.l.b16 %v496
  %v945 = vunpack.c.l.b16 %v497
  %v946 = vunpack.c.l.b16 %v498
  %v947 = vunpack.c.l.b16 %v499
  %v948 = vunpack.c.l.b16 %v500
  %v949 = vunpack.c.l.b16 %v501
  %v950 = vunpack.c.l.b16 %v502
  %v951 = vunpack.c.l.b16 %v503
  %v952 = vunpack.c.l.b16 %v504
  %v953 = vunpack.c.l.b16 %v505
  %v954 = vunpack.c.l.b16 %v506
  %v955 = vunpack.c.l.b16 %v507
  %v956 = vunpack.c.l.b16 %v508
  %v957 = vunpack.c.l.b16 %v509
  %v958 = vunpack.c.l.b16 %v510
  %v959 = vunpack.c.l.b16 %v511
  %v960 = vunpack.c.l.b16 %v512
  %v961 = vunpack.c.l.b16 %v513
  %v962 = vunpack.c.l.b16 %v514
  %v963 = vunpack.c.l.b16 %v515
  %v964 = vunpack.c.l.b16 %v516
  %v965 = vunpack.c.l.b16 %v517
  %v966 = vunpack.c.l.b16 %v518
  %v967 = vunpack.c.l.b16 %v519
  %v968 = vunpack.c.l.b16 %v520
  %v969 = vunpack.c.l.b16 %v521
  %v970 = vunpack.c.l.b16 %v522
  %v971 = vunpack.c.l.b16 %v523
  %v972 = vunpack.c.l.b16 %v524
  %v973 = vunpack.c.l.b16 %v525
  %v974 = vunpack.c.l.b16 %v526
  %v975 = vunpack.c.l.b16 %v527
  %v976 = vunpack.c.l.b16 %v528
  %v977 = vunpack.c.l.b16 %v529
  %v978 = vunpack.c.l.b16 %v530
  %v979 = vunpack.c.l.b16 %v531
  %v980 = vunpack.c.l.b16 %v532
  %v981 = vunpack.c.l.b16 %v533
  %v982 = vpack.c.b16 %v855, %v854
  %v983 = vpack.c.b16 %v857, %v856
  %v984 = vpack.c.b16 %v859, %v858
  %v985 = vpack.c.b16 %v861, %v860
  %v986 = vpack.c.b16 %v863, %v862
  %v987 = vpack.c.b16 %v865, %v864
  %v988 = vpack.c.b16 %v867, %v866
  %v989 = vpack.c.b16 %v869, %v868
  %v990 = vpack.c.b16 %v871, %v870
  %v991 = vpack.c.b16 %v873, %v872
  %v992 = vpack.c.b16 %v875, %v874
  %v993 = vpack.c.b16 %v877, %v876
  %v994 = vpack.c.b16 %v879, %v878
  %v995 = vpack.c.b16 %v881, %v880
  %v996 = vpack.c.b16 %v883, %v882
  %v997 = vpack.c.b16 %v885, %v884
  %v998 = vpack.c.b16 %v887, %v886
  %v999 = vpack.c.b16 %v889, %v888
  %v1000 = vpack.c.b16 %v891, %v890
  %v1001 = vpack.c.b16 %v893, %v892
  %v1002 = vpack.c.b16 %v895, %v894
  %v1003 = vpack.c.b16 %v897, %v896
  %v1004 = vpack.c.b16 %v899, %v898
  %v1005 = vpack.c.b16 %v901, %v900
  %v1006 = vpack.c.b16 %v903, %v902
  %v1007 = vpack.c.b16 %v905, %v904
  %v1008 = vpack.c.b16 %v907, %v906
  %v1009 = vpack.c.b16 %v909, %v908
  %v1010 = vpack.c.b16 %v911, %v910
  %v1011 = vpack.c.b16 %v913, %v912
  %v1012 = vpack.c.b16 %v915, %v914
  %v1013 = vpack.c.b16 %v917, %v916
  %v1014 = vpack.c.b16 %v919, %v918
  %v1015 = vpack.c.b16 %v921, %v920
  %v1016 = vpack.c.b16 %v923, %v922
  %v1017 = vpack.c.b16 %v925, %v924
  %v1018 = vpack.c.b16 %v927, %v926
  %v1019 = vpack.c.b16 %v929, %v928
  %v1020 = vpack.c.b16 %v931, %v930
  %v1021 = vpack.c.b16 %v933, %v932
  %v1022 = vpack.c.b16 %v935, %v934
  %v1023 = vpack.c.b16 %v937, %v936
  %v1024 = vpack.c.b16 %v939, %v938
  %v1025 = vpack.c.b16 %v941, %v940
  %v1026 = vpack.c.b16 %v943, %v942
  %v1027 = vpack.c.b16 %v945, %v944
  %v1028 = vpack.c.b16 %v947, %v946
  %v1029 = vpack.c.b16 %v949, %v948
  %v1030 = vpack.c.b16 %v951, %v950
  %v1031 = vpack.c.b16 %v953, %v952
  %v1032 = vpack.c.b16 %v955, %v954
  %v1033 = vpack.c.b16 %v957, %v956
  %v1034 = vpack.c.b16 %v959, %v958
  %v1035 = vpack.c.b16 %v961, %v960
  %v1036 = vpack.c.b16 %v963, %v962
  %v1037 = vpack.c.b16 %v965, %v964
  %v1038 = vpack.c.b16 %v967, %v966
  %v1039 = vpack.c.b16 %v969, %v968
  %v1040 = vpack.c.b16 %v971, %v970
  %v1041 = vpack.c.b16 %v973, %v972
  %v1042 = vpack.c.b16 %v975, %v974
  %v1043 = vpack.c.b16 %v977, %v976
  %v1044 = vpack.c.b16 %v979, %v978
  %v1045 = vpack.c.b16 %v981, %v980
  %1110 = vmatprep.subr.bf16.mxu0 0
  %1111 = vmatpush1.bf16.msra.mxu0 %v982
  %1112 = vmatprep.subr.bf16.mxu0 0
  %1113 = vmatpush1.bf16.msra.mxu0 %v983
  %1114 = vmatprep.subr.bf16.mxu0 0
  %1115 = vmatpush1.bf16.msra.mxu0 %v984
  %1116 = vmatprep.subr.bf16.mxu0 0
  %1117 = vmatpush1.bf16.msra.mxu0 %v985
  %1118 = vmatprep.subr.bf16.mxu0 0
  %1119 = vmatpush1.bf16.msra.mxu0 %v986
  %1120 = vmatprep.subr.bf16.mxu0 0
  %1121 = vmatpush1.bf16.msra.mxu0 %v987
  %1122 = vmatprep.subr.bf16.mxu0 0
  %1123 = vmatpush1.bf16.msra.mxu0 %v988
  %1124 = vmatprep.subr.bf16.mxu0 0
  %1125 = vmatpush1.bf16.msra.mxu0 %v989
  %1126 = vmatprep.subr.bf16.mxu0 0
  %1127 = vmatpush1.bf16.msra.mxu0 %v990
  %1128 = vmatprep.subr.bf16.mxu0 0
  %1129 = vmatpush1.bf16.msra.mxu0 %v991
  %1130 = vmatprep.subr.bf16.mxu0 0
  %1131 = vmatpush1.bf16.msra.mxu0 %v992
  %1132 = vmatprep.subr.bf16.mxu0 0
  %1133 = vmatpush1.bf16.msra.mxu0 %v993
  %1134 = vmatprep.subr.bf16.mxu0 0
  %1135 = vmatpush1.bf16.msra.mxu0 %v994
  %1136 = vmatprep.subr.bf16.mxu0 0
  %1137 = vmatpush1.bf16.msra.mxu0 %v995
  %1138 = vmatprep.subr.bf16.mxu0 0
  %1139 = vmatpush1.bf16.msra.mxu0 %v996
  %1140 = vmatprep.subr.bf16.mxu0 0
  %1141 = vmatpush1.bf16.msra.mxu0 %v997
  %1142 = vmatprep.mubr.bf16.mxu0 %v663
  %1143 = vmatmul.mubr.bf16.gmra.mrb[0].mxu0 %v662
  %v1144 = vpop.f32.mrb[0].mxu0
  %v1145 = vadd.f32 0.0, %v1144
  %v1146 = vpop.f32.mrb[0].mxu0
  %v1147 = vpop.f32.mrb[0].mxu0
  %v1148 = vadd.f32 0.0, %v1147
  %v1149 = vpop.f32.mrb[0].mxu0
  %1150 = vmatprep.mubr.bf16.mxu0 %v671
  %1151 = vmatmul.mubr.bf16.gmra.mrb[0].mxu0 %v670
  %v1152 = vpop.f32.mrb[0].mxu0
  %v1153 = vadd.f32 0.0, %v1152
  %v1154 = vpop.f32.mrb[0].mxu0
  %v1155 = vpop.f32.mrb[0].mxu0
  %v1156 = vadd.f32 0.0, %v1155
  %v1157 = vpop.f32.mrb[0].mxu0
  %1158 = vmatprep.mubr.bf16.mxu0 %v679
  %1159 = vmatmul.mubr.bf16.gmra.mrb[0].mxu0 %v678
  %v1160 = vpop.f32.mrb[0].mxu0
  %v1161 = vadd.f32 0.0, %v1160
  %v1162 = vpop.f32.mrb[0].mxu0
  %v1163 = vpop.f32.mrb[0].mxu0
  %v1164 = vadd.f32 0.0, %v1163
  %v1165 = vpop.f32.mrb[0].mxu0
  %1166 = vmatprep.mubr.bf16.mxu0 %v687
  %1167 = vmatmul.mubr.bf16.gmra.mrb[0].mxu0 %v686
  %v1168 = vpop.f32.mrb[0].mxu0
  %v1169 = vadd.f32 0.0, %v1168
  %v1170 = vpop.f32.mrb[0].mxu0
  %v1171 = vpop.f32.mrb[0].mxu0
  %v1172 = vadd.f32 0.0, %v1171
  %v1173 = vpop.f32.mrb[0].mxu0
  %1174 = vdwg.mxu0
  %1175 = vmatprep.subr.bf16.mxu0 0
  %1176 = vmatpush1.bf16.msra.mxu0 %v998
  %1177 = vmatprep.subr.bf16.mxu0 0
  %1178 = vmatpush1.bf16.msra.mxu0 %v999
  %1179 = vmatprep.subr.bf16.mxu0 0
  %1180 = vmatpush1.bf16.msra.mxu0 %v1000
  %1181 = vmatprep.subr.bf16.mxu0 0
  %1182 = vmatpush1.bf16.msra.mxu0 %v1001
  %1183 = vmatprep.subr.bf16.mxu0 0
  %1184 = vmatpush1.bf16.msra.mxu0 %v1002
  %1185 = vmatprep.subr.bf16.mxu0 0
  %1186 = vmatpush1.bf16.msra.mxu0 %v1003
  %1187 = vmatprep.subr.bf16.mxu0 0
  %1188 = vmatpush1.bf16.msra.mxu0 %v1004
  %1189 = vmatprep.subr.bf16.mxu0 0
  %1190 = vmatpush1.bf16.msra.mxu0 %v1005
  %1191 = vmatprep.subr.bf16.mxu0 0
  %1192 = vmatpush1.bf16.msra.mxu0 %v1006
  %1193 = vmatprep.subr.bf16.mxu0 0
  %1194 = vmatpush1.bf16.msra.mxu0 %v1007
  %1195 = vmatprep.subr.bf16.mxu0 0
  %1196 = vmatpush1.bf16.msra.mxu0 %v1008
  %1197 = vmatprep.subr.bf16.mxu0 0
  %1198 = vmatpush1.bf16.msra.mxu0 %v1009
  %1199 = vmatprep.subr.bf16.mxu0 0
  %1200 = vmatpush1.bf16.msra.mxu0 %v1010
  %1201 = vmatprep.subr.bf16.mxu0 0
  %1202 = vmatpush1.bf16.msra.mxu0 %v1011
  %1203 = vmatprep.subr.bf16.mxu0 0
  %1204 = vmatpush1.bf16.msra.mxu0 %v1012
  %1205 = vmatprep.subr.bf16.mxu0 0
  %1206 = vmatpush1.bf16.msra.mxu0 %v1013
  %1207 = vmatprep.mubr.bf16.mxu0 %v665
  %1208 = vmatmul.mubr.bf16.gmra.mrb[0].mxu0 %v664
  %v1209 = vpop.f32.mrb[0].mxu0
  %v1210 = vadd.f32 %v1145, %v1209
  %v1211 = vpop.f32.mrb[0].mxu0
  %v1212 = vpop.f32.mrb[0].mxu0
  %v1213 = vadd.f32 %v1148, %v1212
  %v1214 = vpop.f32.mrb[0].mxu0
  %1215 = vmatprep.mubr.bf16.mxu0 %v673
  %1216 = vmatmul.mubr.bf16.gmra.mrb[0].mxu0 %v672
  %v1217 = vpop.f32.mrb[0].mxu0
  %v1218 = vadd.f32 %v1153, %v1217
  %v1219 = vpop.f32.mrb[0].mxu0
  %v1220 = vpop.f32.mrb[0].mxu0
  %v1221 = vadd.f32 %v1156, %v1220
  %v1222 = vpop.f32.mrb[0].mxu0
  %1223 = vmatprep.mubr.bf16.mxu0 %v681
  %1224 = vmatmul.mubr.bf16.gmra.mrb[0].mxu0 %v680
  %v1225 = vpop.f32.mrb[0].mxu0
  %v1226 = vadd.f32 %v1161, %v1225
  %v1227 = vpop.f32.mrb[0].mxu0
  %v1228 = vpop.f32.mrb[0].mxu0
  %v1229 = vadd.f32 %v1164, %v1228
  %v1230 = vpop.f32.mrb[0].mxu0
  %1231 = vmatprep.mubr.bf16.mxu0 %v689
  %1232 = vmatmul.mubr.bf16.gmra.mrb[0].mxu0 %v688
  %v1233 = vpop.f32.mrb[0].mxu0
  %v1234 = vadd.f32 %v1169, %v1233
  %v1235 = vpop.f32.mrb[0].mxu0
  %v1236 = vpop.f32.mrb[0].mxu0
  %v1237 = vadd.f32 %v1172, %v1236
  %v1238 = vpop.f32.mrb[0].mxu0
  %1239 = vdwg.mxu0
  %1240 = vmatprep.subr.bf16.mxu0 0
  %1241 = vmatpush1.bf16.msra.mxu0 %v1014
  %1242 = vmatprep.subr.bf16.mxu0 0
  %1243 = vmatpush1.bf16.msra.mxu0 %v1015
  %1244 = vmatprep.subr.bf16.mxu0 0
  %1245 = vmatpush1.bf16.msra.mxu0 %v1016
  %1246 = vmatprep.subr.bf16.mxu0 0
  %1247 = vmatpush1.bf16.msra.mxu0 %v1017
  %1248 = vmatprep.subr.bf16.mxu0 0
  %1249 = vmatpush1.bf16.msra.mxu0 %v1018
  %1250 = vmatprep.subr.bf16.mxu0 0
  %1251 = vmatpush1.bf16.msra.mxu0 %v1019
  %1252 = vmatprep.subr.bf16.mxu0 0
  %1253 = vmatpush1.bf16.msra.mxu0 %v1020
  %1254 = vmatprep.subr.bf16.mxu0 0
  %1255 = vmatpush1.bf16.msra.mxu0 %v1021
  %1256 = vmatprep.subr.bf16.mxu0 0
  %1257 = vmatpush1.bf16.msra.mxu0 %v1022
  %1258 = vmatprep.subr.bf16.mxu0 0
  %1259 = vmatpush1.bf16.msra.mxu0 %v1023
  %1260 = vmatprep.subr.bf16.mxu0 0
  %1261 = vmatpush1.bf16.msra.mxu0 %v1024
  %1262 = vmatprep.subr.bf16.mxu0 0
  %1263 = vmatpush1.bf16.msra.mxu0 %v1025
  %1264 = vmatprep.subr.bf16.mxu0 0
  %1265 = vmatpush1.bf16.msra.mxu0 %v1026
  %1266 = vmatprep.subr.bf16.mxu0 0
  %1267 = vmatpush1.bf16.msra.mxu0 %v1027
  %1268 = vmatprep.subr.bf16.mxu0 0
  %1269 = vmatpush1.bf16.msra.mxu0 %v1028
  %1270 = vmatprep.subr.bf16.mxu0 0
  %1271 = vmatpush1.bf16.msra.mxu0 %v1029
  %1272 = vmatprep.mubr.bf16.mxu0 %v667
  %1273 = vmatmul.mubr.bf16.gmra.mrb[0].mxu0 %v666
  %v1274 = vpop.f32.mrb[0].mxu0
  %v1275 = vadd.f32 %v1210, %v1274
  %v1276 = vpop.f32.mrb[0].mxu0
  %v1277 = vpop.f32.mrb[0].mxu0
  %v1278 = vadd.f32 %v1213, %v1277
  %v1279 = vpop.f32.mrb[0].mxu0
  %1280 = vmatprep.mubr.bf16.mxu0 %v675
  %1281 = vmatmul.mubr.bf16.gmra.mrb[0].mxu0 %v674
  %v1282 = vpop.f32.mrb[0].mxu0
  %v1283 = vadd.f32 %v1218, %v1282
  %v1284 = vpop.f32.mrb[0].mxu0
  %v1285 = vpop.f32.mrb[0].mxu0
  %v1286 = vadd.f32 %v1221, %v1285
  %v1287 = vpop.f32.mrb[0].mxu0
  %1288 = vmatprep.mubr.bf16.mxu0 %v683
  %1289 = vmatmul.mubr.bf16.gmra.mrb[0].mxu0 %v682
  %v1290 = vpop.f32.mrb[0].mxu0
  %v1291 = vadd.f32 %v1226, %v1290
  %v1292 = vpop.f32.mrb[0].mxu0
  %v1293 = vpop.f32.mrb[0].mxu0
  %v1294 = vadd.f32 %v1229, %v1293
  %v1295 = vpop.f32.mrb[0].mxu0
  %1296 = vmatprep.mubr.bf16.mxu0 %v691
  %1297 = vmatmul.mubr.bf16.gmra.mrb[0].mxu0 %v690
  %v1298 = vpop.f32.mrb[0].mxu0
  %v1299 = vadd.f32 %v1234, %v1298
  %v1300 = vpop.f32.mrb[0].mxu0
  %v1301 = vpop.f32.mrb[0].mxu0
  %v1302 = vadd.f32 %v1237, %v1301
  %v1303 = vpop.f32.mrb[0].mxu0
  %1304 = vdwg.mxu0
  %1305 = vmatprep.subr.bf16.mxu0 0
  %1306 = vmatpush1.bf16.msra.mxu0 %v1030
  %1307 = vmatprep.subr.bf16.mxu0 0
  %1308 = vmatpush1.bf16.msra.mxu0 %v1031
  %1309 = vmatprep.subr.bf16.mxu0 0
  %1310 = vmatpush1.bf16.msra.mxu0 %v1032
  %1311 = vmatprep.subr.bf16.mxu0 0
  %1312 = vmatpush1.bf16.msra.mxu0 %v1033
  %1313 = vmatprep.subr.bf16.mxu0 0
  %1314 = vmatpush1.bf16.msra.mxu0 %v1034
  %1315 = vmatprep.subr.bf16.mxu0 0
  %1316 = vmatpush1.bf16.msra.mxu0 %v1035
  %1317 = vmatprep.subr.bf16.mxu0 0
  %1318 = vmatpush1.bf16.msra.mxu0 %v1036
  %1319 = vmatprep.subr.bf16.mxu0 0
  %1320 = vmatpush1.bf16.msra.mxu0 %v1037
  %1321 = vmatprep.subr.bf16.mxu0 0
  %1322 = vmatpush1.bf16.msra.mxu0 %v1038
  %1323 = vmatprep.subr.bf16.mxu0 0
  %1324 = vmatpush1.bf16.msra.mxu0 %v1039
  %1325 = vmatprep.subr.bf16.mxu0 0
  %1326 = vmatpush1.bf16.msra.mxu0 %v1040
  %1327 = vmatprep.subr.bf16.mxu0 0
  %1328 = vmatpush1.bf16.msra.mxu0 %v1041
  %1329 = vmatprep.subr.bf16.mxu0 0
  %1330 = vmatpush1.bf16.msra.mxu0 %v1042
  %1331 = vmatprep.subr.bf16.mxu0 0
  %1332 = vmatpush1.bf16.msra.mxu0 %v1043
  %1333 = vmatprep.subr.bf16.mxu0 0
  %1334 = vmatpush1.bf16.msra.mxu0 %v1044
  %1335 = vmatprep.subr.bf16.mxu0 0
  %1336 = vmatpush1.bf16.msra.mxu0 %v1045
  %1337 = vmatprep.mubr.bf16.mxu0 %v669
  %1338 = vmatmul.mubr.bf16.gmra.mrb[0].mxu0 %v668
  %v1339 = vpop.f32.mrb[0].mxu0
  %v1340 = vadd.f32 %v1275, %v1339
  %v1341 = vpop.f32.mrb[0].mxu0
  %v1342 = vpop.f32.mrb[0].mxu0
  %v1343 = vadd.f32 %v1278, %v1342
  %v1344 = vpop.f32.mrb[0].mxu0
  %1345 = vmatprep.mubr.bf16.mxu0 %v677
  %1346 = vmatmul.mubr.bf16.gmra.mrb[0].mxu0 %v676
  %v1347 = vpop.f32.mrb[0].mxu0
  %v1348 = vadd.f32 %v1283, %v1347
  %v1349 = vpop.f32.mrb[0].mxu0
  %v1350 = vpop.f32.mrb[0].mxu0
  %v1351 = vadd.f32 %v1286, %v1350
  %v1352 = vpop.f32.mrb[0].mxu0
  %1353 = vmatprep.mubr.bf16.mxu0 %v685
  %1354 = vmatmul.mubr.bf16.gmra.mrb[0].mxu0 %v684
  %v1355 = vpop.f32.mrb[0].mxu0
  %v1356 = vadd.f32 %v1291, %v1355
  %v1357 = vpop.f32.mrb[0].mxu0
  %v1358 = vpop.f32.mrb[0].mxu0
  %v1359 = vadd.f32 %v1294, %v1358
  %v1360 = vpop.f32.mrb[0].mxu0
  %1361 = vmatprep.mubr.bf16.mxu0 %v693
  %1362 = vmatmul.mubr.bf16.gmra.mrb[0].mxu0 %v692
  %v1363 = vpop.f32.mrb[0].mxu0
  %v1364 = vadd.f32 %v1299, %v1363
  %v1365 = vpop.f32.mrb[0].mxu0
  %v1366 = vpop.f32.mrb[0].mxu0
  %v1367 = vadd.f32 %v1302, %v1366
  %v1368 = vpop.f32.mrb[0].mxu0
  %1369 = vdwg.mxu0
  %v1370 = vpack.c.bf16 %v1343, %v1340
  %v1371 = vpack.c.bf16 %v1351, %v1348
  %v1372 = vpack.c.bf16 %v1359, %v1356
  %v1373 = vpack.c.bf16 %v1367, %v1364
  %v1378 = vunpack.c.l.b16 %v1370
  %v1379 = vunpack.c.h.b16 %v1370
  %v1380 = vunpack.c.l.b16 %v1371
  %v1381 = vunpack.c.h.b16 %v1371
  %v1382 = vunpack.c.l.b16 %v1372
  %v1383 = vunpack.c.h.b16 %v1372
  %v1384 = vunpack.c.l.b16 %v1373
  %v1385 = vunpack.c.h.b16 %v1373
  %v1386 = vpack.c.b16 %v1378, %v1378
  %v1387 = vpack.c.b16 %v1379, %v1379
  %v1388 = vpack.c.b16 %v1380, %v1380
  %v1389 = vpack.c.b16 %v1381, %v1381
  %v1390 = vpack.c.b16 %v1382, %v1382
  %v1391 = vpack.c.b16 %v1383, %v1383
  %v1392 = vpack.c.b16 %v1384, %v1384
  %v1393 = vpack.c.b16 %v1385, %v1385
  %vm1402 = vcmask 11264
  %1403 = vst.msk [vmem:[%s5] sm:$0xf] %vm1402, %v1386
  %1404 = vst.msk [vmem:[%s5 + $0x4] sm:$0xf] %vm1402, %v1387
  %1405 = vst.msk [vmem:[%s5 + $0x8] sm:$0xf] %vm1402, %v1388
  %1406 = vst.msk [vmem:[%s5 + $0xc] sm:$0xf] %vm1402, %v1389
  %1407 = vst.msk [vmem:[%s5 + $0x10] sm:$0xf] %vm1402, %v1390
  %1408 = vst.msk [vmem:[%s5 + $0x14] sm:$0xf] %vm1402, %v1391
  %1409 = vst.msk [vmem:[%s5 + $0x18] sm:$0xf] %vm1402, %v1392
  %1410 = vst.msk [vmem:[%s5 + $0x1c] sm:$0xf] %vm1402, %v1393
  // Predicated region
  $region22: #{unet_generator_forward.14} parent=0 // pred_check
    _
  $region23: #{unet_generator_forward.14} parent=0 // pred_check_branch
    %1412 = sbr.rel (0) target = $region25
  $region24: #{unet_generator_forward.14} parent=0 // pred_region
    _
  $region25: #{unet_generator_forward.14} parent=0 // pred_fallthru
    _
  // Predicated region
  $region26: #{unet_generator_forward.14} parent=0 // pred_check
    _
  $region27: #{unet_generator_forward.14} parent=0 // pred_check_branch
    %1414 = sbr.rel (0) target = $region29
  $region28: #{unet_generator_forward.14} parent=0 // pred_region
    _
  $region29: #{unet_generator_forward.14} parent=0 // pred_fallthru
    _

// kernel: unet_generator_forward.15
$region0: #{unet_generator_forward.15}
  #allocation0 [shape = 'u32[]', space=smem, size = 0x4, offset = 0x4, fixed_abs, tag = 'smem constant byte address 0x4 - core index']
  #allocation1 [shape = 'u32[144,128]{1,0:T(1,128)}', space=vmem, size = 0x12000, scoped, tag = 'internal scratch']
  %s0 = inlined_call_operand.vmem [shape: bf16[64,1024], index: 0, kind: input, shape index: {}]
  %s1 = inlined_call_operand.vmem [shape: bf16[1024,8], index: 1, kind: input, shape index: {}]
  %s2 = inlined_call_operand.vmem [shape: f32[64,1], index: 2, kind: input, shape index: {}]
  %s3 = inlined_call_operand.vmem [shape: f32[64,1], index: 3, kind: input, shape index: {}]
  %s4 = inlined_call_operand.vmem [shape: f32[64,1], index: 4, kind: input, shape index: {}]
  %s5 = inlined_call_operand.vmem [shape: bf16[64,8], index: 5, kind: output, shape index: {}]
  %s6 = sld [smem:[#allocation0]]
  $region30: #{unet_generator_forward.15} parent=0
    _
  %s8 = ssub.s32 1, %s6
  %s9 = scalar_select 0, %s8, %s6
  // Predicated region
  $region2: #{unet_generator_forward.15} parent=0 // pred_check
    _
  $region3: #{unet_generator_forward.15} parent=0 // pred_check_branch
    %11 = sbr.rel (0) target = $region5
  $region4: #{unet_generator_forward.15} parent=0 // pred_region
    _
  $region5: #{unet_generator_forward.15} parent=0 // pred_fallthru
    _
  // Predicated region
  $region6: #{unet_generator_forward.15} parent=0 // pred_check
    _
  $region7: #{unet_generator_forward.15} parent=0 // pred_check_branch
    %13 = sbr.rel (0) target = $region9
  $region8: #{unet_generator_forward.15} parent=0 // pred_region
    _
  $region9: #{unet_generator_forward.15} parent=0 // pred_fallthru
    _
  // Predicated region
  $region10: #{unet_generator_forward.15} parent=0 // pred_check
    _
  $region11: #{unet_generator_forward.15} parent=0 // pred_check_branch
    %15 = sbr.rel (0) target = $region13
  $region12: #{unet_generator_forward.15} parent=0 // pred_region
    _
  $region13: #{unet_generator_forward.15} parent=0 // pred_fallthru
    _
  // Predicated region
  $region14: #{unet_generator_forward.15} parent=0 // pred_check
    _
  $region15: #{unet_generator_forward.15} parent=0 // pred_check_branch
    %17 = sbr.rel (0) target = $region17
  $region16: #{unet_generator_forward.15} parent=0 // pred_region
    _
  $region17: #{unet_generator_forward.15} parent=0 // pred_fallthru
    _
  // Predicated region
  $region18: #{unet_generator_forward.15} parent=0 // pred_check
    _
  $region19: #{unet_generator_forward.15} parent=0 // pred_check_branch
    %19 = sbr.rel (0) target = $region21
  $region20: #{unet_generator_forward.15} parent=0 // pred_region
    _
  $region21: #{unet_generator_forward.15} parent=0 // pred_fallthru
    _
  %v21 = vld [vmem:[%s1] sm:$0xf]
  %v22 = vld [vmem:[%s1 + $0x4] sm:$0xf]
  %v23 = vld [vmem:[%s1 + $0x8] sm:$0xf]
  %v24 = vld [vmem:[%s1 + $0xc] sm:$0xf]
  %v25 = vld [vmem:[%s1 + $0x10] sm:$0xf]
  %v26 = vld [vmem:[%s1 + $0x14] sm:$0xf]
  %v27 = vld [vmem:[%s1 + $0x18] sm:$0xf]
  %v28 = vld [vmem:[%s1 + $0x1c] sm:$0xf]
  %v29 = vld [vmem:[%s1 + $0x20] sm:$0xf]
  %v30 = vld [vmem:[%s1 + $0x24] sm:$0xf]
  %v31 = vld [vmem:[%s1 + $0x28] sm:$0xf]
  %v32 = vld [vmem:[%s1 + $0x2c] sm:$0xf]
  %v33 = vld [vmem:[%s1 + $0x30] sm:$0xf]
  %v34 = vld [vmem:[%s1 + $0x34] sm:$0xf]
  %v35 = vld [vmem:[%s1 + $0x38] sm:$0xf]
  %v36 = vld [vmem:[%s1 + $0x3c] sm:$0xf]
  %v37 = vld [vmem:[%s1 + $0x40] sm:$0xf]
  %v38 = vld [vmem:[%s1 + $0x44] sm:$0xf]
  %v39 = vld [vmem:[%s1 + $0x48] sm:$0xf]
  %v40 = vld [vmem:[%s1 + $0x4c] sm:$0xf]
  %v41 = vld [vmem:[%s1 + $0x50] sm:$0xf]
  %v42 = vld [vmem:[%s1 + $0x54] sm:$0xf]
  %v43 = vld [vmem:[%s1 + $0x58] sm:$0xf]
  %v44 = vld [vmem:[%s1 + $0x5c] sm:$0xf]
  %v45 = vld [vmem:[%s1 + $0x60] sm:$0xf]
  %v46 = vld [vmem:[%s1 + $0x64] sm:$0xf]
  %v47 = vld [vmem:[%s1 + $0x68] sm:$0xf]
  %v48 = vld [vmem:[%s1 + $0x6c] sm:$0xf]
  %v49 = vld [vmem:[%s1 + $0x70] sm:$0xf]
  %v50 = vld [vmem:[%s1 + $0x74] sm:$0xf]
  %v51 = vld [vmem:[%s1 + $0x78] sm:$0xf]
  %v52 = vld [vmem:[%s1 + $0x7c] sm:$0xf]
  %v53 = vld [vmem:[%s1 + $0x80] sm:$0xf]
  %v54 = vld [vmem:[%s1 + $0x84] sm:$0xf]
  %v55 = vld [vmem:[%s1 + $0x88] sm:$0xf]
  %v56 = vld [vmem:[%s1 + $0x8c] sm:$0xf]
  %v57 = vld [vmem:[%s1 + $0x90] sm:$0xf]
  %v58 = vld [vmem:[%s1 + $0x94] sm:$0xf]
  %v59 = vld [vmem:[%s1 + $0x98] sm:$0xf]
  %v60 = vld [vmem:[%s1 + $0x9c] sm:$0xf]
  %v61 = vld [vmem:[%s1 + $0xa0] sm:$0xf]
  %v62 = vld [vmem:[%s1 + $0xa4] sm:$0xf]
  %v63 = vld [vmem:[%s1 + $0xa8] sm:$0xf]
  %v64 = vld [vmem:[%s1 + $0xac] sm:$0xf]
  %v65 = vld [vmem:[%s1 + $0xb0] sm:$0xf]
  %v66 = vld [vmem:[%s1 + $0xb4] sm:$0xf]
  %v67 = vld [vmem:[%s1 + $0xb8] sm:$0xf]
  %v68 = vld [vmem:[%s1 + $0xbc] sm:$0xf]
  %v69 = vld [vmem:[%s1 + $0xc0] sm:$0xf]
  %v70 = vld [vmem:[%s1 + $0xc4] sm:$0xf]
  %v71 = vld [vmem:[%s1 + $0xc8] sm:$0xf]
  %v72 = vld [vmem:[%s1 + $0xcc] sm:$0xf]
  %v73 = vld [vmem:[%s1 + $0xd0] sm:$0xf]
  %v74 = vld [vmem:[%s1 + $0xd4] sm:$0xf]
  %v75 = vld [vmem:[%s1 + $0xd8] sm:$0xf]
  %v76 = vld [vmem:[%s1 + $0xdc] sm:$0xf]
  %v77 = vld [vmem:[%s1 + $0xe0] sm:$0xf]
  %v78 = vld [vmem:[%s1 + $0xe4] sm:$0xf]
  %v79 = vld [vmem:[%s1 + $0xe8] sm:$0xf]
  %v80 = vld [vmem:[%s1 + $0xec] sm:$0xf]
  %v81 = vld [vmem:[%s1 + $0xf0] sm:$0xf]
  %v82 = vld [vmem:[%s1 + $0xf4] sm:$0xf]
  %v83 = vld [vmem:[%s1 + $0xf8] sm:$0xf]
  %v84 = vld [vmem:[%s1 + $0xfc] sm:$0xf]
  %v85 = vld [vmem:[%s1 + $0x100] sm:$0xf]
  %v86 = vld [vmem:[%s1 + $0x104] sm:$0xf]
  %v87 = vld [vmem:[%s1 + $0x108] sm:$0xf]
  %v88 = vld [vmem:[%s1 + $0x10c] sm:$0xf]
  %v89 = vld [vmem:[%s1 + $0x110] sm:$0xf]
  %v90 = vld [vmem:[%s1 + $0x114] sm:$0xf]
  %v91 = vld [vmem:[%s1 + $0x118] sm:$0xf]
  %v92 = vld [vmem:[%s1 + $0x11c] sm:$0xf]
  %v93 = vld [vmem:[%s1 + $0x120] sm:$0xf]
  %v94 = vld [vmem:[%s1 + $0x124] sm:$0xf]
  %v95 = vld [vmem:[%s1 + $0x128] sm:$0xf]
  %v96 = vld [vmem:[%s1 + $0x12c] sm:$0xf]
  %v97 = vld [vmem:[%s1 + $0x130] sm:$0xf]
  %v98 = vld [vmem:[%s1 + $0x134] sm:$0xf]
  %v99 = vld [vmem:[%s1 + $0x138] sm:$0xf]
  %v100 = vld [vmem:[%s1 + $0x13c] sm:$0xf]
  %v101 = vld [vmem:[%s1 + $0x140] sm:$0xf]
  %v102 = vld [vmem:[%s1 + $0x144] sm:$0xf]
  %v103 = vld [vmem:[%s1 + $0x148] sm:$0xf]
  %v104 = vld [vmem:[%s1 + $0x14c] sm:$0xf]
  %v105 = vld [vmem:[%s1 + $0x150] sm:$0xf]
  %v106 = vld [vmem:[%s1 + $0x154] sm:$0xf]
  %v107 = vld [vmem:[%s1 + $0x158] sm:$0xf]
  %v108 = vld [vmem:[%s1 + $0x15c] sm:$0xf]
  %v109 = vld [vmem:[%s1 + $0x160] sm:$0xf]
  %v110 = vld [vmem:[%s1 + $0x164] sm:$0xf]
  %v111 = vld [vmem:[%s1 + $0x168] sm:$0xf]
  %v112 = vld [vmem:[%s1 + $0x16c] sm:$0xf]
  %v113 = vld [vmem:[%s1 + $0x170] sm:$0xf]
  %v114 = vld [vmem:[%s1 + $0x174] sm:$0xf]
  %v115 = vld [vmem:[%s1 + $0x178] sm:$0xf]
  %v116 = vld [vmem:[%s1 + $0x17c] sm:$0xf]
  %v117 = vld [vmem:[%s1 + $0x180] sm:$0xf]
  %v118 = vld [vmem:[%s1 + $0x184] sm:$0xf]
  %v119 = vld [vmem:[%s1 + $0x188] sm:$0xf]
  %v120 = vld [vmem:[%s1 + $0x18c] sm:$0xf]
  %v121 = vld [vmem:[%s1 + $0x190] sm:$0xf]
  %v122 = vld [vmem:[%s1 + $0x194] sm:$0xf]
  %v123 = vld [vmem:[%s1 + $0x198] sm:$0xf]
  %v124 = vld [vmem:[%s1 + $0x19c] sm:$0xf]
  %v125 = vld [vmem:[%s1 + $0x1a0] sm:$0xf]
  %v126 = vld [vmem:[%s1 + $0x1a4] sm:$0xf]
  %v127 = vld [vmem:[%s1 + $0x1a8] sm:$0xf]
  %v128 = vld [vmem:[%s1 + $0x1ac] sm:$0xf]
  %v129 = vld [vmem:[%s1 + $0x1b0] sm:$0xf]
  %v130 = vld [vmem:[%s1 + $0x1b4] sm:$0xf]
  %v131 = vld [vmem:[%s1 + $0x1b8] sm:$0xf]
  %v132 = vld [vmem:[%s1 + $0x1bc] sm:$0xf]
  %v133 = vld [vmem:[%s1 + $0x1c0] sm:$0xf]
  %v134 = vld [vmem:[%s1 + $0x1c4] sm:$0xf]
  %v135 = vld [vmem:[%s1 + $0x1c8] sm:$0xf]
  %v136 = vld [vmem:[%s1 + $0x1cc] sm:$0xf]
  %v137 = vld [vmem:[%s1 + $0x1d0] sm:$0xf]
  %v138 = vld [vmem:[%s1 + $0x1d4] sm:$0xf]
  %v139 = vld [vmem:[%s1 + $0x1d8] sm:$0xf]
  %v140 = vld [vmem:[%s1 + $0x1dc] sm:$0xf]
  %v141 = vld [vmem:[%s1 + $0x1e0] sm:$0xf]
  %v142 = vld [vmem:[%s1 + $0x1e4] sm:$0xf]
  %v143 = vld [vmem:[%s1 + $0x1e8] sm:$0xf]
  %v144 = vld [vmem:[%s1 + $0x1ec] sm:$0xf]
  %v145 = vld [vmem:[%s1 + $0x1f0] sm:$0xf]
  %v146 = vld [vmem:[%s1 + $0x1f4] sm:$0xf]
  %v147 = vld [vmem:[%s1 + $0x1f8] sm:$0xf]
  %v148 = vld [vmem:[%s1 + $0x1fc] sm:$0xf]
  %v149 = vmax.bf16 %v21, 0
  %v150 = vmax.bf16 %v22, 0
  %v151 = vmax.bf16 %v23, 0
  %v152 = vmax.bf16 %v24, 0
  %v153 = vmax.bf16 %v25, 0
  %v154 = vmax.bf16 %v26, 0
  %v155 = vmax.bf16 %v27, 0
  %v156 = vmax.bf16 %v28, 0
  %v157 = vmax.bf16 %v29, 0
  %v158 = vmax.bf16 %v30, 0
  %v159 = vmax.bf16 %v31, 0
  %v160 = vmax.bf16 %v32, 0
  %v161 = vmax.bf16 %v33, 0
  %v162 = vmax.bf16 %v34, 0
  %v163 = vmax.bf16 %v35, 0
  %v164 = vmax.bf16 %v36, 0
  %v165 = vmax.bf16 %v37, 0
  %v166 = vmax.bf16 %v38, 0
  %v167 = vmax.bf16 %v39, 0
  %v168 = vmax.bf16 %v40, 0
  %v169 = vmax.bf16 %v41, 0
  %v170 = vmax.bf16 %v42, 0
  %v171 = vmax.bf16 %v43, 0
  %v172 = vmax.bf16 %v44, 0
  %v173 = vmax.bf16 %v45, 0
  %v174 = vmax.bf16 %v46, 0
  %v175 = vmax.bf16 %v47, 0
  %v176 = vmax.bf16 %v48, 0
  %v177 = vmax.bf16 %v49, 0
  %v178 = vmax.bf16 %v50, 0
  %v179 = vmax.bf16 %v51, 0
  %v180 = vmax.bf16 %v52, 0
  %v181 = vmax.bf16 %v53, 0
  %v182 = vmax.bf16 %v54, 0
  %v183 = vmax.bf16 %v55, 0
  %v184 = vmax.bf16 %v56, 0
  %v185 = vmax.bf16 %v57, 0
  %v186 = vmax.bf16 %v58, 0
  %v187 = vmax.bf16 %v59, 0
  %v188 = vmax.bf16 %v60, 0
  %v189 = vmax.bf16 %v61, 0
  %v190 = vmax.bf16 %v62, 0
  %v191 = vmax.bf16 %v63, 0
  %v192 = vmax.bf16 %v64, 0
  %v193 = vmax.bf16 %v65, 0
  %v194 = vmax.bf16 %v66, 0
  %v195 = vmax.bf16 %v67, 0
  %v196 = vmax.bf16 %v68, 0
  %v197 = vmax.bf16 %v69, 0
  %v198 = vmax.bf16 %v70, 0
  %v199 = vmax.bf16 %v71, 0
  %v200 = vmax.bf16 %v72, 0
  %v201 = vmax.bf16 %v73, 0
  %v202 = vmax.bf16 %v74, 0
  %v203 = vmax.bf16 %v75, 0
  %v204 = vmax.bf16 %v76, 0
  %v205 = vmax.bf16 %v77, 0
  %v206 = vmax.bf16 %v78, 0
  %v207 = vmax.bf16 %v79, 0
  %v208 = vmax.bf16 %v80, 0
  %v209 = vmax.bf16 %v81, 0
  %v210 = vmax.bf16 %v82, 0
  %v211 = vmax.bf16 %v83, 0
  %v212 = vmax.bf16 %v84, 0
  %v213 = vmax.bf16 %v85, 0
  %v214 = vmax.bf16 %v86, 0
  %v215 = vmax.bf16 %v87, 0
  %v216 = vmax.bf16 %v88, 0
  %v217 = vmax.bf16 %v89, 0
  %v218 = vmax.bf16 %v90, 0
  %v219 = vmax.bf16 %v91, 0
  %v220 = vmax.bf16 %v92, 0
  %v221 = vmax.bf16 %v93, 0
  %v222 = vmax.bf16 %v94, 0
  %v223 = vmax.bf16 %v95, 0
  %v224 = vmax.bf16 %v96, 0
  %v225 = vmax.bf16 %v97, 0
  %v226 = vmax.bf16 %v98, 0
  %v227 = vmax.bf16 %v99, 0
  %v228 = vmax.bf16 %v100, 0
  %v229 = vmax.bf16 %v101, 0
  %v230 = vmax.bf16 %v102, 0
  %v231 = vmax.bf16 %v103, 0
  %v232 = vmax.bf16 %v104, 0
  %v233 = vmax.bf16 %v105, 0
  %v234 = vmax.bf16 %v106, 0
  %v235 = vmax.bf16 %v107, 0
  %v236 = vmax.bf16 %v108, 0
  %v237 = vmax.bf16 %v109, 0
  %v238 = vmax.bf16 %v110, 0
  %v239 = vmax.bf16 %v111, 0
  %v240 = vmax.bf16 %v112, 0
  %v241 = vmax.bf16 %v113, 0
  %v242 = vmax.bf16 %v114, 0
  %v243 = vmax.bf16 %v115, 0
  %v244 = vmax.bf16 %v116, 0
  %v245 = vmax.bf16 %v117, 0
  %v246 = vmax.bf16 %v118, 0
  %v247 = vmax.bf16 %v119, 0
  %v248 = vmax.bf16 %v120, 0
  %v249 = vmax.bf16 %v121, 0
  %v250 = vmax.bf16 %v122, 0
  %v251 = vmax.bf16 %v123, 0
  %v252 = vmax.bf16 %v124, 0
  %v253 = vmax.bf16 %v125, 0
  %v254 = vmax.bf16 %v126, 0
  %v255 = vmax.bf16 %v127, 0
  %v256 = vmax.bf16 %v128, 0
  %v257 = vmax.bf16 %v129, 0
  %v258 = vmax.bf16 %v130, 0
  %v259 = vmax.bf16 %v131, 0
  %v260 = vmax.bf16 %v132, 0
  %v261 = vmax.bf16 %v133, 0
  %v262 = vmax.bf16 %v134, 0
  %v263 = vmax.bf16 %v135, 0
  %v264 = vmax.bf16 %v136, 0
  %v265 = vmax.bf16 %v137, 0
  %v266 = vmax.bf16 %v138, 0
  %v267 = vmax.bf16 %v139, 0
  %v268 = vmax.bf16 %v140, 0
  %v269 = vmax.bf16 %v141, 0
  %v270 = vmax.bf16 %v142, 0
  %v271 = vmax.bf16 %v143, 0
  %v272 = vmax.bf16 %v144, 0
  %v273 = vmax.bf16 %v145, 0
  %v274 = vmax.bf16 %v146, 0
  %v275 = vmax.bf16 %v147, 0
  %v276 = vmax.bf16 %v148, 0
  %v277 = vld [vmem:[%s0] sm:$0xff]
  %v278 = vld [vmem:[%s0 + $0x8] sm:$0xff]
  %v279 = vld [vmem:[%s0 + $0x10] sm:$0xff]
  %v280 = vld [vmem:[%s0 + $0x18] sm:$0xff]
  %v281 = vld [vmem:[%s0 + $0x20] sm:$0xff]
  %v282 = vld [vmem:[%s0 + $0x28] sm:$0xff]
  %v283 = vld [vmem:[%s0 + $0x30] sm:$0xff]
  %v284 = vld [vmem:[%s0 + $0x38] sm:$0xff]
  %v285 = vld [vmem:[%s0 + $0x40] sm:$0xff]
  %v286 = vld [vmem:[%s0 + $0x48] sm:$0xff]
  %v287 = vld [vmem:[%s0 + $0x50] sm:$0xff]
  %v288 = vld [vmem:[%s0 + $0x58] sm:$0xff]
  %v289 = vld [vmem:[%s0 + $0x60] sm:$0xff]
  %v290 = vld [vmem:[%s0 + $0x68] sm:$0xff]
  %v291 = vld [vmem:[%s0 + $0x70] sm:$0xff]
  %v292 = vld [vmem:[%s0 + $0x78] sm:$0xff]
  %v293 = vld [vmem:[%s0 + $0x80] sm:$0xff]
  %v294 = vld [vmem:[%s0 + $0x88] sm:$0xff]
  %v295 = vld [vmem:[%s0 + $0x90] sm:$0xff]
  %v296 = vld [vmem:[%s0 + $0x98] sm:$0xff]
  %v297 = vld [vmem:[%s0 + $0xa0] sm:$0xff]
  %v298 = vld [vmem:[%s0 + $0xa8] sm:$0xff]
  %v299 = vld [vmem:[%s0 + $0xb0] sm:$0xff]
  %v300 = vld [vmem:[%s0 + $0xb8] sm:$0xff]
  %v301 = vld [vmem:[%s0 + $0xc0] sm:$0xff]
  %v302 = vld [vmem:[%s0 + $0xc8] sm:$0xff]
  %v303 = vld [vmem:[%s0 + $0xd0] sm:$0xff]
  %v304 = vld [vmem:[%s0 + $0xd8] sm:$0xff]
  %v305 = vld [vmem:[%s0 + $0xe0] sm:$0xff]
  %v306 = vld [vmem:[%s0 + $0xe8] sm:$0xff]
  %v307 = vld [vmem:[%s0 + $0xf0] sm:$0xff]
  %v308 = vld [vmem:[%s0 + $0xf8] sm:$0xff]
  %v341 = vunpack.c.l.b16 %v277
  %v342 = vunpack.c.h.b16 %v277
  %v343 = vunpack.c.l.b16 %v278
  %v344 = vunpack.c.h.b16 %v278
  %v345 = vunpack.c.l.b16 %v279
  %v346 = vunpack.c.h.b16 %v279
  %v347 = vunpack.c.l.b16 %v280
  %v348 = vunpack.c.h.b16 %v280
  %v349 = vunpack.c.l.b16 %v281
  %v350 = vunpack.c.h.b16 %v281
  %v351 = vunpack.c.l.b16 %v282
  %v352 = vunpack.c.h.b16 %v282
  %v353 = vunpack.c.l.b16 %v283
  %v354 = vunpack.c.h.b16 %v283
  %v355 = vunpack.c.l.b16 %v284
  %v356 = vunpack.c.h.b16 %v284
  %v357 = vunpack.c.l.b16 %v285
  %v358 = vunpack.c.h.b16 %v285
  %v359 = vunpack.c.l.b16 %v286
  %v360 = vunpack.c.h.b16 %v286
  %v361 = vunpack.c.l.b16 %v287
  %v362 = vunpack.c.h.b16 %v287
  %v363 = vunpack.c.l.b16 %v288
  %v364 = vunpack.c.h.b16 %v288
  %v365 = vunpack.c.l.b16 %v289
  %v366 = vunpack.c.h.b16 %v289
  %v367 = vunpack.c.l.b16 %v290
  %v368 = vunpack.c.h.b16 %v290
  %v369 = vunpack.c.l.b16 %v291
  %v370 = vunpack.c.h.b16 %v291
  %v371 = vunpack.c.l.b16 %v292
  %v372 = vunpack.c.h.b16 %v292
  %v373 = vunpack.c.l.b16 %v293
  %v374 = vunpack.c.h.b16 %v293
  %v375 = vunpack.c.l.b16 %v294
  %v376 = vunpack.c.h.b16 %v294
  %v377 = vunpack.c.l.b16 %v295
  %v378 = vunpack.c.h.b16 %v295
  %v379 = vunpack.c.l.b16 %v296
  %v380 = vunpack.c.h.b16 %v296
  %v381 = vunpack.c.l.b16 %v297
  %v382 = vunpack.c.h.b16 %v297
  %v383 = vunpack.c.l.b16 %v298
  %v384 = vunpack.c.h.b16 %v298
  %v385 = vunpack.c.l.b16 %v299
  %v386 = vunpack.c.h.b16 %v299
  %v387 = vunpack.c.l.b16 %v300
  %v388 = vunpack.c.h.b16 %v300
  %v389 = vunpack.c.l.b16 %v301
  %v390 = vunpack.c.h.b16 %v301
  %v391 = vunpack.c.l.b16 %v302
  %v392 = vunpack.c.h.b16 %v302
  %v393 = vunpack.c.l.b16 %v303
  %v394 = vunpack.c.h.b16 %v303
  %v395 = vunpack.c.l.b16 %v304
  %v396 = vunpack.c.h.b16 %v304
  %v397 = vunpack.c.l.b16 %v305
  %v398 = vunpack.c.h.b16 %v305
  %v399 = vunpack.c.l.b16 %v306
  %v400 = vunpack.c.h.b16 %v306
  %v401 = vunpack.c.l.b16 %v307
  %v402 = vunpack.c.h.b16 %v307
  %v403 = vunpack.c.l.b16 %v308
  %v404 = vunpack.c.h.b16 %v308
  %v405 = vpack.c.b16 %v349, %v341
  %v406 = vpack.c.b16 %v350, %v342
  %v407 = vpack.c.b16 %v351, %v343
  %v408 = vpack.c.b16 %v352, %v344
  %v409 = vpack.c.b16 %v353, %v345
  %v410 = vpack.c.b16 %v354, %v346
  %v411 = vpack.c.b16 %v355, %v347
  %v412 = vpack.c.b16 %v356, %v348
  %v413 = vpack.c.b16 %v365, %v357
  %v414 = vpack.c.b16 %v366, %v358
  %v415 = vpack.c.b16 %v367, %v359
  %v416 = vpack.c.b16 %v368, %v360
  %v417 = vpack.c.b16 %v369, %v361
  %v418 = vpack.c.b16 %v370, %v362
  %v419 = vpack.c.b16 %v371, %v363
  %v420 = vpack.c.b16 %v372, %v364
  %v421 = vpack.c.b16 %v381, %v373
  %v422 = vpack.c.b16 %v382, %v374
  %v423 = vpack.c.b16 %v383, %v375
  %v424 = vpack.c.b16 %v384, %v376
  %v425 = vpack.c.b16 %v385, %v377
  %v426 = vpack.c.b16 %v386, %v378
  %v427 = vpack.c.b16 %v387, %v379
  %v428 = vpack.c.b16 %v388, %v380
  %v429 = vpack.c.b16 %v397, %v389
  %v430 = vpack.c.b16 %v398, %v390
  %v431 = vpack.c.b16 %v399, %v391
  %v432 = vpack.c.b16 %v400, %v392
  %v433 = vpack.c.b16 %v401, %v393
  %v434 = vpack.c.b16 %v402, %v394
  %v435 = vpack.c.b16 %v403, %v395
  %v436 = vpack.c.b16 %v404, %v396
  %v597 = vunpack.c.l.b16 %v149
  %v598 = vunpack.c.l.b16 %v150
  %v599 = vunpack.c.l.b16 %v151
  %v600 = vunpack.c.l.b16 %v152
  %v601 = vunpack.c.l.b16 %v153
  %v602 = vunpack.c.l.b16 %v154
  %v603 = vunpack.c.l.b16 %v155
  %v604 = vunpack.c.l.b16 %v156
  %v605 = vunpack.c.l.b16 %v157
  %v606 = vunpack.c.l.b16 %v158
  %v607 = vunpack.c.l.b16 %v159
  %v608 = vunpack.c.l.b16 %v160
  %v609 = vunpack.c.l.b16 %v161
  %v610 = vunpack.c.l.b16 %v162
  %v611 = vunpack.c.l.b16 %v163
  %v612 = vunpack.c.l.b16 %v164
  %v613 = vunpack.c.l.b16 %v165
  %v614 = vunpack.c.l.b16 %v166
  %v615 = vunpack.c.l.b16 %v167
  %v616 = vunpack.c.l.b16 %v168
  %v617 = vunpack.c.l.b16 %v169
  %v618 = vunpack.c.l.b16 %v170
  %v619 = vunpack.c.l.b16 %v171
  %v620 = vunpack.c.l.b16 %v172
  %v621 = vunpack.c.l.b16 %v173
  %v622 = vunpack.c.l.b16 %v174
  %v623 = vunpack.c.l.b16 %v175
  %v624 = vunpack.c.l.b16 %v176
  %v625 = vunpack.c.l.b16 %v177
  %v626 = vunpack.c.l.b16 %v178
  %v627 = vunpack.c.l.b16 %v179
  %v628 = vunpack.c.l.b16 %v180
  %v629 = vunpack.c.l.b16 %v181
  %v630 = vunpack.c.l.b16 %v182
  %v631 = vunpack.c.l.b16 %v183
  %v632 = vunpack.c.l.b16 %v184
  %v633 = vunpack.c.l.b16 %v185
  %v634 = vunpack.c.l.b16 %v186
  %v635 = vunpack.c.l.b16 %v187
  %v636 = vunpack.c.l.b16 %v188
  %v637 = vunpack.c.l.b16 %v189
  %v638 = vunpack.c.l.b16 %v190
  %v639 = vunpack.c.l.b16 %v191
  %v640 = vunpack.c.l.b16 %v192
  %v641 = vunpack.c.l.b16 %v193
  %v642 = vunpack.c.l.b16 %v194
  %v643 = vunpack.c.l.b16 %v195
  %v644 = vunpack.c.l.b16 %v196
  %v645 = vunpack.c.l.b16 %v197
  %v646 = vunpack.c.l.b16 %v198
  %v647 = vunpack.c.l.b16 %v199
  %v648 = vunpack.c.l.b16 %v200
  %v649 = vunpack.c.l.b16 %v201
  %v650 = vunpack.c.l.b16 %v202
  %v651 = vunpack.c.l.b16 %v203
  %v652 = vunpack.c.l.b16 %v204
  %v653 = vunpack.c.l.b16 %v205
  %v654 = vunpack.c.l.b16 %v206
  %v655 = vunpack.c.l.b16 %v207
  %v656 = vunpack.c.l.b16 %v208
  %v657 = vunpack.c.l.b16 %v209
  %v658 = vunpack.c.l.b16 %v210
  %v659 = vunpack.c.l.b16 %v211
  %v660 = vunpack.c.l.b16 %v212
  %v661 = vunpack.c.l.b16 %v213
  %v662 = vunpack.c.l.b16 %v214
  %v663 = vunpack.c.l.b16 %v215
  %v664 = vunpack.c.l.b16 %v216
  %v665 = vunpack.c.l.b16 %v217
  %v666 = vunpack.c.l.b16 %v218
  %v667 = vunpack.c.l.b16 %v219
  %v668 = vunpack.c.l.b16 %v220
  %v669 = vunpack.c.l.b16 %v221
  %v670 = vunpack.c.l.b16 %v222
  %v671 = vunpack.c.l.b16 %v223
  %v672 = vunpack.c.l.b16 %v224
  %v673 = vunpack.c.l.b16 %v225
  %v674 = vunpack.c.l.b16 %v226
  %v675 = vunpack.c.l.b16 %v227
  %v676 = vunpack.c.l.b16 %v228
  %v677 = vunpack.c.l.b16 %v229
  %v678 = vunpack.c.l.b16 %v230
  %v679 = vunpack.c.l.b16 %v231
  %v680 = vunpack.c.l.b16 %v232
  %v681 = vunpack.c.l.b16 %v233
  %v682 = vunpack.c.l.b16 %v234
  %v683 = vunpack.c.l.b16 %v235
  %v684 = vunpack.c.l.b16 %v236
  %v685 = vunpack.c.l.b16 %v237
  %v686 = vunpack.c.l.b16 %v238
  %v687 = vunpack.c.l.b16 %v239
  %v688 = vunpack.c.l.b16 %v240
  %v689 = vunpack.c.l.b16 %v241
  %v690 = vunpack.c.l.b16 %v242
  %v691 = vunpack.c.l.b16 %v243
  %v692 = vunpack.c.l.b16 %v244
  %v693 = vunpack.c.l.b16 %v245
  %v694 = vunpack.c.l.b16 %v246
  %v695 = vunpack.c.l.b16 %v247
  %v696 = vunpack.c.l.b16 %v248
  %v697 = vunpack.c.l.b16 %v249
  %v698 = vunpack.c.l.b16 %v250
  %v699 = vunpack.c.l.b16 %v251
  %v700 = vunpack.c.l.b16 %v252
  %v701 = vunpack.c.l.b16 %v253
  %v702 = vunpack.c.l.b16 %v254
  %v703 = vunpack.c.l.b16 %v255
  %v704 = vunpack.c.l.b16 %v256
  %v705 = vunpack.c.l.b16 %v257
  %v706 = vunpack.c.l.b16 %v258
  %v707 = vunpack.c.l.b16 %v259
  %v708 = vunpack.c.l.b16 %v260
  %v709 = vunpack.c.l.b16 %v261
  %v710 = vunpack.c.l.b16 %v262
  %v711 = vunpack.c.l.b16 %v263
  %v712 = vunpack.c.l.b16 %v264
  %v713 = vunpack.c.l.b16 %v265
  %v714 = vunpack.c.l.b16 %v266
  %v715 = vunpack.c.l.b16 %v267
  %v716 = vunpack.c.l.b16 %v268
  %v717 = vunpack.c.l.b16 %v269
  %v718 = vunpack.c.l.b16 %v270
  %v719 = vunpack.c.l.b16 %v271
  %v720 = vunpack.c.l.b16 %v272
  %v721 = vunpack.c.l.b16 %v273
  %v722 = vunpack.c.l.b16 %v274
  %v723 = vunpack.c.l.b16 %v275
  %v724 = vunpack.c.l.b16 %v276
  %v725 = vpack.c.b16 %v598, %v597
  %v726 = vpack.c.b16 %v600, %v599
  %v727 = vpack.c.b16 %v602, %v601
  %v728 = vpack.c.b16 %v604, %v603
  %v729 = vpack.c.b16 %v606, %v605
  %v730 = vpack.c.b16 %v608, %v607
  %v731 = vpack.c.b16 %v610, %v609
  %v732 = vpack.c.b16 %v612, %v611
  %v733 = vpack.c.b16 %v614, %v613
  %v734 = vpack.c.b16 %v616, %v615
  %v735 = vpack.c.b16 %v618, %v617
  %v736 = vpack.c.b16 %v620, %v619
  %v737 = vpack.c.b16 %v622, %v621
  %v738 = vpack.c.b16 %v624, %v623
  %v739 = vpack.c.b16 %v626, %v625
  %v740 = vpack.c.b16 %v628, %v627
  %v741 = vpack.c.b16 %v630, %v629
  %v742 = vpack.c.b16 %v632, %v631
  %v743 = vpack.c.b16 %v634, %v633
  %v744 = vpack.c.b16 %v636, %v635
  %v745 = vpack.c.b16 %v638, %v637
  %v746 = vpack.c.b16 %v640, %v639
  %v747 = vpack.c.b16 %v642, %v641
  %v748 = vpack.c.b16 %v644, %v643
  %v749 = vpack.c.b16 %v646, %v645
  %v750 = vpack.c.b16 %v648, %v647
  %v751 = vpack.c.b16 %v650, %v649
  %v752 = vpack.c.b16 %v652, %v651
  %v753 = vpack.c.b16 %v654, %v653
  %v754 = vpack.c.b16 %v656, %v655
  %v755 = vpack.c.b16 %v658, %v657
  %v756 = vpack.c.b16 %v660, %v659
  %v757 = vpack.c.b16 %v662, %v661
  %v758 = vpack.c.b16 %v664, %v663
  %v759 = vpack.c.b16 %v666, %v665
  %v760 = vpack.c.b16 %v668, %v667
  %v761 = vpack.c.b16 %v670, %v669
  %v762 = vpack.c.b16 %v672, %v671
  %v763 = vpack.c.b16 %v674, %v673
  %v764 = vpack.c.b16 %v676, %v675
  %v765 = vpack.c.b16 %v678, %v677
  %v766 = vpack.c.b16 %v680, %v679
  %v767 = vpack.c.b16 %v682, %v681
  %v768 = vpack.c.b16 %v684, %v683
  %v769 = vpack.c.b16 %v686, %v685
  %v770 = vpack.c.b16 %v688, %v687
  %v771 = vpack.c.b16 %v690, %v689
  %v772 = vpack.c.b16 %v692, %v691
  %v773 = vpack.c.b16 %v694, %v693
  %v774 = vpack.c.b16 %v696, %v695
  %v775 = vpack.c.b16 %v698, %v697
  %v776 = vpack.c.b16 %v700, %v699
  %v777 = vpack.c.b16 %v702, %v701
  %v778 = vpack.c.b16 %v704, %v703
  %v779 = vpack.c.b16 %v706, %v705
  %v780 = vpack.c.b16 %v708, %v707
  %v781 = vpack.c.b16 %v710, %v709
  %v782 = vpack.c.b16 %v712, %v711
  %v783 = vpack.c.b16 %v714, %v713
  %v784 = vpack.c.b16 %v716, %v715
  %v785 = vpack.c.b16 %v718, %v717
  %v786 = vpack.c.b16 %v720, %v719
  %v787 = vpack.c.b16 %v722, %v721
  %v788 = vpack.c.b16 %v724, %v723
  %853 = vmatprep.subr.bf16.mxu0 0
  %854 = vmatpush1.bf16.msra.mxu0 %v725
  %855 = vmatprep.subr.bf16.mxu0 0
  %856 = vmatpush1.bf16.msra.mxu0 %v726
  %857 = vmatprep.subr.bf16.mxu0 0
  %858 = vmatpush1.bf16.msra.mxu0 %v727
  %859 = vmatprep.subr.bf16.mxu0 0
  %860 = vmatpush1.bf16.msra.mxu0 %v728
  %861 = vmatprep.subr.bf16.mxu0 0
  %862 = vmatpush1.bf16.msra.mxu0 %v729
  %863 = vmatprep.subr.bf16.mxu0 0
  %864 = vmatpush1.bf16.msra.mxu0 %v730
  %865 = vmatprep.subr.bf16.mxu0 0
  %866 = vmatpush1.bf16.msra.mxu0 %v731
  %867 = vmatprep.subr.bf16.mxu0 0
  %868 = vmatpush1.bf16.msra.mxu0 %v732
  %869 = vmatprep.subr.bf16.mxu0 0
  %870 = vmatpush1.bf16.msra.mxu0 %v733
  %871 = vmatprep.subr.bf16.mxu0 0
  %872 = vmatpush1.bf16.msra.mxu0 %v734
  %873 = vmatprep.subr.bf16.mxu0 0
  %874 = vmatpush1.bf16.msra.mxu0 %v735
  %875 = vmatprep.subr.bf16.mxu0 0
  %876 = vmatpush1.bf16.msra.mxu0 %v736
  %877 = vmatprep.subr.bf16.mxu0 0
  %878 = vmatpush1.bf16.msra.mxu0 %v737
  %879 = vmatprep.subr.bf16.mxu0 0
  %880 = vmatpush1.bf16.msra.mxu0 %v738
  %881 = vmatprep.subr.bf16.mxu0 0
  %882 = vmatpush1.bf16.msra.mxu0 %v739
  %883 = vmatprep.subr.bf16.mxu0 0
  %884 = vmatpush1.bf16.msra.mxu0 %v740
  %885 = vmatprep.mubr.bf16.mxu0 %v406
  %886 = vmatmul.mubr.bf16.gmra.mrb[0].mxu0 %v405
  %v887 = vpop.f32.mrb[0].mxu0
  %v888 = vadd.f32 0.0, %v887
  %v889 = vpop.f32.mrb[0].mxu0
  %v890 = vpop.f32.mrb[0].mxu0
  %v891 = vadd.f32 0.0, %v890
  %v892 = vpop.f32.mrb[0].mxu0
  %893 = vmatprep.mubr.bf16.mxu0 %v414
  %894 = vmatmul.mubr.bf16.gmra.mrb[0].mxu0 %v413
  %v895 = vpop.f32.mrb[0].mxu0
  %v896 = vadd.f32 0.0, %v895
  %v897 = vpop.f32.mrb[0].mxu0
  %v898 = vpop.f32.mrb[0].mxu0
  %v899 = vadd.f32 0.0, %v898
  %v900 = vpop.f32.mrb[0].mxu0
  %901 = vmatprep.mubr.bf16.mxu0 %v422
  %902 = vmatmul.mubr.bf16.gmra.mrb[0].mxu0 %v421
  %v903 = vpop.f32.mrb[0].mxu0
  %v904 = vadd.f32 0.0, %v903
  %v905 = vpop.f32.mrb[0].mxu0
  %v906 = vpop.f32.mrb[0].mxu0
  %v907 = vadd.f32 0.0, %v906
  %v908 = vpop.f32.mrb[0].mxu0
  %909 = vmatprep.mubr.bf16.mxu0 %v430
  %910 = vmatmul.mubr.bf16.gmra.mrb[0].mxu0 %v429
  %v911 = vpop.f32.mrb[0].mxu0
  %v912 = vadd.f32 0.0, %v911
  %v913 = vpop.f32.mrb[0].mxu0
  %v914 = vpop.f32.mrb[0].mxu0
  %v915 = vadd.f32 0.0, %v914
  %v916 = vpop.f32.mrb[0].mxu0
  %917 = vdwg.mxu0
  %918 = vmatprep.subr.bf16.mxu0 0
  %919 = vmatpush1.bf16.msra.mxu0 %v741
  %920 = vmatprep.subr.bf16.mxu0 0
  %921 = vmatpush1.bf16.msra.mxu0 %v742
  %922 = vmatprep.subr.bf16.mxu0 0
  %923 = vmatpush1.bf16.msra.mxu0 %v743
  %924 = vmatprep.subr.bf16.mxu0 0
  %925 = vmatpush1.bf16.msra.mxu0 %v744
  %926 = vmatprep.subr.bf16.mxu0 0
  %927 = vmatpush1.bf16.msra.mxu0 %v745
  %928 = vmatprep.subr.bf16.mxu0 0
  %929 = vmatpush1.bf16.msra.mxu0 %v746
  %930 = vmatprep.subr.bf16.mxu0 0
  %931 = vmatpush1.bf16.msra.mxu0 %v747
  %932 = vmatprep.subr.bf16.mxu0 0
  %933 = vmatpush1.bf16.msra.mxu0 %v748
  %934 = vmatprep.subr.bf16.mxu0 0
  %935 = vmatpush1.bf16.msra.mxu0 %v749
  %936 = vmatprep.subr.bf16.mxu0 0
  %937 = vmatpush1.bf16.msra.mxu0 %v750
  %938 = vmatprep.subr.bf16.mxu0 0
  %939 = vmatpush1.bf16.msra.mxu0 %v751
  %940 = vmatprep.subr.bf16.mxu0 0
  %941 = vmatpush1.bf16.msra.mxu0 %v752
  %942 = vmatprep.subr.bf16.mxu0 0
  %943 = vmatpush1.bf16.msra.mxu0 %v753
  %944 = vmatprep.subr.bf16.mxu0 0
  %945 = vmatpush1.bf16.msra.mxu0 %v754
  %946 = vmatprep.subr.bf16.mxu0 0
  %947 = vmatpush1.bf16.msra.mxu0 %v755
  %948 = vmatprep.subr.bf16.mxu0 0
  %949 = vmatpush1.bf16.msra.mxu0 %v756
  %950 = vmatprep.mubr.bf16.mxu0 %v408
  %951 = vmatmul.mubr.bf16.gmra.mrb[0].mxu0 %v407
  %v952 = vpop.f32.mrb[0].mxu0
  %v953 = vadd.f32 %v888, %v952
  %v954 = vpop.f32.mrb[0].mxu0
  %v955 = vpop.f32.mrb[0].mxu0
  %v956 = vadd.f32 %v891, %v955
  %v957 = vpop.f32.mrb[0].mxu0
  %958 = vmatprep.mubr.bf16.mxu0 %v416
  %959 = vmatmul.mubr.bf16.gmra.mrb[0].mxu0 %v415
  %v960 = vpop.f32.mrb[0].mxu0
  %v961 = vadd.f32 %v896, %v960
  %v962 = vpop.f32.mrb[0].mxu0
  %v963 = vpop.f32.mrb[0].mxu0
  %v964 = vadd.f32 %v899, %v963
  %v965 = vpop.f32.mrb[0].mxu0
  %966 = vmatprep.mubr.bf16.mxu0 %v424
  %967 = vmatmul.mubr.bf16.gmra.mrb[0].mxu0 %v423
  %v968 = vpop.f32.mrb[0].mxu0
  %v969 = vadd.f32 %v904, %v968
  %v970 = vpop.f32.mrb[0].mxu0
  %v971 = vpop.f32.mrb[0].mxu0
  %v972 = vadd.f32 %v907, %v971
  %v973 = vpop.f32.mrb[0].mxu0
  %974 = vmatprep.mubr.bf16.mxu0 %v432
  %975 = vmatmul.mubr.bf16.gmra.mrb[0].mxu0 %v431
  %v976 = vpop.f32.mrb[0].mxu0
  %v977 = vadd.f32 %v912, %v976
  %v978 = vpop.f32.mrb[0].mxu0
  %v979 = vpop.f32.mrb[0].mxu0
  %v980 = vadd.f32 %v915, %v979
  %v981 = vpop.f32.mrb[0].mxu0
  %982 = vdwg.mxu0
  %983 = vmatprep.subr.bf16.mxu0 0
  %984 = vmatpush1.bf16.msra.mxu0 %v757
  %985 = vmatprep.subr.bf16.mxu0 0
  %986 = vmatpush1.bf16.msra.mxu0 %v758
  %987 = vmatprep.subr.bf16.mxu0 0
  %988 = vmatpush1.bf16.msra.mxu0 %v759
  %989 = vmatprep.subr.bf16.mxu0 0
  %990 = vmatpush1.bf16.msra.mxu0 %v760
  %991 = vmatprep.subr.bf16.mxu0 0
  %992 = vmatpush1.bf16.msra.mxu0 %v761
  %993 = vmatprep.subr.bf16.mxu0 0
  %994 = vmatpush1.bf16.msra.mxu0 %v762
  %995 = vmatprep.subr.bf16.mxu0 0
  %996 = vmatpush1.bf16.msra.mxu0 %v763
  %997 = vmatprep.subr.bf16.mxu0 0
  %998 = vmatpush1.bf16.msra.mxu0 %v764
  %999 = vmatprep.subr.bf16.mxu0 0
  %1000 = vmatpush1.bf16.msra.mxu0 %v765
  %1001 = vmatprep.subr.bf16.mxu0 0
  %1002 = vmatpush1.bf16.msra.mxu0 %v766
  %1003 = vmatprep.subr.bf16.mxu0 0
  %1004 = vmatpush1.bf16.msra.mxu0 %v767
  %1005 = vmatprep.subr.bf16.mxu0 0
  %1006 = vmatpush1.bf16.msra.mxu0 %v768
  %1007 = vmatprep.subr.bf16.mxu0 0
  %1008 = vmatpush1.bf16.msra.mxu0 %v769
  %1009 = vmatprep.subr.bf16.mxu0 0
  %1010 = vmatpush1.bf16.msra.mxu0 %v770
  %1011 = vmatprep.subr.bf16.mxu0 0
  %1012 = vmatpush1.bf16.msra.mxu0 %v771
  %1013 = vmatprep.subr.bf16.mxu0 0
  %1014 = vmatpush1.bf16.msra.mxu0 %v772
  %1015 = vmatprep.mubr.bf16.mxu0 %v410
  %1016 = vmatmul.mubr.bf16.gmra.mrb[0].mxu0 %v409
  %v1017 = vpop.f32.mrb[0].mxu0
  %v1018 = vadd.f32 %v953, %v1017
  %v1019 = vpop.f32.mrb[0].mxu0
  %v1020 = vpop.f32.mrb[0].mxu0
  %v1021 = vadd.f32 %v956, %v1020
  %v1022 = vpop.f32.mrb[0].mxu0
  %1023 = vmatprep.mubr.bf16.mxu0 %v418
  %1024 = vmatmul.mubr.bf16.gmra.mrb[0].mxu0 %v417
  %v1025 = vpop.f32.mrb[0].mxu0
  %v1026 = vadd.f32 %v961, %v1025
  %v1027 = vpop.f32.mrb[0].mxu0
  %v1028 = vpop.f32.mrb[0].mxu0
  %v1029 = vadd.f32 %v964, %v1028
  %v1030 = vpop.f32.mrb[0].mxu0
  %1031 = vmatprep.mubr.bf16.mxu0 %v426
  %1032 = vmatmul.mubr.bf16.gmra.mrb[0].mxu0 %v425
  %v1033 = vpop.f32.mrb[0].mxu0
  %v1034 = vadd.f32 %v969, %v1033
  %v1035 = vpop.f32.mrb[0].mxu0
  %v1036 = vpop.f32.mrb[0].mxu0
  %v1037 = vadd.f32 %v972, %v1036
  %v1038 = vpop.f32.mrb[0].mxu0
  %1039 = vmatprep.mubr.bf16.mxu0 %v434
  %1040 = vmatmul.mubr.bf16.gmra.mrb[0].mxu0 %v433
  %v1041 = vpop.f32.mrb[0].mxu0
  %v1042 = vadd.f32 %v977, %v1041
  %v1043 = vpop.f32.mrb[0].mxu0
  %v1044 = vpop.f32.mrb[0].mxu0
  %v1045 = vadd.f32 %v980, %v1044
  %v1046 = vpop.f32.mrb[0].mxu0
  %1047 = vdwg.mxu0
  %1048 = vmatprep.subr.bf16.mxu0 0
  %1049 = vmatpush1.bf16.msra.mxu0 %v773
  %1050 = vmatprep.subr.bf16.mxu0 0
  %1051 = vmatpush1.bf16.msra.mxu0 %v774
  %1052 = vmatprep.subr.bf16.mxu0 0
  %1053 = vmatpush1.bf16.msra.mxu0 %v775
  %1054 = vmatprep.subr.bf16.mxu0 0
  %1055 = vmatpush1.bf16.msra.mxu0 %v776
  %1056 = vmatprep.subr.bf16.mxu0 0
  %1057 = vmatpush1.bf16.msra.mxu0 %v777
  %1058 = vmatprep.subr.bf16.mxu0 0
  %1059 = vmatpush1.bf16.msra.mxu0 %v778
  %1060 = vmatprep.subr.bf16.mxu0 0
  %1061 = vmatpush1.bf16.msra.mxu0 %v779
  %1062 = vmatprep.subr.bf16.mxu0 0
  %1063 = vmatpush1.bf16.msra.mxu0 %v780
  %1064 = vmatprep.subr.bf16.mxu0 0
  %1065 = vmatpush1.bf16.msra.mxu0 %v781
  %1066 = vmatprep.subr.bf16.mxu0 0
  %1067 = vmatpush1.bf16.msra.mxu0 %v782
  %1068 = vmatprep.subr.bf16.mxu0 0
  %1069 = vmatpush1.bf16.msra.mxu0 %v783
  %1070 = vmatprep.subr.bf16.mxu0 0
  %1071 = vmatpush1.bf16.msra.mxu0 %v784
  %1072 = vmatprep.subr.bf16.mxu0 0
  %1073 = vmatpush1.bf16.msra.mxu0 %v785
  %1074 = vmatprep.subr.bf16.mxu0 0
  %1075 = vmatpush1.bf16.msra.mxu0 %v786
  %1076 = vmatprep.subr.bf16.mxu0 0
  %1077 = vmatpush1.bf16.msra.mxu0 %v787
  %1078 = vmatprep.subr.bf16.mxu0 0
  %1079 = vmatpush1.bf16.msra.mxu0 %v788
  %1080 = vmatprep.mubr.bf16.mxu0 %v412
  %1081 = vmatmul.mubr.bf16.gmra.mrb[0].mxu0 %v411
  %v1082 = vpop.f32.mrb[0].mxu0
  %v1083 = vadd.f32 %v1018, %v1082
  %v1084 = vpop.f32.mrb[0].mxu0
  %v1085 = vpop.f32.mrb[0].mxu0
  %v1086 = vadd.f32 %v1021, %v1085
  %v1087 = vpop.f32.mrb[0].mxu0
  %1088 = vmatprep.mubr.bf16.mxu0 %v420
  %1089 = vmatmul.mubr.bf16.gmra.mrb[0].mxu0 %v419
  %v1090 = vpop.f32.mrb[0].mxu0
  %v1091 = vadd.f32 %v1026, %v1090
  %v1092 = vpop.f32.mrb[0].mxu0
  %v1093 = vpop.f32.mrb[0].mxu0
  %v1094 = vadd.f32 %v1029, %v1093
  %v1095 = vpop.f32.mrb[0].mxu0
  %1096 = vmatprep.mubr.bf16.mxu0 %v428
  %1097 = vmatmul.mubr.bf16.gmra.mrb[0].mxu0 %v427
  %v1098 = vpop.f32.mrb[0].mxu0
  %v1099 = vadd.f32 %v1034, %v1098
  %v1100 = vpop.f32.mrb[0].mxu0
  %v1101 = vpop.f32.mrb[0].mxu0
  %v1102 = vadd.f32 %v1037, %v1101
  %v1103 = vpop.f32.mrb[0].mxu0
  %1104 = vmatprep.mubr.bf16.mxu0 %v436
  %1105 = vmatmul.mubr.bf16.gmra.mrb[0].mxu0 %v435
  %v1106 = vpop.f32.mrb[0].mxu0
  %v1107 = vadd.f32 %v1042, %v1106
  %v1108 = vpop.f32.mrb[0].mxu0
  %v1109 = vpop.f32.mrb[0].mxu0
  %v1110 = vadd.f32 %v1045, %v1109
  %v1111 = vpop.f32.mrb[0].mxu0
  %1112 = vdwg.mxu0
  %vm1113 = vcmask 64512
  %v1114 = vsel %vm1113, %v1083, 0.0
  %1115 = vadd.xlane.f32.xlu0 %v1114
  %v1116 = vpop.xlane.xlu0 %1115
  %v1117 = vsel %vm1113, %v1086, 0.0
  %1118 = vadd.xlane.f32.xlu0 %v1117
  %v1119 = vpop.xlane.xlu0 %1118
  %v1120 = vsel %vm1113, %v1091, 0.0
  %1121 = vadd.xlane.f32.xlu0 %v1120
  %v1122 = vpop.xlane.xlu0 %1121
  %v1123 = vsel %vm1113, %v1094, 0.0
  %1124 = vadd.xlane.f32.xlu0 %v1123
  %v1125 = vpop.xlane.xlu0 %1124
  %v1126 = vsel %vm1113, %v1099, 0.0
  %1127 = vadd.xlane.f32.xlu0 %v1126
  %v1128 = vpop.xlane.xlu0 %1127
  %v1129 = vsel %vm1113, %v1102, 0.0
  %1130 = vadd.xlane.f32.xlu0 %v1129
  %v1131 = vpop.xlane.xlu0 %1130
  %v1132 = vsel %vm1113, %v1107, 0.0
  %1133 = vadd.xlane.f32.xlu0 %v1132
  %v1134 = vpop.xlane.xlu0 %1133
  %v1135 = vsel %vm1113, %v1110, 0.0
  %1136 = vadd.xlane.f32.xlu0 %v1135
  %v1137 = vpop.xlane.xlu0 %1136
  %v1138 = vrcp.pop 8.0
  %v1139 = vmul.f32 %v1116, %v1138
  %v1140 = vmul.f32 %v1119, %v1138
  %v1141 = vmul.f32 %v1122, %v1138
  %v1142 = vmul.f32 %v1125, %v1138
  %v1143 = vmul.f32 %v1128, %v1138
  %v1144 = vmul.f32 %v1131, %v1138
  %v1145 = vmul.f32 %v1134, %v1138
  %v1146 = vmul.f32 %v1137, %v1138
  %v1147 = vsub.f32 %v1083, %v1139
  %v1148 = vsub.f32 %v1086, %v1140
  %v1149 = vsub.f32 %v1091, %v1141
  %v1150 = vsub.f32 %v1094, %v1142
  %v1151 = vsub.f32 %v1099, %v1143
  %v1152 = vsub.f32 %v1102, %v1144
  %v1153 = vsub.f32 %v1107, %v1145
  %v1154 = vsub.f32 %v1110, %v1146
  %v1155 = vmul.f32 %v1147, %v1147
  %v1156 = vmul.f32 %v1148, %v1148
  %v1157 = vmul.f32 %v1149, %v1149
  %v1158 = vmul.f32 %v1150, %v1150
  %v1159 = vmul.f32 %v1151, %v1151
  %v1160 = vmul.f32 %v1152, %v1152
  %v1161 = vmul.f32 %v1153, %v1153
  %v1162 = vmul.f32 %v1154, %v1154
  %v1163 = vsel %vm1113, %v1155, 0.0
  %1164 = vadd.xlane.f32.xlu0 %v1163
  %v1165 = vpop.xlane.xlu0 %1164
  %v1166 = vsel %vm1113, %v1156, 0.0
  %1167 = vadd.xlane.f32.xlu0 %v1166
  %v1168 = vpop.xlane.xlu0 %1167
  %v1169 = vsel %vm1113, %v1157, 0.0
  %1170 = vadd.xlane.f32.xlu0 %v1169
  %v1171 = vpop.xlane.xlu0 %1170
  %v1172 = vsel %vm1113, %v1158, 0.0
  %1173 = vadd.xlane.f32.xlu0 %v1172
  %v1174 = vpop.xlane.xlu0 %1173
  %v1175 = vsel %vm1113, %v1159, 0.0
  %1176 = vadd.xlane.f32.xlu0 %v1175
  %v1177 = vpop.xlane.xlu0 %1176
  %v1178 = vsel %vm1113, %v1160, 0.0
  %1179 = vadd.xlane.f32.xlu0 %v1178
  %v1180 = vpop.xlane.xlu0 %1179
  %v1181 = vsel %vm1113, %v1161, 0.0
  %1182 = vadd.xlane.f32.xlu0 %v1181
  %v1183 = vpop.xlane.xlu0 %1182
  %v1184 = vsel %vm1113, %v1162, 0.0
  %1185 = vadd.xlane.f32.xlu0 %v1184
  %v1186 = vpop.xlane.xlu0 %1185
  %v1187 = vmul.f32 %v1165, %v1138
  %v1188 = vmul.f32 %v1168, %v1138
  %v1189 = vmul.f32 %v1171, %v1138
  %v1190 = vmul.f32 %v1174, %v1138
  %v1191 = vmul.f32 %v1177, %v1138
  %v1192 = vmul.f32 %v1180, %v1138
  %v1193 = vmul.f32 %v1183, %v1138
  %v1194 = vmul.f32 %v1186, %v1138
  %v1195 = vadd.f32 %v1187, 1e-05
  %v1196 = vadd.f32 %v1188, 1e-05
  %v1197 = vadd.f32 %v1189, 1e-05
  %v1198 = vadd.f32 %v1190, 1e-05
  %v1199 = vadd.f32 %v1191, 1e-05
  %v1200 = vadd.f32 %v1192, 1e-05
  %v1201 = vadd.f32 %v1193, 1e-05
  %v1202 = vadd.f32 %v1194, 1e-05
  %v1203 = vrsqrt.pop %v1195
  %v1204 = vrsqrt.pop %v1196
  %v1205 = vrsqrt.pop %v1197
  %v1206 = vrsqrt.pop %v1198
  %v1207 = vrsqrt.pop %v1199
  %v1208 = vrsqrt.pop %v1200
  %v1209 = vrsqrt.pop %v1201
  %v1210 = vrsqrt.pop %v1202
  %v1211 = vmul.f32 %v1147, %v1203
  %v1212 = vmul.f32 %v1148, %v1204
  %v1213 = vmul.f32 %v1149, %v1205
  %v1214 = vmul.f32 %v1150, %v1206
  %v1215 = vmul.f32 %v1151, %v1207
  %v1216 = vmul.f32 %v1152, %v1208
  %v1217 = vmul.f32 %v1153, %v1209
  %v1218 = vmul.f32 %v1154, %v1210
  %v1219 = vld [vmem:[%s3] sm:$0xff]
  %v1220 = vld [vmem:[%s3 + $0x8] sm:$0xff]
  %v1221 = vld [vmem:[%s3 + $0x10] sm:$0xff]
  %v1222 = vld [vmem:[%s3 + $0x18] sm:$0xff]
  %v1223 = vld [vmem:[%s3 + $0x20] sm:$0xff]
  %v1224 = vld [vmem:[%s3 + $0x28] sm:$0xff]
  %v1225 = vld [vmem:[%s3 + $0x30] sm:$0xff]
  %v1226 = vld [vmem:[%s3 + $0x38] sm:$0xff]
  %1228 = vset.pattern.permute.xlu0 0
  %1229 = vperm.xlu0 %1228, %v1219
  %v1230 = vpop.permute.xlu0 %1229
  %1233 = vset.pattern.permute.xlu0 0
  %1234 = vperm.xlu0 %1233, %v1220
  %v1235 = vpop.permute.xlu0 %1234
  %1238 = vset.pattern.permute.xlu0 0
  %1239 = vperm.xlu0 %1238, %v1221
  %v1240 = vpop.permute.xlu0 %1239
  %1243 = vset.pattern.permute.xlu0 0
  %1244 = vperm.xlu0 %1243, %v1222
  %v1245 = vpop.permute.xlu0 %1244
  %1248 = vset.pattern.permute.xlu0 0
  %1249 = vperm.xlu0 %1248, %v1223
  %v1250 = vpop.permute.xlu0 %1249
  %1253 = vset.pattern.permute.xlu0 0
  %1254 = vperm.xlu0 %1253, %v1224
  %v1255 = vpop.permute.xlu0 %1254
  %1258 = vset.pattern.permute.xlu0 0
  %1259 = vperm.xlu0 %1258, %v1225
  %v1260 = vpop.permute.xlu0 %1259
  %1263 = vset.pattern.permute.xlu0 0
  %1264 = vperm.xlu0 %1263, %v1226
  %v1265 = vpop.permute.xlu0 %1264
  %v1267 = vmul.f32 %v1211, %v1230
  %v1268 = vmul.f32 %v1212, %v1235
  %v1269 = vmul.f32 %v1213, %v1240
  %v1270 = vmul.f32 %v1214, %v1245
  %v1271 = vmul.f32 %v1215, %v1250
  %v1272 = vmul.f32 %v1216, %v1255
  %v1273 = vmul.f32 %v1217, %v1260
  %v1274 = vmul.f32 %v1218, %v1265
  %v1275 = vld [vmem:[%s4] sm:$0xff]
  %v1276 = vld [vmem:[%s4 + $0x8] sm:$0xff]
  %v1277 = vld [vmem:[%s4 + $0x10] sm:$0xff]
  %v1278 = vld [vmem:[%s4 + $0x18] sm:$0xff]
  %v1279 = vld [vmem:[%s4 + $0x20] sm:$0xff]
  %v1280 = vld [vmem:[%s4 + $0x28] sm:$0xff]
  %v1281 = vld [vmem:[%s4 + $0x30] sm:$0xff]
  %v1282 = vld [vmem:[%s4 + $0x38] sm:$0xff]
  %1284 = vset.pattern.permute.xlu0 0
  %1285 = vperm.xlu0 %1284, %v1275
  %v1286 = vpop.permute.xlu0 %1285
  %1289 = vset.pattern.permute.xlu0 0
  %1290 = vperm.xlu0 %1289, %v1276
  %v1291 = vpop.permute.xlu0 %1290
  %1294 = vset.pattern.permute.xlu0 0
  %1295 = vperm.xlu0 %1294, %v1277
  %v1296 = vpop.permute.xlu0 %1295
  %1299 = vset.pattern.permute.xlu0 0
  %1300 = vperm.xlu0 %1299, %v1278
  %v1301 = vpop.permute.xlu0 %1300
  %1304 = vset.pattern.permute.xlu0 0
  %1305 = vperm.xlu0 %1304, %v1279
  %v1306 = vpop.permute.xlu0 %1305
  %1309 = vset.pattern.permute.xlu0 0
  %1310 = vperm.xlu0 %1309, %v1280
  %v1311 = vpop.permute.xlu0 %1310
  %1314 = vset.pattern.permute.xlu0 0
  %1315 = vperm.xlu0 %1314, %v1281
  %v1316 = vpop.permute.xlu0 %1315
  %1319 = vset.pattern.permute.xlu0 0
  %1320 = vperm.xlu0 %1319, %v1282
  %v1321 = vpop.permute.xlu0 %1320
  %v1323 = vadd.f32 %v1267, %v1286
  %v1324 = vadd.f32 %v1268, %v1291
  %v1325 = vadd.f32 %v1269, %v1296
  %v1326 = vadd.f32 %v1270, %v1301
  %v1327 = vadd.f32 %v1271, %v1306
  %v1328 = vadd.f32 %v1272, %v1311
  %v1329 = vadd.f32 %v1273, %v1316
  %v1330 = vadd.f32 %v1274, %v1321
  %v1331 = vpack.c.bf16 %v1324, %v1323
  %v1332 = vpack.c.bf16 %v1326, %v1325
  %v1333 = vpack.c.bf16 %v1328, %v1327
  %v1334 = vpack.c.bf16 %v1330, %v1329
  %v1339 = vunpack.c.l.b16 %v1331
  %v1340 = vunpack.c.h.b16 %v1331
  %v1341 = vunpack.c.l.b16 %v1332
  %v1342 = vunpack.c.h.b16 %v1332
  %v1343 = vunpack.c.l.b16 %v1333
  %v1344 = vunpack.c.h.b16 %v1333
  %v1345 = vunpack.c.l.b16 %v1334
  %v1346 = vunpack.c.h.b16 %v1334
  %v1347 = vpack.c.b16 %v1339, %v1339
  %v1348 = vpack.c.b16 %v1340, %v1340
  %v1349 = vpack.c.b16 %v1341, %v1341
  %v1350 = vpack.c.b16 %v1342, %v1342
  %v1351 = vpack.c.b16 %v1343, %v1343
  %v1352 = vpack.c.b16 %v1344, %v1344
  %v1353 = vpack.c.b16 %v1345, %v1345
  %v1354 = vpack.c.b16 %v1346, %v1346
  %vm1363 = vcmask 60416
  %1364 = vst.msk [vmem:[%s5] sm:$0xf] %vm1363, %v1347
  %1365 = vst.msk [vmem:[%s5 + $0x4] sm:$0xf] %vm1363, %v1348
  %1366 = vst.msk [vmem:[%s5 + $0x8] sm:$0xf] %vm1363, %v1349
  %1367 = vst.msk [vmem:[%s5 + $0xc] sm:$0xf] %vm1363, %v1350
  %1368 = vst.msk [vmem:[%s5 + $0x10] sm:$0xf] %vm1363, %v1351
  %1369 = vst.msk [vmem:[%s5 + $0x14] sm:$0xf] %vm1363, %v1352
  %1370 = vst.msk [vmem:[%s5 + $0x18] sm:$0xf] %vm1363, %v1353
  %1371 = vst.msk [vmem:[%s5 + $0x1c] sm:$0xf] %vm1363, %v1354
  // Predicated region
  $region22: #{unet_generator_forward.15} parent=0 // pred_check
    _
  $region23: #{unet_generator_forward.15} parent=0 // pred_check_branch
    %1373 = sbr.rel (0) target = $region25
  $region24: #{unet_generator_forward.15} parent=0 // pred_region
    _
  $region25: #{unet_generator_forward.15} parent=0 // pred_fallthru
    _
  // Predicated region
  $region26: #{unet_generator_forward.15} parent=0 // pred_check
    _
  $region27: #{unet_generator_forward.15} parent=0 // pred_check_branch
    %1375 = sbr.rel (0) target = $region29
  $region28: #{unet_generator_forward.15} parent=0 // pred_region
    _
  $region29: #{unet_generator_forward.15} parent=0 // pred_fallthru
    _

// kernel: unet_generator_forward.16
$region0: #{unet_generator_forward.16}
  #allocation0 [shape = 'u32[]', space=smem, size = 0x4, offset = 0x4, fixed_abs, tag = 'smem constant byte address 0x4 - core index']
  #allocation1 [shape = 'u32[144,128]{1,0:T(1,128)}', space=vmem, size = 0x12000, scoped, tag = 'internal scratch']
  %s0 = inlined_call_operand.vmem [shape: bf16[32,2048], index: 0, kind: input, shape index: {}]
  %s1 = inlined_call_operand.vmem [shape: bf16[2048,32], index: 1, kind: input, shape index: {}]
  %s2 = inlined_call_operand.vmem [shape: f32[32,1], index: 2, kind: input, shape index: {}]
  %s3 = inlined_call_operand.vmem [shape: f32[32,1], index: 3, kind: input, shape index: {}]
  %s4 = inlined_call_operand.vmem [shape: f32[32,1], index: 4, kind: input, shape index: {}]
  %s5 = inlined_call_operand.vmem [shape: bf16[32,32], index: 5, kind: output, shape index: {}]
  %s6 = sld [smem:[#allocation0]]
  $region30: #{unet_generator_forward.16} parent=0
    _
  %s8 = ssub.s32 1, %s6
  %s9 = scalar_select 0, %s8, %s6
  // Predicated region
  $region2: #{unet_generator_forward.16} parent=0 // pred_check
    _
  $region3: #{unet_generator_forward.16} parent=0 // pred_check_branch
    %11 = sbr.rel (0) target = $region5
  $region4: #{unet_generator_forward.16} parent=0 // pred_region
    _
  $region5: #{unet_generator_forward.16} parent=0 // pred_fallthru
    _
  // Predicated region
  $region6: #{unet_generator_forward.16} parent=0 // pred_check
    _
  $region7: #{unet_generator_forward.16} parent=0 // pred_check_branch
    %13 = sbr.rel (0) target = $region9
  $region8: #{unet_generator_forward.16} parent=0 // pred_region
    _
  $region9: #{unet_generator_forward.16} parent=0 // pred_fallthru
    _
  // Predicated region
  $region10: #{unet_generator_forward.16} parent=0 // pred_check
    _
  $region11: #{unet_generator_forward.16} parent=0 // pred_check_branch
    %15 = sbr.rel (0) target = $region13
  $region12: #{unet_generator_forward.16} parent=0 // pred_region
    _
  $region13: #{unet_generator_forward.16} parent=0 // pred_fallthru
    _
  // Predicated region
  $region14: #{unet_generator_forward.16} parent=0 // pred_check
    _
  $region15: #{unet_generator_forward.16} parent=0 // pred_check_branch
    %17 = sbr.rel (0) target = $region17
  $region16: #{unet_generator_forward.16} parent=0 // pred_region
    _
  $region17: #{unet_generator_forward.16} parent=0 // pred_fallthru
    _
  // Predicated region
  $region18: #{unet_generator_forward.16} parent=0 // pred_check
    _
  $region19: #{unet_generator_forward.16} parent=0 // pred_check_branch
    %19 = sbr.rel (0) target = $region21
  $region20: #{unet_generator_forward.16} parent=0 // pred_region
    _
  $region21: #{unet_generator_forward.16} parent=0 // pred_fallthru
    _
  %v21 = vld [vmem:[%s1] sm:$0xf]
  %v22 = vld [vmem:[%s1 + $0x4] sm:$0xf]
  %v23 = vld [vmem:[%s1 + $0x8] sm:$0xf]
  %v24 = vld [vmem:[%s1 + $0xc] sm:$0xf]
  %v25 = vld [vmem:[%s1 + $0x10] sm:$0xf]
  %v26 = vld [vmem:[%s1 + $0x14] sm:$0xf]
  %v27 = vld [vmem:[%s1 + $0x18] sm:$0xf]
  %v28 = vld [vmem:[%s1 + $0x1c] sm:$0xf]
  %v29 = vld [vmem:[%s1 + $0x20] sm:$0xf]
  %v30 = vld [vmem:[%s1 + $0x24] sm:$0xf]
  %v31 = vld [vmem:[%s1 + $0x28] sm:$0xf]
  %v32 = vld [vmem:[%s1 + $0x2c] sm:$0xf]
  %v33 = vld [vmem:[%s1 + $0x30] sm:$0xf]
  %v34 = vld [vmem:[%s1 + $0x34] sm:$0xf]
  %v35 = vld [vmem:[%s1 + $0x38] sm:$0xf]
  %v36 = vld [vmem:[%s1 + $0x3c] sm:$0xf]
  %v37 = vld [vmem:[%s1 + $0x40] sm:$0xf]
  %v38 = vld [vmem:[%s1 + $0x44] sm:$0xf]
  %v39 = vld [vmem:[%s1 + $0x48] sm:$0xf]
  %v40 = vld [vmem:[%s1 + $0x4c] sm:$0xf]
  %v41 = vld [vmem:[%s1 + $0x50] sm:$0xf]
  %v42 = vld [vmem:[%s1 + $0x54] sm:$0xf]
  %v43 = vld [vmem:[%s1 + $0x58] sm:$0xf]
  %v44 = vld [vmem:[%s1 + $0x5c] sm:$0xf]
  %v45 = vld [vmem:[%s1 + $0x60] sm:$0xf]
  %v46 = vld [vmem:[%s1 + $0x64] sm:$0xf]
  %v47 = vld [vmem:[%s1 + $0x68] sm:$0xf]
  %v48 = vld [vmem:[%s1 + $0x6c] sm:$0xf]
  %v49 = vld [vmem:[%s1 + $0x70] sm:$0xf]
  %v50 = vld [vmem:[%s1 + $0x74] sm:$0xf]
  %v51 = vld [vmem:[%s1 + $0x78] sm:$0xf]
  %v52 = vld [vmem:[%s1 + $0x7c] sm:$0xf]
  %v53 = vld [vmem:[%s1 + $0x80] sm:$0xf]
  %v54 = vld [vmem:[%s1 + $0x84] sm:$0xf]
  %v55 = vld [vmem:[%s1 + $0x88] sm:$0xf]
  %v56 = vld [vmem:[%s1 + $0x8c] sm:$0xf]
  %v57 = vld [vmem:[%s1 + $0x90] sm:$0xf]
  %v58 = vld [vmem:[%s1 + $0x94] sm:$0xf]
  %v59 = vld [vmem:[%s1 + $0x98] sm:$0xf]
  %v60 = vld [vmem:[%s1 + $0x9c] sm:$0xf]
  %v61 = vld [vmem:[%s1 + $0xa0] sm:$0xf]
  %v62 = vld [vmem:[%s1 + $0xa4] sm:$0xf]
  %v63 = vld [vmem:[%s1 + $0xa8] sm:$0xf]
  %v64 = vld [vmem:[%s1 + $0xac] sm:$0xf]
  %v65 = vld [vmem:[%s1 + $0xb0] sm:$0xf]
  %v66 = vld [vmem:[%s1 + $0xb4] sm:$0xf]
  %v67 = vld [vmem:[%s1 + $0xb8] sm:$0xf]
  %v68 = vld [vmem:[%s1 + $0xbc] sm:$0xf]
  %v69 = vld [vmem:[%s1 + $0xc0] sm:$0xf]
  %v70 = vld [vmem:[%s1 + $0xc4] sm:$0xf]
  %v71 = vld [vmem:[%s1 + $0xc8] sm:$0xf]
  %v72 = vld [vmem:[%s1 + $0xcc] sm:$0xf]
  %v73 = vld [vmem:[%s1 + $0xd0] sm:$0xf]
  %v74 = vld [vmem:[%s1 + $0xd4] sm:$0xf]
  %v75 = vld [vmem:[%s1 + $0xd8] sm:$0xf]
  %v76 = vld [vmem:[%s1 + $0xdc] sm:$0xf]
  %v77 = vld [vmem:[%s1 + $0xe0] sm:$0xf]
  %v78 = vld [vmem:[%s1 + $0xe4] sm:$0xf]
  %v79 = vld [vmem:[%s1 + $0xe8] sm:$0xf]
  %v80 = vld [vmem:[%s1 + $0xec] sm:$0xf]
  %v81 = vld [vmem:[%s1 + $0xf0] sm:$0xf]
  %v82 = vld [vmem:[%s1 + $0xf4] sm:$0xf]
  %v83 = vld [vmem:[%s1 + $0xf8] sm:$0xf]
  %v84 = vld [vmem:[%s1 + $0xfc] sm:$0xf]
  %v85 = vld [vmem:[%s1 + $0x100] sm:$0xf]
  %v86 = vld [vmem:[%s1 + $0x104] sm:$0xf]
  %v87 = vld [vmem:[%s1 + $0x108] sm:$0xf]
  %v88 = vld [vmem:[%s1 + $0x10c] sm:$0xf]
  %v89 = vld [vmem:[%s1 + $0x110] sm:$0xf]
  %v90 = vld [vmem:[%s1 + $0x114] sm:$0xf]
  %v91 = vld [vmem:[%s1 + $0x118] sm:$0xf]
  %v92 = vld [vmem:[%s1 + $0x11c] sm:$0xf]
  %v93 = vld [vmem:[%s1 + $0x120] sm:$0xf]
  %v94 = vld [vmem:[%s1 + $0x124] sm:$0xf]
  %v95 = vld [vmem:[%s1 + $0x128] sm:$0xf]
  %v96 = vld [vmem:[%s1 + $0x12c] sm:$0xf]
  %v97 = vld [vmem:[%s1 + $0x130] sm:$0xf]
  %v98 = vld [vmem:[%s1 + $0x134] sm:$0xf]
  %v99 = vld [vmem:[%s1 + $0x138] sm:$0xf]
  %v100 = vld [vmem:[%s1 + $0x13c] sm:$0xf]
  %v101 = vld [vmem:[%s1 + $0x140] sm:$0xf]
  %v102 = vld [vmem:[%s1 + $0x144] sm:$0xf]
  %v103 = vld [vmem:[%s1 + $0x148] sm:$0xf]
  %v104 = vld [vmem:[%s1 + $0x14c] sm:$0xf]
  %v105 = vld [vmem:[%s1 + $0x150] sm:$0xf]
  %v106 = vld [vmem:[%s1 + $0x154] sm:$0xf]
  %v107 = vld [vmem:[%s1 + $0x158] sm:$0xf]
  %v108 = vld [vmem:[%s1 + $0x15c] sm:$0xf]
  %v109 = vld [vmem:[%s1 + $0x160] sm:$0xf]
  %v110 = vld [vmem:[%s1 + $0x164] sm:$0xf]
  %v111 = vld [vmem:[%s1 + $0x168] sm:$0xf]
  %v112 = vld [vmem:[%s1 + $0x16c] sm:$0xf]
  %v113 = vld [vmem:[%s1 + $0x170] sm:$0xf]
  %v114 = vld [vmem:[%s1 + $0x174] sm:$0xf]
  %v115 = vld [vmem:[%s1 + $0x178] sm:$0xf]
  %v116 = vld [vmem:[%s1 + $0x17c] sm:$0xf]
  %v117 = vld [vmem:[%s1 + $0x180] sm:$0xf]
  %v118 = vld [vmem:[%s1 + $0x184] sm:$0xf]
  %v119 = vld [vmem:[%s1 + $0x188] sm:$0xf]
  %v120 = vld [vmem:[%s1 + $0x18c] sm:$0xf]
  %v121 = vld [vmem:[%s1 + $0x190] sm:$0xf]
  %v122 = vld [vmem:[%s1 + $0x194] sm:$0xf]
  %v123 = vld [vmem:[%s1 + $0x198] sm:$0xf]
  %v124 = vld [vmem:[%s1 + $0x19c] sm:$0xf]
  %v125 = vld [vmem:[%s1 + $0x1a0] sm:$0xf]
  %v126 = vld [vmem:[%s1 + $0x1a4] sm:$0xf]
  %v127 = vld [vmem:[%s1 + $0x1a8] sm:$0xf]
  %v128 = vld [vmem:[%s1 + $0x1ac] sm:$0xf]
  %v129 = vld [vmem:[%s1 + $0x1b0] sm:$0xf]
  %v130 = vld [vmem:[%s1 + $0x1b4] sm:$0xf]
  %v131 = vld [vmem:[%s1 + $0x1b8] sm:$0xf]
  %v132 = vld [vmem:[%s1 + $0x1bc] sm:$0xf]
  %v133 = vld [vmem:[%s1 + $0x1c0] sm:$0xf]
  %v134 = vld [vmem:[%s1 + $0x1c4] sm:$0xf]
  %v135 = vld [vmem:[%s1 + $0x1c8] sm:$0xf]
  %v136 = vld [vmem:[%s1 + $0x1cc] sm:$0xf]
  %v137 = vld [vmem:[%s1 + $0x1d0] sm:$0xf]
  %v138 = vld [vmem:[%s1 + $0x1d4] sm:$0xf]
  %v139 = vld [vmem:[%s1 + $0x1d8] sm:$0xf]
  %v140 = vld [vmem:[%s1 + $0x1dc] sm:$0xf]
  %v141 = vld [vmem:[%s1 + $0x1e0] sm:$0xf]
  %v142 = vld [vmem:[%s1 + $0x1e4] sm:$0xf]
  %v143 = vld [vmem:[%s1 + $0x1e8] sm:$0xf]
  %v144 = vld [vmem:[%s1 + $0x1ec] sm:$0xf]
  %v145 = vld [vmem:[%s1 + $0x1f0] sm:$0xf]
  %v146 = vld [vmem:[%s1 + $0x1f4] sm:$0xf]
  %v147 = vld [vmem:[%s1 + $0x1f8] sm:$0xf]
  %v148 = vld [vmem:[%s1 + $0x1fc] sm:$0xf]
  %v149 = vld [vmem:[%s1 + $0x200] sm:$0xf]
  %v150 = vld [vmem:[%s1 + $0x204] sm:$0xf]
  %v151 = vld [vmem:[%s1 + $0x208] sm:$0xf]
  %v152 = vld [vmem:[%s1 + $0x20c] sm:$0xf]
  %v153 = vld [vmem:[%s1 + $0x210] sm:$0xf]
  %v154 = vld [vmem:[%s1 + $0x214] sm:$0xf]
  %v155 = vld [vmem:[%s1 + $0x218] sm:$0xf]
  %v156 = vld [vmem:[%s1 + $0x21c] sm:$0xf]
  %v157 = vld [vmem:[%s1 + $0x220] sm:$0xf]
  %v158 = vld [vmem:[%s1 + $0x224] sm:$0xf]
  %v159 = vld [vmem:[%s1 + $0x228] sm:$0xf]
  %v160 = vld [vmem:[%s1 + $0x22c] sm:$0xf]
  %v161 = vld [vmem:[%s1 + $0x230] sm:$0xf]
  %v162 = vld [vmem:[%s1 + $0x234] sm:$0xf]
  %v163 = vld [vmem:[%s1 + $0x238] sm:$0xf]
  %v164 = vld [vmem:[%s1 + $0x23c] sm:$0xf]
  %v165 = vld [vmem:[%s1 + $0x240] sm:$0xf]
  %v166 = vld [vmem:[%s1 + $0x244] sm:$0xf]
  %v167 = vld [vmem:[%s1 + $0x248] sm:$0xf]
  %v168 = vld [vmem:[%s1 + $0x24c] sm:$0xf]
  %v169 = vld [vmem:[%s1 + $0x250] sm:$0xf]
  %v170 = vld [vmem:[%s1 + $0x254] sm:$0xf]
  %v171 = vld [vmem:[%s1 + $0x258] sm:$0xf]
  %v172 = vld [vmem:[%s1 + $0x25c] sm:$0xf]
  %v173 = vld [vmem:[%s1 + $0x260] sm:$0xf]
  %v174 = vld [vmem:[%s1 + $0x264] sm:$0xf]
  %v175 = vld [vmem:[%s1 + $0x268] sm:$0xf]
  %v176 = vld [vmem:[%s1 + $0x26c] sm:$0xf]
  %v177 = vld [vmem:[%s1 + $0x270] sm:$0xf]
  %v178 = vld [vmem:[%s1 + $0x274] sm:$0xf]
  %v179 = vld [vmem:[%s1 + $0x278] sm:$0xf]
  %v180 = vld [vmem:[%s1 + $0x27c] sm:$0xf]
  %v181 = vld [vmem:[%s1 + $0x280] sm:$0xf]
  %v182 = vld [vmem:[%s1 + $0x284] sm:$0xf]
  %v183 = vld [vmem:[%s1 + $0x288] sm:$0xf]
  %v184 = vld [vmem:[%s1 + $0x28c] sm:$0xf]
  %v185 = vld [vmem:[%s1 + $0x290] sm:$0xf]
  %v186 = vld [vmem:[%s1 + $0x294] sm:$0xf]
  %v187 = vld [vmem:[%s1 + $0x298] sm:$0xf]
  %v188 = vld [vmem:[%s1 + $0x29c] sm:$0xf]
  %v189 = vld [vmem:[%s1 + $0x2a0] sm:$0xf]
  %v190 = vld [vmem:[%s1 + $0x2a4] sm:$0xf]
  %v191 = vld [vmem:[%s1 + $0x2a8] sm:$0xf]
  %v192 = vld [vmem:[%s1 + $0x2ac] sm:$0xf]
  %v193 = vld [vmem:[%s1 + $0x2b0] sm:$0xf]
  %v194 = vld [vmem:[%s1 + $0x2b4] sm:$0xf]
  %v195 = vld [vmem:[%s1 + $0x2b8] sm:$0xf]
  %v196 = vld [vmem:[%s1 + $0x2bc] sm:$0xf]
  %v197 = vld [vmem:[%s1 + $0x2c0] sm:$0xf]
  %v198 = vld [vmem:[%s1 + $0x2c4] sm:$0xf]
  %v199 = vld [vmem:[%s1 + $0x2c8] sm:$0xf]
  %v200 = vld [vmem:[%s1 + $0x2cc] sm:$0xf]
  %v201 = vld [vmem:[%s1 + $0x2d0] sm:$0xf]
  %v202 = vld [vmem:[%s1 + $0x2d4] sm:$0xf]
  %v203 = vld [vmem:[%s1 + $0x2d8] sm:$0xf]
  %v204 = vld [vmem:[%s1 + $0x2dc] sm:$0xf]
  %v205 = vld [vmem:[%s1 + $0x2e0] sm:$0xf]
  %v206 = vld [vmem:[%s1 + $0x2e4] sm:$0xf]
  %v207 = vld [vmem:[%s1 + $0x2e8] sm:$0xf]
  %v208 = vld [vmem:[%s1 + $0x2ec] sm:$0xf]
  %v209 = vld [vmem:[%s1 + $0x2f0] sm:$0xf]
  %v210 = vld [vmem:[%s1 + $0x2f4] sm:$0xf]
  %v211 = vld [vmem:[%s1 + $0x2f8] sm:$0xf]
  %v212 = vld [vmem:[%s1 + $0x2fc] sm:$0xf]
  %v213 = vld [vmem:[%s1 + $0x300] sm:$0xf]
  %v214 = vld [vmem:[%s1 + $0x304] sm:$0xf]
  %v215 = vld [vmem:[%s1 + $0x308] sm:$0xf]
  %v216 = vld [vmem:[%s1 + $0x30c] sm:$0xf]
  %v217 = vld [vmem:[%s1 + $0x310] sm:$0xf]
  %v218 = vld [vmem:[%s1 + $0x314] sm:$0xf]
  %v219 = vld [vmem:[%s1 + $0x318] sm:$0xf]
  %v220 = vld [vmem:[%s1 + $0x31c] sm:$0xf]
  %v221 = vld [vmem:[%s1 + $0x320] sm:$0xf]
  %v222 = vld [vmem:[%s1 + $0x324] sm:$0xf]
  %v223 = vld [vmem:[%s1 + $0x328] sm:$0xf]
  %v224 = vld [vmem:[%s1 + $0x32c] sm:$0xf]
  %v225 = vld [vmem:[%s1 + $0x330] sm:$0xf]
  %v226 = vld [vmem:[%s1 + $0x334] sm:$0xf]
  %v227 = vld [vmem:[%s1 + $0x338] sm:$0xf]
  %v228 = vld [vmem:[%s1 + $0x33c] sm:$0xf]
  %v229 = vld [vmem:[%s1 + $0x340] sm:$0xf]
  %v230 = vld [vmem:[%s1 + $0x344] sm:$0xf]
  %v231 = vld [vmem:[%s1 + $0x348] sm:$0xf]
  %v232 = vld [vmem:[%s1 + $0x34c] sm:$0xf]
  %v233 = vld [vmem:[%s1 + $0x350] sm:$0xf]
  %v234 = vld [vmem:[%s1 + $0x354] sm:$0xf]
  %v235 = vld [vmem:[%s1 + $0x358] sm:$0xf]
  %v236 = vld [vmem:[%s1 + $0x35c] sm:$0xf]
  %v237 = vld [vmem:[%s1 + $0x360] sm:$0xf]
  %v238 = vld [vmem:[%s1 + $0x364] sm:$0xf]
  %v239 = vld [vmem:[%s1 + $0x368] sm:$0xf]
  %v240 = vld [vmem:[%s1 + $0x36c] sm:$0xf]
  %v241 = vld [vmem:[%s1 + $0x370] sm:$0xf]
  %v242 = vld [vmem:[%s1 + $0x374] sm:$0xf]
  %v243 = vld [vmem:[%s1 + $0x378] sm:$0xf]
  %v244 = vld [vmem:[%s1 + $0x37c] sm:$0xf]
  %v245 = vld [vmem:[%s1 + $0x380] sm:$0xf]
  %v246 = vld [vmem:[%s1 + $0x384] sm:$0xf]
  %v247 = vld [vmem:[%s1 + $0x388] sm:$0xf]
  %v248 = vld [vmem:[%s1 + $0x38c] sm:$0xf]
  %v249 = vld [vmem:[%s1 + $0x390] sm:$0xf]
  %v250 = vld [vmem:[%s1 + $0x394] sm:$0xf]
  %v251 = vld [vmem:[%s1 + $0x398] sm:$0xf]
  %v252 = vld [vmem:[%s1 + $0x39c] sm:$0xf]
  %v253 = vld [vmem:[%s1 + $0x3a0] sm:$0xf]
  %v254 = vld [vmem:[%s1 + $0x3a4] sm:$0xf]
  %v255 = vld [vmem:[%s1 + $0x3a8] sm:$0xf]
  %v256 = vld [vmem:[%s1 + $0x3ac] sm:$0xf]
  %v257 = vld [vmem:[%s1 + $0x3b0] sm:$0xf]
  %v258 = vld [vmem:[%s1 + $0x3b4] sm:$0xf]
  %v259 = vld [vmem:[%s1 + $0x3b8] sm:$0xf]
  %v260 = vld [vmem:[%s1 + $0x3bc] sm:$0xf]
  %v261 = vld [vmem:[%s1 + $0x3c0] sm:$0xf]
  %v262 = vld [vmem:[%s1 + $0x3c4] sm:$0xf]
  %v263 = vld [vmem:[%s1 + $0x3c8] sm:$0xf]
  %v264 = vld [vmem:[%s1 + $0x3cc] sm:$0xf]
  %v265 = vld [vmem:[%s1 + $0x3d0] sm:$0xf]
  %v266 = vld [vmem:[%s1 + $0x3d4] sm:$0xf]
  %v267 = vld [vmem:[%s1 + $0x3d8] sm:$0xf]
  %v268 = vld [vmem:[%s1 + $0x3dc] sm:$0xf]
  %v269 = vld [vmem:[%s1 + $0x3e0] sm:$0xf]
  %v270 = vld [vmem:[%s1 + $0x3e4] sm:$0xf]
  %v271 = vld [vmem:[%s1 + $0x3e8] sm:$0xf]
  %v272 = vld [vmem:[%s1 + $0x3ec] sm:$0xf]
  %v273 = vld [vmem:[%s1 + $0x3f0] sm:$0xf]
  %v274 = vld [vmem:[%s1 + $0x3f4] sm:$0xf]
  %v275 = vld [vmem:[%s1 + $0x3f8] sm:$0xf]
  %v276 = vld [vmem:[%s1 + $0x3fc] sm:$0xf]
  %v277 = vmax.bf16 %v21, 0
  %v278 = vmax.bf16 %v22, 0
  %v279 = vmax.bf16 %v23, 0
  %v280 = vmax.bf16 %v24, 0
  %v281 = vmax.bf16 %v25, 0
  %v282 = vmax.bf16 %v26, 0
  %v283 = vmax.bf16 %v27, 0
  %v284 = vmax.bf16 %v28, 0
  %v285 = vmax.bf16 %v29, 0
  %v286 = vmax.bf16 %v30, 0
  %v287 = vmax.bf16 %v31, 0
  %v288 = vmax.bf16 %v32, 0
  %v289 = vmax.bf16 %v33, 0
  %v290 = vmax.bf16 %v34, 0
  %v291 = vmax.bf16 %v35, 0
  %v292 = vmax.bf16 %v36, 0
  %v293 = vmax.bf16 %v37, 0
  %v294 = vmax.bf16 %v38, 0
  %v295 = vmax.bf16 %v39, 0
  %v296 = vmax.bf16 %v40, 0
  %v297 = vmax.bf16 %v41, 0
  %v298 = vmax.bf16 %v42, 0
  %v299 = vmax.bf16 %v43, 0
  %v300 = vmax.bf16 %v44, 0
  %v301 = vmax.bf16 %v45, 0
  %v302 = vmax.bf16 %v46, 0
  %v303 = vmax.bf16 %v47, 0
  %v304 = vmax.bf16 %v48, 0
  %v305 = vmax.bf16 %v49, 0
  %v306 = vmax.bf16 %v50, 0
  %v307 = vmax.bf16 %v51, 0
  %v308 = vmax.bf16 %v52, 0
  %v309 = vmax.bf16 %v53, 0
  %v310 = vmax.bf16 %v54, 0
  %v311 = vmax.bf16 %v55, 0
  %v312 = vmax.bf16 %v56, 0
  %v313 = vmax.bf16 %v57, 0
  %v314 = vmax.bf16 %v58, 0
  %v315 = vmax.bf16 %v59, 0
  %v316 = vmax.bf16 %v60, 0
  %v317 = vmax.bf16 %v61, 0
  %v318 = vmax.bf16 %v62, 0
  %v319 = vmax.bf16 %v63, 0
  %v320 = vmax.bf16 %v64, 0
  %v321 = vmax.bf16 %v65, 0
  %v322 = vmax.bf16 %v66, 0
  %v323 = vmax.bf16 %v67, 0
  %v324 = vmax.bf16 %v68, 0
  %v325 = vmax.bf16 %v69, 0
  %v326 = vmax.bf16 %v70, 0
  %v327 = vmax.bf16 %v71, 0
  %v328 = vmax.bf16 %v72, 0
  %v329 = vmax.bf16 %v73, 0
  %v330 = vmax.bf16 %v74, 0
  %v331 = vmax.bf16 %v75, 0
  %v332 = vmax.bf16 %v76, 0
  %v333 = vmax.bf16 %v77, 0
  %v334 = vmax.bf16 %v78, 0
  %v335 = vmax.bf16 %v79, 0
  %v336 = vmax.bf16 %v80, 0
  %v337 = vmax.bf16 %v81, 0
  %v338 = vmax.bf16 %v82, 0
  %v339 = vmax.bf16 %v83, 0
  %v340 = vmax.bf16 %v84, 0
  %v341 = vmax.bf16 %v85, 0
  %v342 = vmax.bf16 %v86, 0
  %v343 = vmax.bf16 %v87, 0
  %v344 = vmax.bf16 %v88, 0
  %v345 = vmax.bf16 %v89, 0
  %v346 = vmax.bf16 %v90, 0
  %v347 = vmax.bf16 %v91, 0
  %v348 = vmax.bf16 %v92, 0
  %v349 = vmax.bf16 %v93, 0
  %v350 = vmax.bf16 %v94, 0
  %v351 = vmax.bf16 %v95, 0
  %v352 = vmax.bf16 %v96, 0
  %v353 = vmax.bf16 %v97, 0
  %v354 = vmax.bf16 %v98, 0
  %v355 = vmax.bf16 %v99, 0
  %v356 = vmax.bf16 %v100, 0
  %v357 = vmax.bf16 %v101, 0
  %v358 = vmax.bf16 %v102, 0
  %v359 = vmax.bf16 %v103, 0
  %v360 = vmax.bf16 %v104, 0
  %v361 = vmax.bf16 %v105, 0
  %v362 = vmax.bf16 %v106, 0
  %v363 = vmax.bf16 %v107, 0
  %v364 = vmax.bf16 %v108, 0
  %v365 = vmax.bf16 %v109, 0
  %v366 = vmax.bf16 %v110, 0
  %v367 = vmax.bf16 %v111, 0
  %v368 = vmax.bf16 %v112, 0
  %v369 = vmax.bf16 %v113, 0
  %v370 = vmax.bf16 %v114, 0
  %v371 = vmax.bf16 %v115, 0
  %v372 = vmax.bf16 %v116, 0
  %v373 = vmax.bf16 %v117, 0
  %v374 = vmax.bf16 %v118, 0
  %v375 = vmax.bf16 %v119, 0
  %v376 = vmax.bf16 %v120, 0
  %v377 = vmax.bf16 %v121, 0
  %v378 = vmax.bf16 %v122, 0
  %v379 = vmax.bf16 %v123, 0
  %v380 = vmax.bf16 %v124, 0
  %v381 = vmax.bf16 %v125, 0
  %v382 = vmax.bf16 %v126, 0
  %v383 = vmax.bf16 %v127, 0
  %v384 = vmax.bf16 %v128, 0
  %v385 = vmax.bf16 %v129, 0
  %v386 = vmax.bf16 %v130, 0
  %v387 = vmax.bf16 %v131, 0
  %v388 = vmax.bf16 %v132, 0
  %v389 = vmax.bf16 %v133, 0
  %v390 = vmax.bf16 %v134, 0
  %v391 = vmax.bf16 %v135, 0
  %v392 = vmax.bf16 %v136, 0
  %v393 = vmax.bf16 %v137, 0
  %v394 = vmax.bf16 %v138, 0
  %v395 = vmax.bf16 %v139, 0
  %v396 = vmax.bf16 %v140, 0
  %v397 = vmax.bf16 %v141, 0
  %v398 = vmax.bf16 %v142, 0
  %v399 = vmax.bf16 %v143, 0
  %v400 = vmax.bf16 %v144, 0
  %v401 = vmax.bf16 %v145, 0
  %v402 = vmax.bf16 %v146, 0
  %v403 = vmax.bf16 %v147, 0
  %v404 = vmax.bf16 %v148, 0
  %v405 = vmax.bf16 %v149, 0
  %v406 = vmax.bf16 %v150, 0
  %v407 = vmax.bf16 %v151, 0
  %v408 = vmax.bf16 %v152, 0
  %v409 = vmax.bf16 %v153, 0
  %v410 = vmax.bf16 %v154, 0
  %v411 = vmax.bf16 %v155, 0
  %v412 = vmax.bf16 %v156, 0
  %v413 = vmax.bf16 %v157, 0
  %v414 = vmax.bf16 %v158, 0
  %v415 = vmax.bf16 %v159, 0
  %v416 = vmax.bf16 %v160, 0
  %v417 = vmax.bf16 %v161, 0
  %v418 = vmax.bf16 %v162, 0
  %v419 = vmax.bf16 %v163, 0
  %v420 = vmax.bf16 %v164, 0
  %v421 = vmax.bf16 %v165, 0
  %v422 = vmax.bf16 %v166, 0
  %v423 = vmax.bf16 %v167, 0
  %v424 = vmax.bf16 %v168, 0
  %v425 = vmax.bf16 %v169, 0
  %v426 = vmax.bf16 %v170, 0
  %v427 = vmax.bf16 %v171, 0
  %v428 = vmax.bf16 %v172, 0
  %v429 = vmax.bf16 %v173, 0
  %v430 = vmax.bf16 %v174, 0
  %v431 = vmax.bf16 %v175, 0
  %v432 = vmax.bf16 %v176, 0
  %v433 = vmax.bf16 %v177, 0
  %v434 = vmax.bf16 %v178, 0
  %v435 = vmax.bf16 %v179, 0
  %v436 = vmax.bf16 %v180, 0
  %v437 = vmax.bf16 %v181, 0
  %v438 = vmax.bf16 %v182, 0
  %v439 = vmax.bf16 %v183, 0
  %v440 = vmax.bf16 %v184, 0
  %v441 = vmax.bf16 %v185, 0
  %v442 = vmax.bf16 %v186, 0
  %v443 = vmax.bf16 %v187, 0
  %v444 = vmax.bf16 %v188, 0
  %v445 = vmax.bf16 %v189, 0
  %v446 = vmax.bf16 %v190, 0
  %v447 = vmax.bf16 %v191, 0
  %v448 = vmax.bf16 %v192, 0
  %v449 = vmax.bf16 %v193, 0
  %v450 = vmax.bf16 %v194, 0
  %v451 = vmax.bf16 %v195, 0
  %v452 = vmax.bf16 %v196, 0
  %v453 = vmax.bf16 %v197, 0
  %v454 = vmax.bf16 %v198, 0
  %v455 = vmax.bf16 %v199, 0
  %v456 = vmax.bf16 %v200, 0
  %v457 = vmax.bf16 %v201, 0
  %v458 = vmax.bf16 %v202, 0
  %v459 = vmax.bf16 %v203, 0
  %v460 = vmax.bf16 %v204, 0
  %v461 = vmax.bf16 %v205, 0
  %v462 = vmax.bf16 %v206, 0
  %v463 = vmax.bf16 %v207, 0
  %v464 = vmax.bf16 %v208, 0
  %v465 = vmax.bf16 %v209, 0
  %v466 = vmax.bf16 %v210, 0
  %v467 = vmax.bf16 %v211, 0
  %v468 = vmax.bf16 %v212, 0
  %v469 = vmax.bf16 %v213, 0
  %v470 = vmax.bf16 %v214, 0
  %v471 = vmax.bf16 %v215, 0
  %v472 = vmax.bf16 %v216, 0
  %v473 = vmax.bf16 %v217, 0
  %v474 = vmax.bf16 %v218, 0
  %v475 = vmax.bf16 %v219, 0
  %v476 = vmax.bf16 %v220, 0
  %v477 = vmax.bf16 %v221, 0
  %v478 = vmax.bf16 %v222, 0
  %v479 = vmax.bf16 %v223, 0
  %v480 = vmax.bf16 %v224, 0
  %v481 = vmax.bf16 %v225, 0
  %v482 = vmax.bf16 %v226, 0
  %v483 = vmax.bf16 %v227, 0
  %v484 = vmax.bf16 %v228, 0
  %v485 = vmax.bf16 %v229, 0
  %v486 = vmax.bf16 %v230, 0
  %v487 = vmax.bf16 %v231, 0
  %v488 = vmax.bf16 %v232, 0
  %v489 = vmax.bf16 %v233, 0
  %v490 = vmax.bf16 %v234, 0
  %v491 = vmax.bf16 %v235, 0
  %v492 = vmax.bf16 %v236, 0
  %v493 = vmax.bf16 %v237, 0
  %v494 = vmax.bf16 %v238, 0
  %v495 = vmax.bf16 %v239, 0
  %v496 = vmax.bf16 %v240, 0
  %v497 = vmax.bf16 %v241, 0
  %v498 = vmax.bf16 %v242, 0
  %v499 = vmax.bf16 %v243, 0
  %v500 = vmax.bf16 %v244, 0
  %v501 = vmax.bf16 %v245, 0
  %v502 = vmax.bf16 %v246, 0
  %v503 = vmax.bf16 %v247, 0
  %v504 = vmax.bf16 %v248, 0
  %v505 = vmax.bf16 %v249, 0
  %v506 = vmax.bf16 %v250, 0
  %v507 = vmax.bf16 %v251, 0
  %v508 = vmax.bf16 %v252, 0
  %v509 = vmax.bf16 %v253, 0
  %v510 = vmax.bf16 %v254, 0
  %v511 = vmax.bf16 %v255, 0
  %v512 = vmax.bf16 %v256, 0
  %v513 = vmax.bf16 %v257, 0
  %v514 = vmax.bf16 %v258, 0
  %v515 = vmax.bf16 %v259, 0
  %v516 = vmax.bf16 %v260, 0
  %v517 = vmax.bf16 %v261, 0
  %v518 = vmax.bf16 %v262, 0
  %v519 = vmax.bf16 %v263, 0
  %v520 = vmax.bf16 %v264, 0
  %v521 = vmax.bf16 %v265, 0
  %v522 = vmax.bf16 %v266, 0
  %v523 = vmax.bf16 %v267, 0
  %v524 = vmax.bf16 %v268, 0
  %v525 = vmax.bf16 %v269, 0
  %v526 = vmax.bf16 %v270, 0
  %v527 = vmax.bf16 %v271, 0
  %v528 = vmax.bf16 %v272, 0
  %v529 = vmax.bf16 %v273, 0
  %v530 = vmax.bf16 %v274, 0
  %v531 = vmax.bf16 %v275, 0
  %v532 = vmax.bf16 %v276, 0
  %v533 = vld [vmem:[%s0] sm:$0xff]
  %v534 = vld [vmem:[%s0 + $0x8] sm:$0xff]
  %v535 = vld [vmem:[%s0 + $0x10] sm:$0xff]
  %v536 = vld [vmem:[%s0 + $0x18] sm:$0xff]
  %v537 = vld [vmem:[%s0 + $0x20] sm:$0xff]
  %v538 = vld [vmem:[%s0 + $0x28] sm:$0xff]
  %v539 = vld [vmem:[%s0 + $0x30] sm:$0xff]
  %v540 = vld [vmem:[%s0 + $0x38] sm:$0xff]
  %v541 = vld [vmem:[%s0 + $0x40] sm:$0xff]
  %v542 = vld [vmem:[%s0 + $0x48] sm:$0xff]
  %v543 = vld [vmem:[%s0 + $0x50] sm:$0xff]
  %v544 = vld [vmem:[%s0 + $0x58] sm:$0xff]
  %v545 = vld [vmem:[%s0 + $0x60] sm:$0xff]
  %v546 = vld [vmem:[%s0 + $0x68] sm:$0xff]
  %v547 = vld [vmem:[%s0 + $0x70] sm:$0xff]
  %v548 = vld [vmem:[%s0 + $0x78] sm:$0xff]
  %v549 = vld [vmem:[%s0 + $0x80] sm:$0xff]
  %v550 = vld [vmem:[%s0 + $0x88] sm:$0xff]
  %v551 = vld [vmem:[%s0 + $0x90] sm:$0xff]
  %v552 = vld [vmem:[%s0 + $0x98] sm:$0xff]
  %v553 = vld [vmem:[%s0 + $0xa0] sm:$0xff]
  %v554 = vld [vmem:[%s0 + $0xa8] sm:$0xff]
  %v555 = vld [vmem:[%s0 + $0xb0] sm:$0xff]
  %v556 = vld [vmem:[%s0 + $0xb8] sm:$0xff]
  %v557 = vld [vmem:[%s0 + $0xc0] sm:$0xff]
  %v558 = vld [vmem:[%s0 + $0xc8] sm:$0xff]
  %v559 = vld [vmem:[%s0 + $0xd0] sm:$0xff]
  %v560 = vld [vmem:[%s0 + $0xd8] sm:$0xff]
  %v561 = vld [vmem:[%s0 + $0xe0] sm:$0xff]
  %v562 = vld [vmem:[%s0 + $0xe8] sm:$0xff]
  %v563 = vld [vmem:[%s0 + $0xf0] sm:$0xff]
  %v564 = vld [vmem:[%s0 + $0xf8] sm:$0xff]
  %v597 = vunpack.c.l.b16 %v533
  %v598 = vunpack.c.h.b16 %v533
  %v599 = vunpack.c.l.b16 %v534
  %v600 = vunpack.c.h.b16 %v534
  %v601 = vunpack.c.l.b16 %v535
  %v602 = vunpack.c.h.b16 %v535
  %v603 = vunpack.c.l.b16 %v536
  %v604 = vunpack.c.h.b16 %v536
  %v605 = vunpack.c.l.b16 %v537
  %v606 = vunpack.c.h.b16 %v537
  %v607 = vunpack.c.l.b16 %v538
  %v608 = vunpack.c.h.b16 %v538
  %v609 = vunpack.c.l.b16 %v539
  %v610 = vunpack.c.h.b16 %v539
  %v611 = vunpack.c.l.b16 %v540
  %v612 = vunpack.c.h.b16 %v540
  %v613 = vunpack.c.l.b16 %v541
  %v614 = vunpack.c.h.b16 %v541
  %v615 = vunpack.c.l.b16 %v542
  %v616 = vunpack.c.h.b16 %v542
  %v617 = vunpack.c.l.b16 %v543
  %v618 = vunpack.c.h.b16 %v543
  %v619 = vunpack.c.l.b16 %v544
  %v620 = vunpack.c.h.b16 %v544
  %v621 = vunpack.c.l.b16 %v545
  %v622 = vunpack.c.h.b16 %v545
  %v623 = vunpack.c.l.b16 %v546
  %v624 = vunpack.c.h.b16 %v546
  %v625 = vunpack.c.l.b16 %v547
  %v626 = vunpack.c.h.b16 %v547
  %v627 = vunpack.c.l.b16 %v548
  %v628 = vunpack.c.h.b16 %v548
  %v629 = vunpack.c.l.b16 %v549
  %v630 = vunpack.c.h.b16 %v549
  %v631 = vunpack.c.l.b16 %v550
  %v632 = vunpack.c.h.b16 %v550
  %v633 = vunpack.c.l.b16 %v551
  %v634 = vunpack.c.h.b16 %v551
  %v635 = vunpack.c.l.b16 %v552
  %v636 = vunpack.c.h.b16 %v552
  %v637 = vunpack.c.l.b16 %v553
  %v638 = vunpack.c.h.b16 %v553
  %v639 = vunpack.c.l.b16 %v554
  %v640 = vunpack.c.h.b16 %v554
  %v641 = vunpack.c.l.b16 %v555
  %v642 = vunpack.c.h.b16 %v555
  %v643 = vunpack.c.l.b16 %v556
  %v644 = vunpack.c.h.b16 %v556
  %v645 = vunpack.c.l.b16 %v557
  %v646 = vunpack.c.h.b16 %v557
  %v647 = vunpack.c.l.b16 %v558
  %v648 = vunpack.c.h.b16 %v558
  %v649 = vunpack.c.l.b16 %v559
  %v650 = vunpack.c.h.b16 %v559
  %v651 = vunpack.c.l.b16 %v560
  %v652 = vunpack.c.h.b16 %v560
  %v653 = vunpack.c.l.b16 %v561
  %v654 = vunpack.c.h.b16 %v561
  %v655 = vunpack.c.l.b16 %v562
  %v656 = vunpack.c.h.b16 %v562
  %v657 = vunpack.c.l.b16 %v563
  %v658 = vunpack.c.h.b16 %v563
  %v659 = vunpack.c.l.b16 %v564
  %v660 = vunpack.c.h.b16 %v564
  %v661 = vpack.c.b16 %v613, %v597
  %v662 = vpack.c.b16 %v614, %v598
  %v663 = vpack.c.b16 %v615, %v599
  %v664 = vpack.c.b16 %v616, %v600
  %v665 = vpack.c.b16 %v617, %v601
  %v666 = vpack.c.b16 %v618, %v602
  %v667 = vpack.c.b16 %v619, %v603
  %v668 = vpack.c.b16 %v620, %v604
  %v669 = vpack.c.b16 %v621, %v605
  %v670 = vpack.c.b16 %v622, %v606
  %v671 = vpack.c.b16 %v623, %v607
  %v672 = vpack.c.b16 %v624, %v608
  %v673 = vpack.c.b16 %v625, %v609
  %v674 = vpack.c.b16 %v626, %v610
  %v675 = vpack.c.b16 %v627, %v611
  %v676 = vpack.c.b16 %v628, %v612
  %v677 = vpack.c.b16 %v645, %v629
  %v678 = vpack.c.b16 %v646, %v630
  %v679 = vpack.c.b16 %v647, %v631
  %v680 = vpack.c.b16 %v648, %v632
  %v681 = vpack.c.b16 %v649, %v633
  %v682 = vpack.c.b16 %v650, %v634
  %v683 = vpack.c.b16 %v651, %v635
  %v684 = vpack.c.b16 %v652, %v636
  %v685 = vpack.c.b16 %v653, %v637
  %v686 = vpack.c.b16 %v654, %v638
  %v687 = vpack.c.b16 %v655, %v639
  %v688 = vpack.c.b16 %v656, %v640
  %v689 = vpack.c.b16 %v657, %v641
  %v690 = vpack.c.b16 %v658, %v642
  %v691 = vpack.c.b16 %v659, %v643
  %v692 = vpack.c.b16 %v660, %v644
  %v981 = vunpack.c.l.b16 %v277
  %v982 = vunpack.c.l.b16 %v278
  %v983 = vunpack.c.l.b16 %v279
  %v984 = vunpack.c.l.b16 %v280
  %v985 = vunpack.c.l.b16 %v281
  %v986 = vunpack.c.l.b16 %v282
  %v987 = vunpack.c.l.b16 %v283
  %v988 = vunpack.c.l.b16 %v284
  %v989 = vunpack.c.l.b16 %v285
  %v990 = vunpack.c.l.b16 %v286
  %v991 = vunpack.c.l.b16 %v287
  %v992 = vunpack.c.l.b16 %v288
  %v993 = vunpack.c.l.b16 %v289
  %v994 = vunpack.c.l.b16 %v290
  %v995 = vunpack.c.l.b16 %v291
  %v996 = vunpack.c.l.b16 %v292
  %v997 = vunpack.c.l.b16 %v293
  %v998 = vunpack.c.l.b16 %v294
  %v999 = vunpack.c.l.b16 %v295
  %v1000 = vunpack.c.l.b16 %v296
  %v1001 = vunpack.c.l.b16 %v297
  %v1002 = vunpack.c.l.b16 %v298
  %v1003 = vunpack.c.l.b16 %v299
  %v1004 = vunpack.c.l.b16 %v300
  %v1005 = vunpack.c.l.b16 %v301
  %v1006 = vunpack.c.l.b16 %v302
  %v1007 = vunpack.c.l.b16 %v303
  %v1008 = vunpack.c.l.b16 %v304
  %v1009 = vunpack.c.l.b16 %v305
  %v1010 = vunpack.c.l.b16 %v306
  %v1011 = vunpack.c.l.b16 %v307
  %v1012 = vunpack.c.l.b16 %v308
  %v1013 = vunpack.c.l.b16 %v309
  %v1014 = vunpack.c.l.b16 %v310
  %v1015 = vunpack.c.l.b16 %v311
  %v1016 = vunpack.c.l.b16 %v312
  %v1017 = vunpack.c.l.b16 %v313
  %v1018 = vunpack.c.l.b16 %v314
  %v1019 = vunpack.c.l.b16 %v315
  %v1020 = vunpack.c.l.b16 %v316
  %v1021 = vunpack.c.l.b16 %v317
  %v1022 = vunpack.c.l.b16 %v318
  %v1023 = vunpack.c.l.b16 %v319
  %v1024 = vunpack.c.l.b16 %v320
  %v1025 = vunpack.c.l.b16 %v321
  %v1026 = vunpack.c.l.b16 %v322
  %v1027 = vunpack.c.l.b16 %v323
  %v1028 = vunpack.c.l.b16 %v324
  %v1029 = vunpack.c.l.b16 %v325
  %v1030 = vunpack.c.l.b16 %v326
  %v1031 = vunpack.c.l.b16 %v327
  %v1032 = vunpack.c.l.b16 %v328
  %v1033 = vunpack.c.l.b16 %v329
  %v1034 = vunpack.c.l.b16 %v330
  %v1035 = vunpack.c.l.b16 %v331
  %v1036 = vunpack.c.l.b16 %v332
  %v1037 = vunpack.c.l.b16 %v333
  %v1038 = vunpack.c.l.b16 %v334
  %v1039 = vunpack.c.l.b16 %v335
  %v1040 = vunpack.c.l.b16 %v336
  %v1041 = vunpack.c.l.b16 %v337
  %v1042 = vunpack.c.l.b16 %v338
  %v1043 = vunpack.c.l.b16 %v339
  %v1044 = vunpack.c.l.b16 %v340
  %v1045 = vunpack.c.l.b16 %v341
  %v1046 = vunpack.c.l.b16 %v342
  %v1047 = vunpack.c.l.b16 %v343
  %v1048 = vunpack.c.l.b16 %v344
  %v1049 = vunpack.c.l.b16 %v345
  %v1050 = vunpack.c.l.b16 %v346
  %v1051 = vunpack.c.l.b16 %v347
  %v1052 = vunpack.c.l.b16 %v348
  %v1053 = vunpack.c.l.b16 %v349
  %v1054 = vunpack.c.l.b16 %v350
  %v1055 = vunpack.c.l.b16 %v351
  %v1056 = vunpack.c.l.b16 %v352
  %v1057 = vunpack.c.l.b16 %v353
  %v1058 = vunpack.c.l.b16 %v354
  %v1059 = vunpack.c.l.b16 %v355
  %v1060 = vunpack.c.l.b16 %v356
  %v1061 = vunpack.c.l.b16 %v357
  %v1062 = vunpack.c.l.b16 %v358
  %v1063 = vunpack.c.l.b16 %v359
  %v1064 = vunpack.c.l.b16 %v360
  %v1065 = vunpack.c.l.b16 %v361
  %v1066 = vunpack.c.l.b16 %v362
  %v1067 = vunpack.c.l.b16 %v363
  %v1068 = vunpack.c.l.b16 %v364
  %v1069 = vunpack.c.l.b16 %v365
  %v1070 = vunpack.c.l.b16 %v366
  %v1071 = vunpack.c.l.b16 %v367
  %v1072 = vunpack.c.l.b16 %v368
  %v1073 = vunpack.c.l.b16 %v369
  %v1074 = vunpack.c.l.b16 %v370
  %v1075 = vunpack.c.l.b16 %v371
  %v1076 = vunpack.c.l.b16 %v372
  %v1077 = vunpack.c.l.b16 %v373
  %v1078 = vunpack.c.l.b16 %v374
  %v1079 = vunpack.c.l.b16 %v375
  %v1080 = vunpack.c.l.b16 %v376
  %v1081 = vunpack.c.l.b16 %v377
  %v1082 = vunpack.c.l.b16 %v378
  %v1083 = vunpack.c.l.b16 %v379
  %v1084 = vunpack.c.l.b16 %v380
  %v1085 = vunpack.c.l.b16 %v381
  %v1086 = vunpack.c.l.b16 %v382
  %v1087 = vunpack.c.l.b16 %v383
  %v1088 = vunpack.c.l.b16 %v384
  %v1089 = vunpack.c.l.b16 %v385
  %v1090 = vunpack.c.l.b16 %v386
  %v1091 = vunpack.c.l.b16 %v387
  %v1092 = vunpack.c.l.b16 %v388
  %v1093 = vunpack.c.l.b16 %v389
  %v1094 = vunpack.c.l.b16 %v390
  %v1095 = vunpack.c.l.b16 %v391
  %v1096 = vunpack.c.l.b16 %v392
  %v1097 = vunpack.c.l.b16 %v393
  %v1098 = vunpack.c.l.b16 %v394
  %v1099 = vunpack.c.l.b16 %v395
  %v1100 = vunpack.c.l.b16 %v396
  %v1101 = vunpack.c.l.b16 %v397
  %v1102 = vunpack.c.l.b16 %v398
  %v1103 = vunpack.c.l.b16 %v399
  %v1104 = vunpack.c.l.b16 %v400
  %v1105 = vunpack.c.l.b16 %v401
  %v1106 = vunpack.c.l.b16 %v402
  %v1107 = vunpack.c.l.b16 %v403
  %v1108 = vunpack.c.l.b16 %v404
  %v1109 = vunpack.c.l.b16 %v405
  %v1110 = vunpack.c.l.b16 %v406
  %v1111 = vunpack.c.l.b16 %v407
  %v1112 = vunpack.c.l.b16 %v408
  %v1113 = vunpack.c.l.b16 %v409
  %v1114 = vunpack.c.l.b16 %v410
  %v1115 = vunpack.c.l.b16 %v411
  %v1116 = vunpack.c.l.b16 %v412
  %v1117 = vunpack.c.l.b16 %v413
  %v1118 = vunpack.c.l.b16 %v414
  %v1119 = vunpack.c.l.b16 %v415
  %v1120 = vunpack.c.l.b16 %v416
  %v1121 = vunpack.c.l.b16 %v417
  %v1122 = vunpack.c.l.b16 %v418
  %v1123 = vunpack.c.l.b16 %v419
  %v1124 = vunpack.c.l.b16 %v420
  %v1125 = vunpack.c.l.b16 %v421
  %v1126 = vunpack.c.l.b16 %v422
  %v1127 = vunpack.c.l.b16 %v423
  %v1128 = vunpack.c.l.b16 %v424
  %v1129 = vunpack.c.l.b16 %v425
  %v1130 = vunpack.c.l.b16 %v426
  %v1131 = vunpack.c.l.b16 %v427
  %v1132 = vunpack.c.l.b16 %v428
  %v1133 = vunpack.c.l.b16 %v429
  %v1134 = vunpack.c.l.b16 %v430
  %v1135 = vunpack.c.l.b16 %v431
  %v1136 = vunpack.c.l.b16 %v432
  %v1137 = vunpack.c.l.b16 %v433
  %v1138 = vunpack.c.l.b16 %v434
  %v1139 = vunpack.c.l.b16 %v435
  %v1140 = vunpack.c.l.b16 %v436
  %v1141 = vunpack.c.l.b16 %v437
  %v1142 = vunpack.c.l.b16 %v438
  %v1143 = vunpack.c.l.b16 %v439
  %v1144 = vunpack.c.l.b16 %v440
  %v1145 = vunpack.c.l.b16 %v441
  %v1146 = vunpack.c.l.b16 %v442
  %v1147 = vunpack.c.l.b16 %v443
  %v1148 = vunpack.c.l.b16 %v444
  %v1149 = vunpack.c.l.b16 %v445
  %v1150 = vunpack.c.l.b16 %v446
  %v1151 = vunpack.c.l.b16 %v447
  %v1152 = vunpack.c.l.b16 %v448
  %v1153 = vunpack.c.l.b16 %v449
  %v1154 = vunpack.c.l.b16 %v450
  %v1155 = vunpack.c.l.b16 %v451
  %v1156 = vunpack.c.l.b16 %v452
  %v1157 = vunpack.c.l.b16 %v453
  %v1158 = vunpack.c.l.b16 %v454
  %v1159 = vunpack.c.l.b16 %v455
  %v1160 = vunpack.c.l.b16 %v456
  %v1161 = vunpack.c.l.b16 %v457
  %v1162 = vunpack.c.l.b16 %v458
  %v1163 = vunpack.c.l.b16 %v459
  %v1164 = vunpack.c.l.b16 %v460
  %v1165 = vunpack.c.l.b16 %v461
  %v1166 = vunpack.c.l.b16 %v462
  %v1167 = vunpack.c.l.b16 %v463
  %v1168 = vunpack.c.l.b16 %v464
  %v1169 = vunpack.c.l.b16 %v465
  %v1170 = vunpack.c.l.b16 %v466
  %v1171 = vunpack.c.l.b16 %v467
  %v1172 = vunpack.c.l.b16 %v468
  %v1173 = vunpack.c.l.b16 %v469
  %v1174 = vunpack.c.l.b16 %v470
  %v1175 = vunpack.c.l.b16 %v471
  %v1176 = vunpack.c.l.b16 %v472
  %v1177 = vunpack.c.l.b16 %v473
  %v1178 = vunpack.c.l.b16 %v474
  %v1179 = vunpack.c.l.b16 %v475
  %v1180 = vunpack.c.l.b16 %v476
  %v1181 = vunpack.c.l.b16 %v477
  %v1182 = vunpack.c.l.b16 %v478
  %v1183 = vunpack.c.l.b16 %v479
  %v1184 = vunpack.c.l.b16 %v480
  %v1185 = vunpack.c.l.b16 %v481
  %v1186 = vunpack.c.l.b16 %v482
  %v1187 = vunpack.c.l.b16 %v483
  %v1188 = vunpack.c.l.b16 %v484
  %v1189 = vunpack.c.l.b16 %v485
  %v1190 = vunpack.c.l.b16 %v486
  %v1191 = vunpack.c.l.b16 %v487
  %v1192 = vunpack.c.l.b16 %v488
  %v1193 = vunpack.c.l.b16 %v489
  %v1194 = vunpack.c.l.b16 %v490
  %v1195 = vunpack.c.l.b16 %v491
  %v1196 = vunpack.c.l.b16 %v492
  %v1197 = vunpack.c.l.b16 %v493
  %v1198 = vunpack.c.l.b16 %v494
  %v1199 = vunpack.c.l.b16 %v495
  %v1200 = vunpack.c.l.b16 %v496
  %v1201 = vunpack.c.l.b16 %v497
  %v1202 = vunpack.c.l.b16 %v498
  %v1203 = vunpack.c.l.b16 %v499
  %v1204 = vunpack.c.l.b16 %v500
  %v1205 = vunpack.c.l.b16 %v501
  %v1206 = vunpack.c.l.b16 %v502
  %v1207 = vunpack.c.l.b16 %v503
  %v1208 = vunpack.c.l.b16 %v504
  %v1209 = vunpack.c.l.b16 %v505
  %v1210 = vunpack.c.l.b16 %v506
  %v1211 = vunpack.c.l.b16 %v507
  %v1212 = vunpack.c.l.b16 %v508
  %v1213 = vunpack.c.l.b16 %v509
  %v1214 = vunpack.c.l.b16 %v510
  %v1215 = vunpack.c.l.b16 %v511
  %v1216 = vunpack.c.l.b16 %v512
  %v1217 = vunpack.c.l.b16 %v513
  %v1218 = vunpack.c.l.b16 %v514
  %v1219 = vunpack.c.l.b16 %v515
  %v1220 = vunpack.c.l.b16 %v516
  %v1221 = vunpack.c.l.b16 %v517
  %v1222 = vunpack.c.l.b16 %v518
  %v1223 = vunpack.c.l.b16 %v519
  %v1224 = vunpack.c.l.b16 %v520
  %v1225 = vunpack.c.l.b16 %v521
  %v1226 = vunpack.c.l.b16 %v522
  %v1227 = vunpack.c.l.b16 %v523
  %v1228 = vunpack.c.l.b16 %v524
  %v1229 = vunpack.c.l.b16 %v525
  %v1230 = vunpack.c.l.b16 %v526
  %v1231 = vunpack.c.l.b16 %v527
  %v1232 = vunpack.c.l.b16 %v528
  %v1233 = vunpack.c.l.b16 %v529
  %v1234 = vunpack.c.l.b16 %v530
  %v1235 = vunpack.c.l.b16 %v531
  %v1236 = vunpack.c.l.b16 %v532
  %v1237 = vpack.c.b16 %v982, %v981
  %v1238 = vpack.c.b16 %v984, %v983
  %v1239 = vpack.c.b16 %v986, %v985
  %v1240 = vpack.c.b16 %v988, %v987
  %v1241 = vpack.c.b16 %v990, %v989
  %v1242 = vpack.c.b16 %v992, %v991
  %v1243 = vpack.c.b16 %v994, %v993
  %v1244 = vpack.c.b16 %v996, %v995
  %v1245 = vpack.c.b16 %v998, %v997
  %v1246 = vpack.c.b16 %v1000, %v999
  %v1247 = vpack.c.b16 %v1002, %v1001
  %v1248 = vpack.c.b16 %v1004, %v1003
  %v1249 = vpack.c.b16 %v1006, %v1005
  %v1250 = vpack.c.b16 %v1008, %v1007
  %v1251 = vpack.c.b16 %v1010, %v1009
  %v1252 = vpack.c.b16 %v1012, %v1011
  %v1253 = vpack.c.b16 %v1014, %v1013
  %v1254 = vpack.c.b16 %v1016, %v1015
  %v1255 = vpack.c.b16 %v1018, %v1017
  %v1256 = vpack.c.b16 %v1020, %v1019
  %v1257 = vpack.c.b16 %v1022, %v1021
  %v1258 = vpack.c.b16 %v1024, %v1023
  %v1259 = vpack.c.b16 %v1026, %v1025
  %v1260 = vpack.c.b16 %v1028, %v1027
  %v1261 = vpack.c.b16 %v1030, %v1029
  %v1262 = vpack.c.b16 %v1032, %v1031
  %v1263 = vpack.c.b16 %v1034, %v1033
  %v1264 = vpack.c.b16 %v1036, %v1035
  %v1265 = vpack.c.b16 %v1038, %v1037
  %v1266 = vpack.c.b16 %v1040, %v1039
  %v1267 = vpack.c.b16 %v1042, %v1041
  %v1268 = vpack.c.b16 %v1044, %v1043
  %v1269 = vpack.c.b16 %v1046, %v1045
  %v1270 = vpack.c.b16 %v1048, %v1047
  %v1271 = vpack.c.b16 %v1050, %v1049
  %v1272 = vpack.c.b16 %v1052, %v1051
  %v1273 = vpack.c.b16 %v1054, %v1053
  %v1274 = vpack.c.b16 %v1056, %v1055
  %v1275 = vpack.c.b16 %v1058, %v1057
  %v1276 = vpack.c.b16 %v1060, %v1059
  %v1277 = vpack.c.b16 %v1062, %v1061
  %v1278 = vpack.c.b16 %v1064, %v1063
  %v1279 = vpack.c.b16 %v1066, %v1065
  %v1280 = vpack.c.b16 %v1068, %v1067
  %v1281 = vpack.c.b16 %v1070, %v1069
  %v1282 = vpack.c.b16 %v1072, %v1071
  %v1283 = vpack.c.b16 %v1074, %v1073
  %v1284 = vpack.c.b16 %v1076, %v1075
  %v1285 = vpack.c.b16 %v1078, %v1077
  %v1286 = vpack.c.b16 %v1080, %v1079
  %v1287 = vpack.c.b16 %v1082, %v1081
  %v1288 = vpack.c.b16 %v1084, %v1083
  %v1289 = vpack.c.b16 %v1086, %v1085
  %v1290 = vpack.c.b16 %v1088, %v1087
  %v1291 = vpack.c.b16 %v1090, %v1089
  %v1292 = vpack.c.b16 %v1092, %v1091
  %v1293 = vpack.c.b16 %v1094, %v1093
  %v1294 = vpack.c.b16 %v1096, %v1095
  %v1295 = vpack.c.b16 %v1098, %v1097
  %v1296 = vpack.c.b16 %v1100, %v1099
  %v1297 = vpack.c.b16 %v1102, %v1101
  %v1298 = vpack.c.b16 %v1104, %v1103
  %v1299 = vpack.c.b16 %v1106, %v1105
  %v1300 = vpack.c.b16 %v1108, %v1107
  %v1301 = vpack.c.b16 %v1110, %v1109
  %v1302 = vpack.c.b16 %v1112, %v1111
  %v1303 = vpack.c.b16 %v1114, %v1113
  %v1304 = vpack.c.b16 %v1116, %v1115
  %v1305 = vpack.c.b16 %v1118, %v1117
  %v1306 = vpack.c.b16 %v1120, %v1119
  %v1307 = vpack.c.b16 %v1122, %v1121
  %v1308 = vpack.c.b16 %v1124, %v1123
  %v1309 = vpack.c.b16 %v1126, %v1125
  %v1310 = vpack.c.b16 %v1128, %v1127
  %v1311 = vpack.c.b16 %v1130, %v1129
  %v1312 = vpack.c.b16 %v1132, %v1131
  %v1313 = vpack.c.b16 %v1134, %v1133
  %v1314 = vpack.c.b16 %v1136, %v1135
  %v1315 = vpack.c.b16 %v1138, %v1137
  %v1316 = vpack.c.b16 %v1140, %v1139
  %v1317 = vpack.c.b16 %v1142, %v1141
  %v1318 = vpack.c.b16 %v1144, %v1143
  %v1319 = vpack.c.b16 %v1146, %v1145
  %v1320 = vpack.c.b16 %v1148, %v1147
  %v1321 = vpack.c.b16 %v1150, %v1149
  %v1322 = vpack.c.b16 %v1152, %v1151
  %v1323 = vpack.c.b16 %v1154, %v1153
  %v1324 = vpack.c.b16 %v1156, %v1155
  %v1325 = vpack.c.b16 %v1158, %v1157
  %v1326 = vpack.c.b16 %v1160, %v1159
  %v1327 = vpack.c.b16 %v1162, %v1161
  %v1328 = vpack.c.b16 %v1164, %v1163
  %v1329 = vpack.c.b16 %v1166, %v1165
  %v1330 = vpack.c.b16 %v1168, %v1167
  %v1331 = vpack.c.b16 %v1170, %v1169
  %v1332 = vpack.c.b16 %v1172, %v1171
  %v1333 = vpack.c.b16 %v1174, %v1173
  %v1334 = vpack.c.b16 %v1176, %v1175
  %v1335 = vpack.c.b16 %v1178, %v1177
  %v1336 = vpack.c.b16 %v1180, %v1179
  %v1337 = vpack.c.b16 %v1182, %v1181
  %v1338 = vpack.c.b16 %v1184, %v1183
  %v1339 = vpack.c.b16 %v1186, %v1185
  %v1340 = vpack.c.b16 %v1188, %v1187
  %v1341 = vpack.c.b16 %v1190, %v1189
  %v1342 = vpack.c.b16 %v1192, %v1191
  %v1343 = vpack.c.b16 %v1194, %v1193
  %v1344 = vpack.c.b16 %v1196, %v1195
  %v1345 = vpack.c.b16 %v1198, %v1197
  %v1346 = vpack.c.b16 %v1200, %v1199
  %v1347 = vpack.c.b16 %v1202, %v1201
  %v1348 = vpack.c.b16 %v1204, %v1203
  %v1349 = vpack.c.b16 %v1206, %v1205
  %v1350 = vpack.c.b16 %v1208, %v1207
  %v1351 = vpack.c.b16 %v1210, %v1209
  %v1352 = vpack.c.b16 %v1212, %v1211
  %v1353 = vpack.c.b16 %v1214, %v1213
  %v1354 = vpack.c.b16 %v1216, %v1215
  %v1355 = vpack.c.b16 %v1218, %v1217
  %v1356 = vpack.c.b16 %v1220, %v1219
  %v1357 = vpack.c.b16 %v1222, %v1221
  %v1358 = vpack.c.b16 %v1224, %v1223
  %v1359 = vpack.c.b16 %v1226, %v1225
  %v1360 = vpack.c.b16 %v1228, %v1227
  %v1361 = vpack.c.b16 %v1230, %v1229
  %v1362 = vpack.c.b16 %v1232, %v1231
  %v1363 = vpack.c.b16 %v1234, %v1233
  %v1364 = vpack.c.b16 %v1236, %v1235
  %1493 = vmatprep.subr.bf16.mxu0 0
  %1494 = vmatpush1.bf16.msra.mxu0 %v1237
  %1495 = vmatprep.subr.bf16.mxu0 0
  %1496 = vmatpush1.bf16.msra.mxu0 %v1238
  %1497 = vmatprep.subr.bf16.mxu0 0
  %1498 = vmatpush1.bf16.msra.mxu0 %v1239
  %1499 = vmatprep.subr.bf16.mxu0 0
  %1500 = vmatpush1.bf16.msra.mxu0 %v1240
  %1501 = vmatprep.subr.bf16.mxu0 0
  %1502 = vmatpush1.bf16.msra.mxu0 %v1241
  %1503 = vmatprep.subr.bf16.mxu0 0
  %1504 = vmatpush1.bf16.msra.mxu0 %v1242
  %1505 = vmatprep.subr.bf16.mxu0 0
  %1506 = vmatpush1.bf16.msra.mxu0 %v1243
  %1507 = vmatprep.subr.bf16.mxu0 0
  %1508 = vmatpush1.bf16.msra.mxu0 %v1244
  %1509 = vmatprep.subr.bf16.mxu0 0
  %1510 = vmatpush1.bf16.msra.mxu0 %v1245
  %1511 = vmatprep.subr.bf16.mxu0 0
  %1512 = vmatpush1.bf16.msra.mxu0 %v1246
  %1513 = vmatprep.subr.bf16.mxu0 0
  %1514 = vmatpush1.bf16.msra.mxu0 %v1247
  %1515 = vmatprep.subr.bf16.mxu0 0
  %1516 = vmatpush1.bf16.msra.mxu0 %v1248
  %1517 = vmatprep.subr.bf16.mxu0 0
  %1518 = vmatpush1.bf16.msra.mxu0 %v1249
  %1519 = vmatprep.subr.bf16.mxu0 0
  %1520 = vmatpush1.bf16.msra.mxu0 %v1250
  %1521 = vmatprep.subr.bf16.mxu0 0
  %1522 = vmatpush1.bf16.msra.mxu0 %v1251
  %1523 = vmatprep.subr.bf16.mxu0 0
  %1524 = vmatpush1.bf16.msra.mxu0 %v1252
  %1525 = vmatprep.mubr.bf16.mxu0 %v662
  %1526 = vmatmul.mubr.bf16.gmra.mrb[0].mxu0 %v661
  %v1527 = vpop.f32.mrb[0].mxu0
  %v1528 = vadd.f32 0.0, %v1527
  %v1529 = vpop.f32.mrb[0].mxu0
  %v1530 = vpop.f32.mrb[0].mxu0
  %v1531 = vadd.f32 0.0, %v1530
  %v1532 = vpop.f32.mrb[0].mxu0
  %1533 = vmatprep.mubr.bf16.mxu0 %v678
  %1534 = vmatmul.mubr.bf16.gmra.mrb[0].mxu0 %v677
  %v1535 = vpop.f32.mrb[0].mxu0
  %v1536 = vadd.f32 0.0, %v1535
  %v1537 = vpop.f32.mrb[0].mxu0
  %v1538 = vpop.f32.mrb[0].mxu0
  %v1539 = vadd.f32 0.0, %v1538
  %v1540 = vpop.f32.mrb[0].mxu0
  %1541 = vdwg.mxu0
  %1542 = vmatprep.subr.bf16.mxu0 0
  %1543 = vmatpush1.bf16.msra.mxu0 %v1253
  %1544 = vmatprep.subr.bf16.mxu0 0
  %1545 = vmatpush1.bf16.msra.mxu0 %v1254
  %1546 = vmatprep.subr.bf16.mxu0 0
  %1547 = vmatpush1.bf16.msra.mxu0 %v1255
  %1548 = vmatprep.subr.bf16.mxu0 0
  %1549 = vmatpush1.bf16.msra.mxu0 %v1256
  %1550 = vmatprep.subr.bf16.mxu0 0
  %1551 = vmatpush1.bf16.msra.mxu0 %v1257
  %1552 = vmatprep.subr.bf16.mxu0 0
  %1553 = vmatpush1.bf16.msra.mxu0 %v1258
  %1554 = vmatprep.subr.bf16.mxu0 0
  %1555 = vmatpush1.bf16.msra.mxu0 %v1259
  %1556 = vmatprep.subr.bf16.mxu0 0
  %1557 = vmatpush1.bf16.msra.mxu0 %v1260
  %1558 = vmatprep.subr.bf16.mxu0 0
  %1559 = vmatpush1.bf16.msra.mxu0 %v1261
  %1560 = vmatprep.subr.bf16.mxu0 0
  %1561 = vmatpush1.bf16.msra.mxu0 %v1262
  %1562 = vmatprep.subr.bf16.mxu0 0
  %1563 = vmatpush1.bf16.msra.mxu0 %v1263
  %1564 = vmatprep.subr.bf16.mxu0 0
  %1565 = vmatpush1.bf16.msra.mxu0 %v1264
  %1566 = vmatprep.subr.bf16.mxu0 0
  %1567 = vmatpush1.bf16.msra.mxu0 %v1265
  %1568 = vmatprep.subr.bf16.mxu0 0
  %1569 = vmatpush1.bf16.msra.mxu0 %v1266
  %1570 = vmatprep.subr.bf16.mxu0 0
  %1571 = vmatpush1.bf16.msra.mxu0 %v1267
  %1572 = vmatprep.subr.bf16.mxu0 0
  %1573 = vmatpush1.bf16.msra.mxu0 %v1268
  %1574 = vmatprep.mubr.bf16.mxu0 %v664
  %1575 = vmatmul.mubr.bf16.gmra.mrb[0].mxu0 %v663
  %v1576 = vpop.f32.mrb[0].mxu0
  %v1577 = vadd.f32 %v1528, %v1576
  %v1578 = vpop.f32.mrb[0].mxu0
  %v1579 = vpop.f32.mrb[0].mxu0
  %v1580 = vadd.f32 %v1531, %v1579
  %v1581 = vpop.f32.mrb[0].mxu0
  %1582 = vmatprep.mubr.bf16.mxu0 %v680
  %1583 = vmatmul.mubr.bf16.gmra.mrb[0].mxu0 %v679
  %v1584 = vpop.f32.mrb[0].mxu0
  %v1585 = vadd.f32 %v1536, %v1584
  %v1586 = vpop.f32.mrb[0].mxu0
  %v1587 = vpop.f32.mrb[0].mxu0
  %v1588 = vadd.f32 %v1539, %v1587
  %v1589 = vpop.f32.mrb[0].mxu0
  %1590 = vdwg.mxu0
  %1591 = vmatprep.subr.bf16.mxu0 0
  %1592 = vmatpush1.bf16.msra.mxu0 %v1269
  %1593 = vmatprep.subr.bf16.mxu0 0
  %1594 = vmatpush1.bf16.msra.mxu0 %v1270
  %1595 = vmatprep.subr.bf16.mxu0 0
  %1596 = vmatpush1.bf16.msra.mxu0 %v1271
  %1597 = vmatprep.subr.bf16.mxu0 0
  %1598 = vmatpush1.bf16.msra.mxu0 %v1272
  %1599 = vmatprep.subr.bf16.mxu0 0
  %1600 = vmatpush1.bf16.msra.mxu0 %v1273
  %1601 = vmatprep.subr.bf16.mxu0 0
  %1602 = vmatpush1.bf16.msra.mxu0 %v1274
  %1603 = vmatprep.subr.bf16.mxu0 0
  %1604 = vmatpush1.bf16.msra.mxu0 %v1275
  %1605 = vmatprep.subr.bf16.mxu0 0
  %1606 = vmatpush1.bf16.msra.mxu0 %v1276
  %1607 = vmatprep.subr.bf16.mxu0 0
  %1608 = vmatpush1.bf16.msra.mxu0 %v1277
  %1609 = vmatprep.subr.bf16.mxu0 0
  %1610 = vmatpush1.bf16.msra.mxu0 %v1278
  %1611 = vmatprep.subr.bf16.mxu0 0
  %1612 = vmatpush1.bf16.msra.mxu0 %v1279
  %1613 = vmatprep.subr.bf16.mxu0 0
  %1614 = vmatpush1.bf16.msra.mxu0 %v1280
  %1615 = vmatprep.subr.bf16.mxu0 0
  %1616 = vmatpush1.bf16.msra.mxu0 %v1281
  %1617 = vmatprep.subr.bf16.mxu0 0
  %1618 = vmatpush1.bf16.msra.mxu0 %v1282
  %1619 = vmatprep.subr.bf16.mxu0 0
  %1620 = vmatpush1.bf16.msra.mxu0 %v1283
  %1621 = vmatprep.subr.bf16.mxu0 0
  %1622 = vmatpush1.bf16.msra.mxu0 %v1284
  %1623 = vmatprep.mubr.bf16.mxu0 %v666
  %1624 = vmatmul.mubr.bf16.gmra.mrb[0].mxu0 %v665
  %v1625 = vpop.f32.mrb[0].mxu0
  %v1626 = vadd.f32 %v1577, %v1625
  %v1627 = vpop.f32.mrb[0].mxu0
  %v1628 = vpop.f32.mrb[0].mxu0
  %v1629 = vadd.f32 %v1580, %v1628
  %v1630 = vpop.f32.mrb[0].mxu0
  %1631 = vmatprep.mubr.bf16.mxu0 %v682
  %1632 = vmatmul.mubr.bf16.gmra.mrb[0].mxu0 %v681
  %v1633 = vpop.f32.mrb[0].mxu0
  %v1634 = vadd.f32 %v1585, %v1633
  %v1635 = vpop.f32.mrb[0].mxu0
  %v1636 = vpop.f32.mrb[0].mxu0
  %v1637 = vadd.f32 %v1588, %v1636
  %v1638 = vpop.f32.mrb[0].mxu0
  %1639 = vdwg.mxu0
  %1640 = vmatprep.subr.bf16.mxu0 0
  %1641 = vmatpush1.bf16.msra.mxu0 %v1285
  %1642 = vmatprep.subr.bf16.mxu0 0
  %1643 = vmatpush1.bf16.msra.mxu0 %v1286
  %1644 = vmatprep.subr.bf16.mxu0 0
  %1645 = vmatpush1.bf16.msra.mxu0 %v1287
  %1646 = vmatprep.subr.bf16.mxu0 0
  %1647 = vmatpush1.bf16.msra.mxu0 %v1288
  %1648 = vmatprep.subr.bf16.mxu0 0
  %1649 = vmatpush1.bf16.msra.mxu0 %v1289
  %1650 = vmatprep.subr.bf16.mxu0 0
  %1651 = vmatpush1.bf16.msra.mxu0 %v1290
  %1652 = vmatprep.subr.bf16.mxu0 0
  %1653 = vmatpush1.bf16.msra.mxu0 %v1291
  %1654 = vmatprep.subr.bf16.mxu0 0
  %1655 = vmatpush1.bf16.msra.mxu0 %v1292
  %1656 = vmatprep.subr.bf16.mxu0 0
  %1657 = vmatpush1.bf16.msra.mxu0 %v1293
  %1658 = vmatprep.subr.bf16.mxu0 0
  %1659 = vmatpush1.bf16.msra.mxu0 %v1294
  %1660 = vmatprep.subr.bf16.mxu0 0
  %1661 = vmatpush1.bf16.msra.mxu0 %v1295
  %1662 = vmatprep.subr.bf16.mxu0 0
  %1663 = vmatpush1.bf16.msra.mxu0 %v1296
  %1664 = vmatprep.subr.bf16.mxu0 0
  %1665 = vmatpush1.bf16.msra.mxu0 %v1297
  %1666 = vmatprep.subr.bf16.mxu0 0
  %1667 = vmatpush1.bf16.msra.mxu0 %v1298
  %1668 = vmatprep.subr.bf16.mxu0 0
  %1669 = vmatpush1.bf16.msra.mxu0 %v1299
  %1670 = vmatprep.subr.bf16.mxu0 0
  %1671 = vmatpush1.bf16.msra.mxu0 %v1300
  %1672 = vmatprep.mubr.bf16.mxu0 %v668
  %1673 = vmatmul.mubr.bf16.gmra.mrb[0].mxu0 %v667
  %v1674 = vpop.f32.mrb[0].mxu0
  %v1675 = vadd.f32 %v1626, %v1674
  %v1676 = vpop.f32.mrb[0].mxu0
  %v1677 = vpop.f32.mrb[0].mxu0
  %v1678 = vadd.f32 %v1629, %v1677
  %v1679 = vpop.f32.mrb[0].mxu0
  %1680 = vmatprep.mubr.bf16.mxu0 %v684
  %1681 = vmatmul.mubr.bf16.gmra.mrb[0].mxu0 %v683
  %v1682 = vpop.f32.mrb[0].mxu0
  %v1683 = vadd.f32 %v1634, %v1682
  %v1684 = vpop.f32.mrb[0].mxu0
  %v1685 = vpop.f32.mrb[0].mxu0
  %v1686 = vadd.f32 %v1637, %v1685
  %v1687 = vpop.f32.mrb[0].mxu0
  %1688 = vdwg.mxu0
  %1689 = vmatprep.subr.bf16.mxu0 0
  %1690 = vmatpush1.bf16.msra.mxu0 %v1301
  %1691 = vmatprep.subr.bf16.mxu0 0
  %1692 = vmatpush1.bf16.msra.mxu0 %v1302
  %1693 = vmatprep.subr.bf16.mxu0 0
  %1694 = vmatpush1.bf16.msra.mxu0 %v1303
  %1695 = vmatprep.subr.bf16.mxu0 0
  %1696 = vmatpush1.bf16.msra.mxu0 %v1304
  %1697 = vmatprep.subr.bf16.mxu0 0
  %1698 = vmatpush1.bf16.msra.mxu0 %v1305
  %1699 = vmatprep.subr.bf16.mxu0 0
  %1700 = vmatpush1.bf16.msra.mxu0 %v1306
  %1701 = vmatprep.subr.bf16.mxu0 0
  %1702 = vmatpush1.bf16.msra.mxu0 %v1307
  %1703 = vmatprep.subr.bf16.mxu0 0
  %1704 = vmatpush1.bf16.msra.mxu0 %v1308
  %1705 = vmatprep.subr.bf16.mxu0 0
  %1706 = vmatpush1.bf16.msra.mxu0 %v1309
  %1707 = vmatprep.subr.bf16.mxu0 0
  %1708 = vmatpush1.bf16.msra.mxu0 %v1310
  %1709 = vmatprep.subr.bf16.mxu0 0
  %1710 = vmatpush1.bf16.msra.mxu0 %v1311
  %1711 = vmatprep.subr.bf16.mxu0 0
  %1712 = vmatpush1.bf16.msra.mxu0 %v1312
  %1713 = vmatprep.subr.bf16.mxu0 0
  %1714 = vmatpush1.bf16.msra.mxu0 %v1313
  %1715 = vmatprep.subr.bf16.mxu0 0
  %1716 = vmatpush1.bf16.msra.mxu0 %v1314
  %1717 = vmatprep.subr.bf16.mxu0 0
  %1718 = vmatpush1.bf16.msra.mxu0 %v1315
  %1719 = vmatprep.subr.bf16.mxu0 0
  %1720 = vmatpush1.bf16.msra.mxu0 %v1316
  %1721 = vmatprep.mubr.bf16.mxu0 %v670
  %1722 = vmatmul.mubr.bf16.gmra.mrb[0].mxu0 %v669
  %v1723 = vpop.f32.mrb[0].mxu0
  %v1724 = vadd.f32 %v1675, %v1723
  %v1725 = vpop.f32.mrb[0].mxu0
  %v1726 = vpop.f32.mrb[0].mxu0
  %v1727 = vadd.f32 %v1678, %v1726
  %v1728 = vpop.f32.mrb[0].mxu0
  %1729 = vmatprep.mubr.bf16.mxu0 %v686
  %1730 = vmatmul.mubr.bf16.gmra.mrb[0].mxu0 %v685
  %v1731 = vpop.f32.mrb[0].mxu0
  %v1732 = vadd.f32 %v1683, %v1731
  %v1733 = vpop.f32.mrb[0].mxu0
  %v1734 = vpop.f32.mrb[0].mxu0
  %v1735 = vadd.f32 %v1686, %v1734
  %v1736 = vpop.f32.mrb[0].mxu0
  %1737 = vdwg.mxu0
  %1738 = vmatprep.subr.bf16.mxu0 0
  %1739 = vmatpush1.bf16.msra.mxu0 %v1317
  %1740 = vmatprep.subr.bf16.mxu0 0
  %1741 = vmatpush1.bf16.msra.mxu0 %v1318
  %1742 = vmatprep.subr.bf16.mxu0 0
  %1743 = vmatpush1.bf16.msra.mxu0 %v1319
  %1744 = vmatprep.subr.bf16.mxu0 0
  %1745 = vmatpush1.bf16.msra.mxu0 %v1320
  %1746 = vmatprep.subr.bf16.mxu0 0
  %1747 = vmatpush1.bf16.msra.mxu0 %v1321
  %1748 = vmatprep.subr.bf16.mxu0 0
  %1749 = vmatpush1.bf16.msra.mxu0 %v1322
  %1750 = vmatprep.subr.bf16.mxu0 0
  %1751 = vmatpush1.bf16.msra.mxu0 %v1323
  %1752 = vmatprep.subr.bf16.mxu0 0
  %1753 = vmatpush1.bf16.msra.mxu0 %v1324
  %1754 = vmatprep.subr.bf16.mxu0 0
  %1755 = vmatpush1.bf16.msra.mxu0 %v1325
  %1756 = vmatprep.subr.bf16.mxu0 0
  %1757 = vmatpush1.bf16.msra.mxu0 %v1326
  %1758 = vmatprep.subr.bf16.mxu0 0
  %1759 = vmatpush1.bf16.msra.mxu0 %v1327
  %1760 = vmatprep.subr.bf16.mxu0 0
  %1761 = vmatpush1.bf16.msra.mxu0 %v1328
  %1762 = vmatprep.subr.bf16.mxu0 0
  %1763 = vmatpush1.bf16.msra.mxu0 %v1329
  %1764 = vmatprep.subr.bf16.mxu0 0
  %1765 = vmatpush1.bf16.msra.mxu0 %v1330
  %1766 = vmatprep.subr.bf16.mxu0 0
  %1767 = vmatpush1.bf16.msra.mxu0 %v1331
  %1768 = vmatprep.subr.bf16.mxu0 0
  %1769 = vmatpush1.bf16.msra.mxu0 %v1332
  %1770 = vmatprep.mubr.bf16.mxu0 %v672
  %1771 = vmatmul.mubr.bf16.gmra.mrb[0].mxu0 %v671
  %v1772 = vpop.f32.mrb[0].mxu0
  %v1773 = vadd.f32 %v1724, %v1772
  %v1774 = vpop.f32.mrb[0].mxu0
  %v1775 = vpop.f32.mrb[0].mxu0
  %v1776 = vadd.f32 %v1727, %v1775
  %v1777 = vpop.f32.mrb[0].mxu0
  %1778 = vmatprep.mubr.bf16.mxu0 %v688
  %1779 = vmatmul.mubr.bf16.gmra.mrb[0].mxu0 %v687
  %v1780 = vpop.f32.mrb[0].mxu0
  %v1781 = vadd.f32 %v1732, %v1780
  %v1782 = vpop.f32.mrb[0].mxu0
  %v1783 = vpop.f32.mrb[0].mxu0
  %v1784 = vadd.f32 %v1735, %v1783
  %v1785 = vpop.f32.mrb[0].mxu0
  %1786 = vdwg.mxu0
  %1787 = vmatprep.subr.bf16.mxu0 0
  %1788 = vmatpush1.bf16.msra.mxu0 %v1333
  %1789 = vmatprep.subr.bf16.mxu0 0
  %1790 = vmatpush1.bf16.msra.mxu0 %v1334
  %1791 = vmatprep.subr.bf16.mxu0 0
  %1792 = vmatpush1.bf16.msra.mxu0 %v1335
  %1793 = vmatprep.subr.bf16.mxu0 0
  %1794 = vmatpush1.bf16.msra.mxu0 %v1336
  %1795 = vmatprep.subr.bf16.mxu0 0
  %1796 = vmatpush1.bf16.msra.mxu0 %v1337
  %1797 = vmatprep.subr.bf16.mxu0 0
  %1798 = vmatpush1.bf16.msra.mxu0 %v1338
  %1799 = vmatprep.subr.bf16.mxu0 0
  %1800 = vmatpush1.bf16.msra.mxu0 %v1339
  %1801 = vmatprep.subr.bf16.mxu0 0
  %1802 = vmatpush1.bf16.msra.mxu0 %v1340
  %1803 = vmatprep.subr.bf16.mxu0 0
  %1804 = vmatpush1.bf16.msra.mxu0 %v1341
  %1805 = vmatprep.subr.bf16.mxu0 0
  %1806 = vmatpush1.bf16.msra.mxu0 %v1342
  %1807 = vmatprep.subr.bf16.mxu0 0
  %1808 = vmatpush1.bf16.msra.mxu0 %v1343
  %1809 = vmatprep.subr.bf16.mxu0 0
  %1810 = vmatpush1.bf16.msra.mxu0 %v1344
  %1811 = vmatprep.subr.bf16.mxu0 0
  %1812 = vmatpush1.bf16.msra.mxu0 %v1345
  %1813 = vmatprep.subr.bf16.mxu0 0
  %1814 = vmatpush1.bf16.msra.mxu0 %v1346
  %1815 = vmatprep.subr.bf16.mxu0 0
  %1816 = vmatpush1.bf16.msra.mxu0 %v1347
  %1817 = vmatprep.subr.bf16.mxu0 0
  %1818 = vmatpush1.bf16.msra.mxu0 %v1348
  %1819 = vmatprep.mubr.bf16.mxu0 %v674
  %1820 = vmatmul.mubr.bf16.gmra.mrb[0].mxu0 %v673
  %v1821 = vpop.f32.mrb[0].mxu0
  %v1822 = vadd.f32 %v1773, %v1821
  %v1823 = vpop.f32.mrb[0].mxu0
  %v1824 = vpop.f32.mrb[0].mxu0
  %v1825 = vadd.f32 %v1776, %v1824
  %v1826 = vpop.f32.mrb[0].mxu0
  %1827 = vmatprep.mubr.bf16.mxu0 %v690
  %1828 = vmatmul.mubr.bf16.gmra.mrb[0].mxu0 %v689
  %v1829 = vpop.f32.mrb[0].mxu0
  %v1830 = vadd.f32 %v1781, %v1829
  %v1831 = vpop.f32.mrb[0].mxu0
  %v1832 = vpop.f32.mrb[0].mxu0
  %v1833 = vadd.f32 %v1784, %v1832
  %v1834 = vpop.f32.mrb[0].mxu0
  %1835 = vdwg.mxu0
  %1836 = vmatprep.subr.bf16.mxu0 0
  %1837 = vmatpush1.bf16.msra.mxu0 %v1349
  %1838 = vmatprep.subr.bf16.mxu0 0
  %1839 = vmatpush1.bf16.msra.mxu0 %v1350
  %1840 = vmatprep.subr.bf16.mxu0 0
  %1841 = vmatpush1.bf16.msra.mxu0 %v1351
  %1842 = vmatprep.subr.bf16.mxu0 0
  %1843 = vmatpush1.bf16.msra.mxu0 %v1352
  %1844 = vmatprep.subr.bf16.mxu0 0
  %1845 = vmatpush1.bf16.msra.mxu0 %v1353
  %1846 = vmatprep.subr.bf16.mxu0 0
  %1847 = vmatpush1.bf16.msra.mxu0 %v1354
  %1848 = vmatprep.subr.bf16.mxu0 0
  %1849 = vmatpush1.bf16.msra.mxu0 %v1355
  %1850 = vmatprep.subr.bf16.mxu0 0
  %1851 = vmatpush1.bf16.msra.mxu0 %v1356
  %1852 = vmatprep.subr.bf16.mxu0 0
  %1853 = vmatpush1.bf16.msra.mxu0 %v1357
  %1854 = vmatprep.subr.bf16.mxu0 0
  %1855 = vmatpush1.bf16.msra.mxu0 %v1358
  %1856 = vmatprep.subr.bf16.mxu0 0
  %1857 = vmatpush1.bf16.msra.mxu0 %v1359
  %1858 = vmatprep.subr.bf16.mxu0 0
  %1859 = vmatpush1.bf16.msra.mxu0 %v1360
  %1860 = vmatprep.subr.bf16.mxu0 0
  %1861 = vmatpush1.bf16.msra.mxu0 %v1361
  %1862 = vmatprep.subr.bf16.mxu0 0
  %1863 = vmatpush1.bf16.msra.mxu0 %v1362
  %1864 = vmatprep.subr.bf16.mxu0 0
  %1865 = vmatpush1.bf16.msra.mxu0 %v1363
  %1866 = vmatprep.subr.bf16.mxu0 0
  %1867 = vmatpush1.bf16.msra.mxu0 %v1364
  %1868 = vmatprep.mubr.bf16.mxu0 %v676
  %1869 = vmatmul.mubr.bf16.gmra.mrb[0].mxu0 %v675
  %v1870 = vpop.f32.mrb[0].mxu0
  %v1871 = vadd.f32 %v1822, %v1870
  %v1872 = vpop.f32.mrb[0].mxu0
  %v1873 = vpop.f32.mrb[0].mxu0
  %v1874 = vadd.f32 %v1825, %v1873
  %v1875 = vpop.f32.mrb[0].mxu0
  %1876 = vmatprep.mubr.bf16.mxu0 %v692
  %1877 = vmatmul.mubr.bf16.gmra.mrb[0].mxu0 %v691
  %v1878 = vpop.f32.mrb[0].mxu0
  %v1879 = vadd.f32 %v1830, %v1878
  %v1880 = vpop.f32.mrb[0].mxu0
  %v1881 = vpop.f32.mrb[0].mxu0
  %v1882 = vadd.f32 %v1833, %v1881
  %v1883 = vpop.f32.mrb[0].mxu0
  %1884 = vdwg.mxu0
  %vm1885 = vcmask 261120
  %v1886 = vsel %vm1885, %v1871, 0.0
  %1887 = vadd.xlane.f32.xlu0 %v1886
  %v1888 = vpop.xlane.xlu0 %1887
  %v1889 = vsel %vm1885, %v1874, 0.0
  %1890 = vadd.xlane.f32.xlu0 %v1889
  %v1891 = vpop.xlane.xlu0 %1890
  %v1892 = vsel %vm1885, %v1879, 0.0
  %1893 = vadd.xlane.f32.xlu0 %v1892
  %v1894 = vpop.xlane.xlu0 %1893
  %v1895 = vsel %vm1885, %v1882, 0.0
  %1896 = vadd.xlane.f32.xlu0 %v1895
  %v1897 = vpop.xlane.xlu0 %1896
  %v1898 = vrcp.pop 32.0
  %v1899 = vmul.f32 %v1888, %v1898
  %v1900 = vmul.f32 %v1891, %v1898
  %v1901 = vmul.f32 %v1894, %v1898
  %v1902 = vmul.f32 %v1897, %v1898
  %v1903 = vsub.f32 %v1871, %v1899
  %v1904 = vsub.f32 %v1874, %v1900
  %v1905 = vsub.f32 %v1879, %v1901
  %v1906 = vsub.f32 %v1882, %v1902
  %v1907 = vmul.f32 %v1903, %v1903
  %v1908 = vmul.f32 %v1904, %v1904
  %v1909 = vmul.f32 %v1905, %v1905
  %v1910 = vmul.f32 %v1906, %v1906
  %v1911 = vsel %vm1885, %v1907, 0.0
  %1912 = vadd.xlane.f32.xlu0 %v1911
  %v1913 = vpop.xlane.xlu0 %1912
  %v1914 = vsel %vm1885, %v1908, 0.0
  %1915 = vadd.xlane.f32.xlu0 %v1914
  %v1916 = vpop.xlane.xlu0 %1915
  %v1917 = vsel %vm1885, %v1909, 0.0
  %1918 = vadd.xlane.f32.xlu0 %v1917
  %v1919 = vpop.xlane.xlu0 %1918
  %v1920 = vsel %vm1885, %v1910, 0.0
  %1921 = vadd.xlane.f32.xlu0 %v1920
  %v1922 = vpop.xlane.xlu0 %1921
  %v1923 = vmul.f32 %v1913, %v1898
  %v1924 = vmul.f32 %v1916, %v1898
  %v1925 = vmul.f32 %v1919, %v1898
  %v1926 = vmul.f32 %v1922, %v1898
  %v1927 = vadd.f32 %v1923, 1e-05
  %v1928 = vadd.f32 %v1924, 1e-05
  %v1929 = vadd.f32 %v1925, 1e-05
  %v1930 = vadd.f32 %v1926, 1e-05
  %v1931 = vrsqrt.pop %v1927
  %v1932 = vrsqrt.pop %v1928
  %v1933 = vrsqrt.pop %v1929
  %v1934 = vrsqrt.pop %v1930
  %v1935 = vmul.f32 %v1903, %v1931
  %v1936 = vmul.f32 %v1904, %v1932
  %v1937 = vmul.f32 %v1905, %v1933
  %v1938 = vmul.f32 %v1906, %v1934
  %v1939 = vld [vmem:[%s3] sm:$0xff]
  %v1940 = vld [vmem:[%s3 + $0x8] sm:$0xff]
  %v1941 = vld [vmem:[%s3 + $0x10] sm:$0xff]
  %v1942 = vld [vmem:[%s3 + $0x18] sm:$0xff]
  %1944 = vset.pattern.permute.xlu0 0
  %1945 = vperm.xlu0 %1944, %v1939
  %v1946 = vpop.permute.xlu0 %1945
  %1949 = vset.pattern.permute.xlu0 0
  %1950 = vperm.xlu0 %1949, %v1940
  %v1951 = vpop.permute.xlu0 %1950
  %1954 = vset.pattern.permute.xlu0 0
  %1955 = vperm.xlu0 %1954, %v1941
  %v1956 = vpop.permute.xlu0 %1955
  %1959 = vset.pattern.permute.xlu0 0
  %1960 = vperm.xlu0 %1959, %v1942
  %v1961 = vpop.permute.xlu0 %1960
  %v1963 = vmul.f32 %v1935, %v1946
  %v1964 = vmul.f32 %v1936, %v1951
  %v1965 = vmul.f32 %v1937, %v1956
  %v1966 = vmul.f32 %v1938, %v1961
  %v1967 = vld [vmem:[%s4] sm:$0xff]
  %v1968 = vld [vmem:[%s4 + $0x8] sm:$0xff]
  %v1969 = vld [vmem:[%s4 + $0x10] sm:$0xff]
  %v1970 = vld [vmem:[%s4 + $0x18] sm:$0xff]
  %1972 = vset.pattern.permute.xlu0 0
  %1973 = vperm.xlu0 %1972, %v1967
  %v1974 = vpop.permute.xlu0 %1973
  %1977 = vset.pattern.permute.xlu0 0
  %1978 = vperm.xlu0 %1977, %v1968
  %v1979 = vpop.permute.xlu0 %1978
  %1982 = vset.pattern.permute.xlu0 0
  %1983 = vperm.xlu0 %1982, %v1969
  %v1984 = vpop.permute.xlu0 %1983
  %1987 = vset.pattern.permute.xlu0 0
  %1988 = vperm.xlu0 %1987, %v1970
  %v1989 = vpop.permute.xlu0 %1988
  %v1991 = vadd.f32 %v1963, %v1974
  %v1992 = vadd.f32 %v1964, %v1979
  %v1993 = vadd.f32 %v1965, %v1984
  %v1994 = vadd.f32 %v1966, %v1989
  %v1995 = vpack.c.bf16 %v1992, %v1991
  %v1996 = vpack.c.bf16 %v1994, %v1993
  %v1999 = vunpack.c.l.b16 %v1995
  %v2000 = vunpack.c.h.b16 %v1995
  %v2001 = vunpack.c.l.b16 %v1996
  %v2002 = vunpack.c.h.b16 %v1996
  %v2003 = vpack.c.b16 %v1999, %v1999
  %v2004 = vpack.c.b16 %v2000, %v2000
  %v2005 = vpack.c.b16 %v2001, %v2001
  %v2006 = vpack.c.b16 %v2002, %v2002
  %vm2011 = vcmask 257024
  %2012 = vst.msk [vmem:[%s5] sm:$0xf] %vm2011, %v2003
  %2013 = vst.msk [vmem:[%s5 + $0x4] sm:$0xf] %vm2011, %v2004
  %2014 = vst.msk [vmem:[%s5 + $0x8] sm:$0xf] %vm2011, %v2005
  %2015 = vst.msk [vmem:[%s5 + $0xc] sm:$0xf] %vm2011, %v2006
  // Predicated region
  $region22: #{unet_generator_forward.16} parent=0 // pred_check
    _
  $region23: #{unet_generator_forward.16} parent=0 // pred_check_branch
    %2017 = sbr.rel (0) target = $region25
  $region24: #{unet_generator_forward.16} parent=0 // pred_region
    _
  $region25: #{unet_generator_forward.16} parent=0 // pred_fallthru
    _
  // Predicated region
  $region26: #{unet_generator_forward.16} parent=0 // pred_check
    _
  $region27: #{unet_generator_forward.16} parent=0 // pred_check_branch
    %2019 = sbr.rel (0) target = $region29
  $region28: #{unet_generator_forward.16} parent=0 // pred_region
    _
  $region29: #{unet_generator_forward.16} parent=0 // pred_fallthru
    _

// kernel: unet_generator_forward.17
$region0: #{unet_generator_forward.17}
  #allocation0 [shape = 'u32[]', space=smem, size = 0x4, offset = 0x4, fixed_abs, tag = 'smem constant byte address 0x4 - core index']
  #allocation1 [shape = 'u32[144,128]{1,0:T(1,128)}', space=vmem, size = 0x12000, scoped, tag = 'internal scratch']
  %s0 = inlined_call_operand.vmem [shape: bf16[16,1024], index: 0, kind: input, shape index: {}]
  %s1 = inlined_call_operand.vmem [shape: bf16[1024,128], index: 1, kind: input, shape index: {}]
  %s2 = inlined_call_operand.vmem [shape: f32[16,1], index: 2, kind: input, shape index: {}]
  %s3 = inlined_call_operand.vmem [shape: f32[16,1], index: 3, kind: input, shape index: {}]
  %s4 = inlined_call_operand.vmem [shape: f32[16,1], index: 4, kind: input, shape index: {}]
  %s5 = inlined_call_operand.vmem [shape: bf16[16,128], index: 5, kind: output, shape index: {}]
  %s6 = sld [smem:[#allocation0]]
  $region30: #{unet_generator_forward.17} parent=0
    _
  %s8 = ssub.s32 1, %s6
  %s9 = scalar_select 0, %s8, %s6
  // Predicated region
  $region2: #{unet_generator_forward.17} parent=0 // pred_check
    _
  $region3: #{unet_generator_forward.17} parent=0 // pred_check_branch
    %11 = sbr.rel (0) target = $region5
  $region4: #{unet_generator_forward.17} parent=0 // pred_region
    _
  $region5: #{unet_generator_forward.17} parent=0 // pred_fallthru
    _
  // Predicated region
  $region6: #{unet_generator_forward.17} parent=0 // pred_check
    _
  $region7: #{unet_generator_forward.17} parent=0 // pred_check_branch
    %13 = sbr.rel (0) target = $region9
  $region8: #{unet_generator_forward.17} parent=0 // pred_region
    _
  $region9: #{unet_generator_forward.17} parent=0 // pred_fallthru
    _
  // Predicated region
  $region10: #{unet_generator_forward.17} parent=0 // pred_check
    _
  $region11: #{unet_generator_forward.17} parent=0 // pred_check_branch
    %15 = sbr.rel (0) target = $region13
  $region12: #{unet_generator_forward.17} parent=0 // pred_region
    _
  $region13: #{unet_generator_forward.17} parent=0 // pred_fallthru
    _
  // Predicated region
  $region14: #{unet_generator_forward.17} parent=0 // pred_check
    _
  $region15: #{unet_generator_forward.17} parent=0 // pred_check_branch
    %17 = sbr.rel (0) target = $region17
  $region16: #{unet_generator_forward.17} parent=0 // pred_region
    _
  $region17: #{unet_generator_forward.17} parent=0 // pred_fallthru
    _
  // Predicated region
  $region18: #{unet_generator_forward.17} parent=0 // pred_check
    _
  $region19: #{unet_generator_forward.17} parent=0 // pred_check_branch
    %19 = sbr.rel (0) target = $region21
  $region20: #{unet_generator_forward.17} parent=0 // pred_region
    _
  $region21: #{unet_generator_forward.17} parent=0 // pred_fallthru
    _
  %v21 = vld [vmem:[%s1] sm:$0xf]
  %v22 = vld [vmem:[%s1 + $0x4] sm:$0xf]
  %v23 = vld [vmem:[%s1 + $0x8] sm:$0xf]
  %v24 = vld [vmem:[%s1 + $0xc] sm:$0xf]
  %v25 = vld [vmem:[%s1 + $0x10] sm:$0xf]
  %v26 = vld [vmem:[%s1 + $0x14] sm:$0xf]
  %v27 = vld [vmem:[%s1 + $0x18] sm:$0xf]
  %v28 = vld [vmem:[%s1 + $0x1c] sm:$0xf]
  %v29 = vld [vmem:[%s1 + $0x20] sm:$0xf]
  %v30 = vld [vmem:[%s1 + $0x24] sm:$0xf]
  %v31 = vld [vmem:[%s1 + $0x28] sm:$0xf]
  %v32 = vld [vmem:[%s1 + $0x2c] sm:$0xf]
  %v33 = vld [vmem:[%s1 + $0x30] sm:$0xf]
  %v34 = vld [vmem:[%s1 + $0x34] sm:$0xf]
  %v35 = vld [vmem:[%s1 + $0x38] sm:$0xf]
  %v36 = vld [vmem:[%s1 + $0x3c] sm:$0xf]
  %v37 = vld [vmem:[%s1 + $0x40] sm:$0xf]
  %v38 = vld [vmem:[%s1 + $0x44] sm:$0xf]
  %v39 = vld [vmem:[%s1 + $0x48] sm:$0xf]
  %v40 = vld [vmem:[%s1 + $0x4c] sm:$0xf]
  %v41 = vld [vmem:[%s1 + $0x50] sm:$0xf]
  %v42 = vld [vmem:[%s1 + $0x54] sm:$0xf]
  %v43 = vld [vmem:[%s1 + $0x58] sm:$0xf]
  %v44 = vld [vmem:[%s1 + $0x5c] sm:$0xf]
  %v45 = vld [vmem:[%s1 + $0x60] sm:$0xf]
  %v46 = vld [vmem:[%s1 + $0x64] sm:$0xf]
  %v47 = vld [vmem:[%s1 + $0x68] sm:$0xf]
  %v48 = vld [vmem:[%s1 + $0x6c] sm:$0xf]
  %v49 = vld [vmem:[%s1 + $0x70] sm:$0xf]
  %v50 = vld [vmem:[%s1 + $0x74] sm:$0xf]
  %v51 = vld [vmem:[%s1 + $0x78] sm:$0xf]
  %v52 = vld [vmem:[%s1 + $0x7c] sm:$0xf]
  %v53 = vld [vmem:[%s1 + $0x80] sm:$0xf]
  %v54 = vld [vmem:[%s1 + $0x84] sm:$0xf]
  %v55 = vld [vmem:[%s1 + $0x88] sm:$0xf]
  %v56 = vld [vmem:[%s1 + $0x8c] sm:$0xf]
  %v57 = vld [vmem:[%s1 + $0x90] sm:$0xf]
  %v58 = vld [vmem:[%s1 + $0x94] sm:$0xf]
  %v59 = vld [vmem:[%s1 + $0x98] sm:$0xf]
  %v60 = vld [vmem:[%s1 + $0x9c] sm:$0xf]
  %v61 = vld [vmem:[%s1 + $0xa0] sm:$0xf]
  %v62 = vld [vmem:[%s1 + $0xa4] sm:$0xf]
  %v63 = vld [vmem:[%s1 + $0xa8] sm:$0xf]
  %v64 = vld [vmem:[%s1 + $0xac] sm:$0xf]
  %v65 = vld [vmem:[%s1 + $0xb0] sm:$0xf]
  %v66 = vld [vmem:[%s1 + $0xb4] sm:$0xf]
  %v67 = vld [vmem:[%s1 + $0xb8] sm:$0xf]
  %v68 = vld [vmem:[%s1 + $0xbc] sm:$0xf]
  %v69 = vld [vmem:[%s1 + $0xc0] sm:$0xf]
  %v70 = vld [vmem:[%s1 + $0xc4] sm:$0xf]
  %v71 = vld [vmem:[%s1 + $0xc8] sm:$0xf]
  %v72 = vld [vmem:[%s1 + $0xcc] sm:$0xf]
  %v73 = vld [vmem:[%s1 + $0xd0] sm:$0xf]
  %v74 = vld [vmem:[%s1 + $0xd4] sm:$0xf]
  %v75 = vld [vmem:[%s1 + $0xd8] sm:$0xf]
  %v76 = vld [vmem:[%s1 + $0xdc] sm:$0xf]
  %v77 = vld [vmem:[%s1 + $0xe0] sm:$0xf]
  %v78 = vld [vmem:[%s1 + $0xe4] sm:$0xf]
  %v79 = vld [vmem:[%s1 + $0xe8] sm:$0xf]
  %v80 = vld [vmem:[%s1 + $0xec] sm:$0xf]
  %v81 = vld [vmem:[%s1 + $0xf0] sm:$0xf]
  %v82 = vld [vmem:[%s1 + $0xf4] sm:$0xf]
  %v83 = vld [vmem:[%s1 + $0xf8] sm:$0xf]
  %v84 = vld [vmem:[%s1 + $0xfc] sm:$0xf]
  %v85 = vld [vmem:[%s1 + $0x100] sm:$0xf]
  %v86 = vld [vmem:[%s1 + $0x104] sm:$0xf]
  %v87 = vld [vmem:[%s1 + $0x108] sm:$0xf]
  %v88 = vld [vmem:[%s1 + $0x10c] sm:$0xf]
  %v89 = vld [vmem:[%s1 + $0x110] sm:$0xf]
  %v90 = vld [vmem:[%s1 + $0x114] sm:$0xf]
  %v91 = vld [vmem:[%s1 + $0x118] sm:$0xf]
  %v92 = vld [vmem:[%s1 + $0x11c] sm:$0xf]
  %v93 = vld [vmem:[%s1 + $0x120] sm:$0xf]
  %v94 = vld [vmem:[%s1 + $0x124] sm:$0xf]
  %v95 = vld [vmem:[%s1 + $0x128] sm:$0xf]
  %v96 = vld [vmem:[%s1 + $0x12c] sm:$0xf]
  %v97 = vld [vmem:[%s1 + $0x130] sm:$0xf]
  %v98 = vld [vmem:[%s1 + $0x134] sm:$0xf]
  %v99 = vld [vmem:[%s1 + $0x138] sm:$0xf]
  %v100 = vld [vmem:[%s1 + $0x13c] sm:$0xf]
  %v101 = vld [vmem:[%s1 + $0x140] sm:$0xf]
  %v102 = vld [vmem:[%s1 + $0x144] sm:$0xf]
  %v103 = vld [vmem:[%s1 + $0x148] sm:$0xf]
  %v104 = vld [vmem:[%s1 + $0x14c] sm:$0xf]
  %v105 = vld [vmem:[%s1 + $0x150] sm:$0xf]
  %v106 = vld [vmem:[%s1 + $0x154] sm:$0xf]
  %v107 = vld [vmem:[%s1 + $0x158] sm:$0xf]
  %v108 = vld [vmem:[%s1 + $0x15c] sm:$0xf]
  %v109 = vld [vmem:[%s1 + $0x160] sm:$0xf]
  %v110 = vld [vmem:[%s1 + $0x164] sm:$0xf]
  %v111 = vld [vmem:[%s1 + $0x168] sm:$0xf]
  %v112 = vld [vmem:[%s1 + $0x16c] sm:$0xf]
  %v113 = vld [vmem:[%s1 + $0x170] sm:$0xf]
  %v114 = vld [vmem:[%s1 + $0x174] sm:$0xf]
  %v115 = vld [vmem:[%s1 + $0x178] sm:$0xf]
  %v116 = vld [vmem:[%s1 + $0x17c] sm:$0xf]
  %v117 = vld [vmem:[%s1 + $0x180] sm:$0xf]
  %v118 = vld [vmem:[%s1 + $0x184] sm:$0xf]
  %v119 = vld [vmem:[%s1 + $0x188] sm:$0xf]
  %v120 = vld [vmem:[%s1 + $0x18c] sm:$0xf]
  %v121 = vld [vmem:[%s1 + $0x190] sm:$0xf]
  %v122 = vld [vmem:[%s1 + $0x194] sm:$0xf]
  %v123 = vld [vmem:[%s1 + $0x198] sm:$0xf]
  %v124 = vld [vmem:[%s1 + $0x19c] sm:$0xf]
  %v125 = vld [vmem:[%s1 + $0x1a0] sm:$0xf]
  %v126 = vld [vmem:[%s1 + $0x1a4] sm:$0xf]
  %v127 = vld [vmem:[%s1 + $0x1a8] sm:$0xf]
  %v128 = vld [vmem:[%s1 + $0x1ac] sm:$0xf]
  %v129 = vld [vmem:[%s1 + $0x1b0] sm:$0xf]
  %v130 = vld [vmem:[%s1 + $0x1b4] sm:$0xf]
  %v131 = vld [vmem:[%s1 + $0x1b8] sm:$0xf]
  %v132 = vld [vmem:[%s1 + $0x1bc] sm:$0xf]
  %v133 = vld [vmem:[%s1 + $0x1c0] sm:$0xf]
  %v134 = vld [vmem:[%s1 + $0x1c4] sm:$0xf]
  %v135 = vld [vmem:[%s1 + $0x1c8] sm:$0xf]
  %v136 = vld [vmem:[%s1 + $0x1cc] sm:$0xf]
  %v137 = vld [vmem:[%s1 + $0x1d0] sm:$0xf]
  %v138 = vld [vmem:[%s1 + $0x1d4] sm:$0xf]
  %v139 = vld [vmem:[%s1 + $0x1d8] sm:$0xf]
  %v140 = vld [vmem:[%s1 + $0x1dc] sm:$0xf]
  %v141 = vld [vmem:[%s1 + $0x1e0] sm:$0xf]
  %v142 = vld [vmem:[%s1 + $0x1e4] sm:$0xf]
  %v143 = vld [vmem:[%s1 + $0x1e8] sm:$0xf]
  %v144 = vld [vmem:[%s1 + $0x1ec] sm:$0xf]
  %v145 = vld [vmem:[%s1 + $0x1f0] sm:$0xf]
  %v146 = vld [vmem:[%s1 + $0x1f4] sm:$0xf]
  %v147 = vld [vmem:[%s1 + $0x1f8] sm:$0xf]
  %v148 = vld [vmem:[%s1 + $0x1fc] sm:$0xf]
  %v149 = vmax.bf16 %v21, 0
  %v150 = vmax.bf16 %v22, 0
  %v151 = vmax.bf16 %v23, 0
  %v152 = vmax.bf16 %v24, 0
  %v153 = vmax.bf16 %v25, 0
  %v154 = vmax.bf16 %v26, 0
  %v155 = vmax.bf16 %v27, 0
  %v156 = vmax.bf16 %v28, 0
  %v157 = vmax.bf16 %v29, 0
  %v158 = vmax.bf16 %v30, 0
  %v159 = vmax.bf16 %v31, 0
  %v160 = vmax.bf16 %v32, 0
  %v161 = vmax.bf16 %v33, 0
  %v162 = vmax.bf16 %v34, 0
  %v163 = vmax.bf16 %v35, 0
  %v164 = vmax.bf16 %v36, 0
  %v165 = vmax.bf16 %v37, 0
  %v166 = vmax.bf16 %v38, 0
  %v167 = vmax.bf16 %v39, 0
  %v168 = vmax.bf16 %v40, 0
  %v169 = vmax.bf16 %v41, 0
  %v170 = vmax.bf16 %v42, 0
  %v171 = vmax.bf16 %v43, 0
  %v172 = vmax.bf16 %v44, 0
  %v173 = vmax.bf16 %v45, 0
  %v174 = vmax.bf16 %v46, 0
  %v175 = vmax.bf16 %v47, 0
  %v176 = vmax.bf16 %v48, 0
  %v177 = vmax.bf16 %v49, 0
  %v178 = vmax.bf16 %v50, 0
  %v179 = vmax.bf16 %v51, 0
  %v180 = vmax.bf16 %v52, 0
  %v181 = vmax.bf16 %v53, 0
  %v182 = vmax.bf16 %v54, 0
  %v183 = vmax.bf16 %v55, 0
  %v184 = vmax.bf16 %v56, 0
  %v185 = vmax.bf16 %v57, 0
  %v186 = vmax.bf16 %v58, 0
  %v187 = vmax.bf16 %v59, 0
  %v188 = vmax.bf16 %v60, 0
  %v189 = vmax.bf16 %v61, 0
  %v190 = vmax.bf16 %v62, 0
  %v191 = vmax.bf16 %v63, 0
  %v192 = vmax.bf16 %v64, 0
  %v193 = vmax.bf16 %v65, 0
  %v194 = vmax.bf16 %v66, 0
  %v195 = vmax.bf16 %v67, 0
  %v196 = vmax.bf16 %v68, 0
  %v197 = vmax.bf16 %v69, 0
  %v198 = vmax.bf16 %v70, 0
  %v199 = vmax.bf16 %v71, 0
  %v200 = vmax.bf16 %v72, 0
  %v201 = vmax.bf16 %v73, 0
  %v202 = vmax.bf16 %v74, 0
  %v203 = vmax.bf16 %v75, 0
  %v204 = vmax.bf16 %v76, 0
  %v205 = vmax.bf16 %v77, 0
  %v206 = vmax.bf16 %v78, 0
  %v207 = vmax.bf16 %v79, 0
  %v208 = vmax.bf16 %v80, 0
  %v209 = vmax.bf16 %v81, 0
  %v210 = vmax.bf16 %v82, 0
  %v211 = vmax.bf16 %v83, 0
  %v212 = vmax.bf16 %v84, 0
  %v213 = vmax.bf16 %v85, 0
  %v214 = vmax.bf16 %v86, 0
  %v215 = vmax.bf16 %v87, 0
  %v216 = vmax.bf16 %v88, 0
  %v217 = vmax.bf16 %v89, 0
  %v218 = vmax.bf16 %v90, 0
  %v219 = vmax.bf16 %v91, 0
  %v220 = vmax.bf16 %v92, 0
  %v221 = vmax.bf16 %v93, 0
  %v222 = vmax.bf16 %v94, 0
  %v223 = vmax.bf16 %v95, 0
  %v224 = vmax.bf16 %v96, 0
  %v225 = vmax.bf16 %v97, 0
  %v226 = vmax.bf16 %v98, 0
  %v227 = vmax.bf16 %v99, 0
  %v228 = vmax.bf16 %v100, 0
  %v229 = vmax.bf16 %v101, 0
  %v230 = vmax.bf16 %v102, 0
  %v231 = vmax.bf16 %v103, 0
  %v232 = vmax.bf16 %v104, 0
  %v233 = vmax.bf16 %v105, 0
  %v234 = vmax.bf16 %v106, 0
  %v235 = vmax.bf16 %v107, 0
  %v236 = vmax.bf16 %v108, 0
  %v237 = vmax.bf16 %v109, 0
  %v238 = vmax.bf16 %v110, 0
  %v239 = vmax.bf16 %v111, 0
  %v240 = vmax.bf16 %v112, 0
  %v241 = vmax.bf16 %v113, 0
  %v242 = vmax.bf16 %v114, 0
  %v243 = vmax.bf16 %v115, 0
  %v244 = vmax.bf16 %v116, 0
  %v245 = vmax.bf16 %v117, 0
  %v246 = vmax.bf16 %v118, 0
  %v247 = vmax.bf16 %v119, 0
  %v248 = vmax.bf16 %v120, 0
  %v249 = vmax.bf16 %v121, 0
  %v250 = vmax.bf16 %v122, 0
  %v251 = vmax.bf16 %v123, 0
  %v252 = vmax.bf16 %v124, 0
  %v253 = vmax.bf16 %v125, 0
  %v254 = vmax.bf16 %v126, 0
  %v255 = vmax.bf16 %v127, 0
  %v256 = vmax.bf16 %v128, 0
  %v257 = vmax.bf16 %v129, 0
  %v258 = vmax.bf16 %v130, 0
  %v259 = vmax.bf16 %v131, 0
  %v260 = vmax.bf16 %v132, 0
  %v261 = vmax.bf16 %v133, 0
  %v262 = vmax.bf16 %v134, 0
  %v263 = vmax.bf16 %v135, 0
  %v264 = vmax.bf16 %v136, 0
  %v265 = vmax.bf16 %v137, 0
  %v266 = vmax.bf16 %v138, 0
  %v267 = vmax.bf16 %v139, 0
  %v268 = vmax.bf16 %v140, 0
  %v269 = vmax.bf16 %v141, 0
  %v270 = vmax.bf16 %v142, 0
  %v271 = vmax.bf16 %v143, 0
  %v272 = vmax.bf16 %v144, 0
  %v273 = vmax.bf16 %v145, 0
  %v274 = vmax.bf16 %v146, 0
  %v275 = vmax.bf16 %v147, 0
  %v276 = vmax.bf16 %v148, 0
  %v277 = vld [vmem:[%s0] sm:$0xff]
  %v278 = vld [vmem:[%s0 + $0x8] sm:$0xff]
  %v279 = vld [vmem:[%s0 + $0x10] sm:$0xff]
  %v280 = vld [vmem:[%s0 + $0x18] sm:$0xff]
  %v281 = vld [vmem:[%s0 + $0x20] sm:$0xff]
  %v282 = vld [vmem:[%s0 + $0x28] sm:$0xff]
  %v283 = vld [vmem:[%s0 + $0x30] sm:$0xff]
  %v284 = vld [vmem:[%s0 + $0x38] sm:$0xff]
  %v293 = vunpack.c.l.b16 %v277
  %v294 = vunpack.c.h.b16 %v277
  %v295 = vunpack.c.l.b16 %v278
  %v296 = vunpack.c.h.b16 %v278
  %v297 = vunpack.c.l.b16 %v279
  %v298 = vunpack.c.h.b16 %v279
  %v299 = vunpack.c.l.b16 %v280
  %v300 = vunpack.c.h.b16 %v280
  %v301 = vunpack.c.l.b16 %v281
  %v302 = vunpack.c.h.b16 %v281
  %v303 = vunpack.c.l.b16 %v282
  %v304 = vunpack.c.h.b16 %v282
  %v305 = vunpack.c.l.b16 %v283
  %v306 = vunpack.c.h.b16 %v283
  %v307 = vunpack.c.l.b16 %v284
  %v308 = vunpack.c.h.b16 %v284
  %v309 = vpack.c.b16 %v301, %v293
  %v310 = vpack.c.b16 %v302, %v294
  %v311 = vpack.c.b16 %v303, %v295
  %v312 = vpack.c.b16 %v304, %v296
  %v313 = vpack.c.b16 %v305, %v297
  %v314 = vpack.c.b16 %v306, %v298
  %v315 = vpack.c.b16 %v307, %v299
  %v316 = vpack.c.b16 %v308, %v300
  %v453 = vunpack.c.l.b16 %v149
  %v454 = vunpack.c.l.b16 %v150
  %v455 = vunpack.c.l.b16 %v151
  %v456 = vunpack.c.l.b16 %v152
  %v457 = vunpack.c.l.b16 %v153
  %v458 = vunpack.c.l.b16 %v154
  %v459 = vunpack.c.l.b16 %v155
  %v460 = vunpack.c.l.b16 %v156
  %v461 = vunpack.c.l.b16 %v157
  %v462 = vunpack.c.l.b16 %v158
  %v463 = vunpack.c.l.b16 %v159
  %v464 = vunpack.c.l.b16 %v160
  %v465 = vunpack.c.l.b16 %v161
  %v466 = vunpack.c.l.b16 %v162
  %v467 = vunpack.c.l.b16 %v163
  %v468 = vunpack.c.l.b16 %v164
  %v469 = vunpack.c.l.b16 %v165
  %v470 = vunpack.c.l.b16 %v166
  %v471 = vunpack.c.l.b16 %v167
  %v472 = vunpack.c.l.b16 %v168
  %v473 = vunpack.c.l.b16 %v169
  %v474 = vunpack.c.l.b16 %v170
  %v475 = vunpack.c.l.b16 %v171
  %v476 = vunpack.c.l.b16 %v172
  %v477 = vunpack.c.l.b16 %v173
  %v478 = vunpack.c.l.b16 %v174
  %v479 = vunpack.c.l.b16 %v175
  %v480 = vunpack.c.l.b16 %v176
  %v481 = vunpack.c.l.b16 %v177
  %v482 = vunpack.c.l.b16 %v178
  %v483 = vunpack.c.l.b16 %v179
  %v484 = vunpack.c.l.b16 %v180
  %v485 = vunpack.c.l.b16 %v181
  %v486 = vunpack.c.l.b16 %v182
  %v487 = vunpack.c.l.b16 %v183
  %v488 = vunpack.c.l.b16 %v184
  %v489 = vunpack.c.l.b16 %v185
  %v490 = vunpack.c.l.b16 %v186
  %v491 = vunpack.c.l.b16 %v187
  %v492 = vunpack.c.l.b16 %v188
  %v493 = vunpack.c.l.b16 %v189
  %v494 = vunpack.c.l.b16 %v190
  %v495 = vunpack.c.l.b16 %v191
  %v496 = vunpack.c.l.b16 %v192
  %v497 = vunpack.c.l.b16 %v193
  %v498 = vunpack.c.l.b16 %v194
  %v499 = vunpack.c.l.b16 %v195
  %v500 = vunpack.c.l.b16 %v196
  %v501 = vunpack.c.l.b16 %v197
  %v502 = vunpack.c.l.b16 %v198
  %v503 = vunpack.c.l.b16 %v199
  %v504 = vunpack.c.l.b16 %v200
  %v505 = vunpack.c.l.b16 %v201
  %v506 = vunpack.c.l.b16 %v202
  %v507 = vunpack.c.l.b16 %v203
  %v508 = vunpack.c.l.b16 %v204
  %v509 = vunpack.c.l.b16 %v205
  %v510 = vunpack.c.l.b16 %v206
  %v511 = vunpack.c.l.b16 %v207
  %v512 = vunpack.c.l.b16 %v208
  %v513 = vunpack.c.l.b16 %v209
  %v514 = vunpack.c.l.b16 %v210
  %v515 = vunpack.c.l.b16 %v211
  %v516 = vunpack.c.l.b16 %v212
  %v517 = vunpack.c.l.b16 %v213
  %v518 = vunpack.c.l.b16 %v214
  %v519 = vunpack.c.l.b16 %v215
  %v520 = vunpack.c.l.b16 %v216
  %v521 = vunpack.c.l.b16 %v217
  %v522 = vunpack.c.l.b16 %v218
  %v523 = vunpack.c.l.b16 %v219
  %v524 = vunpack.c.l.b16 %v220
  %v525 = vunpack.c.l.b16 %v221
  %v526 = vunpack.c.l.b16 %v222
  %v527 = vunpack.c.l.b16 %v223
  %v528 = vunpack.c.l.b16 %v224
  %v529 = vunpack.c.l.b16 %v225
  %v530 = vunpack.c.l.b16 %v226
  %v531 = vunpack.c.l.b16 %v227
  %v532 = vunpack.c.l.b16 %v228
  %v533 = vunpack.c.l.b16 %v229
  %v534 = vunpack.c.l.b16 %v230
  %v535 = vunpack.c.l.b16 %v231
  %v536 = vunpack.c.l.b16 %v232
  %v537 = vunpack.c.l.b16 %v233
  %v538 = vunpack.c.l.b16 %v234
  %v539 = vunpack.c.l.b16 %v235
  %v540 = vunpack.c.l.b16 %v236
  %v541 = vunpack.c.l.b16 %v237
  %v542 = vunpack.c.l.b16 %v238
  %v543 = vunpack.c.l.b16 %v239
  %v544 = vunpack.c.l.b16 %v240
  %v545 = vunpack.c.l.b16 %v241
  %v546 = vunpack.c.l.b16 %v242
  %v547 = vunpack.c.l.b16 %v243
  %v548 = vunpack.c.l.b16 %v244
  %v549 = vunpack.c.l.b16 %v245
  %v550 = vunpack.c.l.b16 %v246
  %v551 = vunpack.c.l.b16 %v247
  %v552 = vunpack.c.l.b16 %v248
  %v553 = vunpack.c.l.b16 %v249
  %v554 = vunpack.c.l.b16 %v250
  %v555 = vunpack.c.l.b16 %v251
  %v556 = vunpack.c.l.b16 %v252
  %v557 = vunpack.c.l.b16 %v253
  %v558 = vunpack.c.l.b16 %v254
  %v559 = vunpack.c.l.b16 %v255
  %v560 = vunpack.c.l.b16 %v256
  %v561 = vunpack.c.l.b16 %v257
  %v562 = vunpack.c.l.b16 %v258
  %v563 = vunpack.c.l.b16 %v259
  %v564 = vunpack.c.l.b16 %v260
  %v565 = vunpack.c.l.b16 %v261
  %v566 = vunpack.c.l.b16 %v262
  %v567 = vunpack.c.l.b16 %v263
  %v568 = vunpack.c.l.b16 %v264
  %v569 = vunpack.c.l.b16 %v265
  %v570 = vunpack.c.l.b16 %v266
  %v571 = vunpack.c.l.b16 %v267
  %v572 = vunpack.c.l.b16 %v268
  %v573 = vunpack.c.l.b16 %v269
  %v574 = vunpack.c.l.b16 %v270
  %v575 = vunpack.c.l.b16 %v271
  %v576 = vunpack.c.l.b16 %v272
  %v577 = vunpack.c.l.b16 %v273
  %v578 = vunpack.c.l.b16 %v274
  %v579 = vunpack.c.l.b16 %v275
  %v580 = vunpack.c.l.b16 %v276
  %v581 = vpack.c.b16 %v454, %v453
  %v582 = vpack.c.b16 %v456, %v455
  %v583 = vpack.c.b16 %v458, %v457
  %v584 = vpack.c.b16 %v460, %v459
  %v585 = vpack.c.b16 %v462, %v461
  %v586 = vpack.c.b16 %v464, %v463
  %v587 = vpack.c.b16 %v466, %v465
  %v588 = vpack.c.b16 %v468, %v467
  %v589 = vpack.c.b16 %v470, %v469
  %v590 = vpack.c.b16 %v472, %v471
  %v591 = vpack.c.b16 %v474, %v473
  %v592 = vpack.c.b16 %v476, %v475
  %v593 = vpack.c.b16 %v478, %v477
  %v594 = vpack.c.b16 %v480, %v479
  %v595 = vpack.c.b16 %v482, %v481
  %v596 = vpack.c.b16 %v484, %v483
  %v597 = vpack.c.b16 %v486, %v485
  %v598 = vpack.c.b16 %v488, %v487
  %v599 = vpack.c.b16 %v490, %v489
  %v600 = vpack.c.b16 %v492, %v491
  %v601 = vpack.c.b16 %v494, %v493
  %v602 = vpack.c.b16 %v496, %v495
  %v603 = vpack.c.b16 %v498, %v497
  %v604 = vpack.c.b16 %v500, %v499
  %v605 = vpack.c.b16 %v502, %v501
  %v606 = vpack.c.b16 %v504, %v503
  %v607 = vpack.c.b16 %v506, %v505
  %v608 = vpack.c.b16 %v508, %v507
  %v609 = vpack.c.b16 %v510, %v509
  %v610 = vpack.c.b16 %v512, %v511
  %v611 = vpack.c.b16 %v514, %v513
  %v612 = vpack.c.b16 %v516, %v515
  %v613 = vpack.c.b16 %v518, %v517
  %v614 = vpack.c.b16 %v520, %v519
  %v615 = vpack.c.b16 %v522, %v521
  %v616 = vpack.c.b16 %v524, %v523
  %v617 = vpack.c.b16 %v526, %v525
  %v618 = vpack.c.b16 %v528, %v527
  %v619 = vpack.c.b16 %v530, %v529
  %v620 = vpack.c.b16 %v532, %v531
  %v621 = vpack.c.b16 %v534, %v533
  %v622 = vpack.c.b16 %v536, %v535
  %v623 = vpack.c.b16 %v538, %v537
  %v624 = vpack.c.b16 %v540, %v539
  %v625 = vpack.c.b16 %v542, %v541
  %v626 = vpack.c.b16 %v544, %v543
  %v627 = vpack.c.b16 %v546, %v545
  %v628 = vpack.c.b16 %v548, %v547
  %v629 = vpack.c.b16 %v550, %v549
  %v630 = vpack.c.b16 %v552, %v551
  %v631 = vpack.c.b16 %v554, %v553
  %v632 = vpack.c.b16 %v556, %v555
  %v633 = vpack.c.b16 %v558, %v557
  %v634 = vpack.c.b16 %v560, %v559
  %v635 = vpack.c.b16 %v562, %v561
  %v636 = vpack.c.b16 %v564, %v563
  %v637 = vpack.c.b16 %v566, %v565
  %v638 = vpack.c.b16 %v568, %v567
  %v639 = vpack.c.b16 %v570, %v569
  %v640 = vpack.c.b16 %v572, %v571
  %v641 = vpack.c.b16 %v574, %v573
  %v642 = vpack.c.b16 %v576, %v575
  %v643 = vpack.c.b16 %v578, %v577
  %v644 = vpack.c.b16 %v580, %v579
  %709 = vmatprep.subr.bf16.mxu0 0
  %710 = vmatpush1.bf16.msra.mxu0 %v581
  %711 = vmatprep.subr.bf16.mxu0 0
  %712 = vmatpush1.bf16.msra.mxu0 %v582
  %713 = vmatprep.subr.bf16.mxu0 0
  %714 = vmatpush1.bf16.msra.mxu0 %v583
  %715 = vmatprep.subr.bf16.mxu0 0
  %716 = vmatpush1.bf16.msra.mxu0 %v584
  %717 = vmatprep.subr.bf16.mxu0 0
  %718 = vmatpush1.bf16.msra.mxu0 %v585
  %719 = vmatprep.subr.bf16.mxu0 0
  %720 = vmatpush1.bf16.msra.mxu0 %v586
  %721 = vmatprep.subr.bf16.mxu0 0
  %722 = vmatpush1.bf16.msra.mxu0 %v587
  %723 = vmatprep.subr.bf16.mxu0 0
  %724 = vmatpush1.bf16.msra.mxu0 %v588
  %725 = vmatprep.subr.bf16.mxu0 0
  %726 = vmatpush1.bf16.msra.mxu0 %v589
  %727 = vmatprep.subr.bf16.mxu0 0
  %728 = vmatpush1.bf16.msra.mxu0 %v590
  %729 = vmatprep.subr.bf16.mxu0 0
  %730 = vmatpush1.bf16.msra.mxu0 %v591
  %731 = vmatprep.subr.bf16.mxu0 0
  %732 = vmatpush1.bf16.msra.mxu0 %v592
  %733 = vmatprep.subr.bf16.mxu0 0
  %734 = vmatpush1.bf16.msra.mxu0 %v593
  %735 = vmatprep.subr.bf16.mxu0 0
  %736 = vmatpush1.bf16.msra.mxu0 %v594
  %737 = vmatprep.subr.bf16.mxu0 0
  %738 = vmatpush1.bf16.msra.mxu0 %v595
  %739 = vmatprep.subr.bf16.mxu0 0
  %740 = vmatpush1.bf16.msra.mxu0 %v596
  %741 = vmatprep.mubr.bf16.mxu0 %v310
  %742 = vmatmul.mubr.bf16.gmra.mrb[0].mxu0 %v309
  %v743 = vpop.f32.mrb[0].mxu0
  %v744 = vadd.f32 0.0, %v743
  %v745 = vpop.f32.mrb[0].mxu0
  %v746 = vpop.f32.mrb[0].mxu0
  %v747 = vadd.f32 0.0, %v746
  %v748 = vpop.f32.mrb[0].mxu0
  %749 = vdwg.mxu0
  %750 = vmatprep.subr.bf16.mxu0 0
  %751 = vmatpush1.bf16.msra.mxu0 %v597
  %752 = vmatprep.subr.bf16.mxu0 0
  %753 = vmatpush1.bf16.msra.mxu0 %v598
  %754 = vmatprep.subr.bf16.mxu0 0
  %755 = vmatpush1.bf16.msra.mxu0 %v599
  %756 = vmatprep.subr.bf16.mxu0 0
  %757 = vmatpush1.bf16.msra.mxu0 %v600
  %758 = vmatprep.subr.bf16.mxu0 0
  %759 = vmatpush1.bf16.msra.mxu0 %v601
  %760 = vmatprep.subr.bf16.mxu0 0
  %761 = vmatpush1.bf16.msra.mxu0 %v602
  %762 = vmatprep.subr.bf16.mxu0 0
  %763 = vmatpush1.bf16.msra.mxu0 %v603
  %764 = vmatprep.subr.bf16.mxu0 0
  %765 = vmatpush1.bf16.msra.mxu0 %v604
  %766 = vmatprep.subr.bf16.mxu0 0
  %767 = vmatpush1.bf16.msra.mxu0 %v605
  %768 = vmatprep.subr.bf16.mxu0 0
  %769 = vmatpush1.bf16.msra.mxu0 %v606
  %770 = vmatprep.subr.bf16.mxu0 0
  %771 = vmatpush1.bf16.msra.mxu0 %v607
  %772 = vmatprep.subr.bf16.mxu0 0
  %773 = vmatpush1.bf16.msra.mxu0 %v608
  %774 = vmatprep.subr.bf16.mxu0 0
  %775 = vmatpush1.bf16.msra.mxu0 %v609
  %776 = vmatprep.subr.bf16.mxu0 0
  %777 = vmatpush1.bf16.msra.mxu0 %v610
  %778 = vmatprep.subr.bf16.mxu0 0
  %779 = vmatpush1.bf16.msra.mxu0 %v611
  %780 = vmatprep.subr.bf16.mxu0 0
  %781 = vmatpush1.bf16.msra.mxu0 %v612
  %782 = vmatprep.mubr.bf16.mxu0 %v312
  %783 = vmatmul.mubr.bf16.gmra.mrb[0].mxu0 %v311
  %v784 = vpop.f32.mrb[0].mxu0
  %v785 = vadd.f32 %v744, %v784
  %v786 = vpop.f32.mrb[0].mxu0
  %v787 = vpop.f32.mrb[0].mxu0
  %v788 = vadd.f32 %v747, %v787
  %v789 = vpop.f32.mrb[0].mxu0
  %790 = vdwg.mxu0
  %791 = vmatprep.subr.bf16.mxu0 0
  %792 = vmatpush1.bf16.msra.mxu0 %v613
  %793 = vmatprep.subr.bf16.mxu0 0
  %794 = vmatpush1.bf16.msra.mxu0 %v614
  %795 = vmatprep.subr.bf16.mxu0 0
  %796 = vmatpush1.bf16.msra.mxu0 %v615
  %797 = vmatprep.subr.bf16.mxu0 0
  %798 = vmatpush1.bf16.msra.mxu0 %v616
  %799 = vmatprep.subr.bf16.mxu0 0
  %800 = vmatpush1.bf16.msra.mxu0 %v617
  %801 = vmatprep.subr.bf16.mxu0 0
  %802 = vmatpush1.bf16.msra.mxu0 %v618
  %803 = vmatprep.subr.bf16.mxu0 0
  %804 = vmatpush1.bf16.msra.mxu0 %v619
  %805 = vmatprep.subr.bf16.mxu0 0
  %806 = vmatpush1.bf16.msra.mxu0 %v620
  %807 = vmatprep.subr.bf16.mxu0 0
  %808 = vmatpush1.bf16.msra.mxu0 %v621
  %809 = vmatprep.subr.bf16.mxu0 0
  %810 = vmatpush1.bf16.msra.mxu0 %v622
  %811 = vmatprep.subr.bf16.mxu0 0
  %812 = vmatpush1.bf16.msra.mxu0 %v623
  %813 = vmatprep.subr.bf16.mxu0 0
  %814 = vmatpush1.bf16.msra.mxu0 %v624
  %815 = vmatprep.subr.bf16.mxu0 0
  %816 = vmatpush1.bf16.msra.mxu0 %v625
  %817 = vmatprep.subr.bf16.mxu0 0
  %818 = vmatpush1.bf16.msra.mxu0 %v626
  %819 = vmatprep.subr.bf16.mxu0 0
  %820 = vmatpush1.bf16.msra.mxu0 %v627
  %821 = vmatprep.subr.bf16.mxu0 0
  %822 = vmatpush1.bf16.msra.mxu0 %v628
  %823 = vmatprep.mubr.bf16.mxu0 %v314
  %824 = vmatmul.mubr.bf16.gmra.mrb[0].mxu0 %v313
  %v825 = vpop.f32.mrb[0].mxu0
  %v826 = vadd.f32 %v785, %v825
  %v827 = vpop.f32.mrb[0].mxu0
  %v828 = vpop.f32.mrb[0].mxu0
  %v829 = vadd.f32 %v788, %v828
  %v830 = vpop.f32.mrb[0].mxu0
  %831 = vdwg.mxu0
  %832 = vmatprep.subr.bf16.mxu0 0
  %833 = vmatpush1.bf16.msra.mxu0 %v629
  %834 = vmatprep.subr.bf16.mxu0 0
  %835 = vmatpush1.bf16.msra.mxu0 %v630
  %836 = vmatprep.subr.bf16.mxu0 0
  %837 = vmatpush1.bf16.msra.mxu0 %v631
  %838 = vmatprep.subr.bf16.mxu0 0
  %839 = vmatpush1.bf16.msra.mxu0 %v632
  %840 = vmatprep.subr.bf16.mxu0 0
  %841 = vmatpush1.bf16.msra.mxu0 %v633
  %842 = vmatprep.subr.bf16.mxu0 0
  %843 = vmatpush1.bf16.msra.mxu0 %v634
  %844 = vmatprep.subr.bf16.mxu0 0
  %845 = vmatpush1.bf16.msra.mxu0 %v635
  %846 = vmatprep.subr.bf16.mxu0 0
  %847 = vmatpush1.bf16.msra.mxu0 %v636
  %848 = vmatprep.subr.bf16.mxu0 0
  %849 = vmatpush1.bf16.msra.mxu0 %v637
  %850 = vmatprep.subr.bf16.mxu0 0
  %851 = vmatpush1.bf16.msra.mxu0 %v638
  %852 = vmatprep.subr.bf16.mxu0 0
  %853 = vmatpush1.bf16.msra.mxu0 %v639
  %854 = vmatprep.subr.bf16.mxu0 0
  %855 = vmatpush1.bf16.msra.mxu0 %v640
  %856 = vmatprep.subr.bf16.mxu0 0
  %857 = vmatpush1.bf16.msra.mxu0 %v641
  %858 = vmatprep.subr.bf16.mxu0 0
  %859 = vmatpush1.bf16.msra.mxu0 %v642
  %860 = vmatprep.subr.bf16.mxu0 0
  %861 = vmatpush1.bf16.msra.mxu0 %v643
  %862 = vmatprep.subr.bf16.mxu0 0
  %863 = vmatpush1.bf16.msra.mxu0 %v644
  %864 = vmatprep.mubr.bf16.mxu0 %v316
  %865 = vmatmul.mubr.bf16.gmra.mrb[0].mxu0 %v315
  %v866 = vpop.f32.mrb[0].mxu0
  %v867 = vadd.f32 %v826, %v866
  %v868 = vpop.f32.mrb[0].mxu0
  %v869 = vpop.f32.mrb[0].mxu0
  %v870 = vadd.f32 %v829, %v869
  %v871 = vpop.f32.mrb[0].mxu0
  %872 = vdwg.mxu0
  %873 = vadd.xlane.f32.xlu0 %v867
  %v874 = vpop.xlane.xlu0 %873
  %875 = vadd.xlane.f32.xlu0 %v870
  %v876 = vpop.xlane.xlu0 %875
  %v877 = vrcp.pop 128.0
  %v878 = vmul.f32 %v874, %v877
  %v879 = vmul.f32 %v876, %v877
  %v880 = vsub.f32 %v867, %v878
  %v881 = vsub.f32 %v870, %v879
  %v882 = vmul.f32 %v880, %v880
  %v883 = vmul.f32 %v881, %v881
  %884 = vadd.xlane.f32.xlu0 %v882
  %v885 = vpop.xlane.xlu0 %884
  %886 = vadd.xlane.f32.xlu0 %v883
  %v887 = vpop.xlane.xlu0 %886
  %v888 = vmul.f32 %v885, %v877
  %v889 = vmul.f32 %v887, %v877
  %v890 = vadd.f32 %v888, 1e-05
  %v891 = vadd.f32 %v889, 1e-05
  %v892 = vrsqrt.pop %v890
  %v893 = vrsqrt.pop %v891
  %v894 = vmul.f32 %v880, %v892
  %v895 = vmul.f32 %v881, %v893
  %v896 = vld [vmem:[%s3] sm:$0xff]
  %v897 = vld [vmem:[%s3 + $0x8] sm:$0xff]
  %899 = vset.pattern.permute.xlu0 0
  %900 = vperm.xlu0 %899, %v896
  %v901 = vpop.permute.xlu0 %900
  %904 = vset.pattern.permute.xlu0 0
  %905 = vperm.xlu0 %904, %v897
  %v906 = vpop.permute.xlu0 %905
  %v908 = vmul.f32 %v894, %v901
  %v909 = vmul.f32 %v895, %v906
  %v910 = vld [vmem:[%s4] sm:$0xff]
  %v911 = vld [vmem:[%s4 + $0x8] sm:$0xff]
  %913 = vset.pattern.permute.xlu0 0
  %914 = vperm.xlu0 %913, %v910
  %v915 = vpop.permute.xlu0 %914
  %918 = vset.pattern.permute.xlu0 0
  %919 = vperm.xlu0 %918, %v911
  %v920 = vpop.permute.xlu0 %919
  %v922 = vadd.f32 %v908, %v915
  %v923 = vadd.f32 %v909, %v920
  %v924 = vpack.c.bf16 %v923, %v922
  %v926 = vunpack.c.l.b16 %v924
  %v927 = vunpack.c.h.b16 %v924
  %v928 = vpack.c.b16 %v926, %v926
  %v929 = vpack.c.b16 %v927, %v927
  %932 = vst [vmem:[%s5] sm:$0xf] %v928
  %933 = vst [vmem:[%s5 + $0x4] sm:$0xf] %v929
  // Predicated region
  $region22: #{unet_generator_forward.17} parent=0 // pred_check
    _
  $region23: #{unet_generator_forward.17} parent=0 // pred_check_branch
    %935 = sbr.rel (0) target = $region25
  $region24: #{unet_generator_forward.17} parent=0 // pred_region
    _
  $region25: #{unet_generator_forward.17} parent=0 // pred_fallthru
    _
  // Predicated region
  $region26: #{unet_generator_forward.17} parent=0 // pred_check
    _
  $region27: #{unet_generator_forward.17} parent=0 // pred_check_branch
    %937 = sbr.rel (0) target = $region29
  $region28: #{unet_generator_forward.17} parent=0 // pred_region
    _
  $region29: #{unet_generator_forward.17} parent=0 // pred_fallthru
    _

// kernel: unet_generator_forward.18
$region0: #{unet_generator_forward.18}
  #allocation0 [shape = 'u32[]', space=smem, size = 0x4, offset = 0x4, fixed_abs, tag = 'smem constant byte address 0x4 - core index']
  #allocation1 [shape = 'u32[144,128]{1,0:T(1,128)}', space=vmem, size = 0x12000, scoped, tag = 'internal scratch']
  %s0 = inlined_call_operand.vmem [shape: bf16[8,512], index: 0, kind: input, shape index: {}]
  %s1 = inlined_call_operand.vmem [shape: bf16[512,512], index: 1, kind: input, shape index: {}]
  %s2 = inlined_call_operand.vmem [shape: f32[8,1], index: 2, kind: input, shape index: {}]
  %s3 = inlined_call_operand.vmem [shape: f32[8,1], index: 3, kind: input, shape index: {}]
  %s4 = inlined_call_operand.vmem [shape: f32[8,1], index: 4, kind: input, shape index: {}]
  %s5 = inlined_call_operand.vmem [shape: bf16[8,512], index: 5, kind: output, shape index: {}]
  %s6 = sld [smem:[#allocation0]]
  $region30: #{unet_generator_forward.18} parent=0
    _
  %s8 = ssub.s32 1, %s6
  %s9 = scalar_select 0, %s8, %s6
  // Predicated region
  $region2: #{unet_generator_forward.18} parent=0 // pred_check
    _
  $region3: #{unet_generator_forward.18} parent=0 // pred_check_branch
    %11 = sbr.rel (0) target = $region5
  $region4: #{unet_generator_forward.18} parent=0 // pred_region
    _
  $region5: #{unet_generator_forward.18} parent=0 // pred_fallthru
    _
  // Predicated region
  $region6: #{unet_generator_forward.18} parent=0 // pred_check
    _
  $region7: #{unet_generator_forward.18} parent=0 // pred_check_branch
    %13 = sbr.rel (0) target = $region9
  $region8: #{unet_generator_forward.18} parent=0 // pred_region
    _
  $region9: #{unet_generator_forward.18} parent=0 // pred_fallthru
    _
  // Predicated region
  $region10: #{unet_generator_forward.18} parent=0 // pred_check
    _
  $region11: #{unet_generator_forward.18} parent=0 // pred_check_branch
    %15 = sbr.rel (0) target = $region13
  $region12: #{unet_generator_forward.18} parent=0 // pred_region
    _
  $region13: #{unet_generator_forward.18} parent=0 // pred_fallthru
    _
  // Predicated region
  $region14: #{unet_generator_forward.18} parent=0 // pred_check
    _
  $region15: #{unet_generator_forward.18} parent=0 // pred_check_branch
    %17 = sbr.rel (0) target = $region17
  $region16: #{unet_generator_forward.18} parent=0 // pred_region
    _
  $region17: #{unet_generator_forward.18} parent=0 // pred_fallthru
    _
  // Predicated region
  $region18: #{unet_generator_forward.18} parent=0 // pred_check
    _
  $region19: #{unet_generator_forward.18} parent=0 // pred_check_branch
    %19 = sbr.rel (0) target = $region21
  $region20: #{unet_generator_forward.18} parent=0 // pred_region
    _
  $region21: #{unet_generator_forward.18} parent=0 // pred_fallthru
    _
  %v21 = vld [vmem:[%s1] sm:$0xff]
  %v22 = vld [vmem:[%s1 + $0x8] sm:$0xff]
  %v23 = vld [vmem:[%s1 + $0x10] sm:$0xff]
  %v24 = vld [vmem:[%s1 + $0x18] sm:$0xff]
  %v25 = vld [vmem:[%s1 + $0x20] sm:$0xff]
  %v26 = vld [vmem:[%s1 + $0x28] sm:$0xff]
  %v27 = vld [vmem:[%s1 + $0x30] sm:$0xff]
  %v28 = vld [vmem:[%s1 + $0x38] sm:$0xff]
  %v29 = vld [vmem:[%s1 + $0x40] sm:$0xff]
  %v30 = vld [vmem:[%s1 + $0x48] sm:$0xff]
  %v31 = vld [vmem:[%s1 + $0x50] sm:$0xff]
  %v32 = vld [vmem:[%s1 + $0x58] sm:$0xff]
  %v33 = vld [vmem:[%s1 + $0x60] sm:$0xff]
  %v34 = vld [vmem:[%s1 + $0x68] sm:$0xff]
  %v35 = vld [vmem:[%s1 + $0x70] sm:$0xff]
  %v36 = vld [vmem:[%s1 + $0x78] sm:$0xff]
  %v37 = vld [vmem:[%s1 + $0x80] sm:$0xff]
  %v38 = vld [vmem:[%s1 + $0x88] sm:$0xff]
  %v39 = vld [vmem:[%s1 + $0x90] sm:$0xff]
  %v40 = vld [vmem:[%s1 + $0x98] sm:$0xff]
  %v41 = vld [vmem:[%s1 + $0xa0] sm:$0xff]
  %v42 = vld [vmem:[%s1 + $0xa8] sm:$0xff]
  %v43 = vld [vmem:[%s1 + $0xb0] sm:$0xff]
  %v44 = vld [vmem:[%s1 + $0xb8] sm:$0xff]
  %v45 = vld [vmem:[%s1 + $0xc0] sm:$0xff]
  %v46 = vld [vmem:[%s1 + $0xc8] sm:$0xff]
  %v47 = vld [vmem:[%s1 + $0xd0] sm:$0xff]
  %v48 = vld [vmem:[%s1 + $0xd8] sm:$0xff]
  %v49 = vld [vmem:[%s1 + $0xe0] sm:$0xff]
  %v50 = vld [vmem:[%s1 + $0xe8] sm:$0xff]
  %v51 = vld [vmem:[%s1 + $0xf0] sm:$0xff]
  %v52 = vld [vmem:[%s1 + $0xf8] sm:$0xff]
  %v53 = vld [vmem:[%s1 + $0x100] sm:$0xff]
  %v54 = vld [vmem:[%s1 + $0x108] sm:$0xff]
  %v55 = vld [vmem:[%s1 + $0x110] sm:$0xff]
  %v56 = vld [vmem:[%s1 + $0x118] sm:$0xff]
  %v57 = vld [vmem:[%s1 + $0x120] sm:$0xff]
  %v58 = vld [vmem:[%s1 + $0x128] sm:$0xff]
  %v59 = vld [vmem:[%s1 + $0x130] sm:$0xff]
  %v60 = vld [vmem:[%s1 + $0x138] sm:$0xff]
  %v61 = vld [vmem:[%s1 + $0x140] sm:$0xff]
  %v62 = vld [vmem:[%s1 + $0x148] sm:$0xff]
  %v63 = vld [vmem:[%s1 + $0x150] sm:$0xff]
  %v64 = vld [vmem:[%s1 + $0x158] sm:$0xff]
  %v65 = vld [vmem:[%s1 + $0x160] sm:$0xff]
  %v66 = vld [vmem:[%s1 + $0x168] sm:$0xff]
  %v67 = vld [vmem:[%s1 + $0x170] sm:$0xff]
  %v68 = vld [vmem:[%s1 + $0x178] sm:$0xff]
  %v69 = vld [vmem:[%s1 + $0x180] sm:$0xff]
  %v70 = vld [vmem:[%s1 + $0x188] sm:$0xff]
  %v71 = vld [vmem:[%s1 + $0x190] sm:$0xff]
  %v72 = vld [vmem:[%s1 + $0x198] sm:$0xff]
  %v73 = vld [vmem:[%s1 + $0x1a0] sm:$0xff]
  %v74 = vld [vmem:[%s1 + $0x1a8] sm:$0xff]
  %v75 = vld [vmem:[%s1 + $0x1b0] sm:$0xff]
  %v76 = vld [vmem:[%s1 + $0x1b8] sm:$0xff]
  %v77 = vld [vmem:[%s1 + $0x1c0] sm:$0xff]
  %v78 = vld [vmem:[%s1 + $0x1c8] sm:$0xff]
  %v79 = vld [vmem:[%s1 + $0x1d0] sm:$0xff]
  %v80 = vld [vmem:[%s1 + $0x1d8] sm:$0xff]
  %v81 = vld [vmem:[%s1 + $0x1e0] sm:$0xff]
  %v82 = vld [vmem:[%s1 + $0x1e8] sm:$0xff]
  %v83 = vld [vmem:[%s1 + $0x1f0] sm:$0xff]
  %v84 = vld [vmem:[%s1 + $0x1f8] sm:$0xff]
  %v85 = vld [vmem:[%s1 + $0x200] sm:$0xff]
  %v86 = vld [vmem:[%s1 + $0x208] sm:$0xff]
  %v87 = vld [vmem:[%s1 + $0x210] sm:$0xff]
  %v88 = vld [vmem:[%s1 + $0x218] sm:$0xff]
  %v89 = vld [vmem:[%s1 + $0x220] sm:$0xff]
  %v90 = vld [vmem:[%s1 + $0x228] sm:$0xff]
  %v91 = vld [vmem:[%s1 + $0x230] sm:$0xff]
  %v92 = vld [vmem:[%s1 + $0x238] sm:$0xff]
  %v93 = vld [vmem:[%s1 + $0x240] sm:$0xff]
  %v94 = vld [vmem:[%s1 + $0x248] sm:$0xff]
  %v95 = vld [vmem:[%s1 + $0x250] sm:$0xff]
  %v96 = vld [vmem:[%s1 + $0x258] sm:$0xff]
  %v97 = vld [vmem:[%s1 + $0x260] sm:$0xff]
  %v98 = vld [vmem:[%s1 + $0x268] sm:$0xff]
  %v99 = vld [vmem:[%s1 + $0x270] sm:$0xff]
  %v100 = vld [vmem:[%s1 + $0x278] sm:$0xff]
  %v101 = vld [vmem:[%s1 + $0x280] sm:$0xff]
  %v102 = vld [vmem:[%s1 + $0x288] sm:$0xff]
  %v103 = vld [vmem:[%s1 + $0x290] sm:$0xff]
  %v104 = vld [vmem:[%s1 + $0x298] sm:$0xff]
  %v105 = vld [vmem:[%s1 + $0x2a0] sm:$0xff]
  %v106 = vld [vmem:[%s1 + $0x2a8] sm:$0xff]
  %v107 = vld [vmem:[%s1 + $0x2b0] sm:$0xff]
  %v108 = vld [vmem:[%s1 + $0x2b8] sm:$0xff]
  %v109 = vld [vmem:[%s1 + $0x2c0] sm:$0xff]
  %v110 = vld [vmem:[%s1 + $0x2c8] sm:$0xff]
  %v111 = vld [vmem:[%s1 + $0x2d0] sm:$0xff]
  %v112 = vld [vmem:[%s1 + $0x2d8] sm:$0xff]
  %v113 = vld [vmem:[%s1 + $0x2e0] sm:$0xff]
  %v114 = vld [vmem:[%s1 + $0x2e8] sm:$0xff]
  %v115 = vld [vmem:[%s1 + $0x2f0] sm:$0xff]
  %v116 = vld [vmem:[%s1 + $0x2f8] sm:$0xff]
  %v117 = vld [vmem:[%s1 + $0x300] sm:$0xff]
  %v118 = vld [vmem:[%s1 + $0x308] sm:$0xff]
  %v119 = vld [vmem:[%s1 + $0x310] sm:$0xff]
  %v120 = vld [vmem:[%s1 + $0x318] sm:$0xff]
  %v121 = vld [vmem:[%s1 + $0x320] sm:$0xff]
  %v122 = vld [vmem:[%s1 + $0x328] sm:$0xff]
  %v123 = vld [vmem:[%s1 + $0x330] sm:$0xff]
  %v124 = vld [vmem:[%s1 + $0x338] sm:$0xff]
  %v125 = vld [vmem:[%s1 + $0x340] sm:$0xff]
  %v126 = vld [vmem:[%s1 + $0x348] sm:$0xff]
  %v127 = vld [vmem:[%s1 + $0x350] sm:$0xff]
  %v128 = vld [vmem:[%s1 + $0x358] sm:$0xff]
  %v129 = vld [vmem:[%s1 + $0x360] sm:$0xff]
  %v130 = vld [vmem:[%s1 + $0x368] sm:$0xff]
  %v131 = vld [vmem:[%s1 + $0x370] sm:$0xff]
  %v132 = vld [vmem:[%s1 + $0x378] sm:$0xff]
  %v133 = vld [vmem:[%s1 + $0x380] sm:$0xff]
  %v134 = vld [vmem:[%s1 + $0x388] sm:$0xff]
  %v135 = vld [vmem:[%s1 + $0x390] sm:$0xff]
  %v136 = vld [vmem:[%s1 + $0x398] sm:$0xff]
  %v137 = vld [vmem:[%s1 + $0x3a0] sm:$0xff]
  %v138 = vld [vmem:[%s1 + $0x3a8] sm:$0xff]
  %v139 = vld [vmem:[%s1 + $0x3b0] sm:$0xff]
  %v140 = vld [vmem:[%s1 + $0x3b8] sm:$0xff]
  %v141 = vld [vmem:[%s1 + $0x3c0] sm:$0xff]
  %v142 = vld [vmem:[%s1 + $0x3c8] sm:$0xff]
  %v143 = vld [vmem:[%s1 + $0x3d0] sm:$0xff]
  %v144 = vld [vmem:[%s1 + $0x3d8] sm:$0xff]
  %v145 = vld [vmem:[%s1 + $0x3e0] sm:$0xff]
  %v146 = vld [vmem:[%s1 + $0x3e8] sm:$0xff]
  %v147 = vld [vmem:[%s1 + $0x3f0] sm:$0xff]
  %v148 = vld [vmem:[%s1 + $0x3f8] sm:$0xff]
  %v149 = vmax.bf16 %v21, 0
  %v150 = vmax.bf16 %v22, 0
  %v151 = vmax.bf16 %v23, 0
  %v152 = vmax.bf16 %v24, 0
  %v153 = vmax.bf16 %v25, 0
  %v154 = vmax.bf16 %v26, 0
  %v155 = vmax.bf16 %v27, 0
  %v156 = vmax.bf16 %v28, 0
  %v157 = vmax.bf16 %v29, 0
  %v158 = vmax.bf16 %v30, 0
  %v159 = vmax.bf16 %v31, 0
  %v160 = vmax.bf16 %v32, 0
  %v161 = vmax.bf16 %v33, 0
  %v162 = vmax.bf16 %v34, 0
  %v163 = vmax.bf16 %v35, 0
  %v164 = vmax.bf16 %v36, 0
  %v165 = vmax.bf16 %v37, 0
  %v166 = vmax.bf16 %v38, 0
  %v167 = vmax.bf16 %v39, 0
  %v168 = vmax.bf16 %v40, 0
  %v169 = vmax.bf16 %v41, 0
  %v170 = vmax.bf16 %v42, 0
  %v171 = vmax.bf16 %v43, 0
  %v172 = vmax.bf16 %v44, 0
  %v173 = vmax.bf16 %v45, 0
  %v174 = vmax.bf16 %v46, 0
  %v175 = vmax.bf16 %v47, 0
  %v176 = vmax.bf16 %v48, 0
  %v177 = vmax.bf16 %v49, 0
  %v178 = vmax.bf16 %v50, 0
  %v179 = vmax.bf16 %v51, 0
  %v180 = vmax.bf16 %v52, 0
  %v181 = vmax.bf16 %v53, 0
  %v182 = vmax.bf16 %v54, 0
  %v183 = vmax.bf16 %v55, 0
  %v184 = vmax.bf16 %v56, 0
  %v185 = vmax.bf16 %v57, 0
  %v186 = vmax.bf16 %v58, 0
  %v187 = vmax.bf16 %v59, 0
  %v188 = vmax.bf16 %v60, 0
  %v189 = vmax.bf16 %v61, 0
  %v190 = vmax.bf16 %v62, 0
  %v191 = vmax.bf16 %v63, 0
  %v192 = vmax.bf16 %v64, 0
  %v193 = vmax.bf16 %v65, 0
  %v194 = vmax.bf16 %v66, 0
  %v195 = vmax.bf16 %v67, 0
  %v196 = vmax.bf16 %v68, 0
  %v197 = vmax.bf16 %v69, 0
  %v198 = vmax.bf16 %v70, 0
  %v199 = vmax.bf16 %v71, 0
  %v200 = vmax.bf16 %v72, 0
  %v201 = vmax.bf16 %v73, 0
  %v202 = vmax.bf16 %v74, 0
  %v203 = vmax.bf16 %v75, 0
  %v204 = vmax.bf16 %v76, 0
  %v205 = vmax.bf16 %v77, 0
  %v206 = vmax.bf16 %v78, 0
  %v207 = vmax.bf16 %v79, 0
  %v208 = vmax.bf16 %v80, 0
  %v209 = vmax.bf16 %v81, 0
  %v210 = vmax.bf16 %v82, 0
  %v211 = vmax.bf16 %v83, 0
  %v212 = vmax.bf16 %v84, 0
  %v213 = vmax.bf16 %v85, 0
  %v214 = vmax.bf16 %v86, 0
  %v215 = vmax.bf16 %v87, 0
  %v216 = vmax.bf16 %v88, 0
  %v217 = vmax.bf16 %v89, 0
  %v218 = vmax.bf16 %v90, 0
  %v219 = vmax.bf16 %v91, 0
  %v220 = vmax.bf16 %v92, 0
  %v221 = vmax.bf16 %v93, 0
  %v222 = vmax.bf16 %v94, 0
  %v223 = vmax.bf16 %v95, 0
  %v224 = vmax.bf16 %v96, 0
  %v225 = vmax.bf16 %v97, 0
  %v226 = vmax.bf16 %v98, 0
  %v227 = vmax.bf16 %v99, 0
  %v228 = vmax.bf16 %v100, 0
  %v229 = vmax.bf16 %v101, 0
  %v230 = vmax.bf16 %v102, 0
  %v231 = vmax.bf16 %v103, 0
  %v232 = vmax.bf16 %v104, 0
  %v233 = vmax.bf16 %v105, 0
  %v234 = vmax.bf16 %v106, 0
  %v235 = vmax.bf16 %v107, 0
  %v236 = vmax.bf16 %v108, 0
  %v237 = vmax.bf16 %v109, 0
  %v238 = vmax.bf16 %v110, 0
  %v239 = vmax.bf16 %v111, 0
  %v240 = vmax.bf16 %v112, 0
  %v241 = vmax.bf16 %v113, 0
  %v242 = vmax.bf16 %v114, 0
  %v243 = vmax.bf16 %v115, 0
  %v244 = vmax.bf16 %v116, 0
  %v245 = vmax.bf16 %v117, 0
  %v246 = vmax.bf16 %v118, 0
  %v247 = vmax.bf16 %v119, 0
  %v248 = vmax.bf16 %v120, 0
  %v249 = vmax.bf16 %v121, 0
  %v250 = vmax.bf16 %v122, 0
  %v251 = vmax.bf16 %v123, 0
  %v252 = vmax.bf16 %v124, 0
  %v253 = vmax.bf16 %v125, 0
  %v254 = vmax.bf16 %v126, 0
  %v255 = vmax.bf16 %v127, 0
  %v256 = vmax.bf16 %v128, 0
  %v257 = vmax.bf16 %v129, 0
  %v258 = vmax.bf16 %v130, 0
  %v259 = vmax.bf16 %v131, 0
  %v260 = vmax.bf16 %v132, 0
  %v261 = vmax.bf16 %v133, 0
  %v262 = vmax.bf16 %v134, 0
  %v263 = vmax.bf16 %v135, 0
  %v264 = vmax.bf16 %v136, 0
  %v265 = vmax.bf16 %v137, 0
  %v266 = vmax.bf16 %v138, 0
  %v267 = vmax.bf16 %v139, 0
  %v268 = vmax.bf16 %v140, 0
  %v269 = vmax.bf16 %v141, 0
  %v270 = vmax.bf16 %v142, 0
  %v271 = vmax.bf16 %v143, 0
  %v272 = vmax.bf16 %v144, 0
  %v273 = vmax.bf16 %v145, 0
  %v274 = vmax.bf16 %v146, 0
  %v275 = vmax.bf16 %v147, 0
  %v276 = vmax.bf16 %v148, 0
  %v277 = vld [vmem:[%s0] sm:$0xff]
  %v278 = vld [vmem:[%s0 + $0x8] sm:$0xff]
  %v281 = vunpack.c.l.b16 %v277
  %v282 = vunpack.c.h.b16 %v277
  %v283 = vunpack.c.l.b16 %v278
  %v284 = vunpack.c.h.b16 %v278
  %v285 = vpack.c.b16 %v281, %v281
  %v286 = vpack.c.b16 %v282, %v282
  %v287 = vpack.c.b16 %v283, %v283
  %v288 = vpack.c.b16 %v284, %v284
  %v421 = vunpack.c.l.b16 %v149
  %v422 = vunpack.c.h.b16 %v149
  %v423 = vunpack.c.l.b16 %v150
  %v424 = vunpack.c.h.b16 %v150
  %v425 = vunpack.c.l.b16 %v151
  %v426 = vunpack.c.h.b16 %v151
  %v427 = vunpack.c.l.b16 %v152
  %v428 = vunpack.c.h.b16 %v152
  %v429 = vunpack.c.l.b16 %v153
  %v430 = vunpack.c.h.b16 %v153
  %v431 = vunpack.c.l.b16 %v154
  %v432 = vunpack.c.h.b16 %v154
  %v433 = vunpack.c.l.b16 %v155
  %v434 = vunpack.c.h.b16 %v155
  %v435 = vunpack.c.l.b16 %v156
  %v436 = vunpack.c.h.b16 %v156
  %v437 = vunpack.c.l.b16 %v157
  %v438 = vunpack.c.h.b16 %v157
  %v439 = vunpack.c.l.b16 %v158
  %v440 = vunpack.c.h.b16 %v158
  %v441 = vunpack.c.l.b16 %v159
  %v442 = vunpack.c.h.b16 %v159
  %v443 = vunpack.c.l.b16 %v160
  %v444 = vunpack.c.h.b16 %v160
  %v445 = vunpack.c.l.b16 %v161
  %v446 = vunpack.c.h.b16 %v161
  %v447 = vunpack.c.l.b16 %v162
  %v448 = vunpack.c.h.b16 %v162
  %v449 = vunpack.c.l.b16 %v163
  %v450 = vunpack.c.h.b16 %v163
  %v451 = vunpack.c.l.b16 %v164
  %v452 = vunpack.c.h.b16 %v164
  %v453 = vunpack.c.l.b16 %v165
  %v454 = vunpack.c.h.b16 %v165
  %v455 = vunpack.c.l.b16 %v166
  %v456 = vunpack.c.h.b16 %v166
  %v457 = vunpack.c.l.b16 %v167
  %v458 = vunpack.c.h.b16 %v167
  %v459 = vunpack.c.l.b16 %v168
  %v460 = vunpack.c.h.b16 %v168
  %v461 = vunpack.c.l.b16 %v169
  %v462 = vunpack.c.h.b16 %v169
  %v463 = vunpack.c.l.b16 %v170
  %v464 = vunpack.c.h.b16 %v170
  %v465 = vunpack.c.l.b16 %v171
  %v466 = vunpack.c.h.b16 %v171
  %v467 = vunpack.c.l.b16 %v172
  %v468 = vunpack.c.h.b16 %v172
  %v469 = vunpack.c.l.b16 %v173
  %v470 = vunpack.c.h.b16 %v173
  %v471 = vunpack.c.l.b16 %v174
  %v472 = vunpack.c.h.b16 %v174
  %v473 = vunpack.c.l.b16 %v175
  %v474 = vunpack.c.h.b16 %v175
  %v475 = vunpack.c.l.b16 %v176
  %v476 = vunpack.c.h.b16 %v176
  %v477 = vunpack.c.l.b16 %v177
  %v478 = vunpack.c.h.b16 %v177
  %v479 = vunpack.c.l.b16 %v178
  %v480 = vunpack.c.h.b16 %v178
  %v481 = vunpack.c.l.b16 %v179
  %v482 = vunpack.c.h.b16 %v179
  %v483 = vunpack.c.l.b16 %v180
  %v484 = vunpack.c.h.b16 %v180
  %v485 = vunpack.c.l.b16 %v181
  %v486 = vunpack.c.h.b16 %v181
  %v487 = vunpack.c.l.b16 %v182
  %v488 = vunpack.c.h.b16 %v182
  %v489 = vunpack.c.l.b16 %v183
  %v490 = vunpack.c.h.b16 %v183
  %v491 = vunpack.c.l.b16 %v184
  %v492 = vunpack.c.h.b16 %v184
  %v493 = vunpack.c.l.b16 %v185
  %v494 = vunpack.c.h.b16 %v185
  %v495 = vunpack.c.l.b16 %v186
  %v496 = vunpack.c.h.b16 %v186
  %v497 = vunpack.c.l.b16 %v187
  %v498 = vunpack.c.h.b16 %v187
  %v499 = vunpack.c.l.b16 %v188
  %v500 = vunpack.c.h.b16 %v188
  %v501 = vunpack.c.l.b16 %v189
  %v502 = vunpack.c.h.b16 %v189
  %v503 = vunpack.c.l.b16 %v190
  %v504 = vunpack.c.h.b16 %v190
  %v505 = vunpack.c.l.b16 %v191
  %v506 = vunpack.c.h.b16 %v191
  %v507 = vunpack.c.l.b16 %v192
  %v508 = vunpack.c.h.b16 %v192
  %v509 = vunpack.c.l.b16 %v193
  %v510 = vunpack.c.h.b16 %v193
  %v511 = vunpack.c.l.b16 %v194
  %v512 = vunpack.c.h.b16 %v194
  %v513 = vunpack.c.l.b16 %v195
  %v514 = vunpack.c.h.b16 %v195
  %v515 = vunpack.c.l.b16 %v196
  %v516 = vunpack.c.h.b16 %v196
  %v517 = vunpack.c.l.b16 %v197
  %v518 = vunpack.c.h.b16 %v197
  %v519 = vunpack.c.l.b16 %v198
  %v520 = vunpack.c.h.b16 %v198
  %v521 = vunpack.c.l.b16 %v199
  %v522 = vunpack.c.h.b16 %v199
  %v523 = vunpack.c.l.b16 %v200
  %v524 = vunpack.c.h.b16 %v200
  %v525 = vunpack.c.l.b16 %v201
  %v526 = vunpack.c.h.b16 %v201
  %v527 = vunpack.c.l.b16 %v202
  %v528 = vunpack.c.h.b16 %v202
  %v529 = vunpack.c.l.b16 %v203
  %v530 = vunpack.c.h.b16 %v203
  %v531 = vunpack.c.l.b16 %v204
  %v532 = vunpack.c.h.b16 %v204
  %v533 = vunpack.c.l.b16 %v205
  %v534 = vunpack.c.h.b16 %v205
  %v535 = vunpack.c.l.b16 %v206
  %v536 = vunpack.c.h.b16 %v206
  %v537 = vunpack.c.l.b16 %v207
  %v538 = vunpack.c.h.b16 %v207
  %v539 = vunpack.c.l.b16 %v208
  %v540 = vunpack.c.h.b16 %v208
  %v541 = vunpack.c.l.b16 %v209
  %v542 = vunpack.c.h.b16 %v209
  %v543 = vunpack.c.l.b16 %v210
  %v544 = vunpack.c.h.b16 %v210
  %v545 = vunpack.c.l.b16 %v211
  %v546 = vunpack.c.h.b16 %v211
  %v547 = vunpack.c.l.b16 %v212
  %v548 = vunpack.c.h.b16 %v212
  %v549 = vunpack.c.l.b16 %v213
  %v550 = vunpack.c.h.b16 %v213
  %v551 = vunpack.c.l.b16 %v214
  %v552 = vunpack.c.h.b16 %v214
  %v553 = vunpack.c.l.b16 %v215
  %v554 = vunpack.c.h.b16 %v215
  %v555 = vunpack.c.l.b16 %v216
  %v556 = vunpack.c.h.b16 %v216
  %v557 = vunpack.c.l.b16 %v217
  %v558 = vunpack.c.h.b16 %v217
  %v559 = vunpack.c.l.b16 %v218
  %v560 = vunpack.c.h.b16 %v218
  %v561 = vunpack.c.l.b16 %v219
  %v562 = vunpack.c.h.b16 %v219
  %v563 = vunpack.c.l.b16 %v220
  %v564 = vunpack.c.h.b16 %v220
  %v565 = vunpack.c.l.b16 %v221
  %v566 = vunpack.c.h.b16 %v221
  %v567 = vunpack.c.l.b16 %v222
  %v568 = vunpack.c.h.b16 %v222
  %v569 = vunpack.c.l.b16 %v223
  %v570 = vunpack.c.h.b16 %v223
  %v571 = vunpack.c.l.b16 %v224
  %v572 = vunpack.c.h.b16 %v224
  %v573 = vunpack.c.l.b16 %v225
  %v574 = vunpack.c.h.b16 %v225
  %v575 = vunpack.c.l.b16 %v226
  %v576 = vunpack.c.h.b16 %v226
  %v577 = vunpack.c.l.b16 %v227
  %v578 = vunpack.c.h.b16 %v227
  %v579 = vunpack.c.l.b16 %v228
  %v580 = vunpack.c.h.b16 %v228
  %v581 = vunpack.c.l.b16 %v229
  %v582 = vunpack.c.h.b16 %v229
  %v583 = vunpack.c.l.b16 %v230
  %v584 = vunpack.c.h.b16 %v230
  %v585 = vunpack.c.l.b16 %v231
  %v586 = vunpack.c.h.b16 %v231
  %v587 = vunpack.c.l.b16 %v232
  %v588 = vunpack.c.h.b16 %v232
  %v589 = vunpack.c.l.b16 %v233
  %v590 = vunpack.c.h.b16 %v233
  %v591 = vunpack.c.l.b16 %v234
  %v592 = vunpack.c.h.b16 %v234
  %v593 = vunpack.c.l.b16 %v235
  %v594 = vunpack.c.h.b16 %v235
  %v595 = vunpack.c.l.b16 %v236
  %v596 = vunpack.c.h.b16 %v236
  %v597 = vunpack.c.l.b16 %v237
  %v598 = vunpack.c.h.b16 %v237
  %v599 = vunpack.c.l.b16 %v238
  %v600 = vunpack.c.h.b16 %v238
  %v601 = vunpack.c.l.b16 %v239
  %v602 = vunpack.c.h.b16 %v239
  %v603 = vunpack.c.l.b16 %v240
  %v604 = vunpack.c.h.b16 %v240
  %v605 = vunpack.c.l.b16 %v241
  %v606 = vunpack.c.h.b16 %v241
  %v607 = vunpack.c.l.b16 %v242
  %v608 = vunpack.c.h.b16 %v242
  %v609 = vunpack.c.l.b16 %v243
  %v610 = vunpack.c.h.b16 %v243
  %v611 = vunpack.c.l.b16 %v244
  %v612 = vunpack.c.h.b16 %v244
  %v613 = vunpack.c.l.b16 %v245
  %v614 = vunpack.c.h.b16 %v245
  %v615 = vunpack.c.l.b16 %v246
  %v616 = vunpack.c.h.b16 %v246
  %v617 = vunpack.c.l.b16 %v247
  %v618 = vunpack.c.h.b16 %v247
  %v619 = vunpack.c.l.b16 %v248
  %v620 = vunpack.c.h.b16 %v248
  %v621 = vunpack.c.l.b16 %v249
  %v622 = vunpack.c.h.b16 %v249
  %v623 = vunpack.c.l.b16 %v250
  %v624 = vunpack.c.h.b16 %v250
  %v625 = vunpack.c.l.b16 %v251
  %v626 = vunpack.c.h.b16 %v251
  %v627 = vunpack.c.l.b16 %v252
  %v628 = vunpack.c.h.b16 %v252
  %v629 = vunpack.c.l.b16 %v253
  %v630 = vunpack.c.h.b16 %v253
  %v631 = vunpack.c.l.b16 %v254
  %v632 = vunpack.c.h.b16 %v254
  %v633 = vunpack.c.l.b16 %v255
  %v634 = vunpack.c.h.b16 %v255
  %v635 = vunpack.c.l.b16 %v256
  %v636 = vunpack.c.h.b16 %v256
  %v637 = vunpack.c.l.b16 %v257
  %v638 = vunpack.c.h.b16 %v257
  %v639 = vunpack.c.l.b16 %v258
  %v640 = vunpack.c.h.b16 %v258
  %v641 = vunpack.c.l.b16 %v259
  %v642 = vunpack.c.h.b16 %v259
  %v643 = vunpack.c.l.b16 %v260
  %v644 = vunpack.c.h.b16 %v260
  %v645 = vunpack.c.l.b16 %v261
  %v646 = vunpack.c.h.b16 %v261
  %v647 = vunpack.c.l.b16 %v262
  %v648 = vunpack.c.h.b16 %v262
  %v649 = vunpack.c.l.b16 %v263
  %v650 = vunpack.c.h.b16 %v263
  %v651 = vunpack.c.l.b16 %v264
  %v652 = vunpack.c.h.b16 %v264
  %v653 = vunpack.c.l.b16 %v265
  %v654 = vunpack.c.h.b16 %v265
  %v655 = vunpack.c.l.b16 %v266
  %v656 = vunpack.c.h.b16 %v266
  %v657 = vunpack.c.l.b16 %v267
  %v658 = vunpack.c.h.b16 %v267
  %v659 = vunpack.c.l.b16 %v268
  %v660 = vunpack.c.h.b16 %v268
  %v661 = vunpack.c.l.b16 %v269
  %v662 = vunpack.c.h.b16 %v269
  %v663 = vunpack.c.l.b16 %v270
  %v664 = vunpack.c.h.b16 %v270
  %v665 = vunpack.c.l.b16 %v271
  %v666 = vunpack.c.h.b16 %v271
  %v667 = vunpack.c.l.b16 %v272
  %v668 = vunpack.c.h.b16 %v272
  %v669 = vunpack.c.l.b16 %v273
  %v670 = vunpack.c.h.b16 %v273
  %v671 = vunpack.c.l.b16 %v274
  %v672 = vunpack.c.h.b16 %v274
  %v673 = vunpack.c.l.b16 %v275
  %v674 = vunpack.c.h.b16 %v275
  %v675 = vunpack.c.l.b16 %v276
  %v676 = vunpack.c.h.b16 %v276
  %v677 = vpack.c.b16 %v425, %v421
  %v678 = vpack.c.b16 %v426, %v422
  %v679 = vpack.c.b16 %v427, %v423
  %v680 = vpack.c.b16 %v428, %v424
  %v681 = vpack.c.b16 %v433, %v429
  %v682 = vpack.c.b16 %v434, %v430
  %v683 = vpack.c.b16 %v435, %v431
  %v684 = vpack.c.b16 %v436, %v432
  %v685 = vpack.c.b16 %v441, %v437
  %v686 = vpack.c.b16 %v442, %v438
  %v687 = vpack.c.b16 %v443, %v439
  %v688 = vpack.c.b16 %v444, %v440
  %v689 = vpack.c.b16 %v449, %v445
  %v690 = vpack.c.b16 %v450, %v446
  %v691 = vpack.c.b16 %v451, %v447
  %v692 = vpack.c.b16 %v452, %v448
  %v693 = vpack.c.b16 %v457, %v453
  %v694 = vpack.c.b16 %v458, %v454
  %v695 = vpack.c.b16 %v459, %v455
  %v696 = vpack.c.b16 %v460, %v456
  %v697 = vpack.c.b16 %v465, %v461
  %v698 = vpack.c.b16 %v466, %v462
  %v699 = vpack.c.b16 %v467, %v463
  %v700 = vpack.c.b16 %v468, %v464
  %v701 = vpack.c.b16 %v473, %v469
  %v702 = vpack.c.b16 %v474, %v470
  %v703 = vpack.c.b16 %v475, %v471
  %v704 = vpack.c.b16 %v476, %v472
  %v705 = vpack.c.b16 %v481, %v477
  %v706 = vpack.c.b16 %v482, %v478
  %v707 = vpack.c.b16 %v483, %v479
  %v708 = vpack.c.b16 %v484, %v480
  %v709 = vpack.c.b16 %v489, %v485
  %v710 = vpack.c.b16 %v490, %v486
  %v711 = vpack.c.b16 %v491, %v487
  %v712 = vpack.c.b16 %v492, %v488
  %v713 = vpack.c.b16 %v497, %v493
  %v714 = vpack.c.b16 %v498, %v494
  %v715 = vpack.c.b16 %v499, %v495
  %v716 = vpack.c.b16 %v500, %v496
  %v717 = vpack.c.b16 %v505, %v501
  %v718 = vpack.c.b16 %v506, %v502
  %v719 = vpack.c.b16 %v507, %v503
  %v720 = vpack.c.b16 %v508, %v504
  %v721 = vpack.c.b16 %v513, %v509
  %v722 = vpack.c.b16 %v514, %v510
  %v723 = vpack.c.b16 %v515, %v511
  %v724 = vpack.c.b16 %v516, %v512
  %v725 = vpack.c.b16 %v521, %v517
  %v726 = vpack.c.b16 %v522, %v518
  %v727 = vpack.c.b16 %v523, %v519
  %v728 = vpack.c.b16 %v524, %v520
  %v729 = vpack.c.b16 %v529, %v525
  %v730 = vpack.c.b16 %v530, %v526
  %v731 = vpack.c.b16 %v531, %v527
  %v732 = vpack.c.b16 %v532, %v528
  %v733 = vpack.c.b16 %v537, %v533
  %v734 = vpack.c.b16 %v538, %v534
  %v735 = vpack.c.b16 %v539, %v535
  %v736 = vpack.c.b16 %v540, %v536
  %v737 = vpack.c.b16 %v545, %v541
  %v738 = vpack.c.b16 %v546, %v542
  %v739 = vpack.c.b16 %v547, %v543
  %v740 = vpack.c.b16 %v548, %v544
  %v741 = vpack.c.b16 %v553, %v549
  %v742 = vpack.c.b16 %v554, %v550
  %v743 = vpack.c.b16 %v555, %v551
  %v744 = vpack.c.b16 %v556, %v552
  %v745 = vpack.c.b16 %v561, %v557
  %v746 = vpack.c.b16 %v562, %v558
  %v747 = vpack.c.b16 %v563, %v559
  %v748 = vpack.c.b16 %v564, %v560
  %v749 = vpack.c.b16 %v569, %v565
  %v750 = vpack.c.b16 %v570, %v566
  %v751 = vpack.c.b16 %v571, %v567
  %v752 = vpack.c.b16 %v572, %v568
  %v753 = vpack.c.b16 %v577, %v573
  %v754 = vpack.c.b16 %v578, %v574
  %v755 = vpack.c.b16 %v579, %v575
  %v756 = vpack.c.b16 %v580, %v576
  %v757 = vpack.c.b16 %v585, %v581
  %v758 = vpack.c.b16 %v586, %v582
  %v759 = vpack.c.b16 %v587, %v583
  %v760 = vpack.c.b16 %v588, %v584
  %v761 = vpack.c.b16 %v593, %v589
  %v762 = vpack.c.b16 %v594, %v590
  %v763 = vpack.c.b16 %v595, %v591
  %v764 = vpack.c.b16 %v596, %v592
  %v765 = vpack.c.b16 %v601, %v597
  %v766 = vpack.c.b16 %v602, %v598
  %v767 = vpack.c.b16 %v603, %v599
  %v768 = vpack.c.b16 %v604, %v600
  %v769 = vpack.c.b16 %v609, %v605
  %v770 = vpack.c.b16 %v610, %v606
  %v771 = vpack.c.b16 %v611, %v607
  %v772 = vpack.c.b16 %v612, %v608
  %v773 = vpack.c.b16 %v617, %v613
  %v774 = vpack.c.b16 %v618, %v614
  %v775 = vpack.c.b16 %v619, %v615
  %v776 = vpack.c.b16 %v620, %v616
  %v777 = vpack.c.b16 %v625, %v621
  %v778 = vpack.c.b16 %v626, %v622
  %v779 = vpack.c.b16 %v627, %v623
  %v780 = vpack.c.b16 %v628, %v624
  %v781 = vpack.c.b16 %v633, %v629
  %v782 = vpack.c.b16 %v634, %v630
  %v783 = vpack.c.b16 %v635, %v631
  %v784 = vpack.c.b16 %v636, %v632
  %v785 = vpack.c.b16 %v641, %v637
  %v786 = vpack.c.b16 %v642, %v638
  %v787 = vpack.c.b16 %v643, %v639
  %v788 = vpack.c.b16 %v644, %v640
  %v789 = vpack.c.b16 %v649, %v645
  %v790 = vpack.c.b16 %v650, %v646
  %v791 = vpack.c.b16 %v651, %v647
  %v792 = vpack.c.b16 %v652, %v648
  %v793 = vpack.c.b16 %v657, %v653
  %v794 = vpack.c.b16 %v658, %v654
  %v795 = vpack.c.b16 %v659, %v655
  %v796 = vpack.c.b16 %v660, %v656
  %v797 = vpack.c.b16 %v665, %v661
  %v798 = vpack.c.b16 %v666, %v662
  %v799 = vpack.c.b16 %v667, %v663
  %v800 = vpack.c.b16 %v668, %v664
  %v801 = vpack.c.b16 %v673, %v669
  %v802 = vpack.c.b16 %v674, %v670
  %v803 = vpack.c.b16 %v675, %v671
  %v804 = vpack.c.b16 %v676, %v672
  %933 = vmatprep.subr.bf16.mxu0 %v678
  %934 = vmatpush1.bf16.msra.mxu0 %v677
  %935 = vmatprep.subr.bf16.mxu0 %v682
  %936 = vmatpush1.bf16.msra.mxu0 %v681
  %937 = vmatprep.subr.bf16.mxu0 %v686
  %938 = vmatpush1.bf16.msra.mxu0 %v685
  %939 = vmatprep.subr.bf16.mxu0 %v690
  %940 = vmatpush1.bf16.msra.mxu0 %v689
  %941 = vmatprep.subr.bf16.mxu0 %v694
  %942 = vmatpush1.bf16.msra.mxu0 %v693
  %943 = vmatprep.subr.bf16.mxu0 %v698
  %944 = vmatpush1.bf16.msra.mxu0 %v697
  %945 = vmatprep.subr.bf16.mxu0 %v702
  %946 = vmatpush1.bf16.msra.mxu0 %v701
  %947 = vmatprep.subr.bf16.mxu0 %v706
  %948 = vmatpush1.bf16.msra.mxu0 %v705
  %949 = vmatprep.subr.bf16.mxu0 %v710
  %950 = vmatpush1.bf16.msra.mxu0 %v709
  %951 = vmatprep.subr.bf16.mxu0 %v714
  %952 = vmatpush1.bf16.msra.mxu0 %v713
  %953 = vmatprep.subr.bf16.mxu0 %v718
  %954 = vmatpush1.bf16.msra.mxu0 %v717
  %955 = vmatprep.subr.bf16.mxu0 %v722
  %956 = vmatpush1.bf16.msra.mxu0 %v721
  %957 = vmatprep.subr.bf16.mxu0 %v726
  %958 = vmatpush1.bf16.msra.mxu0 %v725
  %959 = vmatprep.subr.bf16.mxu0 %v730
  %960 = vmatpush1.bf16.msra.mxu0 %v729
  %961 = vmatprep.subr.bf16.mxu0 %v734
  %962 = vmatpush1.bf16.msra.mxu0 %v733
  %963 = vmatprep.subr.bf16.mxu0 %v738
  %964 = vmatpush1.bf16.msra.mxu0 %v737
  %965 = vmatprep.mubr.bf16.mxu0 %v286
  %966 = vmatmul.mubr.bf16.gmra.mrb[0].mxu0 %v285
  %v967 = vpop.f32.mrb[0].mxu0
  %v968 = vadd.f32 0.0, %v967
  %v969 = vpop.f32.mrb[0].mxu0
  %v970 = vadd.f32 0.0, %v969
  %v971 = vpop.f32.mrb[0].mxu0
  %v972 = vpop.f32.mrb[0].mxu0
  %973 = vdwg.mxu0
  %974 = vmatprep.subr.bf16.mxu0 %v742
  %975 = vmatpush1.bf16.msra.mxu0 %v741
  %976 = vmatprep.subr.bf16.mxu0 %v746
  %977 = vmatpush1.bf16.msra.mxu0 %v745
  %978 = vmatprep.subr.bf16.mxu0 %v750
  %979 = vmatpush1.bf16.msra.mxu0 %v749
  %980 = vmatprep.subr.bf16.mxu0 %v754
  %981 = vmatpush1.bf16.msra.mxu0 %v753
  %982 = vmatprep.subr.bf16.mxu0 %v758
  %983 = vmatpush1.bf16.msra.mxu0 %v757
  %984 = vmatprep.subr.bf16.mxu0 %v762
  %985 = vmatpush1.bf16.msra.mxu0 %v761
  %986 = vmatprep.subr.bf16.mxu0 %v766
  %987 = vmatpush1.bf16.msra.mxu0 %v765
  %988 = vmatprep.subr.bf16.mxu0 %v770
  %989 = vmatpush1.bf16.msra.mxu0 %v769
  %990 = vmatprep.subr.bf16.mxu0 %v774
  %991 = vmatpush1.bf16.msra.mxu0 %v773
  %992 = vmatprep.subr.bf16.mxu0 %v778
  %993 = vmatpush1.bf16.msra.mxu0 %v777
  %994 = vmatprep.subr.bf16.mxu0 %v782
  %995 = vmatpush1.bf16.msra.mxu0 %v781
  %996 = vmatprep.subr.bf16.mxu0 %v786
  %997 = vmatpush1.bf16.msra.mxu0 %v785
  %998 = vmatprep.subr.bf16.mxu0 %v790
  %999 = vmatpush1.bf16.msra.mxu0 %v789
  %1000 = vmatprep.subr.bf16.mxu0 %v794
  %1001 = vmatpush1.bf16.msra.mxu0 %v793
  %1002 = vmatprep.subr.bf16.mxu0 %v798
  %1003 = vmatpush1.bf16.msra.mxu0 %v797
  %1004 = vmatprep.subr.bf16.mxu0 %v802
  %1005 = vmatpush1.bf16.msra.mxu0 %v801
  %1006 = vmatprep.mubr.bf16.mxu0 %v288
  %1007 = vmatmul.mubr.bf16.gmra.mrb[0].mxu0 %v287
  %v1008 = vpop.f32.mrb[0].mxu0
  %v1009 = vadd.f32 %v968, %v1008
  %v1010 = vpop.f32.mrb[0].mxu0
  %v1011 = vadd.f32 %v970, %v1010
  %v1012 = vpop.f32.mrb[0].mxu0
  %v1013 = vpop.f32.mrb[0].mxu0
  %1014 = vdwg.mxu0
  %1015 = vmatprep.subr.bf16.mxu0 %v680
  %1016 = vmatpush1.bf16.msra.mxu0 %v679
  %1017 = vmatprep.subr.bf16.mxu0 %v684
  %1018 = vmatpush1.bf16.msra.mxu0 %v683
  %1019 = vmatprep.subr.bf16.mxu0 %v688
  %1020 = vmatpush1.bf16.msra.mxu0 %v687
  %1021 = vmatprep.subr.bf16.mxu0 %v692
  %1022 = vmatpush1.bf16.msra.mxu0 %v691
  %1023 = vmatprep.subr.bf16.mxu0 %v696
  %1024 = vmatpush1.bf16.msra.mxu0 %v695
  %1025 = vmatprep.subr.bf16.mxu0 %v700
  %1026 = vmatpush1.bf16.msra.mxu0 %v699
  %1027 = vmatprep.subr.bf16.mxu0 %v704
  %1028 = vmatpush1.bf16.msra.mxu0 %v703
  %1029 = vmatprep.subr.bf16.mxu0 %v708
  %1030 = vmatpush1.bf16.msra.mxu0 %v707
  %1031 = vmatprep.subr.bf16.mxu0 %v712
  %1032 = vmatpush1.bf16.msra.mxu0 %v711
  %1033 = vmatprep.subr.bf16.mxu0 %v716
  %1034 = vmatpush1.bf16.msra.mxu0 %v715
  %1035 = vmatprep.subr.bf16.mxu0 %v720
  %1036 = vmatpush1.bf16.msra.mxu0 %v719
  %1037 = vmatprep.subr.bf16.mxu0 %v724
  %1038 = vmatpush1.bf16.msra.mxu0 %v723
  %1039 = vmatprep.subr.bf16.mxu0 %v728
  %1040 = vmatpush1.bf16.msra.mxu0 %v727
  %1041 = vmatprep.subr.bf16.mxu0 %v732
  %1042 = vmatpush1.bf16.msra.mxu0 %v731
  %1043 = vmatprep.subr.bf16.mxu0 %v736
  %1044 = vmatpush1.bf16.msra.mxu0 %v735
  %1045 = vmatprep.subr.bf16.mxu0 %v740
  %1046 = vmatpush1.bf16.msra.mxu0 %v739
  %1047 = vmatprep.mubr.bf16.mxu0 %v286
  %1048 = vmatmul.mubr.bf16.gmra.mrb[0].mxu0 %v285
  %v1049 = vpop.f32.mrb[0].mxu0
  %v1050 = vadd.f32 0.0, %v1049
  %v1051 = vpop.f32.mrb[0].mxu0
  %v1052 = vadd.f32 0.0, %v1051
  %v1053 = vpop.f32.mrb[0].mxu0
  %v1054 = vpop.f32.mrb[0].mxu0
  %1055 = vdwg.mxu0
  %1056 = vmatprep.subr.bf16.mxu0 %v744
  %1057 = vmatpush1.bf16.msra.mxu0 %v743
  %1058 = vmatprep.subr.bf16.mxu0 %v748
  %1059 = vmatpush1.bf16.msra.mxu0 %v747
  %1060 = vmatprep.subr.bf16.mxu0 %v752
  %1061 = vmatpush1.bf16.msra.mxu0 %v751
  %1062 = vmatprep.subr.bf16.mxu0 %v756
  %1063 = vmatpush1.bf16.msra.mxu0 %v755
  %1064 = vmatprep.subr.bf16.mxu0 %v760
  %1065 = vmatpush1.bf16.msra.mxu0 %v759
  %1066 = vmatprep.subr.bf16.mxu0 %v764
  %1067 = vmatpush1.bf16.msra.mxu0 %v763
  %1068 = vmatprep.subr.bf16.mxu0 %v768
  %1069 = vmatpush1.bf16.msra.mxu0 %v767
  %1070 = vmatprep.subr.bf16.mxu0 %v772
  %1071 = vmatpush1.bf16.msra.mxu0 %v771
  %1072 = vmatprep.subr.bf16.mxu0 %v776
  %1073 = vmatpush1.bf16.msra.mxu0 %v775
  %1074 = vmatprep.subr.bf16.mxu0 %v780
  %1075 = vmatpush1.bf16.msra.mxu0 %v779
  %1076 = vmatprep.subr.bf16.mxu0 %v784
  %1077 = vmatpush1.bf16.msra.mxu0 %v783
  %1078 = vmatprep.subr.bf16.mxu0 %v788
  %1079 = vmatpush1.bf16.msra.mxu0 %v787
  %1080 = vmatprep.subr.bf16.mxu0 %v792
  %1081 = vmatpush1.bf16.msra.mxu0 %v791
  %1082 = vmatprep.subr.bf16.mxu0 %v796
  %1083 = vmatpush1.bf16.msra.mxu0 %v795
  %1084 = vmatprep.subr.bf16.mxu0 %v800
  %1085 = vmatpush1.bf16.msra.mxu0 %v799
  %1086 = vmatprep.subr.bf16.mxu0 %v804
  %1087 = vmatpush1.bf16.msra.mxu0 %v803
  %1088 = vmatprep.mubr.bf16.mxu0 %v288
  %1089 = vmatmul.mubr.bf16.gmra.mrb[0].mxu0 %v287
  %v1090 = vpop.f32.mrb[0].mxu0
  %v1091 = vadd.f32 %v1050, %v1090
  %v1092 = vpop.f32.mrb[0].mxu0
  %v1093 = vadd.f32 %v1052, %v1092
  %v1094 = vpop.f32.mrb[0].mxu0
  %v1095 = vpop.f32.mrb[0].mxu0
  %1096 = vdwg.mxu0
  %v1097 = vadd.f32 %v1009, %v1011
  %v1098 = vadd.f32 %v1097, %v1091
  %v1099 = vadd.f32 %v1098, %v1093
  %1100 = vadd.xlane.f32.xlu0 %v1099
  %v1101 = vpop.xlane.xlu0 %1100
  %v1102 = vrcp.pop 512.0
  %v1103 = vmul.f32 %v1101, %v1102
  %v1104 = vsub.f32 %v1009, %v1103
  %v1105 = vsub.f32 %v1011, %v1103
  %v1106 = vsub.f32 %v1091, %v1103
  %v1107 = vsub.f32 %v1093, %v1103
  %v1108 = vmul.f32 %v1104, %v1104
  %v1109 = vmul.f32 %v1105, %v1105
  %v1110 = vmul.f32 %v1106, %v1106
  %v1111 = vmul.f32 %v1107, %v1107
  %v1112 = vadd.f32 %v1108, %v1109
  %v1113 = vadd.f32 %v1112, %v1110
  %v1114 = vadd.f32 %v1113, %v1111
  %1115 = vadd.xlane.f32.xlu0 %v1114
  %v1116 = vpop.xlane.xlu0 %1115
  %v1117 = vmul.f32 %v1116, %v1102
  %v1118 = vadd.f32 %v1117, 1e-05
  %v1119 = vrsqrt.pop %v1118
  %v1120 = vmul.f32 %v1104, %v1119
  %v1121 = vmul.f32 %v1105, %v1119
  %v1122 = vmul.f32 %v1106, %v1119
  %v1123 = vmul.f32 %v1107, %v1119
  %v1124 = vld [vmem:[%s3] sm:$0xff]
  %1126 = vset.pattern.permute.xlu0 0
  %1127 = vperm.xlu0 %1126, %v1124
  %v1128 = vpop.permute.xlu0 %1127
  %v1130 = vmul.f32 %v1120, %v1128
  %v1131 = vmul.f32 %v1121, %v1128
  %v1132 = vmul.f32 %v1122, %v1128
  %v1133 = vmul.f32 %v1123, %v1128
  %v1134 = vld [vmem:[%s4] sm:$0xff]
  %1136 = vset.pattern.permute.xlu0 0
  %1137 = vperm.xlu0 %1136, %v1134
  %v1138 = vpop.permute.xlu0 %1137
  %v1140 = vadd.f32 %v1130, %v1138
  %v1141 = vadd.f32 %v1131, %v1138
  %v1142 = vadd.f32 %v1132, %v1138
  %v1143 = vadd.f32 %v1133, %v1138
  %v1144 = vpack.c.bf16 %v1140, %v1140
  %v1145 = vpack.c.bf16 %v1141, %v1141
  %v1146 = vpack.c.bf16 %v1142, %v1142
  %v1147 = vpack.c.bf16 %v1143, %v1143
  %v1152 = vunpack.c.l.b16 %v1144
  %v1153 = vunpack.c.l.b16 %v1145
  %v1154 = vunpack.c.l.b16 %v1146
  %v1155 = vunpack.c.l.b16 %v1147
  %v1156 = vpack.c.b16 %v1153, %v1152
  %v1157 = vpack.c.b16 %v1155, %v1154
  %1160 = vst [vmem:[%s5] sm:$0xff] %v1156
  %1161 = vst [vmem:[%s5 + $0x8] sm:$0xff] %v1157
  // Predicated region
  $region22: #{unet_generator_forward.18} parent=0 // pred_check
    _
  $region23: #{unet_generator_forward.18} parent=0 // pred_check_branch
    %1163 = sbr.rel (0) target = $region25
  $region24: #{unet_generator_forward.18} parent=0 // pred_region
    _
  $region25: #{unet_generator_forward.18} parent=0 // pred_fallthru
    _
  // Predicated region
  $region26: #{unet_generator_forward.18} parent=0 // pred_check
    _
  $region27: #{unet_generator_forward.18} parent=0 // pred_check_branch
    %1165 = sbr.rel (0) target = $region29
  $region28: #{unet_generator_forward.18} parent=0 // pred_region
    _
  $region29: #{unet_generator_forward.18} parent=0 // pred_fallthru
    _

// kernel: unet_generator_forward.19
$region0: #{unet_generator_forward.19}
  #allocation0 [shape = 'u32[]', space=smem, size = 0x4, offset = 0x4, fixed_abs, tag = 'smem constant byte address 0x4 - core index']
  #allocation1 [shape = 'u32[144,128]{1,0:T(1,128)}', space=vmem, size = 0x12000, scoped, tag = 'internal scratch']
  %s0 = inlined_call_operand.vmem [shape: bf16[3,256], index: 0, kind: input, shape index: {}]
  %s1 = inlined_call_operand.vmem [shape: bf16[256,2048], index: 1, kind: input, shape index: {}]
  %s2 = inlined_call_operand.vmem [shape: f32[3,1], index: 2, kind: input, shape index: {}]
  %s3 = inlined_call_operand.vmem [shape: f32[3,1], index: 3, kind: input, shape index: {}]
  %s4 = inlined_call_operand.vmem [shape: f32[3,1], index: 4, kind: input, shape index: {}]
  %s5 = inlined_call_operand.vmem [shape: f32[3,2048], index: 5, kind: output, shape index: {}]
  %s6 = sld [smem:[#allocation0]]
  $region30: #{unet_generator_forward.19} parent=0
    _
  %s8 = ssub.s32 1, %s6
  %s9 = scalar_select 0, %s8, %s6
  // Predicated region
  $region2: #{unet_generator_forward.19} parent=0 // pred_check
    _
  $region3: #{unet_generator_forward.19} parent=0 // pred_check_branch
    %11 = sbr.rel (0) target = $region5
  $region4: #{unet_generator_forward.19} parent=0 // pred_region
    _
  $region5: #{unet_generator_forward.19} parent=0 // pred_fallthru
    _
  // Predicated region
  $region6: #{unet_generator_forward.19} parent=0 // pred_check
    _
  $region7: #{unet_generator_forward.19} parent=0 // pred_check_branch
    %13 = sbr.rel (0) target = $region9
  $region8: #{unet_generator_forward.19} parent=0 // pred_region
    _
  $region9: #{unet_generator_forward.19} parent=0 // pred_fallthru
    _
  // Predicated region
  $region10: #{unet_generator_forward.19} parent=0 // pred_check
    _
  $region11: #{unet_generator_forward.19} parent=0 // pred_check_branch
    %15 = sbr.rel (0) target = $region13
  $region12: #{unet_generator_forward.19} parent=0 // pred_region
    _
  $region13: #{unet_generator_forward.19} parent=0 // pred_fallthru
    _
  // Predicated region
  $region14: #{unet_generator_forward.19} parent=0 // pred_check
    _
  $region15: #{unet_generator_forward.19} parent=0 // pred_check_branch
    %17 = sbr.rel (0) target = $region17
  $region16: #{unet_generator_forward.19} parent=0 // pred_region
    _
  $region17: #{unet_generator_forward.19} parent=0 // pred_fallthru
    _
  // Predicated region
  $region18: #{unet_generator_forward.19} parent=0 // pred_check
    _
  $region19: #{unet_generator_forward.19} parent=0 // pred_check_branch
    %19 = sbr.rel (0) target = $region21
  $region20: #{unet_generator_forward.19} parent=0 // pred_region
    _
  $region21: #{unet_generator_forward.19} parent=0 // pred_fallthru
    _
  %v21 = vld [vmem:[%s1] sm:$0xff]
  %v22 = vld [vmem:[%s1 + $0x8] sm:$0xff]
  %v23 = vld [vmem:[%s1 + $0x10] sm:$0xff]
  %v24 = vld [vmem:[%s1 + $0x18] sm:$0xff]
  %v25 = vld [vmem:[%s1 + $0x20] sm:$0xff]
  %v26 = vld [vmem:[%s1 + $0x28] sm:$0xff]
  %v27 = vld [vmem:[%s1 + $0x30] sm:$0xff]
  %v28 = vld [vmem:[%s1 + $0x38] sm:$0xff]
  %v29 = vld [vmem:[%s1 + $0x40] sm:$0xff]
  %v30 = vld [vmem:[%s1 + $0x48] sm:$0xff]
  %v31 = vld [vmem:[%s1 + $0x50] sm:$0xff]
  %v32 = vld [vmem:[%s1 + $0x58] sm:$0xff]
  %v33 = vld [vmem:[%s1 + $0x60] sm:$0xff]
  %v34 = vld [vmem:[%s1 + $0x68] sm:$0xff]
  %v35 = vld [vmem:[%s1 + $0x70] sm:$0xff]
  %v36 = vld [vmem:[%s1 + $0x78] sm:$0xff]
  %v37 = vld [vmem:[%s1 + $0x80] sm:$0xff]
  %v38 = vld [vmem:[%s1 + $0x88] sm:$0xff]
  %v39 = vld [vmem:[%s1 + $0x90] sm:$0xff]
  %v40 = vld [vmem:[%s1 + $0x98] sm:$0xff]
  %v41 = vld [vmem:[%s1 + $0xa0] sm:$0xff]
  %v42 = vld [vmem:[%s1 + $0xa8] sm:$0xff]
  %v43 = vld [vmem:[%s1 + $0xb0] sm:$0xff]
  %v44 = vld [vmem:[%s1 + $0xb8] sm:$0xff]
  %v45 = vld [vmem:[%s1 + $0xc0] sm:$0xff]
  %v46 = vld [vmem:[%s1 + $0xc8] sm:$0xff]
  %v47 = vld [vmem:[%s1 + $0xd0] sm:$0xff]
  %v48 = vld [vmem:[%s1 + $0xd8] sm:$0xff]
  %v49 = vld [vmem:[%s1 + $0xe0] sm:$0xff]
  %v50 = vld [vmem:[%s1 + $0xe8] sm:$0xff]
  %v51 = vld [vmem:[%s1 + $0xf0] sm:$0xff]
  %v52 = vld [vmem:[%s1 + $0xf8] sm:$0xff]
  %v53 = vld [vmem:[%s1 + $0x100] sm:$0xff]
  %v54 = vld [vmem:[%s1 + $0x108] sm:$0xff]
  %v55 = vld [vmem:[%s1 + $0x110] sm:$0xff]
  %v56 = vld [vmem:[%s1 + $0x118] sm:$0xff]
  %v57 = vld [vmem:[%s1 + $0x120] sm:$0xff]
  %v58 = vld [vmem:[%s1 + $0x128] sm:$0xff]
  %v59 = vld [vmem:[%s1 + $0x130] sm:$0xff]
  %v60 = vld [vmem:[%s1 + $0x138] sm:$0xff]
  %v61 = vld [vmem:[%s1 + $0x140] sm:$0xff]
  %v62 = vld [vmem:[%s1 + $0x148] sm:$0xff]
  %v63 = vld [vmem:[%s1 + $0x150] sm:$0xff]
  %v64 = vld [vmem:[%s1 + $0x158] sm:$0xff]
  %v65 = vld [vmem:[%s1 + $0x160] sm:$0xff]
  %v66 = vld [vmem:[%s1 + $0x168] sm:$0xff]
  %v67 = vld [vmem:[%s1 + $0x170] sm:$0xff]
  %v68 = vld [vmem:[%s1 + $0x178] sm:$0xff]
  %v69 = vld [vmem:[%s1 + $0x180] sm:$0xff]
  %v70 = vld [vmem:[%s1 + $0x188] sm:$0xff]
  %v71 = vld [vmem:[%s1 + $0x190] sm:$0xff]
  %v72 = vld [vmem:[%s1 + $0x198] sm:$0xff]
  %v73 = vld [vmem:[%s1 + $0x1a0] sm:$0xff]
  %v74 = vld [vmem:[%s1 + $0x1a8] sm:$0xff]
  %v75 = vld [vmem:[%s1 + $0x1b0] sm:$0xff]
  %v76 = vld [vmem:[%s1 + $0x1b8] sm:$0xff]
  %v77 = vld [vmem:[%s1 + $0x1c0] sm:$0xff]
  %v78 = vld [vmem:[%s1 + $0x1c8] sm:$0xff]
  %v79 = vld [vmem:[%s1 + $0x1d0] sm:$0xff]
  %v80 = vld [vmem:[%s1 + $0x1d8] sm:$0xff]
  %v81 = vld [vmem:[%s1 + $0x1e0] sm:$0xff]
  %v82 = vld [vmem:[%s1 + $0x1e8] sm:$0xff]
  %v83 = vld [vmem:[%s1 + $0x1f0] sm:$0xff]
  %v84 = vld [vmem:[%s1 + $0x1f8] sm:$0xff]
  %v85 = vld [vmem:[%s1 + $0x200] sm:$0xff]
  %v86 = vld [vmem:[%s1 + $0x208] sm:$0xff]
  %v87 = vld [vmem:[%s1 + $0x210] sm:$0xff]
  %v88 = vld [vmem:[%s1 + $0x218] sm:$0xff]
  %v89 = vld [vmem:[%s1 + $0x220] sm:$0xff]
  %v90 = vld [vmem:[%s1 + $0x228] sm:$0xff]
  %v91 = vld [vmem:[%s1 + $0x230] sm:$0xff]
  %v92 = vld [vmem:[%s1 + $0x238] sm:$0xff]
  %v93 = vld [vmem:[%s1 + $0x240] sm:$0xff]
  %v94 = vld [vmem:[%s1 + $0x248] sm:$0xff]
  %v95 = vld [vmem:[%s1 + $0x250] sm:$0xff]
  %v96 = vld [vmem:[%s1 + $0x258] sm:$0xff]
  %v97 = vld [vmem:[%s1 + $0x260] sm:$0xff]
  %v98 = vld [vmem:[%s1 + $0x268] sm:$0xff]
  %v99 = vld [vmem:[%s1 + $0x270] sm:$0xff]
  %v100 = vld [vmem:[%s1 + $0x278] sm:$0xff]
  %v101 = vld [vmem:[%s1 + $0x280] sm:$0xff]
  %v102 = vld [vmem:[%s1 + $0x288] sm:$0xff]
  %v103 = vld [vmem:[%s1 + $0x290] sm:$0xff]
  %v104 = vld [vmem:[%s1 + $0x298] sm:$0xff]
  %v105 = vld [vmem:[%s1 + $0x2a0] sm:$0xff]
  %v106 = vld [vmem:[%s1 + $0x2a8] sm:$0xff]
  %v107 = vld [vmem:[%s1 + $0x2b0] sm:$0xff]
  %v108 = vld [vmem:[%s1 + $0x2b8] sm:$0xff]
  %v109 = vld [vmem:[%s1 + $0x2c0] sm:$0xff]
  %v110 = vld [vmem:[%s1 + $0x2c8] sm:$0xff]
  %v111 = vld [vmem:[%s1 + $0x2d0] sm:$0xff]
  %v112 = vld [vmem:[%s1 + $0x2d8] sm:$0xff]
  %v113 = vld [vmem:[%s1 + $0x2e0] sm:$0xff]
  %v114 = vld [vmem:[%s1 + $0x2e8] sm:$0xff]
  %v115 = vld [vmem:[%s1 + $0x2f0] sm:$0xff]
  %v116 = vld [vmem:[%s1 + $0x2f8] sm:$0xff]
  %v117 = vld [vmem:[%s1 + $0x300] sm:$0xff]
  %v118 = vld [vmem:[%s1 + $0x308] sm:$0xff]
  %v119 = vld [vmem:[%s1 + $0x310] sm:$0xff]
  %v120 = vld [vmem:[%s1 + $0x318] sm:$0xff]
  %v121 = vld [vmem:[%s1 + $0x320] sm:$0xff]
  %v122 = vld [vmem:[%s1 + $0x328] sm:$0xff]
  %v123 = vld [vmem:[%s1 + $0x330] sm:$0xff]
  %v124 = vld [vmem:[%s1 + $0x338] sm:$0xff]
  %v125 = vld [vmem:[%s1 + $0x340] sm:$0xff]
  %v126 = vld [vmem:[%s1 + $0x348] sm:$0xff]
  %v127 = vld [vmem:[%s1 + $0x350] sm:$0xff]
  %v128 = vld [vmem:[%s1 + $0x358] sm:$0xff]
  %v129 = vld [vmem:[%s1 + $0x360] sm:$0xff]
  %v130 = vld [vmem:[%s1 + $0x368] sm:$0xff]
  %v131 = vld [vmem:[%s1 + $0x370] sm:$0xff]
  %v132 = vld [vmem:[%s1 + $0x378] sm:$0xff]
  %v133 = vld [vmem:[%s1 + $0x380] sm:$0xff]
  %v134 = vld [vmem:[%s1 + $0x388] sm:$0xff]
  %v135 = vld [vmem:[%s1 + $0x390] sm:$0xff]
  %v136 = vld [vmem:[%s1 + $0x398] sm:$0xff]
  %v137 = vld [vmem:[%s1 + $0x3a0] sm:$0xff]
  %v138 = vld [vmem:[%s1 + $0x3a8] sm:$0xff]
  %v139 = vld [vmem:[%s1 + $0x3b0] sm:$0xff]
  %v140 = vld [vmem:[%s1 + $0x3b8] sm:$0xff]
  %v141 = vld [vmem:[%s1 + $0x3c0] sm:$0xff]
  %v142 = vld [vmem:[%s1 + $0x3c8] sm:$0xff]
  %v143 = vld [vmem:[%s1 + $0x3d0] sm:$0xff]
  %v144 = vld [vmem:[%s1 + $0x3d8] sm:$0xff]
  %v145 = vld [vmem:[%s1 + $0x3e0] sm:$0xff]
  %v146 = vld [vmem:[%s1 + $0x3e8] sm:$0xff]
  %v147 = vld [vmem:[%s1 + $0x3f0] sm:$0xff]
  %v148 = vld [vmem:[%s1 + $0x3f8] sm:$0xff]
  %v149 = vld [vmem:[%s1 + $0x400] sm:$0xff]
  %v150 = vld [vmem:[%s1 + $0x408] sm:$0xff]
  %v151 = vld [vmem:[%s1 + $0x410] sm:$0xff]
  %v152 = vld [vmem:[%s1 + $0x418] sm:$0xff]
  %v153 = vld [vmem:[%s1 + $0x420] sm:$0xff]
  %v154 = vld [vmem:[%s1 + $0x428] sm:$0xff]
  %v155 = vld [vmem:[%s1 + $0x430] sm:$0xff]
  %v156 = vld [vmem:[%s1 + $0x438] sm:$0xff]
  %v157 = vld [vmem:[%s1 + $0x440] sm:$0xff]
  %v158 = vld [vmem:[%s1 + $0x448] sm:$0xff]
  %v159 = vld [vmem:[%s1 + $0x450] sm:$0xff]
  %v160 = vld [vmem:[%s1 + $0x458] sm:$0xff]
  %v161 = vld [vmem:[%s1 + $0x460] sm:$0xff]
  %v162 = vld [vmem:[%s1 + $0x468] sm:$0xff]
  %v163 = vld [vmem:[%s1 + $0x470] sm:$0xff]
  %v164 = vld [vmem:[%s1 + $0x478] sm:$0xff]
  %v165 = vld [vmem:[%s1 + $0x480] sm:$0xff]
  %v166 = vld [vmem:[%s1 + $0x488] sm:$0xff]
  %v167 = vld [vmem:[%s1 + $0x490] sm:$0xff]
  %v168 = vld [vmem:[%s1 + $0x498] sm:$0xff]
  %v169 = vld [vmem:[%s1 + $0x4a0] sm:$0xff]
  %v170 = vld [vmem:[%s1 + $0x4a8] sm:$0xff]
  %v171 = vld [vmem:[%s1 + $0x4b0] sm:$0xff]
  %v172 = vld [vmem:[%s1 + $0x4b8] sm:$0xff]
  %v173 = vld [vmem:[%s1 + $0x4c0] sm:$0xff]
  %v174 = vld [vmem:[%s1 + $0x4c8] sm:$0xff]
  %v175 = vld [vmem:[%s1 + $0x4d0] sm:$0xff]
  %v176 = vld [vmem:[%s1 + $0x4d8] sm:$0xff]
  %v177 = vld [vmem:[%s1 + $0x4e0] sm:$0xff]
  %v178 = vld [vmem:[%s1 + $0x4e8] sm:$0xff]
  %v179 = vld [vmem:[%s1 + $0x4f0] sm:$0xff]
  %v180 = vld [vmem:[%s1 + $0x4f8] sm:$0xff]
  %v181 = vld [vmem:[%s1 + $0x500] sm:$0xff]
  %v182 = vld [vmem:[%s1 + $0x508] sm:$0xff]
  %v183 = vld [vmem:[%s1 + $0x510] sm:$0xff]
  %v184 = vld [vmem:[%s1 + $0x518] sm:$0xff]
  %v185 = vld [vmem:[%s1 + $0x520] sm:$0xff]
  %v186 = vld [vmem:[%s1 + $0x528] sm:$0xff]
  %v187 = vld [vmem:[%s1 + $0x530] sm:$0xff]
  %v188 = vld [vmem:[%s1 + $0x538] sm:$0xff]
  %v189 = vld [vmem:[%s1 + $0x540] sm:$0xff]
  %v190 = vld [vmem:[%s1 + $0x548] sm:$0xff]
  %v191 = vld [vmem:[%s1 + $0x550] sm:$0xff]
  %v192 = vld [vmem:[%s1 + $0x558] sm:$0xff]
  %v193 = vld [vmem:[%s1 + $0x560] sm:$0xff]
  %v194 = vld [vmem:[%s1 + $0x568] sm:$0xff]
  %v195 = vld [vmem:[%s1 + $0x570] sm:$0xff]
  %v196 = vld [vmem:[%s1 + $0x578] sm:$0xff]
  %v197 = vld [vmem:[%s1 + $0x580] sm:$0xff]
  %v198 = vld [vmem:[%s1 + $0x588] sm:$0xff]
  %v199 = vld [vmem:[%s1 + $0x590] sm:$0xff]
  %v200 = vld [vmem:[%s1 + $0x598] sm:$0xff]
  %v201 = vld [vmem:[%s1 + $0x5a0] sm:$0xff]
  %v202 = vld [vmem:[%s1 + $0x5a8] sm:$0xff]
  %v203 = vld [vmem:[%s1 + $0x5b0] sm:$0xff]
  %v204 = vld [vmem:[%s1 + $0x5b8] sm:$0xff]
  %v205 = vld [vmem:[%s1 + $0x5c0] sm:$0xff]
  %v206 = vld [vmem:[%s1 + $0x5c8] sm:$0xff]
  %v207 = vld [vmem:[%s1 + $0x5d0] sm:$0xff]
  %v208 = vld [vmem:[%s1 + $0x5d8] sm:$0xff]
  %v209 = vld [vmem:[%s1 + $0x5e0] sm:$0xff]
  %v210 = vld [vmem:[%s1 + $0x5e8] sm:$0xff]
  %v211 = vld [vmem:[%s1 + $0x5f0] sm:$0xff]
  %v212 = vld [vmem:[%s1 + $0x5f8] sm:$0xff]
  %v213 = vld [vmem:[%s1 + $0x600] sm:$0xff]
  %v214 = vld [vmem:[%s1 + $0x608] sm:$0xff]
  %v215 = vld [vmem:[%s1 + $0x610] sm:$0xff]
  %v216 = vld [vmem:[%s1 + $0x618] sm:$0xff]
  %v217 = vld [vmem:[%s1 + $0x620] sm:$0xff]
  %v218 = vld [vmem:[%s1 + $0x628] sm:$0xff]
  %v219 = vld [vmem:[%s1 + $0x630] sm:$0xff]
  %v220 = vld [vmem:[%s1 + $0x638] sm:$0xff]
  %v221 = vld [vmem:[%s1 + $0x640] sm:$0xff]
  %v222 = vld [vmem:[%s1 + $0x648] sm:$0xff]
  %v223 = vld [vmem:[%s1 + $0x650] sm:$0xff]
  %v224 = vld [vmem:[%s1 + $0x658] sm:$0xff]
  %v225 = vld [vmem:[%s1 + $0x660] sm:$0xff]
  %v226 = vld [vmem:[%s1 + $0x668] sm:$0xff]
  %v227 = vld [vmem:[%s1 + $0x670] sm:$0xff]
  %v228 = vld [vmem:[%s1 + $0x678] sm:$0xff]
  %v229 = vld [vmem:[%s1 + $0x680] sm:$0xff]
  %v230 = vld [vmem:[%s1 + $0x688] sm:$0xff]
  %v231 = vld [vmem:[%s1 + $0x690] sm:$0xff]
  %v232 = vld [vmem:[%s1 + $0x698] sm:$0xff]
  %v233 = vld [vmem:[%s1 + $0x6a0] sm:$0xff]
  %v234 = vld [vmem:[%s1 + $0x6a8] sm:$0xff]
  %v235 = vld [vmem:[%s1 + $0x6b0] sm:$0xff]
  %v236 = vld [vmem:[%s1 + $0x6b8] sm:$0xff]
  %v237 = vld [vmem:[%s1 + $0x6c0] sm:$0xff]
  %v238 = vld [vmem:[%s1 + $0x6c8] sm:$0xff]
  %v239 = vld [vmem:[%s1 + $0x6d0] sm:$0xff]
  %v240 = vld [vmem:[%s1 + $0x6d8] sm:$0xff]
  %v241 = vld [vmem:[%s1 + $0x6e0] sm:$0xff]
  %v242 = vld [vmem:[%s1 + $0x6e8] sm:$0xff]
  %v243 = vld [vmem:[%s1 + $0x6f0] sm:$0xff]
  %v244 = vld [vmem:[%s1 + $0x6f8] sm:$0xff]
  %v245 = vld [vmem:[%s1 + $0x700] sm:$0xff]
  %v246 = vld [vmem:[%s1 + $0x708] sm:$0xff]
  %v247 = vld [vmem:[%s1 + $0x710] sm:$0xff]
  %v248 = vld [vmem:[%s1 + $0x718] sm:$0xff]
  %v249 = vld [vmem:[%s1 + $0x720] sm:$0xff]
  %v250 = vld [vmem:[%s1 + $0x728] sm:$0xff]
  %v251 = vld [vmem:[%s1 + $0x730] sm:$0xff]
  %v252 = vld [vmem:[%s1 + $0x738] sm:$0xff]
  %v253 = vld [vmem:[%s1 + $0x740] sm:$0xff]
  %v254 = vld [vmem:[%s1 + $0x748] sm:$0xff]
  %v255 = vld [vmem:[%s1 + $0x750] sm:$0xff]
  %v256 = vld [vmem:[%s1 + $0x758] sm:$0xff]
  %v257 = vld [vmem:[%s1 + $0x760] sm:$0xff]
  %v258 = vld [vmem:[%s1 + $0x768] sm:$0xff]
  %v259 = vld [vmem:[%s1 + $0x770] sm:$0xff]
  %v260 = vld [vmem:[%s1 + $0x778] sm:$0xff]
  %v261 = vld [vmem:[%s1 + $0x780] sm:$0xff]
  %v262 = vld [vmem:[%s1 + $0x788] sm:$0xff]
  %v263 = vld [vmem:[%s1 + $0x790] sm:$0xff]
  %v264 = vld [vmem:[%s1 + $0x798] sm:$0xff]
  %v265 = vld [vmem:[%s1 + $0x7a0] sm:$0xff]
  %v266 = vld [vmem:[%s1 + $0x7a8] sm:$0xff]
  %v267 = vld [vmem:[%s1 + $0x7b0] sm:$0xff]
  %v268 = vld [vmem:[%s1 + $0x7b8] sm:$0xff]
  %v269 = vld [vmem:[%s1 + $0x7c0] sm:$0xff]
  %v270 = vld [vmem:[%s1 + $0x7c8] sm:$0xff]
  %v271 = vld [vmem:[%s1 + $0x7d0] sm:$0xff]
  %v272 = vld [vmem:[%s1 + $0x7d8] sm:$0xff]
  %v273 = vld [vmem:[%s1 + $0x7e0] sm:$0xff]
  %v274 = vld [vmem:[%s1 + $0x7e8] sm:$0xff]
  %v275 = vld [vmem:[%s1 + $0x7f0] sm:$0xff]
  %v276 = vld [vmem:[%s1 + $0x7f8] sm:$0xff]
  %v277 = vmax.bf16 %v21, 0
  %v278 = vmax.bf16 %v22, 0
  %v279 = vmax.bf16 %v23, 0
  %v280 = vmax.bf16 %v24, 0
  %v281 = vmax.bf16 %v25, 0
  %v282 = vmax.bf16 %v26, 0
  %v283 = vmax.bf16 %v27, 0
  %v284 = vmax.bf16 %v28, 0
  %v285 = vmax.bf16 %v29, 0
  %v286 = vmax.bf16 %v30, 0
  %v287 = vmax.bf16 %v31, 0
  %v288 = vmax.bf16 %v32, 0
  %v289 = vmax.bf16 %v33, 0
  %v290 = vmax.bf16 %v34, 0
  %v291 = vmax.bf16 %v35, 0
  %v292 = vmax.bf16 %v36, 0
  %v293 = vmax.bf16 %v37, 0
  %v294 = vmax.bf16 %v38, 0
  %v295 = vmax.bf16 %v39, 0
  %v296 = vmax.bf16 %v40, 0
  %v297 = vmax.bf16 %v41, 0
  %v298 = vmax.bf16 %v42, 0
  %v299 = vmax.bf16 %v43, 0
  %v300 = vmax.bf16 %v44, 0
  %v301 = vmax.bf16 %v45, 0
  %v302 = vmax.bf16 %v46, 0
  %v303 = vmax.bf16 %v47, 0
  %v304 = vmax.bf16 %v48, 0
  %v305 = vmax.bf16 %v49, 0
  %v306 = vmax.bf16 %v50, 0
  %v307 = vmax.bf16 %v51, 0
  %v308 = vmax.bf16 %v52, 0
  %v309 = vmax.bf16 %v53, 0
  %v310 = vmax.bf16 %v54, 0
  %v311 = vmax.bf16 %v55, 0
  %v312 = vmax.bf16 %v56, 0
  %v313 = vmax.bf16 %v57, 0
  %v314 = vmax.bf16 %v58, 0
  %v315 = vmax.bf16 %v59, 0
  %v316 = vmax.bf16 %v60, 0
  %v317 = vmax.bf16 %v61, 0
  %v318 = vmax.bf16 %v62, 0
  %v319 = vmax.bf16 %v63, 0
  %v320 = vmax.bf16 %v64, 0
  %v321 = vmax.bf16 %v65, 0
  %v322 = vmax.bf16 %v66, 0
  %v323 = vmax.bf16 %v67, 0
  %v324 = vmax.bf16 %v68, 0
  %v325 = vmax.bf16 %v69, 0
  %v326 = vmax.bf16 %v70, 0
  %v327 = vmax.bf16 %v71, 0
  %v328 = vmax.bf16 %v72, 0
  %v329 = vmax.bf16 %v73, 0
  %v330 = vmax.bf16 %v74, 0
  %v331 = vmax.bf16 %v75, 0
  %v332 = vmax.bf16 %v76, 0
  %v333 = vmax.bf16 %v77, 0
  %v334 = vmax.bf16 %v78, 0
  %v335 = vmax.bf16 %v79, 0
  %v336 = vmax.bf16 %v80, 0
  %v337 = vmax.bf16 %v81, 0
  %v338 = vmax.bf16 %v82, 0
  %v339 = vmax.bf16 %v83, 0
  %v340 = vmax.bf16 %v84, 0
  %v341 = vmax.bf16 %v85, 0
  %v342 = vmax.bf16 %v86, 0
  %v343 = vmax.bf16 %v87, 0
  %v344 = vmax.bf16 %v88, 0
  %v345 = vmax.bf16 %v89, 0
  %v346 = vmax.bf16 %v90, 0
  %v347 = vmax.bf16 %v91, 0
  %v348 = vmax.bf16 %v92, 0
  %v349 = vmax.bf16 %v93, 0
  %v350 = vmax.bf16 %v94, 0
  %v351 = vmax.bf16 %v95, 0
  %v352 = vmax.bf16 %v96, 0
  %v353 = vmax.bf16 %v97, 0
  %v354 = vmax.bf16 %v98, 0
  %v355 = vmax.bf16 %v99, 0
  %v356 = vmax.bf16 %v100, 0
  %v357 = vmax.bf16 %v101, 0
  %v358 = vmax.bf16 %v102, 0
  %v359 = vmax.bf16 %v103, 0
  %v360 = vmax.bf16 %v104, 0
  %v361 = vmax.bf16 %v105, 0
  %v362 = vmax.bf16 %v106, 0
  %v363 = vmax.bf16 %v107, 0
  %v364 = vmax.bf16 %v108, 0
  %v365 = vmax.bf16 %v109, 0
  %v366 = vmax.bf16 %v110, 0
  %v367 = vmax.bf16 %v111, 0
  %v368 = vmax.bf16 %v112, 0
  %v369 = vmax.bf16 %v113, 0
  %v370 = vmax.bf16 %v114, 0
  %v371 = vmax.bf16 %v115, 0
  %v372 = vmax.bf16 %v116, 0
  %v373 = vmax.bf16 %v117, 0
  %v374 = vmax.bf16 %v118, 0
  %v375 = vmax.bf16 %v119, 0
  %v376 = vmax.bf16 %v120, 0
  %v377 = vmax.bf16 %v121, 0
  %v378 = vmax.bf16 %v122, 0
  %v379 = vmax.bf16 %v123, 0
  %v380 = vmax.bf16 %v124, 0
  %v381 = vmax.bf16 %v125, 0
  %v382 = vmax.bf16 %v126, 0
  %v383 = vmax.bf16 %v127, 0
  %v384 = vmax.bf16 %v128, 0
  %v385 = vmax.bf16 %v129, 0
  %v386 = vmax.bf16 %v130, 0
  %v387 = vmax.bf16 %v131, 0
  %v388 = vmax.bf16 %v132, 0
  %v389 = vmax.bf16 %v133, 0
  %v390 = vmax.bf16 %v134, 0
  %v391 = vmax.bf16 %v135, 0
  %v392 = vmax.bf16 %v136, 0
  %v393 = vmax.bf16 %v137, 0
  %v394 = vmax.bf16 %v138, 0
  %v395 = vmax.bf16 %v139, 0
  %v396 = vmax.bf16 %v140, 0
  %v397 = vmax.bf16 %v141, 0
  %v398 = vmax.bf16 %v142, 0
  %v399 = vmax.bf16 %v143, 0
  %v400 = vmax.bf16 %v144, 0
  %v401 = vmax.bf16 %v145, 0
  %v402 = vmax.bf16 %v146, 0
  %v403 = vmax.bf16 %v147, 0
  %v404 = vmax.bf16 %v148, 0
  %v405 = vmax.bf16 %v149, 0
  %v406 = vmax.bf16 %v150, 0
  %v407 = vmax.bf16 %v151, 0
  %v408 = vmax.bf16 %v152, 0
  %v409 = vmax.bf16 %v153, 0
  %v410 = vmax.bf16 %v154, 0
  %v411 = vmax.bf16 %v155, 0
  %v412 = vmax.bf16 %v156, 0
  %v413 = vmax.bf16 %v157, 0
  %v414 = vmax.bf16 %v158, 0
  %v415 = vmax.bf16 %v159, 0
  %v416 = vmax.bf16 %v160, 0
  %v417 = vmax.bf16 %v161, 0
  %v418 = vmax.bf16 %v162, 0
  %v419 = vmax.bf16 %v163, 0
  %v420 = vmax.bf16 %v164, 0
  %v421 = vmax.bf16 %v165, 0
  %v422 = vmax.bf16 %v166, 0
  %v423 = vmax.bf16 %v167, 0
  %v424 = vmax.bf16 %v168, 0
  %v425 = vmax.bf16 %v169, 0
  %v426 = vmax.bf16 %v170, 0
  %v427 = vmax.bf16 %v171, 0
  %v428 = vmax.bf16 %v172, 0
  %v429 = vmax.bf16 %v173, 0
  %v430 = vmax.bf16 %v174, 0
  %v431 = vmax.bf16 %v175, 0
  %v432 = vmax.bf16 %v176, 0
  %v433 = vmax.bf16 %v177, 0
  %v434 = vmax.bf16 %v178, 0
  %v435 = vmax.bf16 %v179, 0
  %v436 = vmax.bf16 %v180, 0
  %v437 = vmax.bf16 %v181, 0
  %v438 = vmax.bf16 %v182, 0
  %v439 = vmax.bf16 %v183, 0
  %v440 = vmax.bf16 %v184, 0
  %v441 = vmax.bf16 %v185, 0
  %v442 = vmax.bf16 %v186, 0
  %v443 = vmax.bf16 %v187, 0
  %v444 = vmax.bf16 %v188, 0
  %v445 = vmax.bf16 %v189, 0
  %v446 = vmax.bf16 %v190, 0
  %v447 = vmax.bf16 %v191, 0
  %v448 = vmax.bf16 %v192, 0
  %v449 = vmax.bf16 %v193, 0
  %v450 = vmax.bf16 %v194, 0
  %v451 = vmax.bf16 %v195, 0
  %v452 = vmax.bf16 %v196, 0
  %v453 = vmax.bf16 %v197, 0
  %v454 = vmax.bf16 %v198, 0
  %v455 = vmax.bf16 %v199, 0
  %v456 = vmax.bf16 %v200, 0
  %v457 = vmax.bf16 %v201, 0
  %v458 = vmax.bf16 %v202, 0
  %v459 = vmax.bf16 %v203, 0
  %v460 = vmax.bf16 %v204, 0
  %v461 = vmax.bf16 %v205, 0
  %v462 = vmax.bf16 %v206, 0
  %v463 = vmax.bf16 %v207, 0
  %v464 = vmax.bf16 %v208, 0
  %v465 = vmax.bf16 %v209, 0
  %v466 = vmax.bf16 %v210, 0
  %v467 = vmax.bf16 %v211, 0
  %v468 = vmax.bf16 %v212, 0
  %v469 = vmax.bf16 %v213, 0
  %v470 = vmax.bf16 %v214, 0
  %v471 = vmax.bf16 %v215, 0
  %v472 = vmax.bf16 %v216, 0
  %v473 = vmax.bf16 %v217, 0
  %v474 = vmax.bf16 %v218, 0
  %v475 = vmax.bf16 %v219, 0
  %v476 = vmax.bf16 %v220, 0
  %v477 = vmax.bf16 %v221, 0
  %v478 = vmax.bf16 %v222, 0
  %v479 = vmax.bf16 %v223, 0
  %v480 = vmax.bf16 %v224, 0
  %v481 = vmax.bf16 %v225, 0
  %v482 = vmax.bf16 %v226, 0
  %v483 = vmax.bf16 %v227, 0
  %v484 = vmax.bf16 %v228, 0
  %v485 = vmax.bf16 %v229, 0
  %v486 = vmax.bf16 %v230, 0
  %v487 = vmax.bf16 %v231, 0
  %v488 = vmax.bf16 %v232, 0
  %v489 = vmax.bf16 %v233, 0
  %v490 = vmax.bf16 %v234, 0
  %v491 = vmax.bf16 %v235, 0
  %v492 = vmax.bf16 %v236, 0
  %v493 = vmax.bf16 %v237, 0
  %v494 = vmax.bf16 %v238, 0
  %v495 = vmax.bf16 %v239, 0
  %v496 = vmax.bf16 %v240, 0
  %v497 = vmax.bf16 %v241, 0
  %v498 = vmax.bf16 %v242, 0
  %v499 = vmax.bf16 %v243, 0
  %v500 = vmax.bf16 %v244, 0
  %v501 = vmax.bf16 %v245, 0
  %v502 = vmax.bf16 %v246, 0
  %v503 = vmax.bf16 %v247, 0
  %v504 = vmax.bf16 %v248, 0
  %v505 = vmax.bf16 %v249, 0
  %v506 = vmax.bf16 %v250, 0
  %v507 = vmax.bf16 %v251, 0
  %v508 = vmax.bf16 %v252, 0
  %v509 = vmax.bf16 %v253, 0
  %v510 = vmax.bf16 %v254, 0
  %v511 = vmax.bf16 %v255, 0
  %v512 = vmax.bf16 %v256, 0
  %v513 = vmax.bf16 %v257, 0
  %v514 = vmax.bf16 %v258, 0
  %v515 = vmax.bf16 %v259, 0
  %v516 = vmax.bf16 %v260, 0
  %v517 = vmax.bf16 %v261, 0
  %v518 = vmax.bf16 %v262, 0
  %v519 = vmax.bf16 %v263, 0
  %v520 = vmax.bf16 %v264, 0
  %v521 = vmax.bf16 %v265, 0
  %v522 = vmax.bf16 %v266, 0
  %v523 = vmax.bf16 %v267, 0
  %v524 = vmax.bf16 %v268, 0
  %v525 = vmax.bf16 %v269, 0
  %v526 = vmax.bf16 %v270, 0
  %v527 = vmax.bf16 %v271, 0
  %v528 = vmax.bf16 %v272, 0
  %v529 = vmax.bf16 %v273, 0
  %v530 = vmax.bf16 %v274, 0
  %v531 = vmax.bf16 %v275, 0
  %v532 = vmax.bf16 %v276, 0
  %v533 = vld [vmem:[%s0] sm:$0xf]
  %v534 = vld [vmem:[%s2] sm:$0x7]
  %536 = vset.pattern.permute.xlu0 0
  %537 = vperm.xlu0 %536, %v534
  %v538 = vpop.permute.xlu0 %537
  %v542 = vunpack.c.l.s4 1983009808
  %v543 = vunpack.c.0.s8 %v542
  %v544 = vlaneseq
  %v545 = vshrl.u32 %v544, 7
  %v546 = vsub.s32 %v543, %v545
  %v547 = vrot.slane %v533, %v546
  %v548 = vcombine.high %v547, %v547
  %v807 = vunpack.c.l.b16 %v277
  %v808 = vunpack.c.h.b16 %v277
  %v809 = vunpack.c.l.b16 %v278
  %v810 = vunpack.c.h.b16 %v278
  %v811 = vunpack.c.l.b16 %v279
  %v812 = vunpack.c.h.b16 %v279
  %v813 = vunpack.c.l.b16 %v280
  %v814 = vunpack.c.h.b16 %v280
  %v815 = vunpack.c.l.b16 %v281
  %v816 = vunpack.c.h.b16 %v281
  %v817 = vunpack.c.l.b16 %v282
  %v818 = vunpack.c.h.b16 %v282
  %v819 = vunpack.c.l.b16 %v283
  %v820 = vunpack.c.h.b16 %v283
  %v821 = vunpack.c.l.b16 %v284
  %v822 = vunpack.c.h.b16 %v284
  %v823 = vunpack.c.l.b16 %v285
  %v824 = vunpack.c.h.b16 %v285
  %v825 = vunpack.c.l.b16 %v286
  %v826 = vunpack.c.h.b16 %v286
  %v827 = vunpack.c.l.b16 %v287
  %v828 = vunpack.c.h.b16 %v287
  %v829 = vunpack.c.l.b16 %v288
  %v830 = vunpack.c.h.b16 %v288
  %v831 = vunpack.c.l.b16 %v289
  %v832 = vunpack.c.h.b16 %v289
  %v833 = vunpack.c.l.b16 %v290
  %v834 = vunpack.c.h.b16 %v290
  %v835 = vunpack.c.l.b16 %v291
  %v836 = vunpack.c.h.b16 %v291
  %v837 = vunpack.c.l.b16 %v292
  %v838 = vunpack.c.h.b16 %v292
  %v839 = vunpack.c.l.b16 %v293
  %v840 = vunpack.c.h.b16 %v293
  %v841 = vunpack.c.l.b16 %v294
  %v842 = vunpack.c.h.b16 %v294
  %v843 = vunpack.c.l.b16 %v295
  %v844 = vunpack.c.h.b16 %v295
  %v845 = vunpack.c.l.b16 %v296
  %v846 = vunpack.c.h.b16 %v296
  %v847 = vunpack.c.l.b16 %v297
  %v848 = vunpack.c.h.b16 %v297
  %v849 = vunpack.c.l.b16 %v298
  %v850 = vunpack.c.h.b16 %v298
  %v851 = vunpack.c.l.b16 %v299
  %v852 = vunpack.c.h.b16 %v299
  %v853 = vunpack.c.l.b16 %v300
  %v854 = vunpack.c.h.b16 %v300
  %v855 = vunpack.c.l.b16 %v301
  %v856 = vunpack.c.h.b16 %v301
  %v857 = vunpack.c.l.b16 %v302
  %v858 = vunpack.c.h.b16 %v302
  %v859 = vunpack.c.l.b16 %v303
  %v860 = vunpack.c.h.b16 %v303
  %v861 = vunpack.c.l.b16 %v304
  %v862 = vunpack.c.h.b16 %v304
  %v863 = vunpack.c.l.b16 %v305
  %v864 = vunpack.c.h.b16 %v305
  %v865 = vunpack.c.l.b16 %v306
  %v866 = vunpack.c.h.b16 %v306
  %v867 = vunpack.c.l.b16 %v307
  %v868 = vunpack.c.h.b16 %v307
  %v869 = vunpack.c.l.b16 %v308
  %v870 = vunpack.c.h.b16 %v308
  %v871 = vunpack.c.l.b16 %v309
  %v872 = vunpack.c.h.b16 %v309
  %v873 = vunpack.c.l.b16 %v310
  %v874 = vunpack.c.h.b16 %v310
  %v875 = vunpack.c.l.b16 %v311
  %v876 = vunpack.c.h.b16 %v311
  %v877 = vunpack.c.l.b16 %v312
  %v878 = vunpack.c.h.b16 %v312
  %v879 = vunpack.c.l.b16 %v313
  %v880 = vunpack.c.h.b16 %v313
  %v881 = vunpack.c.l.b16 %v314
  %v882 = vunpack.c.h.b16 %v314
  %v883 = vunpack.c.l.b16 %v315
  %v884 = vunpack.c.h.b16 %v315
  %v885 = vunpack.c.l.b16 %v316
  %v886 = vunpack.c.h.b16 %v316
  %v887 = vunpack.c.l.b16 %v317
  %v888 = vunpack.c.h.b16 %v317
  %v889 = vunpack.c.l.b16 %v318
  %v890 = vunpack.c.h.b16 %v318
  %v891 = vunpack.c.l.b16 %v319
  %v892 = vunpack.c.h.b16 %v319
  %v893 = vunpack.c.l.b16 %v320
  %v894 = vunpack.c.h.b16 %v320
  %v895 = vunpack.c.l.b16 %v321
  %v896 = vunpack.c.h.b16 %v321
  %v897 = vunpack.c.l.b16 %v322
  %v898 = vunpack.c.h.b16 %v322
  %v899 = vunpack.c.l.b16 %v323
  %v900 = vunpack.c.h.b16 %v323
  %v901 = vunpack.c.l.b16 %v324
  %v902 = vunpack.c.h.b16 %v324
  %v903 = vunpack.c.l.b16 %v325
  %v904 = vunpack.c.h.b16 %v325
  %v905 = vunpack.c.l.b16 %v326
  %v906 = vunpack.c.h.b16 %v326
  %v907 = vunpack.c.l.b16 %v327
  %v908 = vunpack.c.h.b16 %v327
  %v909 = vunpack.c.l.b16 %v328
  %v910 = vunpack.c.h.b16 %v328
  %v911 = vunpack.c.l.b16 %v329
  %v912 = vunpack.c.h.b16 %v329
  %v913 = vunpack.c.l.b16 %v330
  %v914 = vunpack.c.h.b16 %v330
  %v915 = vunpack.c.l.b16 %v331
  %v916 = vunpack.c.h.b16 %v331
  %v917 = vunpack.c.l.b16 %v332
  %v918 = vunpack.c.h.b16 %v332
  %v919 = vunpack.c.l.b16 %v333
  %v920 = vunpack.c.h.b16 %v333
  %v921 = vunpack.c.l.b16 %v334
  %v922 = vunpack.c.h.b16 %v334
  %v923 = vunpack.c.l.b16 %v335
  %v924 = vunpack.c.h.b16 %v335
  %v925 = vunpack.c.l.b16 %v336
  %v926 = vunpack.c.h.b16 %v336
  %v927 = vunpack.c.l.b16 %v337
  %v928 = vunpack.c.h.b16 %v337
  %v929 = vunpack.c.l.b16 %v338
  %v930 = vunpack.c.h.b16 %v338
  %v931 = vunpack.c.l.b16 %v339
  %v932 = vunpack.c.h.b16 %v339
  %v933 = vunpack.c.l.b16 %v340
  %v934 = vunpack.c.h.b16 %v340
  %v935 = vunpack.c.l.b16 %v341
  %v936 = vunpack.c.h.b16 %v341
  %v937 = vunpack.c.l.b16 %v342
  %v938 = vunpack.c.h.b16 %v342
  %v939 = vunpack.c.l.b16 %v343
  %v940 = vunpack.c.h.b16 %v343
  %v941 = vunpack.c.l.b16 %v344
  %v942 = vunpack.c.h.b16 %v344
  %v943 = vunpack.c.l.b16 %v345
  %v944 = vunpack.c.h.b16 %v345
  %v945 = vunpack.c.l.b16 %v346
  %v946 = vunpack.c.h.b16 %v346
  %v947 = vunpack.c.l.b16 %v347
  %v948 = vunpack.c.h.b16 %v347
  %v949 = vunpack.c.l.b16 %v348
  %v950 = vunpack.c.h.b16 %v348
  %v951 = vunpack.c.l.b16 %v349
  %v952 = vunpack.c.h.b16 %v349
  %v953 = vunpack.c.l.b16 %v350
  %v954 = vunpack.c.h.b16 %v350
  %v955 = vunpack.c.l.b16 %v351
  %v956 = vunpack.c.h.b16 %v351
  %v957 = vunpack.c.l.b16 %v352
  %v958 = vunpack.c.h.b16 %v352
  %v959 = vunpack.c.l.b16 %v353
  %v960 = vunpack.c.h.b16 %v353
  %v961 = vunpack.c.l.b16 %v354
  %v962 = vunpack.c.h.b16 %v354
  %v963 = vunpack.c.l.b16 %v355
  %v964 = vunpack.c.h.b16 %v355
  %v965 = vunpack.c.l.b16 %v356
  %v966 = vunpack.c.h.b16 %v356
  %v967 = vunpack.c.l.b16 %v357
  %v968 = vunpack.c.h.b16 %v357
  %v969 = vunpack.c.l.b16 %v358
  %v970 = vunpack.c.h.b16 %v358
  %v971 = vunpack.c.l.b16 %v359
  %v972 = vunpack.c.h.b16 %v359
  %v973 = vunpack.c.l.b16 %v360
  %v974 = vunpack.c.h.b16 %v360
  %v975 = vunpack.c.l.b16 %v361
  %v976 = vunpack.c.h.b16 %v361
  %v977 = vunpack.c.l.b16 %v362
  %v978 = vunpack.c.h.b16 %v362
  %v979 = vunpack.c.l.b16 %v363
  %v980 = vunpack.c.h.b16 %v363
  %v981 = vunpack.c.l.b16 %v364
  %v982 = vunpack.c.h.b16 %v364
  %v983 = vunpack.c.l.b16 %v365
  %v984 = vunpack.c.h.b16 %v365
  %v985 = vunpack.c.l.b16 %v366
  %v986 = vunpack.c.h.b16 %v366
  %v987 = vunpack.c.l.b16 %v367
  %v988 = vunpack.c.h.b16 %v367
  %v989 = vunpack.c.l.b16 %v368
  %v990 = vunpack.c.h.b16 %v368
  %v991 = vunpack.c.l.b16 %v369
  %v992 = vunpack.c.h.b16 %v369
  %v993 = vunpack.c.l.b16 %v370
  %v994 = vunpack.c.h.b16 %v370
  %v995 = vunpack.c.l.b16 %v371
  %v996 = vunpack.c.h.b16 %v371
  %v997 = vunpack.c.l.b16 %v372
  %v998 = vunpack.c.h.b16 %v372
  %v999 = vunpack.c.l.b16 %v373
  %v1000 = vunpack.c.h.b16 %v373
  %v1001 = vunpack.c.l.b16 %v374
  %v1002 = vunpack.c.h.b16 %v374
  %v1003 = vunpack.c.l.b16 %v375
  %v1004 = vunpack.c.h.b16 %v375
  %v1005 = vunpack.c.l.b16 %v376
  %v1006 = vunpack.c.h.b16 %v376
  %v1007 = vunpack.c.l.b16 %v377
  %v1008 = vunpack.c.h.b16 %v377
  %v1009 = vunpack.c.l.b16 %v378
  %v1010 = vunpack.c.h.b16 %v378
  %v1011 = vunpack.c.l.b16 %v379
  %v1012 = vunpack.c.h.b16 %v379
  %v1013 = vunpack.c.l.b16 %v380
  %v1014 = vunpack.c.h.b16 %v380
  %v1015 = vunpack.c.l.b16 %v381
  %v1016 = vunpack.c.h.b16 %v381
  %v1017 = vunpack.c.l.b16 %v382
  %v1018 = vunpack.c.h.b16 %v382
  %v1019 = vunpack.c.l.b16 %v383
  %v1020 = vunpack.c.h.b16 %v383
  %v1021 = vunpack.c.l.b16 %v384
  %v1022 = vunpack.c.h.b16 %v384
  %v1023 = vunpack.c.l.b16 %v385
  %v1024 = vunpack.c.h.b16 %v385
  %v1025 = vunpack.c.l.b16 %v386
  %v1026 = vunpack.c.h.b16 %v386
  %v1027 = vunpack.c.l.b16 %v387
  %v1028 = vunpack.c.h.b16 %v387
  %v1029 = vunpack.c.l.b16 %v388
  %v1030 = vunpack.c.h.b16 %v388
  %v1031 = vunpack.c.l.b16 %v389
  %v1032 = vunpack.c.h.b16 %v389
  %v1033 = vunpack.c.l.b16 %v390
  %v1034 = vunpack.c.h.b16 %v390
  %v1035 = vunpack.c.l.b16 %v391
  %v1036 = vunpack.c.h.b16 %v391
  %v1037 = vunpack.c.l.b16 %v392
  %v1038 = vunpack.c.h.b16 %v392
  %v1039 = vunpack.c.l.b16 %v393
  %v1040 = vunpack.c.h.b16 %v393
  %v1041 = vunpack.c.l.b16 %v394
  %v1042 = vunpack.c.h.b16 %v394
  %v1043 = vunpack.c.l.b16 %v395
  %v1044 = vunpack.c.h.b16 %v395
  %v1045 = vunpack.c.l.b16 %v396
  %v1046 = vunpack.c.h.b16 %v396
  %v1047 = vunpack.c.l.b16 %v397
  %v1048 = vunpack.c.h.b16 %v397
  %v1049 = vunpack.c.l.b16 %v398
  %v1050 = vunpack.c.h.b16 %v398
  %v1051 = vunpack.c.l.b16 %v399
  %v1052 = vunpack.c.h.b16 %v399
  %v1053 = vunpack.c.l.b16 %v400
  %v1054 = vunpack.c.h.b16 %v400
  %v1055 = vunpack.c.l.b16 %v401
  %v1056 = vunpack.c.h.b16 %v401
  %v1057 = vunpack.c.l.b16 %v402
  %v1058 = vunpack.c.h.b16 %v402
  %v1059 = vunpack.c.l.b16 %v403
  %v1060 = vunpack.c.h.b16 %v403
  %v1061 = vunpack.c.l.b16 %v404
  %v1062 = vunpack.c.h.b16 %v404
  %v1063 = vunpack.c.l.b16 %v405
  %v1064 = vunpack.c.h.b16 %v405
  %v1065 = vunpack.c.l.b16 %v406
  %v1066 = vunpack.c.h.b16 %v406
  %v1067 = vunpack.c.l.b16 %v407
  %v1068 = vunpack.c.h.b16 %v407
  %v1069 = vunpack.c.l.b16 %v408
  %v1070 = vunpack.c.h.b16 %v408
  %v1071 = vunpack.c.l.b16 %v409
  %v1072 = vunpack.c.h.b16 %v409
  %v1073 = vunpack.c.l.b16 %v410
  %v1074 = vunpack.c.h.b16 %v410
  %v1075 = vunpack.c.l.b16 %v411
  %v1076 = vunpack.c.h.b16 %v411
  %v1077 = vunpack.c.l.b16 %v412
  %v1078 = vunpack.c.h.b16 %v412
  %v1079 = vunpack.c.l.b16 %v413
  %v1080 = vunpack.c.h.b16 %v413
  %v1081 = vunpack.c.l.b16 %v414
  %v1082 = vunpack.c.h.b16 %v414
  %v1083 = vunpack.c.l.b16 %v415
  %v1084 = vunpack.c.h.b16 %v415
  %v1085 = vunpack.c.l.b16 %v416
  %v1086 = vunpack.c.h.b16 %v416
  %v1087 = vunpack.c.l.b16 %v417
  %v1088 = vunpack.c.h.b16 %v417
  %v1089 = vunpack.c.l.b16 %v418
  %v1090 = vunpack.c.h.b16 %v418
  %v1091 = vunpack.c.l.b16 %v419
  %v1092 = vunpack.c.h.b16 %v419
  %v1093 = vunpack.c.l.b16 %v420
  %v1094 = vunpack.c.h.b16 %v420
  %v1095 = vunpack.c.l.b16 %v421
  %v1096 = vunpack.c.h.b16 %v421
  %v1097 = vunpack.c.l.b16 %v422
  %v1098 = vunpack.c.h.b16 %v422
  %v1099 = vunpack.c.l.b16 %v423
  %v1100 = vunpack.c.h.b16 %v423
  %v1101 = vunpack.c.l.b16 %v424
  %v1102 = vunpack.c.h.b16 %v424
  %v1103 = vunpack.c.l.b16 %v425
  %v1104 = vunpack.c.h.b16 %v425
  %v1105 = vunpack.c.l.b16 %v426
  %v1106 = vunpack.c.h.b16 %v426
  %v1107 = vunpack.c.l.b16 %v427
  %v1108 = vunpack.c.h.b16 %v427
  %v1109 = vunpack.c.l.b16 %v428
  %v1110 = vunpack.c.h.b16 %v428
  %v1111 = vunpack.c.l.b16 %v429
  %v1112 = vunpack.c.h.b16 %v429
  %v1113 = vunpack.c.l.b16 %v430
  %v1114 = vunpack.c.h.b16 %v430
  %v1115 = vunpack.c.l.b16 %v431
  %v1116 = vunpack.c.h.b16 %v431
  %v1117 = vunpack.c.l.b16 %v432
  %v1118 = vunpack.c.h.b16 %v432
  %v1119 = vunpack.c.l.b16 %v433
  %v1120 = vunpack.c.h.b16 %v433
  %v1121 = vunpack.c.l.b16 %v434
  %v1122 = vunpack.c.h.b16 %v434
  %v1123 = vunpack.c.l.b16 %v435
  %v1124 = vunpack.c.h.b16 %v435
  %v1125 = vunpack.c.l.b16 %v436
  %v1126 = vunpack.c.h.b16 %v436
  %v1127 = vunpack.c.l.b16 %v437
  %v1128 = vunpack.c.h.b16 %v437
  %v1129 = vunpack.c.l.b16 %v438
  %v1130 = vunpack.c.h.b16 %v438
  %v1131 = vunpack.c.l.b16 %v439
  %v1132 = vunpack.c.h.b16 %v439
  %v1133 = vunpack.c.l.b16 %v440
  %v1134 = vunpack.c.h.b16 %v440
  %v1135 = vunpack.c.l.b16 %v441
  %v1136 = vunpack.c.h.b16 %v441
  %v1137 = vunpack.c.l.b16 %v442
  %v1138 = vunpack.c.h.b16 %v442
  %v1139 = vunpack.c.l.b16 %v443
  %v1140 = vunpack.c.h.b16 %v443
  %v1141 = vunpack.c.l.b16 %v444
  %v1142 = vunpack.c.h.b16 %v444
  %v1143 = vunpack.c.l.b16 %v445
  %v1144 = vunpack.c.h.b16 %v445
  %v1145 = vunpack.c.l.b16 %v446
  %v1146 = vunpack.c.h.b16 %v446
  %v1147 = vunpack.c.l.b16 %v447
  %v1148 = vunpack.c.h.b16 %v447
  %v1149 = vunpack.c.l.b16 %v448
  %v1150 = vunpack.c.h.b16 %v448
  %v1151 = vunpack.c.l.b16 %v449
  %v1152 = vunpack.c.h.b16 %v449
  %v1153 = vunpack.c.l.b16 %v450
  %v1154 = vunpack.c.h.b16 %v450
  %v1155 = vunpack.c.l.b16 %v451
  %v1156 = vunpack.c.h.b16 %v451
  %v1157 = vunpack.c.l.b16 %v452
  %v1158 = vunpack.c.h.b16 %v452
  %v1159 = vunpack.c.l.b16 %v453
  %v1160 = vunpack.c.h.b16 %v453
  %v1161 = vunpack.c.l.b16 %v454
  %v1162 = vunpack.c.h.b16 %v454
  %v1163 = vunpack.c.l.b16 %v455
  %v1164 = vunpack.c.h.b16 %v455
  %v1165 = vunpack.c.l.b16 %v456
  %v1166 = vunpack.c.h.b16 %v456
  %v1167 = vunpack.c.l.b16 %v457
  %v1168 = vunpack.c.h.b16 %v457
  %v1169 = vunpack.c.l.b16 %v458
  %v1170 = vunpack.c.h.b16 %v458
  %v1171 = vunpack.c.l.b16 %v459
  %v1172 = vunpack.c.h.b16 %v459
  %v1173 = vunpack.c.l.b16 %v460
  %v1174 = vunpack.c.h.b16 %v460
  %v1175 = vunpack.c.l.b16 %v461
  %v1176 = vunpack.c.h.b16 %v461
  %v1177 = vunpack.c.l.b16 %v462
  %v1178 = vunpack.c.h.b16 %v462
  %v1179 = vunpack.c.l.b16 %v463
  %v1180 = vunpack.c.h.b16 %v463
  %v1181 = vunpack.c.l.b16 %v464
  %v1182 = vunpack.c.h.b16 %v464
  %v1183 = vunpack.c.l.b16 %v465
  %v1184 = vunpack.c.h.b16 %v465
  %v1185 = vunpack.c.l.b16 %v466
  %v1186 = vunpack.c.h.b16 %v466
  %v1187 = vunpack.c.l.b16 %v467
  %v1188 = vunpack.c.h.b16 %v467
  %v1189 = vunpack.c.l.b16 %v468
  %v1190 = vunpack.c.h.b16 %v468
  %v1191 = vunpack.c.l.b16 %v469
  %v1192 = vunpack.c.h.b16 %v469
  %v1193 = vunpack.c.l.b16 %v470
  %v1194 = vunpack.c.h.b16 %v470
  %v1195 = vunpack.c.l.b16 %v471
  %v1196 = vunpack.c.h.b16 %v471
  %v1197 = vunpack.c.l.b16 %v472
  %v1198 = vunpack.c.h.b16 %v472
  %v1199 = vunpack.c.l.b16 %v473
  %v1200 = vunpack.c.h.b16 %v473
  %v1201 = vunpack.c.l.b16 %v474
  %v1202 = vunpack.c.h.b16 %v474
  %v1203 = vunpack.c.l.b16 %v475
  %v1204 = vunpack.c.h.b16 %v475
  %v1205 = vunpack.c.l.b16 %v476
  %v1206 = vunpack.c.h.b16 %v476
  %v1207 = vunpack.c.l.b16 %v477
  %v1208 = vunpack.c.h.b16 %v477
  %v1209 = vunpack.c.l.b16 %v478
  %v1210 = vunpack.c.h.b16 %v478
  %v1211 = vunpack.c.l.b16 %v479
  %v1212 = vunpack.c.h.b16 %v479
  %v1213 = vunpack.c.l.b16 %v480
  %v1214 = vunpack.c.h.b16 %v480
  %v1215 = vunpack.c.l.b16 %v481
  %v1216 = vunpack.c.h.b16 %v481
  %v1217 = vunpack.c.l.b16 %v482
  %v1218 = vunpack.c.h.b16 %v482
  %v1219 = vunpack.c.l.b16 %v483
  %v1220 = vunpack.c.h.b16 %v483
  %v1221 = vunpack.c.l.b16 %v484
  %v1222 = vunpack.c.h.b16 %v484
  %v1223 = vunpack.c.l.b16 %v485
  %v1224 = vunpack.c.h.b16 %v485
  %v1225 = vunpack.c.l.b16 %v486
  %v1226 = vunpack.c.h.b16 %v486
  %v1227 = vunpack.c.l.b16 %v487
  %v1228 = vunpack.c.h.b16 %v487
  %v1229 = vunpack.c.l.b16 %v488
  %v1230 = vunpack.c.h.b16 %v488
  %v1231 = vunpack.c.l.b16 %v489
  %v1232 = vunpack.c.h.b16 %v489
  %v1233 = vunpack.c.l.b16 %v490
  %v1234 = vunpack.c.h.b16 %v490
  %v1235 = vunpack.c.l.b16 %v491
  %v1236 = vunpack.c.h.b16 %v491
  %v1237 = vunpack.c.l.b16 %v492
  %v1238 = vunpack.c.h.b16 %v492
  %v1239 = vunpack.c.l.b16 %v493
  %v1240 = vunpack.c.h.b16 %v493
  %v1241 = vunpack.c.l.b16 %v494
  %v1242 = vunpack.c.h.b16 %v494
  %v1243 = vunpack.c.l.b16 %v495
  %v1244 = vunpack.c.h.b16 %v495
  %v1245 = vunpack.c.l.b16 %v496
  %v1246 = vunpack.c.h.b16 %v496
  %v1247 = vunpack.c.l.b16 %v497
  %v1248 = vunpack.c.h.b16 %v497
  %v1249 = vunpack.c.l.b16 %v498
  %v1250 = vunpack.c.h.b16 %v498
  %v1251 = vunpack.c.l.b16 %v499
  %v1252 = vunpack.c.h.b16 %v499
  %v1253 = vunpack.c.l.b16 %v500
  %v1254 = vunpack.c.h.b16 %v500
  %v1255 = vunpack.c.l.b16 %v501
  %v1256 = vunpack.c.h.b16 %v501
  %v1257 = vunpack.c.l.b16 %v502
  %v1258 = vunpack.c.h.b16 %v502
  %v1259 = vunpack.c.l.b16 %v503
  %v1260 = vunpack.c.h.b16 %v503
  %v1261 = vunpack.c.l.b16 %v504
  %v1262 = vunpack.c.h.b16 %v504
  %v1263 = vunpack.c.l.b16 %v505
  %v1264 = vunpack.c.h.b16 %v505
  %v1265 = vunpack.c.l.b16 %v506
  %v1266 = vunpack.c.h.b16 %v506
  %v1267 = vunpack.c.l.b16 %v507
  %v1268 = vunpack.c.h.b16 %v507
  %v1269 = vunpack.c.l.b16 %v508
  %v1270 = vunpack.c.h.b16 %v508
  %v1271 = vunpack.c.l.b16 %v509
  %v1272 = vunpack.c.h.b16 %v509
  %v1273 = vunpack.c.l.b16 %v510
  %v1274 = vunpack.c.h.b16 %v510
  %v1275 = vunpack.c.l.b16 %v511
  %v1276 = vunpack.c.h.b16 %v511
  %v1277 = vunpack.c.l.b16 %v512
  %v1278 = vunpack.c.h.b16 %v512
  %v1279 = vunpack.c.l.b16 %v513
  %v1280 = vunpack.c.h.b16 %v513
  %v1281 = vunpack.c.l.b16 %v514
  %v1282 = vunpack.c.h.b16 %v514
  %v1283 = vunpack.c.l.b16 %v515
  %v1284 = vunpack.c.h.b16 %v515
  %v1285 = vunpack.c.l.b16 %v516
  %v1286 = vunpack.c.h.b16 %v516
  %v1287 = vunpack.c.l.b16 %v517
  %v1288 = vunpack.c.h.b16 %v517
  %v1289 = vunpack.c.l.b16 %v518
  %v1290 = vunpack.c.h.b16 %v518
  %v1291 = vunpack.c.l.b16 %v519
  %v1292 = vunpack.c.h.b16 %v519
  %v1293 = vunpack.c.l.b16 %v520
  %v1294 = vunpack.c.h.b16 %v520
  %v1295 = vunpack.c.l.b16 %v521
  %v1296 = vunpack.c.h.b16 %v521
  %v1297 = vunpack.c.l.b16 %v522
  %v1298 = vunpack.c.h.b16 %v522
  %v1299 = vunpack.c.l.b16 %v523
  %v1300 = vunpack.c.h.b16 %v523
  %v1301 = vunpack.c.l.b16 %v524
  %v1302 = vunpack.c.h.b16 %v524
  %v1303 = vunpack.c.l.b16 %v525
  %v1304 = vunpack.c.h.b16 %v525
  %v1305 = vunpack.c.l.b16 %v526
  %v1306 = vunpack.c.h.b16 %v526
  %v1307 = vunpack.c.l.b16 %v527
  %v1308 = vunpack.c.h.b16 %v527
  %v1309 = vunpack.c.l.b16 %v528
  %v1310 = vunpack.c.h.b16 %v528
  %v1311 = vunpack.c.l.b16 %v529
  %v1312 = vunpack.c.h.b16 %v529
  %v1313 = vunpack.c.l.b16 %v530
  %v1314 = vunpack.c.h.b16 %v530
  %v1315 = vunpack.c.l.b16 %v531
  %v1316 = vunpack.c.h.b16 %v531
  %v1317 = vunpack.c.l.b16 %v532
  %v1318 = vunpack.c.h.b16 %v532
  %v1319 = vpack.c.b16 %v823, %v807
  %v1320 = vpack.c.b16 %v824, %v808
  %v1321 = vpack.c.b16 %v825, %v809
  %v1322 = vpack.c.b16 %v826, %v810
  %v1323 = vpack.c.b16 %v827, %v811
  %v1324 = vpack.c.b16 %v828, %v812
  %v1325 = vpack.c.b16 %v829, %v813
  %v1326 = vpack.c.b16 %v830, %v814
  %v1327 = vpack.c.b16 %v831, %v815
  %v1328 = vpack.c.b16 %v832, %v816
  %v1329 = vpack.c.b16 %v833, %v817
  %v1330 = vpack.c.b16 %v834, %v818
  %v1331 = vpack.c.b16 %v835, %v819
  %v1332 = vpack.c.b16 %v836, %v820
  %v1333 = vpack.c.b16 %v837, %v821
  %v1334 = vpack.c.b16 %v838, %v822
  %v1335 = vpack.c.b16 %v855, %v839
  %v1336 = vpack.c.b16 %v856, %v840
  %v1337 = vpack.c.b16 %v857, %v841
  %v1338 = vpack.c.b16 %v858, %v842
  %v1339 = vpack.c.b16 %v859, %v843
  %v1340 = vpack.c.b16 %v860, %v844
  %v1341 = vpack.c.b16 %v861, %v845
  %v1342 = vpack.c.b16 %v862, %v846
  %v1343 = vpack.c.b16 %v863, %v847
  %v1344 = vpack.c.b16 %v864, %v848
  %v1345 = vpack.c.b16 %v865, %v849
  %v1346 = vpack.c.b16 %v866, %v850
  %v1347 = vpack.c.b16 %v867, %v851
  %v1348 = vpack.c.b16 %v868, %v852
  %v1349 = vpack.c.b16 %v869, %v853
  %v1350 = vpack.c.b16 %v870, %v854
  %v1351 = vpack.c.b16 %v887, %v871
  %v1352 = vpack.c.b16 %v888, %v872
  %v1353 = vpack.c.b16 %v889, %v873
  %v1354 = vpack.c.b16 %v890, %v874
  %v1355 = vpack.c.b16 %v891, %v875
  %v1356 = vpack.c.b16 %v892, %v876
  %v1357 = vpack.c.b16 %v893, %v877
  %v1358 = vpack.c.b16 %v894, %v878
  %v1359 = vpack.c.b16 %v895, %v879
  %v1360 = vpack.c.b16 %v896, %v880
  %v1361 = vpack.c.b16 %v897, %v881
  %v1362 = vpack.c.b16 %v898, %v882
  %v1363 = vpack.c.b16 %v899, %v883
  %v1364 = vpack.c.b16 %v900, %v884
  %v1365 = vpack.c.b16 %v901, %v885
  %v1366 = vpack.c.b16 %v902, %v886
  %v1367 = vpack.c.b16 %v919, %v903
  %v1368 = vpack.c.b16 %v920, %v904
  %v1369 = vpack.c.b16 %v921, %v905
  %v1370 = vpack.c.b16 %v922, %v906
  %v1371 = vpack.c.b16 %v923, %v907
  %v1372 = vpack.c.b16 %v924, %v908
  %v1373 = vpack.c.b16 %v925, %v909
  %v1374 = vpack.c.b16 %v926, %v910
  %v1375 = vpack.c.b16 %v927, %v911
  %v1376 = vpack.c.b16 %v928, %v912
  %v1377 = vpack.c.b16 %v929, %v913
  %v1378 = vpack.c.b16 %v930, %v914
  %v1379 = vpack.c.b16 %v931, %v915
  %v1380 = vpack.c.b16 %v932, %v916
  %v1381 = vpack.c.b16 %v933, %v917
  %v1382 = vpack.c.b16 %v934, %v918
  %v1383 = vpack.c.b16 %v951, %v935
  %v1384 = vpack.c.b16 %v952, %v936
  %v1385 = vpack.c.b16 %v953, %v937
  %v1386 = vpack.c.b16 %v954, %v938
  %v1387 = vpack.c.b16 %v955, %v939
  %v1388 = vpack.c.b16 %v956, %v940
  %v1389 = vpack.c.b16 %v957, %v941
  %v1390 = vpack.c.b16 %v958, %v942
  %v1391 = vpack.c.b16 %v959, %v943
  %v1392 = vpack.c.b16 %v960, %v944
  %v1393 = vpack.c.b16 %v961, %v945
  %v1394 = vpack.c.b16 %v962, %v946
  %v1395 = vpack.c.b16 %v963, %v947
  %v1396 = vpack.c.b16 %v964, %v948
  %v1397 = vpack.c.b16 %v965, %v949
  %v1398 = vpack.c.b16 %v966, %v950
  %v1399 = vpack.c.b16 %v983, %v967
  %v1400 = vpack.c.b16 %v984, %v968
  %v1401 = vpack.c.b16 %v985, %v969
  %v1402 = vpack.c.b16 %v986, %v970
  %v1403 = vpack.c.b16 %v987, %v971
  %v1404 = vpack.c.b16 %v988, %v972
  %v1405 = vpack.c.b16 %v989, %v973
  %v1406 = vpack.c.b16 %v990, %v974
  %v1407 = vpack.c.b16 %v991, %v975
  %v1408 = vpack.c.b16 %v992, %v976
  %v1409 = vpack.c.b16 %v993, %v977
  %v1410 = vpack.c.b16 %v994, %v978
  %v1411 = vpack.c.b16 %v995, %v979
  %v1412 = vpack.c.b16 %v996, %v980
  %v1413 = vpack.c.b16 %v997, %v981
  %v1414 = vpack.c.b16 %v998, %v982
  %v1415 = vpack.c.b16 %v1015, %v999
  %v1416 = vpack.c.b16 %v1016, %v1000
  %v1417 = vpack.c.b16 %v1017, %v1001
  %v1418 = vpack.c.b16 %v1018, %v1002
  %v1419 = vpack.c.b16 %v1019, %v1003
  %v1420 = vpack.c.b16 %v1020, %v1004
  %v1421 = vpack.c.b16 %v1021, %v1005
  %v1422 = vpack.c.b16 %v1022, %v1006
  %v1423 = vpack.c.b16 %v1023, %v1007
  %v1424 = vpack.c.b16 %v1024, %v1008
  %v1425 = vpack.c.b16 %v1025, %v1009
  %v1426 = vpack.c.b16 %v1026, %v1010
  %v1427 = vpack.c.b16 %v1027, %v1011
  %v1428 = vpack.c.b16 %v1028, %v1012
  %v1429 = vpack.c.b16 %v1029, %v1013
  %v1430 = vpack.c.b16 %v1030, %v1014
  %v1431 = vpack.c.b16 %v1047, %v1031
  %v1432 = vpack.c.b16 %v1048, %v1032
  %v1433 = vpack.c.b16 %v1049, %v1033
  %v1434 = vpack.c.b16 %v1050, %v1034
  %v1435 = vpack.c.b16 %v1051, %v1035
  %v1436 = vpack.c.b16 %v1052, %v1036
  %v1437 = vpack.c.b16 %v1053, %v1037
  %v1438 = vpack.c.b16 %v1054, %v1038
  %v1439 = vpack.c.b16 %v1055, %v1039
  %v1440 = vpack.c.b16 %v1056, %v1040
  %v1441 = vpack.c.b16 %v1057, %v1041
  %v1442 = vpack.c.b16 %v1058, %v1042
  %v1443 = vpack.c.b16 %v1059, %v1043
  %v1444 = vpack.c.b16 %v1060, %v1044
  %v1445 = vpack.c.b16 %v1061, %v1045
  %v1446 = vpack.c.b16 %v1062, %v1046
  %v1447 = vpack.c.b16 %v1079, %v1063
  %v1448 = vpack.c.b16 %v1080, %v1064
  %v1449 = vpack.c.b16 %v1081, %v1065
  %v1450 = vpack.c.b16 %v1082, %v1066
  %v1451 = vpack.c.b16 %v1083, %v1067
  %v1452 = vpack.c.b16 %v1084, %v1068
  %v1453 = vpack.c.b16 %v1085, %v1069
  %v1454 = vpack.c.b16 %v1086, %v1070
  %v1455 = vpack.c.b16 %v1087, %v1071
  %v1456 = vpack.c.b16 %v1088, %v1072
  %v1457 = vpack.c.b16 %v1089, %v1073
  %v1458 = vpack.c.b16 %v1090, %v1074
  %v1459 = vpack.c.b16 %v1091, %v1075
  %v1460 = vpack.c.b16 %v1092, %v1076
  %v1461 = vpack.c.b16 %v1093, %v1077
  %v1462 = vpack.c.b16 %v1094, %v1078
  %v1463 = vpack.c.b16 %v1111, %v1095
  %v1464 = vpack.c.b16 %v1112, %v1096
  %v1465 = vpack.c.b16 %v1113, %v1097
  %v1466 = vpack.c.b16 %v1114, %v1098
  %v1467 = vpack.c.b16 %v1115, %v1099
  %v1468 = vpack.c.b16 %v1116, %v1100
  %v1469 = vpack.c.b16 %v1117, %v1101
  %v1470 = vpack.c.b16 %v1118, %v1102
  %v1471 = vpack.c.b16 %v1119, %v1103
  %v1472 = vpack.c.b16 %v1120, %v1104
  %v1473 = vpack.c.b16 %v1121, %v1105
  %v1474 = vpack.c.b16 %v1122, %v1106
  %v1475 = vpack.c.b16 %v1123, %v1107
  %v1476 = vpack.c.b16 %v1124, %v1108
  %v1477 = vpack.c.b16 %v1125, %v1109
  %v1478 = vpack.c.b16 %v1126, %v1110
  %v1479 = vpack.c.b16 %v1143, %v1127
  %v1480 = vpack.c.b16 %v1144, %v1128
  %v1481 = vpack.c.b16 %v1145, %v1129
  %v1482 = vpack.c.b16 %v1146, %v1130
  %v1483 = vpack.c.b16 %v1147, %v1131
  %v1484 = vpack.c.b16 %v1148, %v1132
  %v1485 = vpack.c.b16 %v1149, %v1133
  %v1486 = vpack.c.b16 %v1150, %v1134
  %v1487 = vpack.c.b16 %v1151, %v1135
  %v1488 = vpack.c.b16 %v1152, %v1136
  %v1489 = vpack.c.b16 %v1153, %v1137
  %v1490 = vpack.c.b16 %v1154, %v1138
  %v1491 = vpack.c.b16 %v1155, %v1139
  %v1492 = vpack.c.b16 %v1156, %v1140
  %v1493 = vpack.c.b16 %v1157, %v1141
  %v1494 = vpack.c.b16 %v1158, %v1142
  %v1495 = vpack.c.b16 %v1175, %v1159
  %v1496 = vpack.c.b16 %v1176, %v1160
  %v1497 = vpack.c.b16 %v1177, %v1161
  %v1498 = vpack.c.b16 %v1178, %v1162
  %v1499 = vpack.c.b16 %v1179, %v1163
  %v1500 = vpack.c.b16 %v1180, %v1164
  %v1501 = vpack.c.b16 %v1181, %v1165
  %v1502 = vpack.c.b16 %v1182, %v1166
  %v1503 = vpack.c.b16 %v1183, %v1167
  %v1504 = vpack.c.b16 %v1184, %v1168
  %v1505 = vpack.c.b16 %v1185, %v1169
  %v1506 = vpack.c.b16 %v1186, %v1170
  %v1507 = vpack.c.b16 %v1187, %v1171
  %v1508 = vpack.c.b16 %v1188, %v1172
  %v1509 = vpack.c.b16 %v1189, %v1173
  %v1510 = vpack.c.b16 %v1190, %v1174
  %v1511 = vpack.c.b16 %v1207, %v1191
  %v1512 = vpack.c.b16 %v1208, %v1192
  %v1513 = vpack.c.b16 %v1209, %v1193
  %v1514 = vpack.c.b16 %v1210, %v1194
  %v1515 = vpack.c.b16 %v1211, %v1195
  %v1516 = vpack.c.b16 %v1212, %v1196
  %v1517 = vpack.c.b16 %v1213, %v1197
  %v1518 = vpack.c.b16 %v1214, %v1198
  %v1519 = vpack.c.b16 %v1215, %v1199
  %v1520 = vpack.c.b16 %v1216, %v1200
  %v1521 = vpack.c.b16 %v1217, %v1201
  %v1522 = vpack.c.b16 %v1218, %v1202
  %v1523 = vpack.c.b16 %v1219, %v1203
  %v1524 = vpack.c.b16 %v1220, %v1204
  %v1525 = vpack.c.b16 %v1221, %v1205
  %v1526 = vpack.c.b16 %v1222, %v1206
  %v1527 = vpack.c.b16 %v1239, %v1223
  %v1528 = vpack.c.b16 %v1240, %v1224
  %v1529 = vpack.c.b16 %v1241, %v1225
  %v1530 = vpack.c.b16 %v1242, %v1226
  %v1531 = vpack.c.b16 %v1243, %v1227
  %v1532 = vpack.c.b16 %v1244, %v1228
  %v1533 = vpack.c.b16 %v1245, %v1229
  %v1534 = vpack.c.b16 %v1246, %v1230
  %v1535 = vpack.c.b16 %v1247, %v1231
  %v1536 = vpack.c.b16 %v1248, %v1232
  %v1537 = vpack.c.b16 %v1249, %v1233
  %v1538 = vpack.c.b16 %v1250, %v1234
  %v1539 = vpack.c.b16 %v1251, %v1235
  %v1540 = vpack.c.b16 %v1252, %v1236
  %v1541 = vpack.c.b16 %v1253, %v1237
  %v1542 = vpack.c.b16 %v1254, %v1238
  %v1543 = vpack.c.b16 %v1271, %v1255
  %v1544 = vpack.c.b16 %v1272, %v1256
  %v1545 = vpack.c.b16 %v1273, %v1257
  %v1546 = vpack.c.b16 %v1274, %v1258
  %v1547 = vpack.c.b16 %v1275, %v1259
  %v1548 = vpack.c.b16 %v1276, %v1260
  %v1549 = vpack.c.b16 %v1277, %v1261
  %v1550 = vpack.c.b16 %v1278, %v1262
  %v1551 = vpack.c.b16 %v1279, %v1263
  %v1552 = vpack.c.b16 %v1280, %v1264
  %v1553 = vpack.c.b16 %v1281, %v1265
  %v1554 = vpack.c.b16 %v1282, %v1266
  %v1555 = vpack.c.b16 %v1283, %v1267
  %v1556 = vpack.c.b16 %v1284, %v1268
  %v1557 = vpack.c.b16 %v1285, %v1269
  %v1558 = vpack.c.b16 %v1286, %v1270
  %v1559 = vpack.c.b16 %v1303, %v1287
  %v1560 = vpack.c.b16 %v1304, %v1288
  %v1561 = vpack.c.b16 %v1305, %v1289
  %v1562 = vpack.c.b16 %v1306, %v1290
  %v1563 = vpack.c.b16 %v1307, %v1291
  %v1564 = vpack.c.b16 %v1308, %v1292
  %v1565 = vpack.c.b16 %v1309, %v1293
  %v1566 = vpack.c.b16 %v1310, %v1294
  %v1567 = vpack.c.b16 %v1311, %v1295
  %v1568 = vpack.c.b16 %v1312, %v1296
  %v1569 = vpack.c.b16 %v1313, %v1297
  %v1570 = vpack.c.b16 %v1314, %v1298
  %v1571 = vpack.c.b16 %v1315, %v1299
  %v1572 = vpack.c.b16 %v1316, %v1300
  %v1573 = vpack.c.b16 %v1317, %v1301
  %v1574 = vpack.c.b16 %v1318, %v1302
  %1831 = vmatprep.subr.bf16.mxu0 %v1320
  %1832 = vmatpush1.bf16.msra.mxu0 %v1319
  %1833 = vmatprep.subr.bf16.mxu0 %v1336
  %1834 = vmatpush1.bf16.msra.mxu0 %v1335
  %1835 = vmatprep.subr.bf16.mxu0 %v1352
  %1836 = vmatpush1.bf16.msra.mxu0 %v1351
  %1837 = vmatprep.subr.bf16.mxu0 %v1368
  %1838 = vmatpush1.bf16.msra.mxu0 %v1367
  %1839 = vmatprep.subr.bf16.mxu0 %v1384
  %1840 = vmatpush1.bf16.msra.mxu0 %v1383
  %1841 = vmatprep.subr.bf16.mxu0 %v1400
  %1842 = vmatpush1.bf16.msra.mxu0 %v1399
  %1843 = vmatprep.subr.bf16.mxu0 %v1416
  %1844 = vmatpush1.bf16.msra.mxu0 %v1415
  %1845 = vmatprep.subr.bf16.mxu0 %v1432
  %1846 = vmatpush1.bf16.msra.mxu0 %v1431
  %1847 = vmatprep.subr.bf16.mxu0 %v1448
  %1848 = vmatpush1.bf16.msra.mxu0 %v1447
  %1849 = vmatprep.subr.bf16.mxu0 %v1464
  %1850 = vmatpush1.bf16.msra.mxu0 %v1463
  %1851 = vmatprep.subr.bf16.mxu0 %v1480
  %1852 = vmatpush1.bf16.msra.mxu0 %v1479
  %1853 = vmatprep.subr.bf16.mxu0 %v1496
  %1854 = vmatpush1.bf16.msra.mxu0 %v1495
  %1855 = vmatprep.subr.bf16.mxu0 %v1512
  %1856 = vmatpush1.bf16.msra.mxu0 %v1511
  %1857 = vmatprep.subr.bf16.mxu0 %v1528
  %1858 = vmatpush1.bf16.msra.mxu0 %v1527
  %1859 = vmatprep.subr.bf16.mxu0 %v1544
  %1860 = vmatpush1.bf16.msra.mxu0 %v1543
  %1861 = vmatprep.subr.bf16.mxu0 %v1560
  %1862 = vmatpush1.bf16.msra.mxu0 %v1559
  %1863 = vmatprep.mubr.bf16.mxu0 %v548
  %1864 = vmatmul.mubr.bf16.gmra.mrb[0].mxu0 %v547
  %v1865 = vpop.f32.mrb[0].mxu0
  %v1866 = vadd.f32 %v538, %v1865
  %v1867 = vpop.f32.mrb[0].mxu0
  %v1868 = vadd.f32 %v538, %v1867
  %v1869 = vpop.f32.mrb[0].mxu0
  %v1870 = vpop.f32.mrb[0].mxu0
  %1871 = vdwg.mxu0
  %1872 = vmatprep.subr.bf16.mxu0 %v1322
  %1873 = vmatpush1.bf16.msra.mxu0 %v1321
  %1874 = vmatprep.subr.bf16.mxu0 %v1338
  %1875 = vmatpush1.bf16.msra.mxu0 %v1337
  %1876 = vmatprep.subr.bf16.mxu0 %v1354
  %1877 = vmatpush1.bf16.msra.mxu0 %v1353
  %1878 = vmatprep.subr.bf16.mxu0 %v1370
  %1879 = vmatpush1.bf16.msra.mxu0 %v1369
  %1880 = vmatprep.subr.bf16.mxu0 %v1386
  %1881 = vmatpush1.bf16.msra.mxu0 %v1385
  %1882 = vmatprep.subr.bf16.mxu0 %v1402
  %1883 = vmatpush1.bf16.msra.mxu0 %v1401
  %1884 = vmatprep.subr.bf16.mxu0 %v1418
  %1885 = vmatpush1.bf16.msra.mxu0 %v1417
  %1886 = vmatprep.subr.bf16.mxu0 %v1434
  %1887 = vmatpush1.bf16.msra.mxu0 %v1433
  %1888 = vmatprep.subr.bf16.mxu0 %v1450
  %1889 = vmatpush1.bf16.msra.mxu0 %v1449
  %1890 = vmatprep.subr.bf16.mxu0 %v1466
  %1891 = vmatpush1.bf16.msra.mxu0 %v1465
  %1892 = vmatprep.subr.bf16.mxu0 %v1482
  %1893 = vmatpush1.bf16.msra.mxu0 %v1481
  %1894 = vmatprep.subr.bf16.mxu0 %v1498
  %1895 = vmatpush1.bf16.msra.mxu0 %v1497
  %1896 = vmatprep.subr.bf16.mxu0 %v1514
  %1897 = vmatpush1.bf16.msra.mxu0 %v1513
  %1898 = vmatprep.subr.bf16.mxu0 %v1530
  %1899 = vmatpush1.bf16.msra.mxu0 %v1529
  %1900 = vmatprep.subr.bf16.mxu0 %v1546
  %1901 = vmatpush1.bf16.msra.mxu0 %v1545
  %1902 = vmatprep.subr.bf16.mxu0 %v1562
  %1903 = vmatpush1.bf16.msra.mxu0 %v1561
  %1904 = vmatprep.mubr.bf16.mxu0 %v548
  %1905 = vmatmul.mubr.bf16.gmra.mrb[0].mxu0 %v547
  %v1906 = vpop.f32.mrb[0].mxu0
  %v1907 = vadd.f32 %v538, %v1906
  %v1908 = vpop.f32.mrb[0].mxu0
  %v1909 = vadd.f32 %v538, %v1908
  %v1910 = vpop.f32.mrb[0].mxu0
  %v1911 = vpop.f32.mrb[0].mxu0
  %1912 = vdwg.mxu0
  %1913 = vmatprep.subr.bf16.mxu0 %v1324
  %1914 = vmatpush1.bf16.msra.mxu0 %v1323
  %1915 = vmatprep.subr.bf16.mxu0 %v1340
  %1916 = vmatpush1.bf16.msra.mxu0 %v1339
  %1917 = vmatprep.subr.bf16.mxu0 %v1356
  %1918 = vmatpush1.bf16.msra.mxu0 %v1355
  %1919 = vmatprep.subr.bf16.mxu0 %v1372
  %1920 = vmatpush1.bf16.msra.mxu0 %v1371
  %1921 = vmatprep.subr.bf16.mxu0 %v1388
  %1922 = vmatpush1.bf16.msra.mxu0 %v1387
  %1923 = vmatprep.subr.bf16.mxu0 %v1404
  %1924 = vmatpush1.bf16.msra.mxu0 %v1403
  %1925 = vmatprep.subr.bf16.mxu0 %v1420
  %1926 = vmatpush1.bf16.msra.mxu0 %v1419
  %1927 = vmatprep.subr.bf16.mxu0 %v1436
  %1928 = vmatpush1.bf16.msra.mxu0 %v1435
  %1929 = vmatprep.subr.bf16.mxu0 %v1452
  %1930 = vmatpush1.bf16.msra.mxu0 %v1451
  %1931 = vmatprep.subr.bf16.mxu0 %v1468
  %1932 = vmatpush1.bf16.msra.mxu0 %v1467
  %1933 = vmatprep.subr.bf16.mxu0 %v1484
  %1934 = vmatpush1.bf16.msra.mxu0 %v1483
  %1935 = vmatprep.subr.bf16.mxu0 %v1500
  %1936 = vmatpush1.bf16.msra.mxu0 %v1499
  %1937 = vmatprep.subr.bf16.mxu0 %v1516
  %1938 = vmatpush1.bf16.msra.mxu0 %v1515
  %1939 = vmatprep.subr.bf16.mxu0 %v1532
  %1940 = vmatpush1.bf16.msra.mxu0 %v1531
  %1941 = vmatprep.subr.bf16.mxu0 %v1548
  %1942 = vmatpush1.bf16.msra.mxu0 %v1547
  %1943 = vmatprep.subr.bf16.mxu0 %v1564
  %1944 = vmatpush1.bf16.msra.mxu0 %v1563
  %1945 = vmatprep.mubr.bf16.mxu0 %v548
  %1946 = vmatmul.mubr.bf16.gmra.mrb[0].mxu0 %v547
  %v1947 = vpop.f32.mrb[0].mxu0
  %v1948 = vadd.f32 %v538, %v1947
  %v1949 = vpop.f32.mrb[0].mxu0
  %v1950 = vadd.f32 %v538, %v1949
  %v1951 = vpop.f32.mrb[0].mxu0
  %v1952 = vpop.f32.mrb[0].mxu0
  %1953 = vdwg.mxu0
  %1954 = vmatprep.subr.bf16.mxu0 %v1326
  %1955 = vmatpush1.bf16.msra.mxu0 %v1325
  %1956 = vmatprep.subr.bf16.mxu0 %v1342
  %1957 = vmatpush1.bf16.msra.mxu0 %v1341
  %1958 = vmatprep.subr.bf16.mxu0 %v1358
  %1959 = vmatpush1.bf16.msra.mxu0 %v1357
  %1960 = vmatprep.subr.bf16.mxu0 %v1374
  %1961 = vmatpush1.bf16.msra.mxu0 %v1373
  %1962 = vmatprep.subr.bf16.mxu0 %v1390
  %1963 = vmatpush1.bf16.msra.mxu0 %v1389
  %1964 = vmatprep.subr.bf16.mxu0 %v1406
  %1965 = vmatpush1.bf16.msra.mxu0 %v1405
  %1966 = vmatprep.subr.bf16.mxu0 %v1422
  %1967 = vmatpush1.bf16.msra.mxu0 %v1421
  %1968 = vmatprep.subr.bf16.mxu0 %v1438
  %1969 = vmatpush1.bf16.msra.mxu0 %v1437
  %1970 = vmatprep.subr.bf16.mxu0 %v1454
  %1971 = vmatpush1.bf16.msra.mxu0 %v1453
  %1972 = vmatprep.subr.bf16.mxu0 %v1470
  %1973 = vmatpush1.bf16.msra.mxu0 %v1469
  %1974 = vmatprep.subr.bf16.mxu0 %v1486
  %1975 = vmatpush1.bf16.msra.mxu0 %v1485
  %1976 = vmatprep.subr.bf16.mxu0 %v1502
  %1977 = vmatpush1.bf16.msra.mxu0 %v1501
  %1978 = vmatprep.subr.bf16.mxu0 %v1518
  %1979 = vmatpush1.bf16.msra.mxu0 %v1517
  %1980 = vmatprep.subr.bf16.mxu0 %v1534
  %1981 = vmatpush1.bf16.msra.mxu0 %v1533
  %1982 = vmatprep.subr.bf16.mxu0 %v1550
  %1983 = vmatpush1.bf16.msra.mxu0 %v1549
  %1984 = vmatprep.subr.bf16.mxu0 %v1566
  %1985 = vmatpush1.bf16.msra.mxu0 %v1565
  %1986 = vmatprep.mubr.bf16.mxu0 %v548
  %1987 = vmatmul.mubr.bf16.gmra.mrb[0].mxu0 %v547
  %v1988 = vpop.f32.mrb[0].mxu0
  %v1989 = vadd.f32 %v538, %v1988
  %v1990 = vpop.f32.mrb[0].mxu0
  %v1991 = vadd.f32 %v538, %v1990
  %v1992 = vpop.f32.mrb[0].mxu0
  %v1993 = vpop.f32.mrb[0].mxu0
  %1994 = vdwg.mxu0
  %1995 = vmatprep.subr.bf16.mxu0 %v1328
  %1996 = vmatpush1.bf16.msra.mxu0 %v1327
  %1997 = vmatprep.subr.bf16.mxu0 %v1344
  %1998 = vmatpush1.bf16.msra.mxu0 %v1343
  %1999 = vmatprep.subr.bf16.mxu0 %v1360
  %2000 = vmatpush1.bf16.msra.mxu0 %v1359
  %2001 = vmatprep.subr.bf16.mxu0 %v1376
  %2002 = vmatpush1.bf16.msra.mxu0 %v1375
  %2003 = vmatprep.subr.bf16.mxu0 %v1392
  %2004 = vmatpush1.bf16.msra.mxu0 %v1391
  %2005 = vmatprep.subr.bf16.mxu0 %v1408
  %2006 = vmatpush1.bf16.msra.mxu0 %v1407
  %2007 = vmatprep.subr.bf16.mxu0 %v1424
  %2008 = vmatpush1.bf16.msra.mxu0 %v1423
  %2009 = vmatprep.subr.bf16.mxu0 %v1440
  %2010 = vmatpush1.bf16.msra.mxu0 %v1439
  %2011 = vmatprep.subr.bf16.mxu0 %v1456
  %2012 = vmatpush1.bf16.msra.mxu0 %v1455
  %2013 = vmatprep.subr.bf16.mxu0 %v1472
  %2014 = vmatpush1.bf16.msra.mxu0 %v1471
  %2015 = vmatprep.subr.bf16.mxu0 %v1488
  %2016 = vmatpush1.bf16.msra.mxu0 %v1487
  %2017 = vmatprep.subr.bf16.mxu0 %v1504
  %2018 = vmatpush1.bf16.msra.mxu0 %v1503
  %2019 = vmatprep.subr.bf16.mxu0 %v1520
  %2020 = vmatpush1.bf16.msra.mxu0 %v1519
  %2021 = vmatprep.subr.bf16.mxu0 %v1536
  %2022 = vmatpush1.bf16.msra.mxu0 %v1535
  %2023 = vmatprep.subr.bf16.mxu0 %v1552
  %2024 = vmatpush1.bf16.msra.mxu0 %v1551
  %2025 = vmatprep.subr.bf16.mxu0 %v1568
  %2026 = vmatpush1.bf16.msra.mxu0 %v1567
  %2027 = vmatprep.mubr.bf16.mxu0 %v548
  %2028 = vmatmul.mubr.bf16.gmra.mrb[0].mxu0 %v547
  %v2029 = vpop.f32.mrb[0].mxu0
  %v2030 = vadd.f32 %v538, %v2029
  %v2031 = vpop.f32.mrb[0].mxu0
  %v2032 = vadd.f32 %v538, %v2031
  %v2033 = vpop.f32.mrb[0].mxu0
  %v2034 = vpop.f32.mrb[0].mxu0
  %2035 = vdwg.mxu0
  %2036 = vmatprep.subr.bf16.mxu0 %v1330
  %2037 = vmatpush1.bf16.msra.mxu0 %v1329
  %2038 = vmatprep.subr.bf16.mxu0 %v1346
  %2039 = vmatpush1.bf16.msra.mxu0 %v1345
  %2040 = vmatprep.subr.bf16.mxu0 %v1362
  %2041 = vmatpush1.bf16.msra.mxu0 %v1361
  %2042 = vmatprep.subr.bf16.mxu0 %v1378
  %2043 = vmatpush1.bf16.msra.mxu0 %v1377
  %2044 = vmatprep.subr.bf16.mxu0 %v1394
  %2045 = vmatpush1.bf16.msra.mxu0 %v1393
  %2046 = vmatprep.subr.bf16.mxu0 %v1410
  %2047 = vmatpush1.bf16.msra.mxu0 %v1409
  %2048 = vmatprep.subr.bf16.mxu0 %v1426
  %2049 = vmatpush1.bf16.msra.mxu0 %v1425
  %2050 = vmatprep.subr.bf16.mxu0 %v1442
  %2051 = vmatpush1.bf16.msra.mxu0 %v1441
  %2052 = vmatprep.subr.bf16.mxu0 %v1458
  %2053 = vmatpush1.bf16.msra.mxu0 %v1457
  %2054 = vmatprep.subr.bf16.mxu0 %v1474
  %2055 = vmatpush1.bf16.msra.mxu0 %v1473
  %2056 = vmatprep.subr.bf16.mxu0 %v1490
  %2057 = vmatpush1.bf16.msra.mxu0 %v1489
  %2058 = vmatprep.subr.bf16.mxu0 %v1506
  %2059 = vmatpush1.bf16.msra.mxu0 %v1505
  %2060 = vmatprep.subr.bf16.mxu0 %v1522
  %2061 = vmatpush1.bf16.msra.mxu0 %v1521
  %2062 = vmatprep.subr.bf16.mxu0 %v1538
  %2063 = vmatpush1.bf16.msra.mxu0 %v1537
  %2064 = vmatprep.subr.bf16.mxu0 %v1554
  %2065 = vmatpush1.bf16.msra.mxu0 %v1553
  %2066 = vmatprep.subr.bf16.mxu0 %v1570
  %2067 = vmatpush1.bf16.msra.mxu0 %v1569
  %2068 = vmatprep.mubr.bf16.mxu0 %v548
  %2069 = vmatmul.mubr.bf16.gmra.mrb[0].mxu0 %v547
  %v2070 = vpop.f32.mrb[0].mxu0
  %v2071 = vadd.f32 %v538, %v2070
  %v2072 = vpop.f32.mrb[0].mxu0
  %v2073 = vadd.f32 %v538, %v2072
  %v2074 = vpop.f32.mrb[0].mxu0
  %v2075 = vpop.f32.mrb[0].mxu0
  %2076 = vdwg.mxu0
  %2077 = vmatprep.subr.bf16.mxu0 %v1332
  %2078 = vmatpush1.bf16.msra.mxu0 %v1331
  %2079 = vmatprep.subr.bf16.mxu0 %v1348
  %2080 = vmatpush1.bf16.msra.mxu0 %v1347
  %2081 = vmatprep.subr.bf16.mxu0 %v1364
  %2082 = vmatpush1.bf16.msra.mxu0 %v1363
  %2083 = vmatprep.subr.bf16.mxu0 %v1380
  %2084 = vmatpush1.bf16.msra.mxu0 %v1379
  %2085 = vmatprep.subr.bf16.mxu0 %v1396
  %2086 = vmatpush1.bf16.msra.mxu0 %v1395
  %2087 = vmatprep.subr.bf16.mxu0 %v1412
  %2088 = vmatpush1.bf16.msra.mxu0 %v1411
  %2089 = vmatprep.subr.bf16.mxu0 %v1428
  %2090 = vmatpush1.bf16.msra.mxu0 %v1427
  %2091 = vmatprep.subr.bf16.mxu0 %v1444
  %2092 = vmatpush1.bf16.msra.mxu0 %v1443
  %2093 = vmatprep.subr.bf16.mxu0 %v1460
  %2094 = vmatpush1.bf16.msra.mxu0 %v1459
  %2095 = vmatprep.subr.bf16.mxu0 %v1476
  %2096 = vmatpush1.bf16.msra.mxu0 %v1475
  %2097 = vmatprep.subr.bf16.mxu0 %v1492
  %2098 = vmatpush1.bf16.msra.mxu0 %v1491
  %2099 = vmatprep.subr.bf16.mxu0 %v1508
  %2100 = vmatpush1.bf16.msra.mxu0 %v1507
  %2101 = vmatprep.subr.bf16.mxu0 %v1524
  %2102 = vmatpush1.bf16.msra.mxu0 %v1523
  %2103 = vmatprep.subr.bf16.mxu0 %v1540
  %2104 = vmatpush1.bf16.msra.mxu0 %v1539
  %2105 = vmatprep.subr.bf16.mxu0 %v1556
  %2106 = vmatpush1.bf16.msra.mxu0 %v1555
  %2107 = vmatprep.subr.bf16.mxu0 %v1572
  %2108 = vmatpush1.bf16.msra.mxu0 %v1571
  %2109 = vmatprep.mubr.bf16.mxu0 %v548
  %2110 = vmatmul.mubr.bf16.gmra.mrb[0].mxu0 %v547
  %v2111 = vpop.f32.mrb[0].mxu0
  %v2112 = vadd.f32 %v538, %v2111
  %v2113 = vpop.f32.mrb[0].mxu0
  %v2114 = vadd.f32 %v538, %v2113
  %v2115 = vpop.f32.mrb[0].mxu0
  %v2116 = vpop.f32.mrb[0].mxu0
  %2117 = vdwg.mxu0
  %2118 = vmatprep.subr.bf16.mxu0 %v1334
  %2119 = vmatpush1.bf16.msra.mxu0 %v1333
  %2120 = vmatprep.subr.bf16.mxu0 %v1350
  %2121 = vmatpush1.bf16.msra.mxu0 %v1349
  %2122 = vmatprep.subr.bf16.mxu0 %v1366
  %2123 = vmatpush1.bf16.msra.mxu0 %v1365
  %2124 = vmatprep.subr.bf16.mxu0 %v1382
  %2125 = vmatpush1.bf16.msra.mxu0 %v1381
  %2126 = vmatprep.subr.bf16.mxu0 %v1398
  %2127 = vmatpush1.bf16.msra.mxu0 %v1397
  %2128 = vmatprep.subr.bf16.mxu0 %v1414
  %2129 = vmatpush1.bf16.msra.mxu0 %v1413
  %2130 = vmatprep.subr.bf16.mxu0 %v1430
  %2131 = vmatpush1.bf16.msra.mxu0 %v1429
  %2132 = vmatprep.subr.bf16.mxu0 %v1446
  %2133 = vmatpush1.bf16.msra.mxu0 %v1445
  %2134 = vmatprep.subr.bf16.mxu0 %v1462
  %2135 = vmatpush1.bf16.msra.mxu0 %v1461
  %2136 = vmatprep.subr.bf16.mxu0 %v1478
  %2137 = vmatpush1.bf16.msra.mxu0 %v1477
  %2138 = vmatprep.subr.bf16.mxu0 %v1494
  %2139 = vmatpush1.bf16.msra.mxu0 %v1493
  %2140 = vmatprep.subr.bf16.mxu0 %v1510
  %2141 = vmatpush1.bf16.msra.mxu0 %v1509
  %2142 = vmatprep.subr.bf16.mxu0 %v1526
  %2143 = vmatpush1.bf16.msra.mxu0 %v1525
  %2144 = vmatprep.subr.bf16.mxu0 %v1542
  %2145 = vmatpush1.bf16.msra.mxu0 %v1541
  %2146 = vmatprep.subr.bf16.mxu0 %v1558
  %2147 = vmatpush1.bf16.msra.mxu0 %v1557
  %2148 = vmatprep.subr.bf16.mxu0 %v1574
  %2149 = vmatpush1.bf16.msra.mxu0 %v1573
  %2150 = vmatprep.mubr.bf16.mxu0 %v548
  %2151 = vmatmul.mubr.bf16.gmra.mrb[0].mxu0 %v547
  %v2152 = vpop.f32.mrb[0].mxu0
  %v2153 = vadd.f32 %v538, %v2152
  %v2154 = vpop.f32.mrb[0].mxu0
  %v2155 = vadd.f32 %v538, %v2154
  %v2156 = vpop.f32.mrb[0].mxu0
  %v2157 = vpop.f32.mrb[0].mxu0
  %2158 = vdwg.mxu0
  %v2159 = vtanh.pop %v1866
  %v2160 = vtanh.pop %v1868
  %v2161 = vtanh.pop %v1907
  %v2162 = vtanh.pop %v1909
  %v2163 = vtanh.pop %v1948
  %v2164 = vtanh.pop %v1950
  %v2165 = vtanh.pop %v1989
  %v2166 = vtanh.pop %v1991
  %v2167 = vtanh.pop %v2030
  %v2168 = vtanh.pop %v2032
  %v2169 = vtanh.pop %v2071
  %v2170 = vtanh.pop %v2073
  %v2171 = vtanh.pop %v2112
  %v2172 = vtanh.pop %v2114
  %v2173 = vtanh.pop %v2153
  %v2174 = vtanh.pop %v2155
  %v2191 = vcombine.low %v2159, %v2160
  %v2192 = vcombine.low %v2161, %v2162
  %v2193 = vcombine.low %v2163, %v2164
  %v2194 = vcombine.low %v2165, %v2166
  %v2195 = vcombine.low %v2167, %v2168
  %v2196 = vcombine.low %v2169, %v2170
  %v2197 = vcombine.low %v2171, %v2172
  %v2198 = vcombine.low %v2173, %v2174
  %2207 = vst [vmem:[%s5] sm:$0x77] %v2191
  %2208 = vst [vmem:[%s5 + $0x8] sm:$0x77] %v2192
  %2209 = vst [vmem:[%s5 + $0x10] sm:$0x77] %v2193
  %2210 = vst [vmem:[%s5 + $0x18] sm:$0x77] %v2194
  %2211 = vst [vmem:[%s5 + $0x20] sm:$0x77] %v2195
  %2212 = vst [vmem:[%s5 + $0x28] sm:$0x77] %v2196
  %2213 = vst [vmem:[%s5 + $0x30] sm:$0x77] %v2197
  %2214 = vst [vmem:[%s5 + $0x38] sm:$0x77] %v2198
  // Predicated region
  $region22: #{unet_generator_forward.19} parent=0 // pred_check
    _
  $region23: #{unet_generator_forward.19} parent=0 // pred_check_branch
    %2216 = sbr.rel (0) target = $region25
  $region24: #{unet_generator_forward.19} parent=0 // pred_region
    _
  $region25: #{unet_generator_forward.19} parent=0 // pred_fallthru
    _
  // Predicated region
  $region26: #{unet_generator_forward.19} parent=0 // pred_check
    _
  $region27: #{unet_generator_forward.19} parent=0 // pred_check_branch
    %2218 = sbr.rel (0) target = $region29
  $region28: #{unet_generator_forward.19} parent=0 // pred_region
    _
  $region29: #{unet_generator_forward.19} parent=0 // pred_fallthru
    _

</llo_original>
